<compile_context>
chip_gen: v7x
topology: tpu7x:2x2x1
jax: 0.10.0
libtpu: 0.0.40
codegen_flags: <defaults>
</compile_context>

<pallas_src>
import math

import jax
import jax.numpy as jnp
from jax import lax
from jax.experimental import pallas as pl
from jax.experimental.pallas import tpu as pltpu

# ----------------------- configuration (module defaults) --------------------
GRID_SIZE = 8
D_MODEL = 128
N_HEADS = 8
NUM_LAYERS = 4
DFF = 2048            # nn.TransformerEncoderLayer default dim_feedforward
K_SALESMEN = 2
MAX_LEN = 64
LN_EPS = 1e-5


# ------------------------------ kernel helpers -------------------------------
def _layer_norm(x, gamma, beta, eps=LN_EPS):
    mu = jnp.mean(x, axis=-1, keepdims=True)
    var = jnp.mean(jnp.square(x - mu), axis=-1, keepdims=True)
    return (x - mu) * lax.rsqrt(var + eps) * gamma + beta


# ------------- fused kernel: embed + encoder layer (pipelined) + scorer ------
def _fused_mtsp_kernel(coords_ref, pe_ref, emb_w_ref, emb_b_ref,
                       wqkv_ref, bqkv_ref, wo_ref, bo_ref,
                       ln1g_ref, ln1b_ref, w1_ref, b1_ref,
                       w2_ref, b2_ref, ln2g_ref, ln2b_ref,
                       sw1_ref, sb1_ref, sg1_ref, sbe1_ref,
                       sw2_ref, sb2_ref, sg2_ref, sbe2_ref,
                       sw3_ref, sb3_ref, o_ref, x_scr):
    B, N, _ = coords_ref.shape
    BN = B * N
    D = pe_ref.shape[-1]
    H = N_HEADS
    dh = D // H
    scale = 1.0 / math.sqrt(dh)
    l = pl.program_id(0)

    # ---- step 0: input linear (2 -> D) on the VPU + positional encoding ----
    @pl.when(l == 0)
    def _():
        c = coords_ref[...].reshape(BN, 2)                        # (BN, 2) f32
        w_emb = emb_w_ref[...]                                    # (2, D) f32
        e = (c[:, 0:1] * w_emb[0:1, :]
             + c[:, 1:2] * w_emb[1:2, :]
             + emb_b_ref[...])                                    # (BN, D) f32
        e = e.reshape(B, N, D) + pe_ref[...]                      # + PE (N, D)
        x_scr[...] = e.reshape(BN, D)

    # ---- one post-norm transformer encoder layer per grid step ----
    # TODO(synk): dropout layers are identity here (inference semantics).
    x = x_scr[...]                                                # (BN, D) f32
    xb = x.astype(jnp.bfloat16)
    qkv = jnp.dot(xb, wqkv_ref[...],
                  preferred_element_type=jnp.float32) + bqkv_ref[...]  # (BN, 3D)
    q3 = qkv[:, 0:D].reshape(B, N, D)                             # vreg-aligned slices
    k3 = qkv[:, D:2 * D].reshape(B, N, D)
    v3 = qkv[:, 2 * D:3 * D].reshape(B, N, D)

    ctx_parts = []
    for h in range(H):                                            # static unroll
        sl = slice(h * dh, (h + 1) * dh)
        qh, kh, vh = q3[..., sl], k3[..., sl], v3[..., sl]        # (B, N, dh)
        s = jnp.einsum('bqd,bkd->bqk', qh, kh,
                       preferred_element_type=jnp.float32) * scale
        m = jnp.max(s, axis=-1, keepdims=True)
        e = jnp.exp(s - m)
        p = e / jnp.sum(e, axis=-1, keepdims=True)
        ctx_parts.append(jnp.einsum('bqk,bkd->bqd', p, vh,
                                    preferred_element_type=jnp.float32))
    ctx = jnp.concatenate(ctx_parts, axis=-1).reshape(BN, D)      # one lane concat
    attn = jnp.dot(ctx.astype(jnp.bfloat16), wo_ref[...],
                   preferred_element_type=jnp.float32) + bo_ref[...]  # single W_o

    x1 = _layer_norm(x + attn, ln1g_ref[...], ln1b_ref[...])
    h1 = jnp.maximum(jnp.dot(x1.astype(jnp.bfloat16), w1_ref[...],
                             preferred_element_type=jnp.float32) + b1_ref[...], 0.0)
    ff = jnp.dot(h1.astype(jnp.bfloat16), w2_ref[...],
                 preferred_element_type=jnp.float32) + b2_ref[...]
    x_out = _layer_norm(x1 + ff, ln2g_ref[...], ln2b_ref[...])
    x_scr[...] = x_out                                            # carry to next step

    # ---- last step: route_scorer MLP + per-batch softmax over cities ----
    @pl.when(l == pl.num_programs(0) - 1)
    def _():
        s1 = jnp.dot(x_out.astype(jnp.bfloat16), sw1_ref[...],
                     preferred_element_type=jnp.float32) + sb1_ref[...]
        s1 = jnp.maximum(_layer_norm(s1, sg1_ref[...], sbe1_ref[...]), 0.0)
        s2 = jnp.dot(s1.astype(jnp.bfloat16), sw2_ref[...],
                     preferred_element_type=jnp.float32) + sb2_ref[...]
        s2 = jnp.maximum(_layer_norm(s2, sg2_ref[...], sbe2_ref[...]), 0.0)
        # 64 -> 1 score: VPU multiply + one cross-lane reduce (no width-1 matmul).
        sc = jnp.sum(s2 * sw3_ref[...], axis=-1, keepdims=True) + sb3_ref[...]
        sc = sc.reshape(B, N, 1)
        m = jnp.max(sc, axis=1, keepdims=True)                    # softmax over N
        e = jnp.exp(sc - m)
        o_ref[...] = e / jnp.sum(e, axis=1, keepdims=True)


def fused_forward(city_coords, params):
    B, N, _ = city_coords.shape
    BN = B * N
    lay = params["layers"]
    sc = params["scorer"]
    pe = params["pe"][:N]                                         # (N, D), no tile

    def full_spec(a):                                             # fetched once
        nd = a.ndim
        return pl.BlockSpec(a.shape, lambda l, _nd=nd: (0,) * _nd)

    def layer_spec(a):                                            # one layer per step
        nd = a.ndim
        return pl.BlockSpec((None,) + tuple(a.shape[1:]),
                            lambda l, _nd=nd: (l,) + (0,) * (_nd - 1))

    const_args = [city_coords, pe, params["emb_w"], params["emb_b"]]
    layer_args = [lay[n] for n in ("wqkv", "bqkv", "wo", "bo", "ln1_g", "ln1_b",
                                   "w1", "b1", "w2", "b2", "ln2_g", "ln2_b")]
    scorer_args = [sc[n] for n in ("w1", "b1", "g1", "be1",
                                   "w2", "b2", "g2", "be2", "w3", "b3")]
    args = const_args + layer_args + scorer_args
    in_specs = ([full_spec(a) for a in const_args]
                + [layer_spec(a) for a in layer_args]
                + [full_spec(a) for a in scorer_args])

    out = pl.pallas_call(
        _fused_mtsp_kernel,
        out_shape=jax.ShapeDtypeStruct((B, N, 1), jnp.float32),
        grid=(NUM_LAYERS,),
        in_specs=in_specs,
        out_specs=pl.BlockSpec((B, N, 1), lambda l: (0, 0, 0)),
        scratch_shapes=[pltpu.VMEM((BN, D_MODEL), jnp.float32)],
        compiler_params=pltpu.CompilerParams(
            dimension_semantics=("arbitrary",),
            vmem_limit_bytes=32 * 1024 * 1024),
    )(*args)
    return out[..., 0]                                            # (B, N)


# ------------------------------- parameters ----------------------------------
def _linear(key, fan_in, fan_out):
    k1, k2 = jax.random.split(key)
    lim = 1.0 / math.sqrt(fan_in)
    w = jax.random.uniform(k1, (fan_in, fan_out), jnp.float32, -lim, lim)
    b = jax.random.uniform(k2, (1, fan_out), jnp.float32, -lim, lim)
    return w, b


def _positional_encoding(max_len, d_model):
    position = jnp.arange(max_len, dtype=jnp.float32)[:, None]
    div_term = jnp.exp(jnp.arange(0, d_model, 2, dtype=jnp.float32)
                       * (-math.log(10000.0) / d_model))
    pe = jnp.zeros((max_len, d_model), jnp.float32)
    pe = pe.at[:, 0::2].set(jnp.sin(position * div_term))
    pe = pe.at[:, 1::2].set(jnp.cos(position * div_term))
    return pe


def init_params(key):
    keys = list(jax.random.split(key, 8 + 6 * NUM_LAYERS))
    ki = iter(keys)
    params = {}
    w, b = _linear(next(ki), 2, D_MODEL)
    params["emb_w"], params["emb_b"] = w, b                       # tiny: keep f32
    params["pe"] = _positional_encoding(MAX_LEN, D_MODEL)

    names = ("wqkv", "bqkv", "wo", "bo", "ln1_g", "ln1_b",
             "w1", "b1", "w2", "b2", "ln2_g", "ln2_b")
    stack = {n: [] for n in names}
    for _ in range(NUM_LAYERS):
        wq, bq = _linear(next(ki), D_MODEL, D_MODEL)
        wk, bk = _linear(next(ki), D_MODEL, D_MODEL)
        wv, bv = _linear(next(ki), D_MODEL, D_MODEL)
        wo, bo = _linear(next(ki), D_MODEL, D_MODEL)
        w1, b1 = _linear(next(ki), D_MODEL, DFF)
        w2, b2 = _linear(next(ki), DFF, D_MODEL)
        # fused QKV weight: one (D, 3D) bf16 block -> one MXU push per layer
        stack["wqkv"].append(jnp.concatenate([wq, wk, wv], axis=1).astype(jnp.bfloat16))
        stack["bqkv"].append(jnp.concatenate([bq, bk, bv], axis=1))   # f32
        stack["wo"].append(wo.astype(jnp.bfloat16)); stack["bo"].append(bo)
        stack["w1"].append(w1.astype(jnp.bfloat16)); stack["b1"].append(b1)
        stack["w2"].append(w2.astype(jnp.bfloat16)); stack["b2"].append(b2)
        stack["ln1_g"].append(jnp.ones((1, D_MODEL), jnp.float32))
        stack["ln1_b"].append(jnp.zeros((1, D_MODEL), jnp.float32))
        stack["ln2_g"].append(jnp.ones((1, D_MODEL), jnp.float32))
        stack["ln2_b"].append(jnp.zeros((1, D_MODEL), jnp.float32))
    # Stacked (L, ...) so the layer-grid BlockSpecs pipeline weight DMA.
    params["layers"] = {n: jnp.stack(v) for n, v in stack.items()}

    sc = {}
    w, b = _linear(next(ki), D_MODEL, 128)
    sc["w1"], sc["b1"] = w.astype(jnp.bfloat16), b
    sc["g1"] = jnp.ones((1, 128), jnp.float32)
    sc["be1"] = jnp.zeros((1, 128), jnp.float32)
    w, b = _linear(next(ki), 128, 64)
    sc["w2"], sc["b2"] = w.astype(jnp.bfloat16), b
    sc["g2"] = jnp.ones((1, 64), jnp.float32)
    sc["be2"] = jnp.zeros((1, 64), jnp.float32)
    w3, b3 = _linear(next(ki), 64, 1)
    sc["w3"] = jnp.transpose(w3)                                  # (1, 64) f32, VPU reduce
    sc["b3"] = b3.reshape(1, 1)
    params["scorer"] = sc

    params["depot"] = jnp.array([GRID_SIZE / 2.0, GRID_SIZE / 2.0], jnp.float32)
    return params


# -------------------------------- forward ------------------------------------
@jax.jit
def mtsp_forward(city_coords, params):
    B, N, _ = city_coords.shape
    probs = fused_forward(city_coords, params)                    # (B, N)

    # Route assembly (plain-JAX glue): one batched argsort + one batched gather.
    order = jnp.argsort(-probs, axis=-1)                          # descending per batch
    sorted_cities = jnp.take_along_axis(city_coords, order[..., None], axis=1)
    depot = jnp.broadcast_to(params["depot"][None, None, :], (B, 1, 2))
    cities_per = N // K_SALESMEN
    rem = N % K_SALESMEN
    segs = []
    start = 0
    for i in range(K_SALESMEN):
        end = start + cities_per + (1 if i < rem else 0)
        segs.append(jnp.concatenate([depot, sorted_cities[:, start:end], depot],
                                    axis=1))                      # (B, len_i + 2, 2)
        start = end
    routes = [[segs[i][b] for i in range(K_SALESMEN)] for b in range(B)]
    return probs, routes


# ---------------------------------- main --------------------------------------
if __name__ == "__main__":
    key = jax.random.PRNGKey(0)
    pkey, xkey = jax.random.split(key)
    params = init_params(pkey)

    B, N = 2, 8                                                   # batch, num cities
    city_coords = jax.random.uniform(xkey, (B, N, 2), jnp.float32,
                                     minval=0.0, maxval=float(GRID_SIZE))

    probs, routes = mtsp_forward(city_coords, params)
    jax.block_until_ready(probs)
    for br in routes:
        for r in br:
            jax.block_until_ready(r)

    assert probs.shape == (B, N)
    assert bool(jnp.all(jnp.isfinite(probs)))
    assert bool(jnp.allclose(jnp.sum(probs, axis=-1), 1.0, atol=1e-3))
    assert len(routes) == B and len(routes[0]) == K_SALESMEN
    assert routes[0][0].shape[1] == 2
    print("KERNEL_OK")
</pallas_src>

<mosaic_0001>
module attributes {stable_mosaic.version = 11 : i64} {
  func.func @_fused_mtsp_kernel(%arg0: i32, %arg1: memref<2x8x2xf32, #tpu.memory_space<vmem>>, %arg2: memref<8x128xf32, #tpu.memory_space<vmem>>, %arg3: memref<2x128xf32, #tpu.memory_space<vmem>>, %arg4: memref<1x128xf32, #tpu.memory_space<vmem>>, %arg5: memref<1x128x384xbf16, #tpu.memory_space<vmem>>, %arg6: memref<1x1x384xf32, #tpu.memory_space<vmem>>, %arg7: memref<1x128x128xbf16, #tpu.memory_space<vmem>>, %arg8: memref<1x1x128xf32, #tpu.memory_space<vmem>>, %arg9: memref<1x1x128xf32, #tpu.memory_space<vmem>>, %arg10: memref<1x1x128xf32, #tpu.memory_space<vmem>>, %arg11: memref<1x128x2048xbf16, #tpu.memory_space<vmem>>, %arg12: memref<1x1x2048xf32, #tpu.memory_space<vmem>>, %arg13: memref<1x2048x128xbf16, #tpu.memory_space<vmem>>, %arg14: memref<1x1x128xf32, #tpu.memory_space<vmem>>, %arg15: memref<1x1x128xf32, #tpu.memory_space<vmem>>, %arg16: memref<1x1x128xf32, #tpu.memory_space<vmem>>, %arg17: memref<128x128xbf16, #tpu.memory_space<vmem>>, %arg18: memref<1x128xf32, #tpu.memory_space<vmem>>, %arg19: memref<1x128xf32, #tpu.memory_space<vmem>>, %arg20: memref<1x128xf32, #tpu.memory_space<vmem>>, %arg21: memref<128x64xbf16, #tpu.memory_space<vmem>>, %arg22: memref<1x64xf32, #tpu.memory_space<vmem>>, %arg23: memref<1x64xf32, #tpu.memory_space<vmem>>, %arg24: memref<1x64xf32, #tpu.memory_space<vmem>>, %arg25: memref<1x64xf32, #tpu.memory_space<vmem>>, %arg26: memref<1x1xf32, #tpu.memory_space<vmem>>, %arg27: memref<2x8x1xf32, #tpu.memory_space<vmem>>, %arg28: memref<16x128xf32, #tpu.memory_space<vmem>>) attributes {dimension_semantics = [#tpu.dimension_semantics<arbitrary>], iteration_bounds = array<i64: 4>, scalar_prefetch = 0 : i64, scratch_operands = 1 : i64, tpu.core_type = #tpu.core_type<tc>, window_params = [{pipeline_mode = #tpu.pipeline_mode<synchronous>, transform_indices = @transform_0, window_bounds = array<i64: 2, 8, 2>}, {pipeline_mode = #tpu.pipeline_mode<synchronous>, transform_indices = @transform_1, window_bounds = array<i64: 8, 128>}, {pipeline_mode = #tpu.pipeline_mode<synchronous>, transform_indices = @transform_2, window_bounds = array<i64: 2, 128>}, {pipeline_mode = #tpu.pipeline_mode<synchronous>, transform_indices = @transform_3, window_bounds = array<i64: 1, 128>}, {transform_indices = @transform_4, window_bounds = array<i64: 1, 128, 384>}, {transform_indices = @transform_5, window_bounds = array<i64: 1, 1, 384>}, {transform_indices = @transform_6, window_bounds = array<i64: 1, 128, 128>}, {transform_indices = @transform_7, window_bounds = array<i64: 1, 1, 128>}, {transform_indices = @transform_8, window_bounds = array<i64: 1, 1, 128>}, {transform_indices = @transform_9, window_bounds = array<i64: 1, 1, 128>}, {transform_indices = @transform_10, window_bounds = array<i64: 1, 128, 2048>}, {transform_indices = @transform_11, window_bounds = array<i64: 1, 1, 2048>}, {transform_indices = @transform_12, window_bounds = array<i64: 1, 2048, 128>}, {transform_indices = @transform_13, window_bounds = array<i64: 1, 1, 128>}, {transform_indices = @transform_14, window_bounds = array<i64: 1, 1, 128>}, {transform_indices = @transform_15, window_bounds = array<i64: 1, 1, 128>}, {pipeline_mode = #tpu.pipeline_mode<synchronous>, transform_indices = @transform_16, window_bounds = array<i64: 128, 128>}, {pipeline_mode = #tpu.pipeline_mode<synchronous>, transform_indices = @transform_17, window_bounds = array<i64: 1, 128>}, {pipeline_mode = #tpu.pipeline_mode<synchronous>, transform_indices = @transform_18, window_bounds = array<i64: 1, 128>}, {pipeline_mode = #tpu.pipeline_mode<synchronous>, transform_indices = @transform_19, window_bounds = array<i64: 1, 128>}, {pipeline_mode = #tpu.pipeline_mode<synchronous>, transform_indices = @transform_20, window_bounds = array<i64: 128, 64>}, {pipeline_mode = #tpu.pipeline_mode<synchronous>, transform_indices = @transform_21, window_bounds = array<i64: 1, 64>}, {pipeline_mode = #tpu.pipeline_mode<synchronous>, transform_indices = @transform_22, window_bounds = array<i64: 1, 64>}, {pipeline_mode = #tpu.pipeline_mode<synchronous>, transform_indices = @transform_23, window_bounds = array<i64: 1, 64>}, {pipeline_mode = #tpu.pipeline_mode<synchronous>, transform_indices = @transform_24, window_bounds = array<i64: 1, 64>}, {pipeline_mode = #tpu.pipeline_mode<synchronous>, transform_indices = @transform_25, window_bounds = array<i64: 1, 1>}, {pipeline_mode = #tpu.pipeline_mode<synchronous>, transform_indices = @transform_26, window_bounds = array<i64: 2, 8, 1>}]} {
    %c0_i32 = arith.constant 0 : i32
    %0 = arith.cmpi eq, %arg0, %c0_i32 : i32
    %1 = arith.extui %0 : i1 to i32
    %c0_i32_0 = arith.constant 0 : i32
    %2 = arith.cmpi ne, %1, %c0_i32_0 : i32
    scf.if %2 {
      %c0_95 = arith.constant 0 : index
      %c0_96 = arith.constant 0 : index
      %c0_97 = arith.constant 0 : index
      %232 = vector.load %arg1[%c0_95, %c0_96, %c0_97] : memref<2x8x2xf32, #tpu.memory_space<vmem>>, vector<2x8x2xf32>
      %233 = vector.shape_cast %232 : vector<2x8x2xf32> to vector<16x2xf32>
      %c0_98 = arith.constant 0 : index
      %c0_99 = arith.constant 0 : index
      %234 = vector.load %arg3[%c0_98, %c0_99] : memref<2x128xf32, #tpu.memory_space<vmem>>, vector<2x128xf32>
      %235 = vector.extract_strided_slice %233 {offsets = [0, 0], sizes = [16, 1], strides = [1, 1]} : vector<16x2xf32> to vector<16x1xf32>
      %236 = vector.extract_strided_slice %234 {offsets = [0, 0], sizes = [1, 128], strides = [1, 1]} : vector<2x128xf32> to vector<1x128xf32>
      %237 = vector.broadcast %235 : vector<16x1xf32> to vector<16x128xf32>
      %238 = vector.broadcast %236 : vector<1x128xf32> to vector<16x128xf32>
      %239 = arith.mulf %237, %238 : vector<16x128xf32>
      %240 = vector.extract_strided_slice %233 {offsets = [0, 1], sizes = [16, 1], strides = [1, 1]} : vector<16x2xf32> to vector<16x1xf32>
      %241 = vector.extract_strided_slice %234 {offsets = [1, 0], sizes = [1, 128], strides = [1, 1]} : vector<2x128xf32> to vector<1x128xf32>
      %242 = vector.broadcast %240 : vector<16x1xf32> to vector<16x128xf32>
      %243 = vector.broadcast %241 : vector<1x128xf32> to vector<16x128xf32>
      %244 = arith.mulf %242, %243 : vector<16x128xf32>
      %245 = arith.addf %239, %244 : vector<16x128xf32>
      %c0_100 = arith.constant 0 : index
      %c0_101 = arith.constant 0 : index
      %246 = vector.load %arg4[%c0_100, %c0_101] : memref<1x128xf32, #tpu.memory_space<vmem>>, vector<1x128xf32>
      %247 = vector.broadcast %246 : vector<1x128xf32> to vector<16x128xf32>
      %248 = arith.addf %245, %247 : vector<16x128xf32>
      %249 = vector.shape_cast %248 : vector<16x128xf32> to vector<2x8x128xf32>
      %c0_102 = arith.constant 0 : index
      %c0_103 = arith.constant 0 : index
      %250 = vector.load %arg2[%c0_102, %c0_103] : memref<8x128xf32, #tpu.memory_space<vmem>>, vector<8x128xf32>
      %251 = vector.shape_cast %250 : vector<8x128xf32> to vector<1x8x128xf32>
      %252 = vector.broadcast %251 : vector<1x8x128xf32> to vector<2x8x128xf32>
      %253 = arith.addf %249, %252 : vector<2x8x128xf32>
      %254 = vector.shape_cast %253 : vector<2x8x128xf32> to vector<16x128xf32>
      %c0_104 = arith.constant 0 : index
      %c0_105 = arith.constant 0 : index
      %255 = vector.load %arg28[%c0_104, %c0_105] : memref<16x128xf32, #tpu.memory_space<vmem>>, vector<16x128xf32>
      tpu.vector_store %arg28[%c0_104, %c0_105], %254 {strides = array<i32>} : memref<16x128xf32, #tpu.memory_space<vmem>>, vector<16x128xf32>,
    } else {
    }
    %c0 = arith.constant 0 : index
    %c0_1 = arith.constant 0 : index
    %3 = vector.load %arg28[%c0, %c0_1] : memref<16x128xf32, #tpu.memory_space<vmem>>, vector<16x128xf32>
    %4 = arith.truncf %3 : vector<16x128xf32> to vector<16x128xbf16>
    %c0_2 = arith.constant 0 : index
    %c0_3 = arith.constant 0 : index
    %c0_4 = arith.constant 0 : index
    %5 = vector.load %arg5[%c0_2, %c0_3, %c0_4] : memref<1x128x384xbf16, #tpu.memory_space<vmem>>, vector<1x128x384xbf16>
    %6 = vector.shape_cast %5 : vector<1x128x384xbf16> to vector<128x384xbf16>
    %cst = arith.constant dense<0.000000e+00> : vector<16x384xf32>
    %7 = tpu.matmul %4, %6, %cst {dimension_numbers = #tpu.dot_dimension_numbers<[1], [0], [0], [1], [0, 0, 1, 1], [], []>} : vector<16x128xbf16>, vector<128x384xbf16>, vector<16x384xf32> -> vector<16x384xf32>
    %c0_5 = arith.constant 0 : index
    %c0_6 = arith.constant 0 : index
    %c0_7 = arith.constant 0 : index
    %8 = vector.load %arg6[%c0_5, %c0_6, %c0_7] : memref<1x1x384xf32, #tpu.memory_space<vmem>>, vector<1x1x384xf32>
    %9 = vector.shape_cast %8 : vector<1x1x384xf32> to vector<1x384xf32>
    %10 = vector.broadcast %9 : vector<1x384xf32> to vector<16x384xf32>
    %11 = arith.addf %7, %10 : vector<16x384xf32>
    %12 = vector.extract_strided_slice %11 {offsets = [0, 0], sizes = [16, 128], strides = [1, 1]} : vector<16x384xf32> to vector<16x128xf32>
    %13 = vector.shape_cast %12 : vector<16x128xf32> to vector<2x8x128xf32>
    %14 = vector.extract_strided_slice %11 {offsets = [0, 128], sizes = [16, 128], strides = [1, 1]} : vector<16x384xf32> to vector<16x128xf32>
    %15 = vector.shape_cast %14 : vector<16x128xf32> to vector<2x8x128xf32>
    %16 = vector.extract_strided_slice %11 {offsets = [0, 256], sizes = [16, 128], strides = [1, 1]} : vector<16x384xf32> to vector<16x128xf32>
    %17 = vector.shape_cast %16 : vector<16x128xf32> to vector<2x8x128xf32>
    %18 = vector.extract_strided_slice %13 {offsets = [0, 0, 0], sizes = [2, 8, 16], strides = [1, 1, 1]} : vector<2x8x128xf32> to vector<2x8x16xf32>
    %19 = vector.extract_strided_slice %15 {offsets = [0, 0, 0], sizes = [2, 8, 16], strides = [1, 1, 1]} : vector<2x8x128xf32> to vector<2x8x16xf32>
    %20 = vector.extract_strided_slice %17 {offsets = [0, 0, 0], sizes = [2, 8, 16], strides = [1, 1, 1]} : vector<2x8x128xf32> to vector<2x8x16xf32>
    "tpu.trace_start"() <{level = 10 : i32, message = "bqd,bkd->bqk"}> : () -> ()
    %cst_8 = arith.constant dense<0.000000e+00> : vector<2x8x8xf32>
    %21 = tpu.matmul %18, %19, %cst_8 {dimension_numbers = #tpu.dot_dimension_numbers<[2], [2], [1], [1], [0, 0, 0, 1, 1, 1], [0], [0]>} : vector<2x8x16xf32>, vector<2x8x16xf32>, vector<2x8x8xf32> -> vector<2x8x8xf32>
    "tpu.trace_stop"() : () -> ()
    %cst_9 = arith.constant 2.500000e-01 : f32
    %22 = vector.broadcast %cst_9 : f32 to vector<2x8x8xf32>
    %23 = arith.mulf %21, %22 : vector<2x8x8xf32>
    %cst_10 = arith.constant dense<0xFF800000> : vector<2x8xf32>
    %24 = vector.multi_reduction <maximumf>, %23, %cst_10 [2] : vector<2x8x8xf32> to vector<2x8xf32>
    %25 = vector.shape_cast %24 : vector<2x8xf32> to vector<2x8x1xf32>
    %26 = vector.broadcast %25 : vector<2x8x1xf32> to vector<2x8x8xf32>
    %27 = arith.subf %23, %26 : vector<2x8x8xf32>
    %28 = math.exp %27 : vector<2x8x8xf32>
    %cst_11 = arith.constant dense<0.000000e+00> : vector<2x8xf32>
    %29 = vector.multi_reduction <add>, %28, %cst_11 [2] : vector<2x8x8xf32> to vector<2x8xf32>
    %30 = vector.shape_cast %29 : vector<2x8xf32> to vector<2x8x1xf32>
    %31 = vector.broadcast %30 : vector<2x8x1xf32> to vector<2x8x8xf32>
    %32 = arith.divf %28, %31 : vector<2x8x8xf32>
    "tpu.trace_start"() <{level = 10 : i32, message = "bqk,bkd->bqd"}> : () -> ()
    %cst_12 = arith.constant dense<0.000000e+00> : vector<2x8x16xf32>
    %33 = tpu.matmul %32, %20, %cst_12 {dimension_numbers = #tpu.dot_dimension_numbers<[2], [1], [1], [2], [0, 0, 0, 1, 1, 2], [0], [0]>} : vector<2x8x8xf32>, vector<2x8x16xf32>, vector<2x8x16xf32> -> vector<2x8x16xf32>
    "tpu.trace_stop"() : () -> ()
    %34 = vector.extract_strided_slice %13 {offsets = [0, 0, 16], sizes = [2, 8, 16], strides = [1, 1, 1]} : vector<2x8x128xf32> to vector<2x8x16xf32>
    %35 = vector.extract_strided_slice %15 {offsets = [0, 0, 16], sizes = [2, 8, 16], strides = [1, 1, 1]} : vector<2x8x128xf32> to vector<2x8x16xf32>
    %36 = vector.extract_strided_slice %17 {offsets = [0, 0, 16], sizes = [2, 8, 16], strides = [1, 1, 1]} : vector<2x8x128xf32> to vector<2x8x16xf32>
    "tpu.trace_start"() <{level = 10 : i32, message = "bqd,bkd->bqk"}> : () -> ()
    %cst_13 = arith.constant dense<0.000000e+00> : vector<2x8x8xf32>
    %37 = tpu.matmul %34, %35, %cst_13 {dimension_numbers = #tpu.dot_dimension_numbers<[2], [2], [1], [1], [0, 0, 0, 1, 1, 1], [0], [0]>} : vector<2x8x16xf32>, vector<2x8x16xf32>, vector<2x8x8xf32> -> vector<2x8x8xf32>
    "tpu.trace_stop"() : () -> ()
    %cst_14 = arith.constant 2.500000e-01 : f32
    %38 = vector.broadcast %cst_14 : f32 to vector<2x8x8xf32>
    %39 = arith.mulf %37, %38 : vector<2x8x8xf32>
    %cst_15 = arith.constant dense<0xFF800000> : vector<2x8xf32>
    %40 = vector.multi_reduction <maximumf>, %39, %cst_15 [2] : vector<2x8x8xf32> to vector<2x8xf32>
    %41 = vector.shape_cast %40 : vector<2x8xf32> to vector<2x8x1xf32>
    %42 = vector.broadcast %41 : vector<2x8x1xf32> to vector<2x8x8xf32>
    %43 = arith.subf %39, %42 : vector<2x8x8xf32>
    %44 = math.exp %43 : vector<2x8x8xf32>
    %cst_16 = arith.constant dense<0.000000e+00> : vector<2x8xf32>
    %45 = vector.multi_reduction <add>, %44, %cst_16 [2] : vector<2x8x8xf32> to vector<2x8xf32>
    %46 = vector.shape_cast %45 : vector<2x8xf32> to vector<2x8x1xf32>
    %47 = vector.broadcast %46 : vector<2x8x1xf32> to vector<2x8x8xf32>
    %48 = arith.divf %44, %47 : vector<2x8x8xf32>
    "tpu.trace_start"() <{level = 10 : i32, message = "bqk,bkd->bqd"}> : () -> ()
    %cst_17 = arith.constant dense<0.000000e+00> : vector<2x8x16xf32>
    %49 = tpu.matmul %48, %36, %cst_17 {dimension_numbers = #tpu.dot_dimension_numbers<[2], [1], [1], [2], [0, 0, 0, 1, 1, 2], [0], [0]>} : vector<2x8x8xf32>, vector<2x8x16xf32>, vector<2x8x16xf32> -> vector<2x8x16xf32>
    "tpu.trace_stop"() : () -> ()
    %50 = vector.extract_strided_slice %13 {offsets = [0, 0, 32], sizes = [2, 8, 16], strides = [1, 1, 1]} : vector<2x8x128xf32> to vector<2x8x16xf32>
    %51 = vector.extract_strided_slice %15 {offsets = [0, 0, 32], sizes = [2, 8, 16], strides = [1, 1, 1]} : vector<2x8x128xf32> to vector<2x8x16xf32>
    %52 = vector.extract_strided_slice %17 {offsets = [0, 0, 32], sizes = [2, 8, 16], strides = [1, 1, 1]} : vector<2x8x128xf32> to vector<2x8x16xf32>
    "tpu.trace_start"() <{level = 10 : i32, message = "bqd,bkd->bqk"}> : () -> ()
    %cst_18 = arith.constant dense<0.000000e+00> : vector<2x8x8xf32>
    %53 = tpu.matmul %50, %51, %cst_18 {dimension_numbers = #tpu.dot_dimension_numbers<[2], [2], [1], [1], [0, 0, 0, 1, 1, 1], [0], [0]>} : vector<2x8x16xf32>, vector<2x8x16xf32>, vector<2x8x8xf32> -> vector<2x8x8xf32>
    "tpu.trace_stop"() : () -> ()
    %cst_19 = arith.constant 2.500000e-01 : f32
    %54 = vector.broadcast %cst_19 : f32 to vector<2x8x8xf32>
    %55 = arith.mulf %53, %54 : vector<2x8x8xf32>
    %cst_20 = arith.constant dense<0xFF800000> : vector<2x8xf32>
    %56 = vector.multi_reduction <maximumf>, %55, %cst_20 [2] : vector<2x8x8xf32> to vector<2x8xf32>
    %57 = vector.shape_cast %56 : vector<2x8xf32> to vector<2x8x1xf32>
    %58 = vector.broadcast %57 : vector<2x8x1xf32> to vector<2x8x8xf32>
    %59 = arith.subf %55, %58 : vector<2x8x8xf32>
    %60 = math.exp %59 : vector<2x8x8xf32>
    %cst_21 = arith.constant dense<0.000000e+00> : vector<2x8xf32>
    %61 = vector.multi_reduction <add>, %60, %cst_21 [2] : vector<2x8x8xf32> to vector<2x8xf32>
    %62 = vector.shape_cast %61 : vector<2x8xf32> to vector<2x8x1xf32>
    %63 = vector.broadcast %62 : vector<2x8x1xf32> to vector<2x8x8xf32>
    %64 = arith.divf %60, %63 : vector<2x8x8xf32>
    "tpu.trace_start"() <{level = 10 : i32, message = "bqk,bkd->bqd"}> : () -> ()
    %cst_22 = arith.constant dense<0.000000e+00> : vector<2x8x16xf32>
    %65 = tpu.matmul %64, %52, %cst_22 {dimension_numbers = #tpu.dot_dimension_numbers<[2], [1], [1], [2], [0, 0, 0, 1, 1, 2], [0], [0]>} : vector<2x8x8xf32>, vector<2x8x16xf32>, vector<2x8x16xf32> -> vector<2x8x16xf32>
    "tpu.trace_stop"() : () -> ()
    %66 = vector.extract_strided_slice %13 {offsets = [0, 0, 48], sizes = [2, 8, 16], strides = [1, 1, 1]} : vector<2x8x128xf32> to vector<2x8x16xf32>
    %67 = vector.extract_strided_slice %15 {offsets = [0, 0, 48], sizes = [2, 8, 16], strides = [1, 1, 1]} : vector<2x8x128xf32> to vector<2x8x16xf32>
    %68 = vector.extract_strided_slice %17 {offsets = [0, 0, 48], sizes = [2, 8, 16], strides = [1, 1, 1]} : vector<2x8x128xf32> to vector<2x8x16xf32>
    "tpu.trace_start"() <{level = 10 : i32, message = "bqd,bkd->bqk"}> : () -> ()
    %cst_23 = arith.constant dense<0.000000e+00> : vector<2x8x8xf32>
    %69 = tpu.matmul %66, %67, %cst_23 {dimension_numbers = #tpu.dot_dimension_numbers<[2], [2], [1], [1], [0, 0, 0, 1, 1, 1], [0], [0]>} : vector<2x8x16xf32>, vector<2x8x16xf32>, vector<2x8x8xf32> -> vector<2x8x8xf32>
    "tpu.trace_stop"() : () -> ()
    %cst_24 = arith.constant 2.500000e-01 : f32
    %70 = vector.broadcast %cst_24 : f32 to vector<2x8x8xf32>
    %71 = arith.mulf %69, %70 : vector<2x8x8xf32>
    %cst_25 = arith.constant dense<0xFF800000> : vector<2x8xf32>
    %72 = vector.multi_reduction <maximumf>, %71, %cst_25 [2] : vector<2x8x8xf32> to vector<2x8xf32>
    %73 = vector.shape_cast %72 : vector<2x8xf32> to vector<2x8x1xf32>
    %74 = vector.broadcast %73 : vector<2x8x1xf32> to vector<2x8x8xf32>
    %75 = arith.subf %71, %74 : vector<2x8x8xf32>
    %76 = math.exp %75 : vector<2x8x8xf32>
    %cst_26 = arith.constant dense<0.000000e+00> : vector<2x8xf32>
    %77 = vector.multi_reduction <add>, %76, %cst_26 [2] : vector<2x8x8xf32> to vector<2x8xf32>
    %78 = vector.shape_cast %77 : vector<2x8xf32> to vector<2x8x1xf32>
    %79 = vector.broadcast %78 : vector<2x8x1xf32> to vector<2x8x8xf32>
    %80 = arith.divf %76, %79 : vector<2x8x8xf32>
    "tpu.trace_start"() <{level = 10 : i32, message = "bqk,bkd->bqd"}> : () -> ()
    %cst_27 = arith.constant dense<0.000000e+00> : vector<2x8x16xf32>
    %81 = tpu.matmul %80, %68, %cst_27 {dimension_numbers = #tpu.dot_dimension_numbers<[2], [1], [1], [2], [0, 0, 0, 1, 1, 2], [0], [0]>} : vector<2x8x8xf32>, vector<2x8x16xf32>, vector<2x8x16xf32> -> vector<2x8x16xf32>
    "tpu.trace_stop"() : () -> ()
    %82 = vector.extract_strided_slice %13 {offsets = [0, 0, 64], sizes = [2, 8, 16], strides = [1, 1, 1]} : vector<2x8x128xf32> to vector<2x8x16xf32>
    %83 = vector.extract_strided_slice %15 {offsets = [0, 0, 64], sizes = [2, 8, 16], strides = [1, 1, 1]} : vector<2x8x128xf32> to vector<2x8x16xf32>
    %84 = vector.extract_strided_slice %17 {offsets = [0, 0, 64], sizes = [2, 8, 16], strides = [1, 1, 1]} : vector<2x8x128xf32> to vector<2x8x16xf32>
    "tpu.trace_start"() <{level = 10 : i32, message = "bqd,bkd->bqk"}> : () -> ()
    %cst_28 = arith.constant dense<0.000000e+00> : vector<2x8x8xf32>
    %85 = tpu.matmul %82, %83, %cst_28 {dimension_numbers = #tpu.dot_dimension_numbers<[2], [2], [1], [1], [0, 0, 0, 1, 1, 1], [0], [0]>} : vector<2x8x16xf32>, vector<2x8x16xf32>, vector<2x8x8xf32> -> vector<2x8x8xf32>
    "tpu.trace_stop"() : () -> ()
    %cst_29 = arith.constant 2.500000e-01 : f32
    %86 = vector.broadcast %cst_29 : f32 to vector<2x8x8xf32>
    %87 = arith.mulf %85, %86 : vector<2x8x8xf32>
    %cst_30 = arith.constant dense<0xFF800000> : vector<2x8xf32>
    %88 = vector.multi_reduction <maximumf>, %87, %cst_30 [2] : vector<2x8x8xf32> to vector<2x8xf32>
    %89 = vector.shape_cast %88 : vector<2x8xf32> to vector<2x8x1xf32>
    %90 = vector.broadcast %89 : vector<2x8x1xf32> to vector<2x8x8xf32>
    %91 = arith.subf %87, %90 : vector<2x8x8xf32>
    %92 = math.exp %91 : vector<2x8x8xf32>
    %cst_31 = arith.constant dense<0.000000e+00> : vector<2x8xf32>
    %93 = vector.multi_reduction <add>, %92, %cst_31 [2] : vector<2x8x8xf32> to vector<2x8xf32>
    %94 = vector.shape_cast %93 : vector<2x8xf32> to vector<2x8x1xf32>
    %95 = vector.broadcast %94 : vector<2x8x1xf32> to vector<2x8x8xf32>
    %96 = arith.divf %92, %95 : vector<2x8x8xf32>
    "tpu.trace_start"() <{level = 10 : i32, message = "bqk,bkd->bqd"}> : () -> ()
    %cst_32 = arith.constant dense<0.000000e+00> : vector<2x8x16xf32>
    %97 = tpu.matmul %96, %84, %cst_32 {dimension_numbers = #tpu.dot_dimension_numbers<[2], [1], [1], [2], [0, 0, 0, 1, 1, 2], [0], [0]>} : vector<2x8x8xf32>, vector<2x8x16xf32>, vector<2x8x16xf32> -> vector<2x8x16xf32>
    "tpu.trace_stop"() : () -> ()
    %98 = vector.extract_strided_slice %13 {offsets = [0, 0, 80], sizes = [2, 8, 16], strides = [1, 1, 1]} : vector<2x8x128xf32> to vector<2x8x16xf32>
    %99 = vector.extract_strided_slice %15 {offsets = [0, 0, 80], sizes = [2, 8, 16], strides = [1, 1, 1]} : vector<2x8x128xf32> to vector<2x8x16xf32>
    %100 = vector.extract_strided_slice %17 {offsets = [0, 0, 80], sizes = [2, 8, 16], strides = [1, 1, 1]} : vector<2x8x128xf32> to vector<2x8x16xf32>
    "tpu.trace_start"() <{level = 10 : i32, message = "bqd,bkd->bqk"}> : () -> ()
    %cst_33 = arith.constant dense<0.000000e+00> : vector<2x8x8xf32>
    %101 = tpu.matmul %98, %99, %cst_33 {dimension_numbers = #tpu.dot_dimension_numbers<[2], [2], [1], [1], [0, 0, 0, 1, 1, 1], [0], [0]>} : vector<2x8x16xf32>, vector<2x8x16xf32>, vector<2x8x8xf32> -> vector<2x8x8xf32>
    "tpu.trace_stop"() : () -> ()
    %cst_34 = arith.constant 2.500000e-01 : f32
    %102 = vector.broadcast %cst_34 : f32 to vector<2x8x8xf32>
    %103 = arith.mulf %101, %102 : vector<2x8x8xf32>
    %cst_35 = arith.constant dense<0xFF800000> : vector<2x8xf32>
    %104 = vector.multi_reduction <maximumf>, %103, %cst_35 [2] : vector<2x8x8xf32> to vector<2x8xf32>
    %105 = vector.shape_cast %104 : vector<2x8xf32> to vector<2x8x1xf32>
    %106 = vector.broadcast %105 : vector<2x8x1xf32> to vector<2x8x8xf32>
    %107 = arith.subf %103, %106 : vector<2x8x8xf32>
    %108 = math.exp %107 : vector<2x8x8xf32>
    %cst_36 = arith.constant dense<0.000000e+00> : vector<2x8xf32>
    %109 = vector.multi_reduction <add>, %108, %cst_36 [2] : vector<2x8x8xf32> to vector<2x8xf32>
    %110 = vector.shape_cast %109 : vector<2x8xf32> to vector<2x8x1xf32>
    %111 = vector.broadcast %110 : vector<2x8x1xf32> to vector<2x8x8xf32>
    %112 = arith.divf %108, %111 : vector<2x8x8xf32>
    "tpu.trace_start"() <{level = 10 : i32, message = "bqk,bkd->bqd"}> : () -> ()
    %cst_37 = arith.constant dense<0.000000e+00> : vector<2x8x16xf32>
    %113 = tpu.matmul %112, %100, %cst_37 {dimension_numbers = #tpu.dot_dimension_numbers<[2], [1], [1], [2], [0, 0, 0, 1, 1, 2], [0], [0]>} : vector<2x8x8xf32>, vector<2x8x16xf32>, vector<2x8x16xf32> -> vector<2x8x16xf32>
    "tpu.trace_stop"() : () -> ()
    %114 = vector.extract_strided_slice %13 {offsets = [0, 0, 96], sizes = [2, 8, 16], strides = [1, 1, 1]} : vector<2x8x128xf32> to vector<2x8x16xf32>
    %115 = vector.extract_strided_slice %15 {offsets = [0, 0, 96], sizes = [2, 8, 16], strides = [1, 1, 1]} : vector<2x8x128xf32> to vector<2x8x16xf32>
    %116 = vector.extract_strided_slice %17 {offsets = [0, 0, 96], sizes = [2, 8, 16], strides = [1, 1, 1]} : vector<2x8x128xf32> to vector<2x8x16xf32>
    "tpu.trace_start"() <{level = 10 : i32, message = "bqd,bkd->bqk"}> : () -> ()
    %cst_38 = arith.constant dense<0.000000e+00> : vector<2x8x8xf32>
    %117 = tpu.matmul %114, %115, %cst_38 {dimension_numbers = #tpu.dot_dimension_numbers<[2], [2], [1], [1], [0, 0, 0, 1, 1, 1], [0], [0]>} : vector<2x8x16xf32>, vector<2x8x16xf32>, vector<2x8x8xf32> -> vector<2x8x8xf32>
    "tpu.trace_stop"() : () -> ()
    %cst_39 = arith.constant 2.500000e-01 : f32
    %118 = vector.broadcast %cst_39 : f32 to vector<2x8x8xf32>
    %119 = arith.mulf %117, %118 : vector<2x8x8xf32>
    %cst_40 = arith.constant dense<0xFF800000> : vector<2x8xf32>
    %120 = vector.multi_reduction <maximumf>, %119, %cst_40 [2] : vector<2x8x8xf32> to vector<2x8xf32>
    %121 = vector.shape_cast %120 : vector<2x8xf32> to vector<2x8x1xf32>
    %122 = vector.broadcast %121 : vector<2x8x1xf32> to vector<2x8x8xf32>
    %123 = arith.subf %119, %122 : vector<2x8x8xf32>
    %124 = math.exp %123 : vector<2x8x8xf32>
    %cst_41 = arith.constant dense<0.000000e+00> : vector<2x8xf32>
    %125 = vector.multi_reduction <add>, %124, %cst_41 [2] : vector<2x8x8xf32> to vector<2x8xf32>
    %126 = vector.shape_cast %125 : vector<2x8xf32> to vector<2x8x1xf32>
    %127 = vector.broadcast %126 : vector<2x8x1xf32> to vector<2x8x8xf32>
    %128 = arith.divf %124, %127 : vector<2x8x8xf32>
    "tpu.trace_start"() <{level = 10 : i32, message = "bqk,bkd->bqd"}> : () -> ()
    %cst_42 = arith.constant dense<0.000000e+00> : vector<2x8x16xf32>
    %129 = tpu.matmul %128, %116, %cst_42 {dimension_numbers = #tpu.dot_dimension_numbers<[2], [1], [1], [2], [0, 0, 0, 1, 1, 2], [0], [0]>} : vector<2x8x8xf32>, vector<2x8x16xf32>, vector<2x8x16xf32> -> vector<2x8x16xf32>
    "tpu.trace_stop"() : () -> ()
    %130 = vector.extract_strided_slice %13 {offsets = [0, 0, 112], sizes = [2, 8, 16], strides = [1, 1, 1]} : vector<2x8x128xf32> to vector<2x8x16xf32>
    %131 = vector.extract_strided_slice %15 {offsets = [0, 0, 112], sizes = [2, 8, 16], strides = [1, 1, 1]} : vector<2x8x128xf32> to vector<2x8x16xf32>
    %132 = vector.extract_strided_slice %17 {offsets = [0, 0, 112], sizes = [2, 8, 16], strides = [1, 1, 1]} : vector<2x8x128xf32> to vector<2x8x16xf32>
    "tpu.trace_start"() <{level = 10 : i32, message = "bqd,bkd->bqk"}> : () -> ()
    %cst_43 = arith.constant dense<0.000000e+00> : vector<2x8x8xf32>
    %133 = tpu.matmul %130, %131, %cst_43 {dimension_numbers = #tpu.dot_dimension_numbers<[2], [2], [1], [1], [0, 0, 0, 1, 1, 1], [0], [0]>} : vector<2x8x16xf32>, vector<2x8x16xf32>, vector<2x8x8xf32> -> vector<2x8x8xf32>
    "tpu.trace_stop"() : () -> ()
    %cst_44 = arith.constant 2.500000e-01 : f32
    %134 = vector.broadcast %cst_44 : f32 to vector<2x8x8xf32>
    %135 = arith.mulf %133, %134 : vector<2x8x8xf32>
    %cst_45 = arith.constant dense<0xFF800000> : vector<2x8xf32>
    %136 = vector.multi_reduction <maximumf>, %135, %cst_45 [2] : vector<2x8x8xf32> to vector<2x8xf32>
    %137 = vector.shape_cast %136 : vector<2x8xf32> to vector<2x8x1xf32>
    %138 = vector.broadcast %137 : vector<2x8x1xf32> to vector<2x8x8xf32>
    %139 = arith.subf %135, %138 : vector<2x8x8xf32>
    %140 = math.exp %139 : vector<2x8x8xf32>
    %cst_46 = arith.constant dense<0.000000e+00> : vector<2x8xf32>
    %141 = vector.multi_reduction <add>, %140, %cst_46 [2] : vector<2x8x8xf32> to vector<2x8xf32>
    %142 = vector.shape_cast %141 : vector<2x8xf32> to vector<2x8x1xf32>
    %143 = vector.broadcast %142 : vector<2x8x1xf32> to vector<2x8x8xf32>
    %144 = arith.divf %140, %143 : vector<2x8x8xf32>
    "tpu.trace_start"() <{level = 10 : i32, message = "bqk,bkd->bqd"}> : () -> ()
    %cst_47 = arith.constant dense<0.000000e+00> : vector<2x8x16xf32>
    %145 = tpu.matmul %144, %132, %cst_47 {dimension_numbers = #tpu.dot_dimension_numbers<[2], [1], [1], [2], [0, 0, 0, 1, 1, 2], [0], [0]>} : vector<2x8x8xf32>, vector<2x8x16xf32>, vector<2x8x16xf32> -> vector<2x8x16xf32>
    "tpu.trace_stop"() : () -> ()
    %146 = tpu.concatenate %33, %49, %65, %81, %97, %113, %129, %145 in 2 : vector<2x8x16xf32>, vector<2x8x16xf32>, vector<2x8x16xf32>, vector<2x8x16xf32>, vector<2x8x16xf32>, vector<2x8x16xf32>, vector<2x8x16xf32>, vector<2x8x16xf32> -> vector<2x8x128xf32>
    %147 = vector.shape_cast %146 : vector<2x8x128xf32> to vector<16x128xf32>
    %148 = arith.truncf %147 : vector<16x128xf32> to vector<16x128xbf16>
    %c0_48 = arith.constant 0 : index
    %c0_49 = arith.constant 0 : index
    %c0_50 = arith.constant 0 : index
    %149 = vector.load %arg7[%c0_48, %c0_49, %c0_50] : memref<1x128x128xbf16, #tpu.memory_space<vmem>>, vector<1x128x128xbf16>
    %150 = vector.shape_cast %149 : vector<1x128x128xbf16> to vector<128x128xbf16>
    %cst_51 = arith.constant dense<0.000000e+00> : vector<16x128xf32>
    %151 = tpu.matmul %148, %150, %cst_51 {dimension_numbers = #tpu.dot_dimension_numbers<[1], [0], [0], [1], [0, 0, 1, 1], [], []>} : vector<16x128xbf16>, vector<128x128xbf16>, vector<16x128xf32> -> vector<16x128xf32>
    %c0_52 = arith.constant 0 : index
    %c0_53 = arith.constant 0 : index
    %c0_54 = arith.constant 0 : index
    %152 = vector.load %arg8[%c0_52, %c0_53, %c0_54] : memref<1x1x128xf32, #tpu.memory_space<vmem>>, vector<1x1x128xf32>
    %153 = vector.shape_cast %152 : vector<1x1x128xf32> to vector<1x128xf32>
    %154 = vector.broadcast %153 : vector<1x128xf32> to vector<16x128xf32>
    %155 = arith.addf %151, %154 : vector<16x128xf32>
    %156 = arith.addf %3, %155 : vector<16x128xf32>
    %c0_55 = arith.constant 0 : index
    %c0_56 = arith.constant 0 : index
    %c0_57 = arith.constant 0 : index
    %157 = vector.load %arg9[%c0_55, %c0_56, %c0_57] : memref<1x1x128xf32, #tpu.memory_space<vmem>>, vector<1x1x128xf32>
    %158 = vector.shape_cast %157 : vector<1x1x128xf32> to vector<1x128xf32>
    %c0_58 = arith.constant 0 : index
    %c0_59 = arith.constant 0 : index
    %c0_60 = arith.constant 0 : index
    %159 = vector.load %arg10[%c0_58, %c0_59, %c0_60] : memref<1x1x128xf32, #tpu.memory_space<vmem>>, vector<1x1x128xf32>
    %160 = vector.shape_cast %159 : vector<1x1x128xf32> to vector<1x128xf32>
    %cst_61 = arith.constant dense<0.000000e+00> : vector<16xf32>
    %161 = vector.multi_reduction <add>, %156, %cst_61 [1] : vector<16x128xf32> to vector<16xf32>
    %162 = vector.shape_cast %161 : vector<16xf32> to vector<16x1xf32>
    %cst_62 = arith.constant 1.280000e+02 : f32
    %163 = vector.broadcast %cst_62 : f32 to vector<16x1xf32>
    %164 = arith.divf %162, %163 : vector<16x1xf32>
    %165 = vector.broadcast %164 : vector<16x1xf32> to vector<16x128xf32>
    %166 = arith.subf %156, %165 : vector<16x128xf32>
    %167 = arith.mulf %166, %166 : vector<16x128xf32>
    %cst_63 = arith.constant dense<0.000000e+00> : vector<16xf32>
    %168 = vector.multi_reduction <add>, %167, %cst_63 [1] : vector<16x128xf32> to vector<16xf32>
    %169 = vector.shape_cast %168 : vector<16xf32> to vector<16x1xf32>
    %cst_64 = arith.constant 1.280000e+02 : f32
    %170 = vector.broadcast %cst_64 : f32 to vector<16x1xf32>
    %171 = arith.divf %169, %170 : vector<16x1xf32>
    %172 = vector.broadcast %164 : vector<16x1xf32> to vector<16x128xf32>
    %173 = arith.subf %156, %172 : vector<16x128xf32>
    %cst_65 = arith.constant 9.99999974E-6 : f32
    %174 = vector.broadcast %cst_65 : f32 to vector<16x1xf32>
    %175 = arith.addf %171, %174 : vector<16x1xf32>
    %176 = math.rsqrt %175 : vector<16x1xf32>
    %177 = vector.broadcast %176 : vector<16x1xf32> to vector<16x128xf32>
    %178 = arith.mulf %173, %177 : vector<16x128xf32>
    %179 = vector.broadcast %158 : vector<1x128xf32> to vector<16x128xf32>
    %180 = arith.mulf %178, %179 : vector<16x128xf32>
    %181 = vector.broadcast %160 : vector<1x128xf32> to vector<16x128xf32>
    %182 = arith.addf %180, %181 : vector<16x128xf32>
    %183 = arith.truncf %182 : vector<16x128xf32> to vector<16x128xbf16>
    %c0_66 = arith.constant 0 : index
    %c0_67 = arith.constant 0 : index
    %c0_68 = arith.constant 0 : index
    %184 = vector.load %arg11[%c0_66, %c0_67, %c0_68] : memref<1x128x2048xbf16, #tpu.memory_space<vmem>>, vector<1x128x2048xbf16>
    %185 = vector.shape_cast %184 : vector<1x128x2048xbf16> to vector<128x2048xbf16>
    %cst_69 = arith.constant dense<0.000000e+00> : vector<16x2048xf32>
    %186 = tpu.matmul %183, %185, %cst_69 {dimension_numbers = #tpu.dot_dimension_numbers<[1], [0], [0], [1], [0, 0, 1, 1], [], []>} : vector<16x128xbf16>, vector<128x2048xbf16>, vector<16x2048xf32> -> vector<16x2048xf32>
    %c0_70 = arith.constant 0 : index
    %c0_71 = arith.constant 0 : index
    %c0_72 = arith.constant 0 : index
    %187 = vector.load %arg12[%c0_70, %c0_71, %c0_72] : memref<1x1x2048xf32, #tpu.memory_space<vmem>>, vector<1x1x2048xf32>
    %188 = vector.shape_cast %187 : vector<1x1x2048xf32> to vector<1x2048xf32>
    %189 = vector.broadcast %188 : vector<1x2048xf32> to vector<16x2048xf32>
    %190 = arith.addf %186, %189 : vector<16x2048xf32>
    %cst_73 = arith.constant 0.000000e+00 : f32
    %191 = vector.broadcast %cst_73 : f32 to vector<16x2048xf32>
    %192 = arith.maximumf %190, %191 : vector<16x2048xf32>
    %193 = arith.truncf %192 : vector<16x2048xf32> to vector<16x2048xbf16>
    %c0_74 = arith.constant 0 : index
    %c0_75 = arith.constant 0 : index
    %c0_76 = arith.constant 0 : index
    %194 = vector.load %arg13[%c0_74, %c0_75, %c0_76] : memref<1x2048x128xbf16, #tpu.memory_space<vmem>>, vector<1x2048x128xbf16>
    %195 = vector.shape_cast %194 : vector<1x2048x128xbf16> to vector<2048x128xbf16>
    %cst_77 = arith.constant dense<0.000000e+00> : vector<16x128xf32>
    %196 = tpu.matmul %193, %195, %cst_77 {dimension_numbers = #tpu.dot_dimension_numbers<[1], [0], [0], [1], [0, 0, 1, 1], [], []>} : vector<16x2048xbf16>, vector<2048x128xbf16>, vector<16x128xf32> -> vector<16x128xf32>
    %c0_78 = arith.constant 0 : index
    %c0_79 = arith.constant 0 : index
    %c0_80 = arith.constant 0 : index
    %197 = vector.load %arg14[%c0_78, %c0_79, %c0_80] : memref<1x1x128xf32, #tpu.memory_space<vmem>>, vector<1x1x128xf32>
    %198 = vector.shape_cast %197 : vector<1x1x128xf32> to vector<1x128xf32>
    %199 = vector.broadcast %198 : vector<1x128xf32> to vector<16x128xf32>
    %200 = arith.addf %196, %199 : vector<16x128xf32>
    %201 = arith.addf %182, %200 : vector<16x128xf32>
    %c0_81 = arith.constant 0 : index
    %c0_82 = arith.constant 0 : index
    %c0_83 = arith.constant 0 : index
    %202 = vector.load %arg15[%c0_81, %c0_82, %c0_83] : memref<1x1x128xf32, #tpu.memory_space<vmem>>, vector<1x1x128xf32>
    %203 = vector.shape_cast %202 : vector<1x1x128xf32> to vector<1x128xf32>
    %c0_84 = arith.constant 0 : index
    %c0_85 = arith.constant 0 : index
    %c0_86 = arith.constant 0 : index
    %204 = vector.load %arg16[%c0_84, %c0_85, %c0_86] : memref<1x1x128xf32, #tpu.memory_space<vmem>>, vector<1x1x128xf32>
    %205 = vector.shape_cast %204 : vector<1x1x128xf32> to vector<1x128xf32>
    %cst_87 = arith.constant dense<0.000000e+00> : vector<16xf32>
    %206 = vector.multi_reduction <add>, %201, %cst_87 [1] : vector<16x128xf32> to vector<16xf32>
    %207 = vector.shape_cast %206 : vector<16xf32> to vector<16x1xf32>
    %cst_88 = arith.constant 1.280000e+02 : f32
    %208 = vector.broadcast %cst_88 : f32 to vector<16x1xf32>
    %209 = arith.divf %207, %208 : vector<16x1xf32>
    %210 = vector.broadcast %209 : vector<16x1xf32> to vector<16x128xf32>
    %211 = arith.subf %201, %210 : vector<16x128xf32>
    %212 = arith.mulf %211, %211 : vector<16x128xf32>
    %cst_89 = arith.constant dense<0.000000e+00> : vector<16xf32>
    %213 = vector.multi_reduction <add>, %212, %cst_89 [1] : vector<16x128xf32> to vector<16xf32>
    %214 = vector.shape_cast %213 : vector<16xf32> to vector<16x1xf32>
    %cst_90 = arith.constant 1.280000e+02 : f32
    %215 = vector.broadcast %cst_90 : f32 to vector<16x1xf32>
    %216 = arith.divf %214, %215 : vector<16x1xf32>
    %217 = vector.broadcast %209 : vector<16x1xf32> to vector<16x128xf32>
    %218 = arith.subf %201, %217 : vector<16x128xf32>
    %cst_91 = arith.constant 9.99999974E-6 : f32
    %219 = vector.broadcast %cst_91 : f32 to vector<16x1xf32>
    %220 = arith.addf %216, %219 : vector<16x1xf32>
    %221 = math.rsqrt %220 : vector<16x1xf32>
    %222 = vector.broadcast %221 : vector<16x1xf32> to vector<16x128xf32>
    %223 = arith.mulf %218, %222 : vector<16x128xf32>
    %224 = vector.broadcast %203 : vector<1x128xf32> to vector<16x128xf32>
    %225 = arith.mulf %223, %224 : vector<16x128xf32>
    %226 = vector.broadcast %205 : vector<1x128xf32> to vector<16x128xf32>
    %227 = arith.addf %225, %226 : vector<16x128xf32>
    %c0_92 = arith.constant 0 : index
    %c0_93 = arith.constant 0 : index
    %228 = vector.load %arg28[%c0_92, %c0_93] : memref<16x128xf32, #tpu.memory_space<vmem>>, vector<16x128xf32>
    tpu.vector_store %arg28[%c0_92, %c0_93], %227 {strides = array<i32>} : memref<16x128xf32, #tpu.memory_space<vmem>>, vector<16x128xf32>,
    %c3_i32 = arith.constant 3 : i32
    %229 = arith.cmpi eq, %arg0, %c3_i32 : i32
    %230 = arith.extui %229 : i1 to i32
    %c0_i32_94 = arith.constant 0 : i32
    %231 = arith.cmpi ne, %230, %c0_i32_94 : i32
    scf.if %231 {
      %232 = arith.truncf %227 : vector<16x128xf32> to vector<16x128xbf16>
      %c0_95 = arith.constant 0 : index
      %c0_96 = arith.constant 0 : index
      %233 = vector.load %arg17[%c0_95, %c0_96] : memref<128x128xbf16, #tpu.memory_space<vmem>>, vector<128x128xbf16>
      %cst_97 = arith.constant dense<0.000000e+00> : vector<16x128xf32>
      %234 = tpu.matmul %232, %233, %cst_97 {dimension_numbers = #tpu.dot_dimension_numbers<[1], [0], [0], [1], [0, 0, 1, 1], [], []>} : vector<16x128xbf16>, vector<128x128xbf16>, vector<16x128xf32> -> vector<16x128xf32>
      %c0_98 = arith.constant 0 : index
      %c0_99 = arith.constant 0 : index
      %235 = vector.load %arg18[%c0_98, %c0_99] : memref<1x128xf32, #tpu.memory_space<vmem>>, vector<1x128xf32>
      %236 = vector.broadcast %235 : vector<1x128xf32> to vector<16x128xf32>
      %237 = arith.addf %234, %236 : vector<16x128xf32>
      %c0_100 = arith.constant 0 : index
      %c0_101 = arith.constant 0 : index
      %238 = vector.load %arg19[%c0_100, %c0_101] : memref<1x128xf32, #tpu.memory_space<vmem>>, vector<1x128xf32>
      %c0_102 = arith.constant 0 : index
      %c0_103 = arith.constant 0 : index
      %239 = vector.load %arg20[%c0_102, %c0_103] : memref<1x128xf32, #tpu.memory_space<vmem>>, vector<1x128xf32>
      %cst_104 = arith.constant dense<0.000000e+00> : vector<16xf32>
      %240 = vector.multi_reduction <add>, %237, %cst_104 [1] : vector<16x128xf32> to vector<16xf32>
      %241 = vector.shape_cast %240 : vector<16xf32> to vector<16x1xf32>
      %cst_105 = arith.constant 1.280000e+02 : f32
      %242 = vector.broadcast %cst_105 : f32 to vector<16x1xf32>
      %243 = arith.divf %241, %242 : vector<16x1xf32>
      %244 = vector.broadcast %243 : vector<16x1xf32> to vector<16x128xf32>
      %245 = arith.subf %237, %244 : vector<16x128xf32>
      %246 = arith.mulf %245, %245 : vector<16x128xf32>
      %cst_106 = arith.constant dense<0.000000e+00> : vector<16xf32>
      %247 = vector.multi_reduction <add>, %246, %cst_106 [1] : vector<16x128xf32> to vector<16xf32>
      %248 = vector.shape_cast %247 : vector<16xf32> to vector<16x1xf32>
      %cst_107 = arith.constant 1.280000e+02 : f32
      %249 = vector.broadcast %cst_107 : f32 to vector<16x1xf32>
      %250 = arith.divf %248, %249 : vector<16x1xf32>
      %251 = vector.broadcast %243 : vector<16x1xf32> to vector<16x128xf32>
      %252 = arith.subf %237, %251 : vector<16x128xf32>
      %cst_108 = arith.constant 9.99999974E-6 : f32
      %253 = vector.broadcast %cst_108 : f32 to vector<16x1xf32>
      %254 = arith.addf %250, %253 : vector<16x1xf32>
      %255 = math.rsqrt %254 : vector<16x1xf32>
      %256 = vector.broadcast %255 : vector<16x1xf32> to vector<16x128xf32>
      %257 = arith.mulf %252, %256 : vector<16x128xf32>
      %258 = vector.broadcast %238 : vector<1x128xf32> to vector<16x128xf32>
      %259 = arith.mulf %257, %258 : vector<16x128xf32>
      %260 = vector.broadcast %239 : vector<1x128xf32> to vector<16x128xf32>
      %261 = arith.addf %259, %260 : vector<16x128xf32>
      %cst_109 = arith.constant 0.000000e+00 : f32
      %262 = vector.broadcast %cst_109 : f32 to vector<16x128xf32>
      %263 = arith.maximumf %261, %262 : vector<16x128xf32>
      %264 = arith.truncf %263 : vector<16x128xf32> to vector<16x128xbf16>
      %c0_110 = arith.constant 0 : index
      %c0_111 = arith.constant 0 : index
      %265 = vector.load %arg21[%c0_110, %c0_111] : memref<128x64xbf16, #tpu.memory_space<vmem>>, vector<128x64xbf16>
      %cst_112 = arith.constant dense<0.000000e+00> : vector<16x64xf32>
      %266 = tpu.matmul %264, %265, %cst_112 {dimension_numbers = #tpu.dot_dimension_numbers<[1], [0], [0], [1], [0, 0, 1, 1], [], []>} : vector<16x128xbf16>, vector<128x64xbf16>, vector<16x64xf32> -> vector<16x64xf32>
      %c0_113 = arith.constant 0 : index
      %c0_114 = arith.constant 0 : index
      %267 = vector.load %arg22[%c0_113, %c0_114] : memref<1x64xf32, #tpu.memory_space<vmem>>, vector<1x64xf32>
      %268 = vector.broadcast %267 : vector<1x64xf32> to vector<16x64xf32>
      %269 = arith.addf %266, %268 : vector<16x64xf32>
      %c0_115 = arith.constant 0 : index
      %c0_116 = arith.constant 0 : index
      %270 = vector.load %arg23[%c0_115, %c0_116] : memref<1x64xf32, #tpu.memory_space<vmem>>, vector<1x64xf32>
      %c0_117 = arith.constant 0 : index
      %c0_118 = arith.constant 0 : index
      %271 = vector.load %arg24[%c0_117, %c0_118] : memref<1x64xf32, #tpu.memory_space<vmem>>, vector<1x64xf32>
      %cst_119 = arith.constant dense<0.000000e+00> : vector<16xf32>
      %272 = vector.multi_reduction <add>, %269, %cst_119 [1] : vector<16x64xf32> to vector<16xf32>
      %273 = vector.shape_cast %272 : vector<16xf32> to vector<16x1xf32>
      %cst_120 = arith.constant 6.400000e+01 : f32
      %274 = vector.broadcast %cst_120 : f32 to vector<16x1xf32>
      %275 = arith.divf %273, %274 : vector<16x1xf32>
      %276 = vector.broadcast %275 : vector<16x1xf32> to vector<16x64xf32>
      %277 = arith.subf %269, %276 : vector<16x64xf32>
      %278 = arith.mulf %277, %277 : vector<16x64xf32>
      %cst_121 = arith.constant dense<0.000000e+00> : vector<16xf32>
      %279 = vector.multi_reduction <add>, %278, %cst_121 [1] : vector<16x64xf32> to vector<16xf32>
      %280 = vector.shape_cast %279 : vector<16xf32> to vector<16x1xf32>
      %cst_122 = arith.constant 6.400000e+01 : f32
      %281 = vector.broadcast %cst_122 : f32 to vector<16x1xf32>
      %282 = arith.divf %280, %281 : vector<16x1xf32>
      %283 = vector.broadcast %275 : vector<16x1xf32> to vector<16x64xf32>
      %284 = arith.subf %269, %283 : vector<16x64xf32>
      %cst_123 = arith.constant 9.99999974E-6 : f32
      %285 = vector.broadcast %cst_123 : f32 to vector<16x1xf32>
      %286 = arith.addf %282, %285 : vector<16x1xf32>
      %287 = math.rsqrt %286 : vector<16x1xf32>
      %288 = vector.broadcast %287 : vector<16x1xf32> to vector<16x64xf32>
      %289 = arith.mulf %284, %288 : vector<16x64xf32>
      %290 = vector.broadcast %270 : vector<1x64xf32> to vector<16x64xf32>
      %291 = arith.mulf %289, %290 : vector<16x64xf32>
      %292 = vector.broadcast %271 : vector<1x64xf32> to vector<16x64xf32>
      %293 = arith.addf %291, %292 : vector<16x64xf32>
      %cst_124 = arith.constant 0.000000e+00 : f32
      %294 = vector.broadcast %cst_124 : f32 to vector<16x64xf32>
      %295 = arith.maximumf %293, %294 : vector<16x64xf32>
      %c0_125 = arith.constant 0 : index
      %c0_126 = arith.constant 0 : index
      %296 = vector.load %arg25[%c0_125, %c0_126] : memref<1x64xf32, #tpu.memory_space<vmem>>, vector<1x64xf32>
      %297 = vector.broadcast %296 : vector<1x64xf32> to vector<16x64xf32>
      %298 = arith.mulf %295, %297 : vector<16x64xf32>
      %cst_127 = arith.constant dense<0.000000e+00> : vector<16xf32>
      %299 = vector.multi_reduction <add>, %298, %cst_127 [1] : vector<16x64xf32> to vector<16xf32>
      %300 = vector.shape_cast %299 : vector<16xf32> to vector<16x1xf32>
      %c0_128 = arith.constant 0 : index
      %c0_129 = arith.constant 0 : index
      %301 = vector.load %arg26[%c0_128, %c0_129] : memref<1x1xf32, #tpu.memory_space<vmem>>, vector<1x1xf32>
      %302 = vector.broadcast %301 : vector<1x1xf32> to vector<16x1xf32>
      %303 = arith.addf %300, %302 : vector<16x1xf32>
      %304 = vector.shape_cast %303 : vector<16x1xf32> to vector<2x8x1xf32>
      %cst_130 = arith.constant dense<0xFF800000> : vector<2x1xf32>
      %305 = vector.multi_reduction <maximumf>, %304, %cst_130 [1] : vector<2x8x1xf32> to vector<2x1xf32>
      %306 = vector.shape_cast %305 : vector<2x1xf32> to vector<2x1x1xf32>
      %307 = vector.broadcast %306 : vector<2x1x1xf32> to vector<2x8x1xf32>
      %308 = arith.subf %304, %307 : vector<2x8x1xf32>
      %309 = math.exp %308 : vector<2x8x1xf32>
      %cst_131 = arith.constant dense<0.000000e+00> : vector<2x1xf32>
      %310 = vector.multi_reduction <add>, %309, %cst_131 [1] : vector<2x8x1xf32> to vector<2x1xf32>
      %311 = vector.shape_cast %310 : vector<2x1xf32> to vector<2x1x1xf32>
      %312 = vector.broadcast %311 : vector<2x1x1xf32> to vector<2x8x1xf32>
      %313 = arith.divf %309, %312 : vector<2x8x1xf32>
      %c0_132 = arith.constant 0 : index
      %c0_133 = arith.constant 0 : index
      %c0_134 = arith.constant 0 : index
      %314 = vector.load %arg27[%c0_132, %c0_133, %c0_134] : memref<2x8x1xf32, #tpu.memory_space<vmem>>, vector<2x8x1xf32>
      tpu.vector_store %arg27[%c0_132, %c0_133, %c0_134], %313 {strides = array<i32>} : memref<2x8x1xf32, #tpu.memory_space<vmem>>, vector<2x8x1xf32>,
    } else {
    }
    return
  }
  func.func @transform_0(%arg0: i32) -> (i32, i32, i32) {
    %c0_i32 = arith.constant 0 : i32
    %c0_i32_0 = arith.constant 0 : i32
    %c0_i32_1 = arith.constant 0 : i32
    %c0_i32_2 = arith.constant 0 : i32
    return %c0_i32, %c0_i32_0, %c0_i32_1 : i32, i32, i32
  }
  func.func @transform_1(%arg0: i32) -> (i32, i32) {
    %c0_i32 = arith.constant 0 : i32
    %c0_i32_0 = arith.constant 0 : i32
    %c0_i32_1 = arith.constant 0 : i32
    return %c0_i32, %c0_i32_0 : i32, i32
  }
  func.func @transform_2(%arg0: i32) -> (i32, i32) {
    %c0_i32 = arith.constant 0 : i32
    %c0_i32_0 = arith.constant 0 : i32
    %c0_i32_1 = arith.constant 0 : i32
    return %c0_i32, %c0_i32_0 : i32, i32
  }
  func.func @transform_3(%arg0: i32) -> (i32, i32) {
    %c0_i32 = arith.constant 0 : i32
    %c0_i32_0 = arith.constant 0 : i32
    %c0_i32_1 = arith.constant 0 : i32
    return %c0_i32, %c0_i32_0 : i32, i32
  }
  func.func @transform_4(%arg0: i32) -> (i32, i32, i32) {
    %c0_i32 = arith.constant 0 : i32
    %c0_i32_0 = arith.constant 0 : i32
    %c0_i32_1 = arith.constant 0 : i32
    return %arg0, %c0_i32, %c0_i32_0 : i32, i32, i32
  }
  func.func @transform_5(%arg0: i32) -> (i32, i32, i32) {
    %c0_i32 = arith.constant 0 : i32
    %c0_i32_0 = arith.constant 0 : i32
    %c0_i32_1 = arith.constant 0 : i32
    return %arg0, %c0_i32, %c0_i32_0 : i32, i32, i32
  }
  func.func @transform_6(%arg0: i32) -> (i32, i32, i32) {
    %c0_i32 = arith.constant 0 : i32
    %c0_i32_0 = arith.constant 0 : i32
    %c0_i32_1 = arith.constant 0 : i32
    return %arg0, %c0_i32, %c0_i32_0 : i32, i32, i32
  }
  func.func @transform_7(%arg0: i32) -> (i32, i32, i32) {
    %c0_i32 = arith.constant 0 : i32
    %c0_i32_0 = arith.constant 0 : i32
    %c0_i32_1 = arith.constant 0 : i32
    return %arg0, %c0_i32, %c0_i32_0 : i32, i32, i32
  }
  func.func @transform_8(%arg0: i32) -> (i32, i32, i32) {
    %c0_i32 = arith.constant 0 : i32
    %c0_i32_0 = arith.constant 0 : i32
    %c0_i32_1 = arith.constant 0 : i32
    return %arg0, %c0_i32, %c0_i32_0 : i32, i32, i32
  }
  func.func @transform_9(%arg0: i32) -> (i32, i32, i32) {
    %c0_i32 = arith.constant 0 : i32
    %c0_i32_0 = arith.constant 0 : i32
    %c0_i32_1 = arith.constant 0 : i32
    return %arg0, %c0_i32, %c0_i32_0 : i32, i32, i32
  }
  func.func @transform_10(%arg0: i32) -> (i32, i32, i32) {
    %c0_i32 = arith.constant 0 : i32
    %c0_i32_0 = arith.constant 0 : i32
    %c0_i32_1 = arith.constant 0 : i32
    return %arg0, %c0_i32, %c0_i32_0 : i32, i32, i32
  }
  func.func @transform_11(%arg0: i32) -> (i32, i32, i32) {
    %c0_i32 = arith.constant 0 : i32
    %c0_i32_0 = arith.constant 0 : i32
    %c0_i32_1 = arith.constant 0 : i32
    return %arg0, %c0_i32, %c0_i32_0 : i32, i32, i32
  }
  func.func @transform_12(%arg0: i32) -> (i32, i32, i32) {
    %c0_i32 = arith.constant 0 : i32
    %c0_i32_0 = arith.constant 0 : i32
    %c0_i32_1 = arith.constant 0 : i32
    return %arg0, %c0_i32, %c0_i32_0 : i32, i32, i32
  }
  func.func @transform_13(%arg0: i32) -> (i32, i32, i32) {
    %c0_i32 = arith.constant 0 : i32
    %c0_i32_0 = arith.constant 0 : i32
    %c0_i32_1 = arith.constant 0 : i32
    return %arg0, %c0_i32, %c0_i32_0 : i32, i32, i32
  }
  func.func @transform_14(%arg0: i32) -> (i32, i32, i32) {
    %c0_i32 = arith.constant 0 : i32
    %c0_i32_0 = arith.constant 0 : i32
    %c0_i32_1 = arith.constant 0 : i32
    return %arg0, %c0_i32, %c0_i32_0 : i32, i32, i32
  }
  func.func @transform_15(%arg0: i32) -> (i32, i32, i32) {
    %c0_i32 = arith.constant 0 : i32
    %c0_i32_0 = arith.constant 0 : i32
    %c0_i32_1 = arith.constant 0 : i32
    return %arg0, %c0_i32, %c0_i32_0 : i32, i32, i32
  }
  func.func @transform_16(%arg0: i32) -> (i32, i32) {
    %c0_i32 = arith.constant 0 : i32
    %c0_i32_0 = arith.constant 0 : i32
    %c0_i32_1 = arith.constant 0 : i32
    return %c0_i32, %c0_i32_0 : i32, i32
  }
  func.func @transform_17(%arg0: i32) -> (i32, i32) {
    %c0_i32 = arith.constant 0 : i32
    %c0_i32_0 = arith.constant 0 : i32
    %c0_i32_1 = arith.constant 0 : i32
    return %c0_i32, %c0_i32_0 : i32, i32
  }
  func.func @transform_18(%arg0: i32) -> (i32, i32) {
    %c0_i32 = arith.constant 0 : i32
    %c0_i32_0 = arith.constant 0 : i32
    %c0_i32_1 = arith.constant 0 : i32
    return %c0_i32, %c0_i32_0 : i32, i32
  }
  func.func @transform_19(%arg0: i32) -> (i32, i32) {
    %c0_i32 = arith.constant 0 : i32
    %c0_i32_0 = arith.constant 0 : i32
    %c0_i32_1 = arith.constant 0 : i32
    return %c0_i32, %c0_i32_0 : i32, i32
  }
  func.func @transform_20(%arg0: i32) -> (i32, i32) {
    %c0_i32 = arith.constant 0 : i32
    %c0_i32_0 = arith.constant 0 : i32
    %c0_i32_1 = arith.constant 0 : i32
    return %c0_i32, %c0_i32_0 : i32, i32
  }
  func.func @transform_21(%arg0: i32) -> (i32, i32) {
    %c0_i32 = arith.constant 0 : i32
    %c0_i32_0 = arith.constant 0 : i32
    %c0_i32_1 = arith.constant 0 : i32
    return %c0_i32, %c0_i32_0 : i32, i32
  }
  func.func @transform_22(%arg0: i32) -> (i32, i32) {
    %c0_i32 = arith.constant 0 : i32
    %c0_i32_0 = arith.constant 0 : i32
    %c0_i32_1 = arith.constant 0 : i32
    return %c0_i32, %c0_i32_0 : i32, i32
  }
  func.func @transform_23(%arg0: i32) -> (i32, i32) {
    %c0_i32 = arith.constant 0 : i32
    %c0_i32_0 = arith.constant 0 : i32
    %c0_i32_1 = arith.constant 0 : i32
    return %c0_i32, %c0_i32_0 : i32, i32
  }
  func.func @transform_24(%arg0: i32) -> (i32, i32) {
    %c0_i32 = arith.constant 0 : i32
    %c0_i32_0 = arith.constant 0 : i32
    %c0_i32_1 = arith.constant 0 : i32
    return %c0_i32, %c0_i32_0 : i32, i32
  }
  func.func @transform_25(%arg0: i32) -> (i32, i32) {
    %c0_i32 = arith.constant 0 : i32
    %c0_i32_0 = arith.constant 0 : i32
    %c0_i32_1 = arith.constant 0 : i32
    return %c0_i32, %c0_i32_0 : i32, i32
  }
  func.func @transform_26(%arg0: i32) -> (i32, i32, i32) {
    %c0_i32 = arith.constant 0 : i32
    %c0_i32_0 = arith.constant 0 : i32
    %c0_i32_1 = arith.constant 0 : i32
    %c0_i32_2 = arith.constant 0 : i32
    return %c0_i32, %c0_i32_0, %c0_i32_1 : i32, i32, i32
  }
}

</mosaic_0001>

<llo_original>
// kernel: neg.1
$region0: #{neg.1}
  #allocation0 [shape = 's32[1]{0}', space=sflag, size = 0x4, scoped, tag = 'scoped memory for neg.1']
  %s0 = inlined_call_operand.vmem [shape: f32[2,8], index: 0, kind: input, shape index: {}]
  %s1 = inlined_call_operand.vmem [shape: f32[2,8], index: 1, kind: output, shape index: {}]
  %v2 = vld [vmem:[%s0] sm:$0xff]
  %3 = xla_tuple %v2
  %4 = xla_tuple %3
  %v5 = vxor.u32 %v2, 2147483648
  %6 = xla_tuple %v5
  %7 = vst [vmem:[%s1] sm:$0xff] %v5

// kernel: mtsp_forward.1
$region0: #{mtsp_forward.1}
  #allocation0 [shape = 'u32[]', space=smem, size = 0x4, offset = 0x4, fixed_abs, tag = 'smem constant byte address 0x4 - core index']
  #allocation1 [shape = 'u32[144,128]{1,0:T(1,128)}', space=vmem, size = 0x12000, scoped, tag = 'internal scratch']
  #allocation2 [shape = 'f32[16,128]{1,0:T(8,128)}', space=vmem, size = 0x2000, scoped, tag = 'scratch operand']
  #allocation3 [shape = 'f32[1,1]{1,0:T(1,128)S(1)}', space=vmem, size = 0x200, scoped, tag = 'scoped memory for mtsp_forward.1']
  %s0 = inlined_call_operand.vmem [shape: f32[2,8,2], index: 0, kind: input, shape index: {}]
  %s1 = inlined_call_operand.vmem [shape: f32[8,128], index: 1, kind: input, shape index: {}]
  %s2 = inlined_call_operand.hbm [shape: f32[2,128], index: 2, kind: input, shape index: {}]
  %s3 = inlined_call_operand.hbm [shape: f32[1,128], index: 3, kind: input, shape index: {}]
  %s4 = inlined_call_operand.hbm [shape: bf16[4,128,384], index: 4, kind: input, shape index: {}]
  %s5 = inlined_call_operand.hbm [shape: f32[4,1,384], index: 5, kind: input, shape index: {}]
  %s6 = inlined_call_operand.hbm [shape: bf16[4,128,128], index: 6, kind: input, shape index: {}]
  %s7 = inlined_call_operand.hbm [shape: f32[4,1,128], index: 7, kind: input, shape index: {}]
  %s8 = inlined_call_operand.hbm [shape: f32[4,1,128], index: 8, kind: input, shape index: {}]
  %s9 = inlined_call_operand.hbm [shape: f32[4,1,128], index: 9, kind: input, shape index: {}]
  %s10 = inlined_call_operand.hbm [shape: bf16[4,128,2048], index: 10, kind: input, shape index: {}]
  %s11 = inlined_call_operand.hbm [shape: f32[4,1,2048], index: 11, kind: input, shape index: {}]
  %s12 = inlined_call_operand.hbm [shape: bf16[4,2048,128], index: 12, kind: input, shape index: {}]
  %s13 = inlined_call_operand.hbm [shape: f32[4,1,128], index: 13, kind: input, shape index: {}]
  %s14 = inlined_call_operand.hbm [shape: f32[4,1,128], index: 14, kind: input, shape index: {}]
  %s15 = inlined_call_operand.hbm [shape: f32[4,1,128], index: 15, kind: input, shape index: {}]
  %s16 = inlined_call_operand.hbm [shape: bf16[128,128], index: 16, kind: input, shape index: {}]
  %s17 = inlined_call_operand.hbm [shape: f32[1,128], index: 17, kind: input, shape index: {}]
  %s18 = inlined_call_operand.hbm [shape: f32[1,128], index: 18, kind: input, shape index: {}]
  %s19 = inlined_call_operand.hbm [shape: f32[1,128], index: 19, kind: input, shape index: {}]
  %s20 = inlined_call_operand.vmem [shape: bf16[128,64], index: 20, kind: input, shape index: {}]
  %s21 = inlined_call_operand.hbm [shape: f32[1,64], index: 21, kind: input, shape index: {}]
  %s22 = inlined_call_operand.hbm [shape: f32[1,64], index: 22, kind: input, shape index: {}]
  %s23 = inlined_call_operand.hbm [shape: f32[1,64], index: 23, kind: input, shape index: {}]
  %s24 = inlined_call_operand.hbm [shape: f32[1,64], index: 24, kind: input, shape index: {}]
  %s25 = inlined_call_operand.<no memory space> [shape: f32[1,1], index: 25, kind: input, shape index: {}]
  %s26 = inlined_call_operand.vmem [shape: f32[2,8,1], index: 26, kind: output, shape index: {}]
  %s27 = sld [smem:[#allocation0]]
  $region233: #{mtsp_forward.1} parent=0
    _
  %s29 = ssub.s32 1, %s27
  %s30 = scalar_select 0, %s29, %s27
  %v31 = vstv %s25
  %32 = vst [vmem:[#allocation3] sm:$0x1] %v31
  $region1: #{mtsp_forward.1} parent=0
    #allocation4 [shape = 'u8[1024]{0}', space=vmem, size = 0x400, scoped, tag = 'input window, operand 2, single buffered']
    #allocation5 [shape = 's32[2]{0}', space=sflag, size = 0x8, scoped, tag = 'scoped memory for mtsp_forward.1']
    #allocation6 [shape = 'u8[512]{0}', space=vmem, size = 0x400, scoped, tag = 'input window, operand 3, single buffered']
    #allocation7 [shape = 's32[1]{0}', space=sflag, size = 0x4, scoped, tag = 'scoped memory for mtsp_forward.1']
    #allocation8 [shape = 'u8[196608]{0}', space=vmem, size = 0x30000, scoped, tag = 'input window, operand 4']
    #allocation9 [shape = 'u8[3072]{0}', space=vmem, size = 0xc00, scoped, tag = 'input window, operand 5']
    #allocation10 [shape = 'u8[65536]{0}', space=vmem, size = 0x10000, scoped, tag = 'input window, operand 6']
    #allocation11 [shape = 'u8[1024]{0}', space=vmem, size = 0x400, scoped, tag = 'input window, operand 7']
    #allocation12 [shape = 'u8[1024]{0}', space=vmem, size = 0x400, scoped, tag = 'input window, operand 8']
    #allocation13 [shape = 'u8[1024]{0}', space=vmem, size = 0x400, scoped, tag = 'input window, operand 9']
    #allocation14 [shape = 'u8[1048576]{0}', space=vmem, size = 0x100000, scoped, tag = 'input window, operand 10']
    #allocation15 [shape = 'u8[16384]{0}', space=vmem, size = 0x4000, scoped, tag = 'input window, operand 11']
    #allocation16 [shape = 'u8[1048576]{0}', space=vmem, size = 0x100000, scoped, tag = 'input window, operand 12']
    #allocation17 [shape = 'u8[1024]{0}', space=vmem, size = 0x400, scoped, tag = 'input window, operand 13']
    #allocation18 [shape = 'u8[1024]{0}', space=vmem, size = 0x400, scoped, tag = 'input window, operand 14']
    #allocation19 [shape = 'u8[1024]{0}', space=vmem, size = 0x400, scoped, tag = 'input window, operand 15']
    #allocation20 [shape = 'u8[32768]{0}', space=vmem, size = 0x8000, scoped, tag = 'input window, operand 16, single buffered']
    #allocation21 [shape = 'u8[512]{0}', space=vmem, size = 0x400, scoped, tag = 'input window, operand 17, single buffered']
    #allocation22 [shape = 's32[1]{0}', space=sflag, size = 0x4, scoped, tag = 'scoped memory for mtsp_forward.1']
    #allocation23 [shape = 'u8[512]{0}', space=vmem, size = 0x400, scoped, tag = 'input window, operand 18, single buffered']
    #allocation24 [shape = 'u8[512]{0}', space=vmem, size = 0x400, scoped, tag = 'input window, operand 19, single buffered']
    #allocation25 [shape = 's32[1]{0}', space=sflag, size = 0x4, scoped, tag = 'scoped memory for mtsp_forward.1']
    #allocation26 [shape = 'u8[512]{0}', space=vmem, size = 0x400, scoped, tag = 'input window, operand 21, single buffered']
    #allocation27 [shape = 'u8[512]{0}', space=vmem, size = 0x400, scoped, tag = 'input window, operand 22, single buffered']
    #allocation28 [shape = 's32[1]{0}', space=sflag, size = 0x4, scoped, tag = 'scoped memory for mtsp_forward.1']
    #allocation29 [shape = 'u8[512]{0}', space=vmem, size = 0x400, scoped, tag = 'input window, operand 23, single buffered']
    #allocation30 [shape = 'u8[512]{0}', space=vmem, size = 0x400, scoped, tag = 'input window, operand 24, single buffered']
    #allocation31 [shape = 's32[1]{0}', space=sflag, size = 0x4, scoped, tag = 'scoped memory for mtsp_forward.1']
    %33 = vsyncpa [#allocation5], 0
    %34 = vsyncpa [#allocation7], 0
    %35 = vsyncpa [#allocation22], 0
    %36 = vsyncpa [#allocation25], 0
    %37 = vsyncpa [#allocation28], 0
    %38 = vsyncpa [#allocation31], 0
    loop: start=0, step=1, limit=6
    $region2: #{mtsp_forward.1} parent=1 // loop_pre_header
      _
    $region3: #{mtsp_forward.1} parent=1 // loop_header
      %s40 = sphi 0, %s44
      %p41 = scmp.ge.s32.totalorder %s40, 6
      %s48 = sphi 0, %s48
      %s50 = sphi 0, %s48
      %s51 = sphi 0, %s50
      %s65 = sphi 0, %s51
      %s69 = sphi 0, %s69
      %s71 = sphi 0, %s69
      %s72 = sphi 0, %s71
      %s86 = sphi 0, %s72
      %s90 = sphi 0, %s90
      %s92 = sphi 0, %s90
      %s93 = sphi 0, %s92
      %s107 = sphi 0, %s93
      %s111 = sphi 0, %s111
      %s113 = sphi 0, %s111
      %s114 = sphi 0, %s113
      %s128 = sphi 0, %s114
      %s134 = sphi 0, %s136
      %s137 = sphi 0, %s134
      %s138 = sphi 0, %s137
      %s154 = sphi 0, %s138
      %s160 = sphi 0, %s162
      %s163 = sphi 0, %s160
      %s164 = sphi 0, %s163
      %s180 = sphi 0, %s164
      %s186 = sphi 0, %s188
      %s189 = sphi 0, %s186
      %s190 = sphi 0, %s189
      %s206 = sphi 0, %s190
      %s212 = sphi 0, %s214
      %s215 = sphi 0, %s212
      %s216 = sphi 0, %s215
      %s232 = sphi 0, %s216
      %s238 = sphi 0, %s240
      %s241 = sphi 0, %s238
      %s242 = sphi 0, %s241
      %s258 = sphi 0, %s242
      %s264 = sphi 0, %s266
      %s267 = sphi 0, %s264
      %s268 = sphi 0, %s267
      %s284 = sphi 0, %s268
      %s290 = sphi 0, %s292
      %s293 = sphi 0, %s290
      %s294 = sphi 0, %s293
      %s310 = sphi 0, %s294
      %s316 = sphi 0, %s318
      %s319 = sphi 0, %s316
      %s320 = sphi 0, %s319
      %s336 = sphi 0, %s320
      %s342 = sphi 0, %s344
      %s345 = sphi 0, %s342
      %s346 = sphi 0, %s345
      %s362 = sphi 0, %s346
      %s368 = sphi 0, %s370
      %s371 = sphi 0, %s368
      %s372 = sphi 0, %s371
      %s388 = sphi 0, %s372
      %s394 = sphi 0, %s396
      %s397 = sphi 0, %s394
      %s398 = sphi 0, %s397
      %s414 = sphi 0, %s398
      %s420 = sphi 0, %s422
      %s423 = sphi 0, %s420
      %s424 = sphi 0, %s423
      %s440 = sphi 0, %s424
      %s444 = sphi 0, %s444
      %s446 = sphi 0, %s444
      %s447 = sphi 0, %s446
      %s461 = sphi 0, %s447
      %s465 = sphi 0, %s465
      %s467 = sphi 0, %s465
      %s468 = sphi 0, %s467
      %s482 = sphi 0, %s468
      %s486 = sphi 0, %s486
      %s488 = sphi 0, %s486
      %s489 = sphi 0, %s488
      %s503 = sphi 0, %s489
      %s507 = sphi 0, %s507
      %s509 = sphi 0, %s507
      %s510 = sphi 0, %s509
      %s524 = sphi 0, %s510
      %s528 = sphi 0, %s528
      %s530 = sphi 0, %s528
      %s531 = sphi 0, %s530
      %s545 = sphi 0, %s531
      %s549 = sphi 0, %s549
      %s551 = sphi 0, %s549
      %s552 = sphi 0, %s551
      %s566 = sphi 0, %s552
      %s570 = sphi 0, %s570
      %s572 = sphi 0, %s570
      %s573 = sphi 0, %s572
      %s587 = sphi 0, %s573
      %s591 = sphi 0, %s591
      %s593 = sphi 0, %s591
      %s594 = sphi 0, %s593
      %s608 = sphi 0, %s594
      %s612 = sphi 0, %s612
      %s614 = sphi 0, %s612
      %s615 = sphi 0, %s614
      %s629 = sphi 0, %s615
      %s633 = sphi 0, %s633
      %s635 = sphi 0, %s633
      %s636 = sphi 0, %s635
      %s650 = sphi 0, %s636
      %s654 = sphi 0, %s654
      %s656 = sphi 0, %s654
      %s657 = sphi 0, %s656
      %s671 = sphi 0, %s657
    $region4: #{mtsp_forward.1} parent=1 // loop_header_branch
      %43 = sbr.rel (%p41) target = $region8
    $region5: #{mtsp_forward.1} parent=1 // loop_body
      %s45 = ssub.s32 %s40, 1
      %s46 = ssub.s32 %s40, 2
      %s47 = sadd.s32 %s40, 1
      %s49 = sadd.s32 %s48, 1
      %p52 = scmp.eq.s32.totalorder %s40, 3
      %p53 = scmp.ne.s32.totalorder %s48, %s50
      %p54 = scmp.eq.s32.totalorder %s40, 0
      %p55 = por %p53, %p54
      %p56 = scmp.ne.s32.totalorder %s48, %s50
      %p57 = scmp.eq.s32.totalorder %s45, 3
      %p58 = por %p56, %p57
      %p59 = scmp.ne.s32.totalorder %s50, %s51
      %p60 = scmp.eq.s32.totalorder %s45, 0
      %p61 = por %p59, %p60
      %p62 = scmp.ne.s32.totalorder %s50, %s51
      %p63 = scmp.eq.s32.totalorder %s46, 3
      %p64 = por %p62, %p63
      %p66 = scmp.ne.s32.totalorder %s51, %s65
      %p67 = scmp.eq.s32.totalorder %s46, 0
      %p68 = por %p66, %p67
      %s70 = sadd.s32 %s69, 1
      %p73 = scmp.eq.s32.totalorder %s40, 3
      %p74 = scmp.ne.s32.totalorder %s69, %s71
      %p75 = scmp.eq.s32.totalorder %s40, 0
      %p76 = por %p74, %p75
      %p77 = scmp.ne.s32.totalorder %s69, %s71
      %p78 = scmp.eq.s32.totalorder %s45, 3
      %p79 = por %p77, %p78
      %p80 = scmp.ne.s32.totalorder %s71, %s72
      %p81 = scmp.eq.s32.totalorder %s45, 0
      %p82 = por %p80, %p81
      %p83 = scmp.ne.s32.totalorder %s71, %s72
      %p84 = scmp.eq.s32.totalorder %s46, 3
      %p85 = por %p83, %p84
      %p87 = scmp.ne.s32.totalorder %s72, %s86
      %p88 = scmp.eq.s32.totalorder %s46, 0
      %p89 = por %p87, %p88
      %s91 = sadd.s32 %s90, 1
      %p94 = scmp.eq.s32.totalorder %s40, 3
      %p95 = scmp.ne.s32.totalorder %s90, %s92
      %p96 = scmp.eq.s32.totalorder %s40, 0
      %p97 = por %p95, %p96
      %p98 = scmp.ne.s32.totalorder %s90, %s92
      %p99 = scmp.eq.s32.totalorder %s45, 3
      %p100 = por %p98, %p99
      %p101 = scmp.ne.s32.totalorder %s92, %s93
      %p102 = scmp.eq.s32.totalorder %s45, 0
      %p103 = por %p101, %p102
      %p104 = scmp.ne.s32.totalorder %s92, %s93
      %p105 = scmp.eq.s32.totalorder %s46, 3
      %p106 = por %p104, %p105
      %p108 = scmp.ne.s32.totalorder %s93, %s107
      %p109 = scmp.eq.s32.totalorder %s46, 0
      %p110 = por %p108, %p109
      %s112 = sadd.s32 %s111, 1
      %p115 = scmp.eq.s32.totalorder %s40, 3
      %p116 = scmp.ne.s32.totalorder %s111, %s113
      %p117 = scmp.eq.s32.totalorder %s40, 0
      %p118 = por %p116, %p117
      %p119 = scmp.ne.s32.totalorder %s111, %s113
      %p120 = scmp.eq.s32.totalorder %s45, 3
      %p121 = por %p119, %p120
      %p122 = scmp.ne.s32.totalorder %s113, %s114
      %p123 = scmp.eq.s32.totalorder %s45, 0
      %p124 = por %p122, %p123
      %p125 = scmp.ne.s32.totalorder %s113, %s114
      %p126 = scmp.eq.s32.totalorder %s46, 3
      %p127 = por %p125, %p126
      %p129 = scmp.ne.s32.totalorder %s114, %s128
      %p130 = scmp.eq.s32.totalorder %s46, 0
      %p131 = por %p129, %p130
      %s132 = ssub.s32 %s40, %s47
      %p133 = scmp.eq.s32.totalorder %s132, 0
      %s135 = sadd.s32 %s134, 1
      %s136 = scalar_select %p133, %s134, %s135
      %p139 = pneg %p133
      %p140 = scmp.eq.s32.totalorder %s40, 3
      %p141 = por %p139, %p140
      %p142 = scmp.ne.s32.totalorder %s134, %s137
      %p143 = scmp.eq.s32.totalorder %s40, 0
      %p144 = por %p142, %p143
      %p145 = scmp.ne.s32.totalorder %s134, %s137
      %p146 = scmp.eq.s32.totalorder %s45, 3
      %p147 = por %p145, %p146
      %p148 = scmp.ne.s32.totalorder %s137, %s138
      %p149 = scmp.eq.s32.totalorder %s45, 0
      %p150 = por %p148, %p149
      %p151 = scmp.ne.s32.totalorder %s137, %s138
      %p152 = scmp.eq.s32.totalorder %s46, 3
      %p153 = por %p151, %p152
      %p155 = scmp.ne.s32.totalorder %s138, %s154
      %p156 = scmp.eq.s32.totalorder %s46, 0
      %p157 = por %p155, %p156
      %s158 = ssub.s32 %s40, %s47
      %p159 = scmp.eq.s32.totalorder %s158, 0
      %s161 = sadd.s32 %s160, 1
      %s162 = scalar_select %p159, %s160, %s161
      %p165 = pneg %p159
      %p166 = scmp.eq.s32.totalorder %s40, 3
      %p167 = por %p165, %p166
      %p168 = scmp.ne.s32.totalorder %s160, %s163
      %p169 = scmp.eq.s32.totalorder %s40, 0
      %p170 = por %p168, %p169
      %p171 = scmp.ne.s32.totalorder %s160, %s163
      %p172 = scmp.eq.s32.totalorder %s45, 3
      %p173 = por %p171, %p172
      %p174 = scmp.ne.s32.totalorder %s163, %s164
      %p175 = scmp.eq.s32.totalorder %s45, 0
      %p176 = por %p174, %p175
      %p177 = scmp.ne.s32.totalorder %s163, %s164
      %p178 = scmp.eq.s32.totalorder %s46, 3
      %p179 = por %p177, %p178
      %p181 = scmp.ne.s32.totalorder %s164, %s180
      %p182 = scmp.eq.s32.totalorder %s46, 0
      %p183 = por %p181, %p182
      %s184 = ssub.s32 %s40, %s47
      %p185 = scmp.eq.s32.totalorder %s184, 0
      %s187 = sadd.s32 %s186, 1
      %s188 = scalar_select %p185, %s186, %s187
      %p191 = pneg %p185
      %p192 = scmp.eq.s32.totalorder %s40, 3
      %p193 = por %p191, %p192
      %p194 = scmp.ne.s32.totalorder %s186, %s189
      %p195 = scmp.eq.s32.totalorder %s40, 0
      %p196 = por %p194, %p195
      %p197 = scmp.ne.s32.totalorder %s186, %s189
      %p198 = scmp.eq.s32.totalorder %s45, 3
      %p199 = por %p197, %p198
      %p200 = scmp.ne.s32.totalorder %s189, %s190
      %p201 = scmp.eq.s32.totalorder %s45, 0
      %p202 = por %p200, %p201
      %p203 = scmp.ne.s32.totalorder %s189, %s190
      %p204 = scmp.eq.s32.totalorder %s46, 3
      %p205 = por %p203, %p204
      %p207 = scmp.ne.s32.totalorder %s190, %s206
      %p208 = scmp.eq.s32.totalorder %s46, 0
      %p209 = por %p207, %p208
      %s210 = ssub.s32 %s40, %s47
      %p211 = scmp.eq.s32.totalorder %s210, 0
      %s213 = sadd.s32 %s212, 1
      %s214 = scalar_select %p211, %s212, %s213
      %p217 = pneg %p211
      %p218 = scmp.eq.s32.totalorder %s40, 3
      %p219 = por %p217, %p218
      %p220 = scmp.ne.s32.totalorder %s212, %s215
      %p221 = scmp.eq.s32.totalorder %s40, 0
      %p222 = por %p220, %p221
      %p223 = scmp.ne.s32.totalorder %s212, %s215
      %p224 = scmp.eq.s32.totalorder %s45, 3
      %p225 = por %p223, %p224
      %p226 = scmp.ne.s32.totalorder %s215, %s216
      %p227 = scmp.eq.s32.totalorder %s45, 0
      %p228 = por %p226, %p227
      %p229 = scmp.ne.s32.totalorder %s215, %s216
      %p230 = scmp.eq.s32.totalorder %s46, 3
      %p231 = por %p229, %p230
      %p233 = scmp.ne.s32.totalorder %s216, %s232
      %p234 = scmp.eq.s32.totalorder %s46, 0
      %p235 = por %p233, %p234
      %s236 = ssub.s32 %s40, %s47
      %p237 = scmp.eq.s32.totalorder %s236, 0
      %s239 = sadd.s32 %s238, 1
      %s240 = scalar_select %p237, %s238, %s239
      %p243 = pneg %p237
      %p244 = scmp.eq.s32.totalorder %s40, 3
      %p245 = por %p243, %p244
      %p246 = scmp.ne.s32.totalorder %s238, %s241
      %p247 = scmp.eq.s32.totalorder %s40, 0
      %p248 = por %p246, %p247
      %p249 = scmp.ne.s32.totalorder %s238, %s241
      %p250 = scmp.eq.s32.totalorder %s45, 3
      %p251 = por %p249, %p250
      %p252 = scmp.ne.s32.totalorder %s241, %s242
      %p253 = scmp.eq.s32.totalorder %s45, 0
      %p254 = por %p252, %p253
      %p255 = scmp.ne.s32.totalorder %s241, %s242
      %p256 = scmp.eq.s32.totalorder %s46, 3
      %p257 = por %p255, %p256
      %p259 = scmp.ne.s32.totalorder %s242, %s258
      %p260 = scmp.eq.s32.totalorder %s46, 0
      %p261 = por %p259, %p260
      %s262 = ssub.s32 %s40, %s47
      %p263 = scmp.eq.s32.totalorder %s262, 0
      %s265 = sadd.s32 %s264, 1
      %s266 = scalar_select %p263, %s264, %s265
      %p269 = pneg %p263
      %p270 = scmp.eq.s32.totalorder %s40, 3
      %p271 = por %p269, %p270
      %p272 = scmp.ne.s32.totalorder %s264, %s267
      %p273 = scmp.eq.s32.totalorder %s40, 0
      %p274 = por %p272, %p273
      %p275 = scmp.ne.s32.totalorder %s264, %s267
      %p276 = scmp.eq.s32.totalorder %s45, 3
      %p277 = por %p275, %p276
      %p278 = scmp.ne.s32.totalorder %s267, %s268
      %p279 = scmp.eq.s32.totalorder %s45, 0
      %p280 = por %p278, %p279
      %p281 = scmp.ne.s32.totalorder %s267, %s268
      %p282 = scmp.eq.s32.totalorder %s46, 3
      %p283 = por %p281, %p282
      %p285 = scmp.ne.s32.totalorder %s268, %s284
      %p286 = scmp.eq.s32.totalorder %s46, 0
      %p287 = por %p285, %p286
      %s288 = ssub.s32 %s40, %s47
      %p289 = scmp.eq.s32.totalorder %s288, 0
      %s291 = sadd.s32 %s290, 1
      %s292 = scalar_select %p289, %s290, %s291
      %p295 = pneg %p289
      %p296 = scmp.eq.s32.totalorder %s40, 3
      %p297 = por %p295, %p296
      %p298 = scmp.ne.s32.totalorder %s290, %s293
      %p299 = scmp.eq.s32.totalorder %s40, 0
      %p300 = por %p298, %p299
      %p301 = scmp.ne.s32.totalorder %s290, %s293
      %p302 = scmp.eq.s32.totalorder %s45, 3
      %p303 = por %p301, %p302
      %p304 = scmp.ne.s32.totalorder %s293, %s294
      %p305 = scmp.eq.s32.totalorder %s45, 0
      %p306 = por %p304, %p305
      %p307 = scmp.ne.s32.totalorder %s293, %s294
      %p308 = scmp.eq.s32.totalorder %s46, 3
      %p309 = por %p307, %p308
      %p311 = scmp.ne.s32.totalorder %s294, %s310
      %p312 = scmp.eq.s32.totalorder %s46, 0
      %p313 = por %p311, %p312
      %s314 = ssub.s32 %s40, %s47
      %p315 = scmp.eq.s32.totalorder %s314, 0
      %s317 = sadd.s32 %s316, 1
      %s318 = scalar_select %p315, %s316, %s317
      %p321 = pneg %p315
      %p322 = scmp.eq.s32.totalorder %s40, 3
      %p323 = por %p321, %p322
      %p324 = scmp.ne.s32.totalorder %s316, %s319
      %p325 = scmp.eq.s32.totalorder %s40, 0
      %p326 = por %p324, %p325
      %p327 = scmp.ne.s32.totalorder %s316, %s319
      %p328 = scmp.eq.s32.totalorder %s45, 3
      %p329 = por %p327, %p328
      %p330 = scmp.ne.s32.totalorder %s319, %s320
      %p331 = scmp.eq.s32.totalorder %s45, 0
      %p332 = por %p330, %p331
      %p333 = scmp.ne.s32.totalorder %s319, %s320
      %p334 = scmp.eq.s32.totalorder %s46, 3
      %p335 = por %p333, %p334
      %p337 = scmp.ne.s32.totalorder %s320, %s336
      %p338 = scmp.eq.s32.totalorder %s46, 0
      %p339 = por %p337, %p338
      %s340 = ssub.s32 %s40, %s47
      %p341 = scmp.eq.s32.totalorder %s340, 0
      %s343 = sadd.s32 %s342, 1
      %s344 = scalar_select %p341, %s342, %s343
      %p347 = pneg %p341
      %p348 = scmp.eq.s32.totalorder %s40, 3
      %p349 = por %p347, %p348
      %p350 = scmp.ne.s32.totalorder %s342, %s345
      %p351 = scmp.eq.s32.totalorder %s40, 0
      %p352 = por %p350, %p351
      %p353 = scmp.ne.s32.totalorder %s342, %s345
      %p354 = scmp.eq.s32.totalorder %s45, 3
      %p355 = por %p353, %p354
      %p356 = scmp.ne.s32.totalorder %s345, %s346
      %p357 = scmp.eq.s32.totalorder %s45, 0
      %p358 = por %p356, %p357
      %p359 = scmp.ne.s32.totalorder %s345, %s346
      %p360 = scmp.eq.s32.totalorder %s46, 3
      %p361 = por %p359, %p360
      %p363 = scmp.ne.s32.totalorder %s346, %s362
      %p364 = scmp.eq.s32.totalorder %s46, 0
      %p365 = por %p363, %p364
      %s366 = ssub.s32 %s40, %s47
      %p367 = scmp.eq.s32.totalorder %s366, 0
      %s369 = sadd.s32 %s368, 1
      %s370 = scalar_select %p367, %s368, %s369
      %p373 = pneg %p367
      %p374 = scmp.eq.s32.totalorder %s40, 3
      %p375 = por %p373, %p374
      %p376 = scmp.ne.s32.totalorder %s368, %s371
      %p377 = scmp.eq.s32.totalorder %s40, 0
      %p378 = por %p376, %p377
      %p379 = scmp.ne.s32.totalorder %s368, %s371
      %p380 = scmp.eq.s32.totalorder %s45, 3
      %p381 = por %p379, %p380
      %p382 = scmp.ne.s32.totalorder %s371, %s372
      %p383 = scmp.eq.s32.totalorder %s45, 0
      %p384 = por %p382, %p383
      %p385 = scmp.ne.s32.totalorder %s371, %s372
      %p386 = scmp.eq.s32.totalorder %s46, 3
      %p387 = por %p385, %p386
      %p389 = scmp.ne.s32.totalorder %s372, %s388
      %p390 = scmp.eq.s32.totalorder %s46, 0
      %p391 = por %p389, %p390
      %s392 = ssub.s32 %s40, %s47
      %p393 = scmp.eq.s32.totalorder %s392, 0
      %s395 = sadd.s32 %s394, 1
      %s396 = scalar_select %p393, %s394, %s395
      %p399 = pneg %p393
      %p400 = scmp.eq.s32.totalorder %s40, 3
      %p401 = por %p399, %p400
      %p402 = scmp.ne.s32.totalorder %s394, %s397
      %p403 = scmp.eq.s32.totalorder %s40, 0
      %p404 = por %p402, %p403
      %p405 = scmp.ne.s32.totalorder %s394, %s397
      %p406 = scmp.eq.s32.totalorder %s45, 3
      %p407 = por %p405, %p406
      %p408 = scmp.ne.s32.totalorder %s397, %s398
      %p409 = scmp.eq.s32.totalorder %s45, 0
      %p410 = por %p408, %p409
      %p411 = scmp.ne.s32.totalorder %s397, %s398
      %p412 = scmp.eq.s32.totalorder %s46, 3
      %p413 = por %p411, %p412
      %p415 = scmp.ne.s32.totalorder %s398, %s414
      %p416 = scmp.eq.s32.totalorder %s46, 0
      %p417 = por %p415, %p416
      %s418 = ssub.s32 %s40, %s47
      %p419 = scmp.eq.s32.totalorder %s418, 0
      %s421 = sadd.s32 %s420, 1
      %s422 = scalar_select %p419, %s420, %s421
      %p425 = pneg %p419
      %p426 = scmp.eq.s32.totalorder %s40, 3
      %p427 = por %p425, %p426
      %p428 = scmp.ne.s32.totalorder %s420, %s423
      %p429 = scmp.eq.s32.totalorder %s40, 0
      %p430 = por %p428, %p429
      %p431 = scmp.ne.s32.totalorder %s420, %s423
      %p432 = scmp.eq.s32.totalorder %s45, 3
      %p433 = por %p431, %p432
      %p434 = scmp.ne.s32.totalorder %s423, %s424
      %p435 = scmp.eq.s32.totalorder %s45, 0
      %p436 = por %p434, %p435
      %p437 = scmp.ne.s32.totalorder %s423, %s424
      %p438 = scmp.eq.s32.totalorder %s46, 3
      %p439 = por %p437, %p438
      %p441 = scmp.ne.s32.totalorder %s424, %s440
      %p442 = scmp.eq.s32.totalorder %s46, 0
      %p443 = por %p441, %p442
      %s445 = sadd.s32 %s444, 1
      %p448 = scmp.eq.s32.totalorder %s40, 3
      %p449 = scmp.ne.s32.totalorder %s444, %s446
      %p450 = scmp.eq.s32.totalorder %s40, 0
      %p451 = por %p449, %p450
      %p452 = scmp.ne.s32.totalorder %s444, %s446
      %p453 = scmp.eq.s32.totalorder %s45, 3
      %p454 = por %p452, %p453
      %p455 = scmp.ne.s32.totalorder %s446, %s447
      %p456 = scmp.eq.s32.totalorder %s45, 0
      %p457 = por %p455, %p456
      %p458 = scmp.ne.s32.totalorder %s446, %s447
      %p459 = scmp.eq.s32.totalorder %s46, 3
      %p460 = por %p458, %p459
      %p462 = scmp.ne.s32.totalorder %s447, %s461
      %p463 = scmp.eq.s32.totalorder %s46, 0
      %p464 = por %p462, %p463
      %s466 = sadd.s32 %s465, 1
      %p469 = scmp.eq.s32.totalorder %s40, 3
      %p470 = scmp.ne.s32.totalorder %s465, %s467
      %p471 = scmp.eq.s32.totalorder %s40, 0
      %p472 = por %p470, %p471
      %p473 = scmp.ne.s32.totalorder %s465, %s467
      %p474 = scmp.eq.s32.totalorder %s45, 3
      %p475 = por %p473, %p474
      %p476 = scmp.ne.s32.totalorder %s467, %s468
      %p477 = scmp.eq.s32.totalorder %s45, 0
      %p478 = por %p476, %p477
      %p479 = scmp.ne.s32.totalorder %s467, %s468
      %p480 = scmp.eq.s32.totalorder %s46, 3
      %p481 = por %p479, %p480
      %p483 = scmp.ne.s32.totalorder %s468, %s482
      %p484 = scmp.eq.s32.totalorder %s46, 0
      %p485 = por %p483, %p484
      %s487 = sadd.s32 %s486, 1
      %p490 = scmp.eq.s32.totalorder %s40, 3
      %p491 = scmp.ne.s32.totalorder %s486, %s488
      %p492 = scmp.eq.s32.totalorder %s40, 0
      %p493 = por %p491, %p492
      %p494 = scmp.ne.s32.totalorder %s486, %s488
      %p495 = scmp.eq.s32.totalorder %s45, 3
      %p496 = por %p494, %p495
      %p497 = scmp.ne.s32.totalorder %s488, %s489
      %p498 = scmp.eq.s32.totalorder %s45, 0
      %p499 = por %p497, %p498
      %p500 = scmp.ne.s32.totalorder %s488, %s489
      %p501 = scmp.eq.s32.totalorder %s46, 3
      %p502 = por %p500, %p501
      %p504 = scmp.ne.s32.totalorder %s489, %s503
      %p505 = scmp.eq.s32.totalorder %s46, 0
      %p506 = por %p504, %p505
      %s508 = sadd.s32 %s507, 1
      %p511 = scmp.eq.s32.totalorder %s40, 3
      %p512 = scmp.ne.s32.totalorder %s507, %s509
      %p513 = scmp.eq.s32.totalorder %s40, 0
      %p514 = por %p512, %p513
      %p515 = scmp.ne.s32.totalorder %s507, %s509
      %p516 = scmp.eq.s32.totalorder %s45, 3
      %p517 = por %p515, %p516
      %p518 = scmp.ne.s32.totalorder %s509, %s510
      %p519 = scmp.eq.s32.totalorder %s45, 0
      %p520 = por %p518, %p519
      %p521 = scmp.ne.s32.totalorder %s509, %s510
      %p522 = scmp.eq.s32.totalorder %s46, 3
      %p523 = por %p521, %p522
      %p525 = scmp.ne.s32.totalorder %s510, %s524
      %p526 = scmp.eq.s32.totalorder %s46, 0
      %p527 = por %p525, %p526
      %s529 = sadd.s32 %s528, 1
      %p532 = scmp.eq.s32.totalorder %s40, 3
      %p533 = scmp.ne.s32.totalorder %s528, %s530
      %p534 = scmp.eq.s32.totalorder %s40, 0
      %p535 = por %p533, %p534
      %p536 = scmp.ne.s32.totalorder %s528, %s530
      %p537 = scmp.eq.s32.totalorder %s45, 3
      %p538 = por %p536, %p537
      %p539 = scmp.ne.s32.totalorder %s530, %s531
      %p540 = scmp.eq.s32.totalorder %s45, 0
      %p541 = por %p539, %p540
      %p542 = scmp.ne.s32.totalorder %s530, %s531
      %p543 = scmp.eq.s32.totalorder %s46, 3
      %p544 = por %p542, %p543
      %p546 = scmp.ne.s32.totalorder %s531, %s545
      %p547 = scmp.eq.s32.totalorder %s46, 0
      %p548 = por %p546, %p547
      %s550 = sadd.s32 %s549, 1
      %p553 = scmp.eq.s32.totalorder %s40, 3
      %p554 = scmp.ne.s32.totalorder %s549, %s551
      %p555 = scmp.eq.s32.totalorder %s40, 0
      %p556 = por %p554, %p555
      %p557 = scmp.ne.s32.totalorder %s549, %s551
      %p558 = scmp.eq.s32.totalorder %s45, 3
      %p559 = por %p557, %p558
      %p560 = scmp.ne.s32.totalorder %s551, %s552
      %p561 = scmp.eq.s32.totalorder %s45, 0
      %p562 = por %p560, %p561
      %p563 = scmp.ne.s32.totalorder %s551, %s552
      %p564 = scmp.eq.s32.totalorder %s46, 3
      %p565 = por %p563, %p564
      %p567 = scmp.ne.s32.totalorder %s552, %s566
      %p568 = scmp.eq.s32.totalorder %s46, 0
      %p569 = por %p567, %p568
      %s571 = sadd.s32 %s570, 1
      %p574 = scmp.eq.s32.totalorder %s40, 3
      %p575 = scmp.ne.s32.totalorder %s570, %s572
      %p576 = scmp.eq.s32.totalorder %s40, 0
      %p577 = por %p575, %p576
      %p578 = scmp.ne.s32.totalorder %s570, %s572
      %p579 = scmp.eq.s32.totalorder %s45, 3
      %p580 = por %p578, %p579
      %p581 = scmp.ne.s32.totalorder %s572, %s573
      %p582 = scmp.eq.s32.totalorder %s45, 0
      %p583 = por %p581, %p582
      %p584 = scmp.ne.s32.totalorder %s572, %s573
      %p585 = scmp.eq.s32.totalorder %s46, 3
      %p586 = por %p584, %p585
      %p588 = scmp.ne.s32.totalorder %s573, %s587
      %p589 = scmp.eq.s32.totalorder %s46, 0
      %p590 = por %p588, %p589
      %s592 = sadd.s32 %s591, 1
      %p595 = scmp.eq.s32.totalorder %s40, 3
      %p596 = scmp.ne.s32.totalorder %s591, %s593
      %p597 = scmp.eq.s32.totalorder %s40, 0
      %p598 = por %p596, %p597
      %p599 = scmp.ne.s32.totalorder %s591, %s593
      %p600 = scmp.eq.s32.totalorder %s45, 3
      %p601 = por %p599, %p600
      %p602 = scmp.ne.s32.totalorder %s593, %s594
      %p603 = scmp.eq.s32.totalorder %s45, 0
      %p604 = por %p602, %p603
      %p605 = scmp.ne.s32.totalorder %s593, %s594
      %p606 = scmp.eq.s32.totalorder %s46, 3
      %p607 = por %p605, %p606
      %p609 = scmp.ne.s32.totalorder %s594, %s608
      %p610 = scmp.eq.s32.totalorder %s46, 0
      %p611 = por %p609, %p610
      %s613 = sadd.s32 %s612, 1
      %p616 = scmp.eq.s32.totalorder %s40, 3
      %p617 = scmp.ne.s32.totalorder %s612, %s614
      %p618 = scmp.eq.s32.totalorder %s40, 0
      %p619 = por %p617, %p618
      %p620 = scmp.ne.s32.totalorder %s612, %s614
      %p621 = scmp.eq.s32.totalorder %s45, 3
      %p622 = por %p620, %p621
      %p623 = scmp.ne.s32.totalorder %s614, %s615
      %p624 = scmp.eq.s32.totalorder %s45, 0
      %p625 = por %p623, %p624
      %p626 = scmp.ne.s32.totalorder %s614, %s615
      %p627 = scmp.eq.s32.totalorder %s46, 3
      %p628 = por %p626, %p627
      %p630 = scmp.ne.s32.totalorder %s615, %s629
      %p631 = scmp.eq.s32.totalorder %s46, 0
      %p632 = por %p630, %p631
      %s634 = sadd.s32 %s633, 1
      %p637 = scmp.eq.s32.totalorder %s40, 3
      %p638 = scmp.ne.s32.totalorder %s633, %s635
      %p639 = scmp.eq.s32.totalorder %s40, 0
      %p640 = por %p638, %p639
      %p641 = scmp.ne.s32.totalorder %s633, %s635
      %p642 = scmp.eq.s32.totalorder %s45, 3
      %p643 = por %p641, %p642
      %p644 = scmp.ne.s32.totalorder %s635, %s636
      %p645 = scmp.eq.s32.totalorder %s45, 0
      %p646 = por %p644, %p645
      %p647 = scmp.ne.s32.totalorder %s635, %s636
      %p648 = scmp.eq.s32.totalorder %s46, 3
      %p649 = por %p647, %p648
      %p651 = scmp.ne.s32.totalorder %s636, %s650
      %p652 = scmp.eq.s32.totalorder %s46, 0
      %p653 = por %p651, %p652
      %s655 = sadd.s32 %s654, 1
      %p658 = scmp.eq.s32.totalorder %s40, 3
      %p659 = scmp.ne.s32.totalorder %s654, %s656
      %p660 = scmp.eq.s32.totalorder %s40, 0
      %p661 = por %p659, %p660
      %p662 = scmp.ne.s32.totalorder %s654, %s656
      %p663 = scmp.eq.s32.totalorder %s45, 3
      %p664 = por %p662, %p663
      %p665 = scmp.ne.s32.totalorder %s656, %s657
      %p666 = scmp.eq.s32.totalorder %s45, 0
      %p667 = por %p665, %p666
      %p668 = scmp.ne.s32.totalorder %s656, %s657
      %p669 = scmp.eq.s32.totalorder %s46, 3
      %p670 = por %p668, %p669
      %p672 = scmp.ne.s32.totalorder %s657, %s671
      %p673 = scmp.eq.s32.totalorder %s46, 0
      %p674 = por %p672, %p673
      %p675 = scmp.le.s32.totalorder 1, %s40
      %p676 = scmp.lt.s32.totalorder %s40, 5
      %p677 = pnand %p675, %p676
      %p678 = pneg %p677
      // Predicated region
      $region9: #{mtsp_forward.1} parent=5 // pred_check
        _
      $region10: #{mtsp_forward.1} parent=5 // pred_check_branch
        %680 = sbr.rel (%p677) target = $region12
      $region11: #{mtsp_forward.1} parent=5 // pred_region
        %s681 = ssub.s32 %s40, 1
        // Predicated region
        $region13: #{mtsp_forward.1} parent=11 // pred_check
          %p682 = pneg %p61
        $region14: #{mtsp_forward.1} parent=11 // pred_check_branch
          %684 = sbr.rel (%p682) target = $region16
        $region15: #{mtsp_forward.1} parent=11 // pred_region
          _
        $region16: #{mtsp_forward.1} parent=11 // pred_fallthru
          _
        // Predicated region
        $region17: #{mtsp_forward.1} parent=11 // pred_check
          %p685 = pneg %p82
        $region18: #{mtsp_forward.1} parent=11 // pred_check_branch
          %687 = sbr.rel (%p685) target = $region20
        $region19: #{mtsp_forward.1} parent=11 // pred_region
          _
        $region20: #{mtsp_forward.1} parent=11 // pred_fallthru
          _
        // Predicated region
        $region21: #{mtsp_forward.1} parent=11 // pred_check
          %p688 = pneg %p103
        $region22: #{mtsp_forward.1} parent=11 // pred_check_branch
          %690 = sbr.rel (%p688) target = $region24
        $region23: #{mtsp_forward.1} parent=11 // pred_region
          %s692 = ssub.s32 32, 32
          %693 = vsyncadd [#allocation5], %s692
          %s695 = sshll.u32 [#allocation4], 4
          %s696 = int_to_ptr.vmem [resolvable:$true] %s695
          %698 = dma.hbm_to_vmem [thread:$0]  %s2, 32, %s696, [#allocation5]
        $region24: #{mtsp_forward.1} parent=11 // pred_fallthru
          _
        // Predicated region
        $region25: #{mtsp_forward.1} parent=11 // pred_check
          %p699 = pneg %p124
        $region26: #{mtsp_forward.1} parent=11 // pred_check_branch
          %701 = sbr.rel (%p699) target = $region28
        $region27: #{mtsp_forward.1} parent=11 // pred_region
          %s703 = ssub.s32 16, 16
          %704 = vsyncadd [#allocation7], %s703
          %s706 = sshll.u32 [#allocation6], 4
          %s707 = int_to_ptr.vmem [resolvable:$true] %s706
          %709 = dma.hbm_to_vmem [thread:$0]  %s3, 16, %s707, [#allocation7]
        $region28: #{mtsp_forward.1} parent=11 // pred_fallthru
          _
        // Predicated region
        $region29: #{mtsp_forward.1} parent=11 // pred_check
          %p710 = pneg %p457
        $region30: #{mtsp_forward.1} parent=11 // pred_check_branch
          %712 = sbr.rel (%p710) target = $region32
        $region31: #{mtsp_forward.1} parent=11 // pred_region
          %s714 = ssub.s32 1024, 1024
          %715 = vsyncadd [#allocation7], %s714
          %s716 = sshll.u32 [#allocation20], 4
          %s717 = int_to_ptr.vmem [resolvable:$true] %s716
          %722 = dma.hbm_to_vmem [thread:$0]  %s16, 1024, %s717, [#allocation7], 64, 64, 4
        $region32: #{mtsp_forward.1} parent=11 // pred_fallthru
          _
        // Predicated region
        $region33: #{mtsp_forward.1} parent=11 // pred_check
          %p723 = pneg %p478
        $region34: #{mtsp_forward.1} parent=11 // pred_check_branch
          %725 = sbr.rel (%p723) target = $region36
        $region35: #{mtsp_forward.1} parent=11 // pred_region
          %s727 = ssub.s32 16, 16
          %728 = vsyncadd [#allocation22], %s727
          %s730 = sshll.u32 [#allocation21], 4
          %s731 = int_to_ptr.vmem [resolvable:$true] %s730
          %733 = dma.hbm_to_vmem [thread:$0]  %s17, 16, %s731, [#allocation22]
        $region36: #{mtsp_forward.1} parent=11 // pred_fallthru
          _
        // Predicated region
        $region37: #{mtsp_forward.1} parent=11 // pred_check
          %p734 = pneg %p499
        $region38: #{mtsp_forward.1} parent=11 // pred_check_branch
          %736 = sbr.rel (%p734) target = $region40
        $region39: #{mtsp_forward.1} parent=11 // pred_region
          %s738 = ssub.s32 16, 16
          %739 = vsyncadd [#allocation22], %s738
          %s741 = sshll.u32 [#allocation23], 4
          %s742 = int_to_ptr.vmem [resolvable:$true] %s741
          %744 = dma.hbm_to_vmem [thread:$0]  %s18, 16, %s742, [#allocation22]
        $region40: #{mtsp_forward.1} parent=11 // pred_fallthru
          _
        // Predicated region
        $region41: #{mtsp_forward.1} parent=11 // pred_check
          %p745 = pneg %p520
        $region42: #{mtsp_forward.1} parent=11 // pred_check_branch
          %747 = sbr.rel (%p745) target = $region44
        $region43: #{mtsp_forward.1} parent=11 // pred_region
          %s749 = ssub.s32 16, 16
          %750 = vsyncadd [#allocation25], %s749
          %s752 = sshll.u32 [#allocation24], 4
          %s753 = int_to_ptr.vmem [resolvable:$true] %s752
          %755 = dma.hbm_to_vmem [thread:$0]  %s19, 16, %s753, [#allocation25]
        $region44: #{mtsp_forward.1} parent=11 // pred_fallthru
          _
        // Predicated region
        $region45: #{mtsp_forward.1} parent=11 // pred_check
          %p756 = pneg %p541
        $region46: #{mtsp_forward.1} parent=11 // pred_check_branch
          %758 = sbr.rel (%p756) target = $region48
        $region47: #{mtsp_forward.1} parent=11 // pred_region
          _
        $region48: #{mtsp_forward.1} parent=11 // pred_fallthru
          _
        // Predicated region
        $region49: #{mtsp_forward.1} parent=11 // pred_check
          %p759 = pneg %p562
        $region50: #{mtsp_forward.1} parent=11 // pred_check_branch
          %761 = sbr.rel (%p759) target = $region52
        $region51: #{mtsp_forward.1} parent=11 // pred_region
          %s763 = ssub.s32 16, 16
          %764 = vsyncadd [#allocation25], %s763
          %s766 = sshll.u32 [#allocation26], 4
          %s767 = int_to_ptr.vmem [resolvable:$true] %s766
          %769 = dma.hbm_to_vmem [thread:$0]  %s21, 16, %s767, [#allocation25]
        $region52: #{mtsp_forward.1} parent=11 // pred_fallthru
          _
        // Predicated region
        $region53: #{mtsp_forward.1} parent=11 // pred_check
          %p770 = pneg %p583
        $region54: #{mtsp_forward.1} parent=11 // pred_check_branch
          %772 = sbr.rel (%p770) target = $region56
        $region55: #{mtsp_forward.1} parent=11 // pred_region
          %s774 = ssub.s32 16, 16
          %775 = vsyncadd [#allocation28], %s774
          %s777 = sshll.u32 [#allocation27], 4
          %s778 = int_to_ptr.vmem [resolvable:$true] %s777
          %780 = dma.hbm_to_vmem [thread:$0]  %s22, 16, %s778, [#allocation28]
        $region56: #{mtsp_forward.1} parent=11 // pred_fallthru
          _
        // Predicated region
        $region57: #{mtsp_forward.1} parent=11 // pred_check
          %p781 = pneg %p604
        $region58: #{mtsp_forward.1} parent=11 // pred_check_branch
          %783 = sbr.rel (%p781) target = $region60
        $region59: #{mtsp_forward.1} parent=11 // pred_region
          %s785 = ssub.s32 16, 16
          %786 = vsyncadd [#allocation28], %s785
          %s788 = sshll.u32 [#allocation29], 4
          %s789 = int_to_ptr.vmem [resolvable:$true] %s788
          %791 = dma.hbm_to_vmem [thread:$0]  %s23, 16, %s789, [#allocation28]
        $region60: #{mtsp_forward.1} parent=11 // pred_fallthru
          _
        // Predicated region
        $region61: #{mtsp_forward.1} parent=11 // pred_check
          %p792 = pneg %p625
        $region62: #{mtsp_forward.1} parent=11 // pred_check_branch
          %794 = sbr.rel (%p792) target = $region64
        $region63: #{mtsp_forward.1} parent=11 // pred_region
          %s796 = ssub.s32 16, 16
          %797 = vsyncadd [#allocation31], %s796
          %s799 = sshll.u32 [#allocation30], 4
          %s800 = int_to_ptr.vmem [resolvable:$true] %s799
          %802 = dma.hbm_to_vmem [thread:$0]  %s24, 16, %s800, [#allocation31]
        $region64: #{mtsp_forward.1} parent=11 // pred_fallthru
          _
        // Predicated region
        $region65: #{mtsp_forward.1} parent=11 // pred_check
          %p803 = pneg %p646
        $region66: #{mtsp_forward.1} parent=11 // pred_check_branch
          %805 = sbr.rel (%p803) target = $region68
        $region67: #{mtsp_forward.1} parent=11 // pred_region
          _
        $region68: #{mtsp_forward.1} parent=11 // pred_fallthru
          _
      $region12: #{mtsp_forward.1} parent=5 // pred_fallthru
        _
      %p806 = scmp.lt.s32.totalorder %s40, 4
      // Predicated region
      $region69: #{mtsp_forward.1} parent=5 // pred_check
        %p807 = pneg %p806
      $region70: #{mtsp_forward.1} parent=5 // pred_check_branch
        %809 = sbr.rel (%p807) target = $region72
      $region71: #{mtsp_forward.1} parent=5 // pred_region
        // Predicated region
        $region73: #{mtsp_forward.1} parent=71 // pred_check
          %p810 = pneg %p144
        $region74: #{mtsp_forward.1} parent=71 // pred_check_branch
          %812 = sbr.rel (%p810) target = $region76
        $region75: #{mtsp_forward.1} parent=71 // pred_region
          %s813 = sand.u32 %s40, 1
          %s814 = scalar_lea.sflag [#allocation5], %s813
          %s815 = sand.u32 %s134, 1
          %s816 = smul.addr %s815, 192
          %s817 = scalar_lea.vmem [#allocation8], %s816
          %s819 = ssub.s32 3072, 3072
          %820 = vsyncadd %s814, %s819
          %s821 = smul.addr %s40, 48
          %s822 = smul.addr %s821, 64
          %s823 = scalar_lea.hbm %s4, %s822
          %s824 = sshll.u32 %s817, 4
          %s825 = int_to_ptr.vmem [resolvable:$true] %s824
          %830 = dma.hbm_to_vmem [thread:$0]  %s823, 3072, %s825, %s814, 192, 192, 12
        $region76: #{mtsp_forward.1} parent=71 // pred_fallthru
          _
        // Predicated region
        $region77: #{mtsp_forward.1} parent=71 // pred_check
          %p831 = pneg %p170
        $region78: #{mtsp_forward.1} parent=71 // pred_check_branch
          %833 = sbr.rel (%p831) target = $region80
        $region79: #{mtsp_forward.1} parent=71 // pred_region
          %s834 = sand.u32 %s40, 1
          %s835 = scalar_lea.sflag [#allocation5], %s834
          %s836 = sand.u32 %s160, 1
          %s837 = smul.addr %s836, 3
          %s838 = scalar_lea.vmem [#allocation9], %s837
          %s840 = ssub.s32 48, 48
          %841 = vsyncadd %s835, %s840
          %s842 = smul.addr %s40, 3
          %s843 = smul.addr %s842, 16
          %s844 = scalar_lea.hbm %s5, %s843
          %s846 = sshll.u32 %s838, 4
          %s847 = int_to_ptr.vmem [resolvable:$true] %s846
          %849 = dma.hbm_to_vmem [thread:$0]  %s844, 48, %s847, %s835
        $region80: #{mtsp_forward.1} parent=71 // pred_fallthru
          _
        // Predicated region
        $region81: #{mtsp_forward.1} parent=71 // pred_check
          %p850 = pneg %p196
        $region82: #{mtsp_forward.1} parent=71 // pred_check_branch
          %852 = sbr.rel (%p850) target = $region84
        $region83: #{mtsp_forward.1} parent=71 // pred_region
          %s853 = sand.u32 %s40, 1
          %s854 = scalar_lea.sflag [#allocation5], %s853
          %s855 = sand.u32 %s186, 1
          %s856 = smul.addr %s855, 64
          %s857 = scalar_lea.vmem [#allocation10], %s856
          %s859 = ssub.s32 1024, 1024
          %860 = vsyncadd %s854, %s859
          %s861 = smul.addr %s40, 16
          %s862 = smul.addr %s861, 64
          %s863 = scalar_lea.hbm %s6, %s862
          %s864 = sshll.u32 %s857, 4
          %s865 = int_to_ptr.vmem [resolvable:$true] %s864
          %870 = dma.hbm_to_vmem [thread:$0]  %s863, 1024, %s865, %s854, 64, 64, 4
        $region84: #{mtsp_forward.1} parent=71 // pred_fallthru
          _
        // Predicated region
        $region85: #{mtsp_forward.1} parent=71 // pred_check
          %p871 = pneg %p222
        $region86: #{mtsp_forward.1} parent=71 // pred_check_branch
          %873 = sbr.rel (%p871) target = $region88
        $region87: #{mtsp_forward.1} parent=71 // pred_region
          %s874 = sand.u32 %s40, 1
          %s875 = scalar_lea.sflag [#allocation5], %s874
          %s876 = sand.u32 %s212, 1
          %s877 = scalar_lea.vmem [#allocation11], %s876
          %s879 = ssub.s32 16, 16
          %880 = vsyncadd %s875, %s879
          %s881 = smul.addr %s40, 16
          %s882 = scalar_lea.hbm %s7, %s881
          %s884 = sshll.u32 %s877, 4
          %s885 = int_to_ptr.vmem [resolvable:$true] %s884
          %887 = dma.hbm_to_vmem [thread:$0]  %s882, 16, %s885, %s875
        $region88: #{mtsp_forward.1} parent=71 // pred_fallthru
          _
        // Predicated region
        $region89: #{mtsp_forward.1} parent=71 // pred_check
          %p888 = pneg %p248
        $region90: #{mtsp_forward.1} parent=71 // pred_check_branch
          %890 = sbr.rel (%p888) target = $region92
        $region91: #{mtsp_forward.1} parent=71 // pred_region
          %s891 = sand.u32 %s40, 1
          %s892 = scalar_lea.sflag [#allocation5], %s891
          %s893 = sand.u32 %s238, 1
          %s894 = scalar_lea.vmem [#allocation12], %s893
          %s896 = ssub.s32 16, 16
          %897 = vsyncadd %s892, %s896
          %s898 = smul.addr %s40, 16
          %s899 = scalar_lea.hbm %s8, %s898
          %s901 = sshll.u32 %s894, 4
          %s902 = int_to_ptr.vmem [resolvable:$true] %s901
          %904 = dma.hbm_to_vmem [thread:$0]  %s899, 16, %s902, %s892
        $region92: #{mtsp_forward.1} parent=71 // pred_fallthru
          _
        // Predicated region
        $region93: #{mtsp_forward.1} parent=71 // pred_check
          %p905 = pneg %p274
        $region94: #{mtsp_forward.1} parent=71 // pred_check_branch
          %907 = sbr.rel (%p905) target = $region96
        $region95: #{mtsp_forward.1} parent=71 // pred_region
          %s908 = sand.u32 %s40, 1
          %s909 = scalar_lea.sflag [#allocation5], %s908
          %s910 = sand.u32 %s264, 1
          %s911 = scalar_lea.vmem [#allocation13], %s910
          %s913 = ssub.s32 16, 16
          %914 = vsyncadd %s909, %s913
          %s915 = smul.addr %s40, 16
          %s916 = scalar_lea.hbm %s9, %s915
          %s918 = sshll.u32 %s911, 4
          %s919 = int_to_ptr.vmem [resolvable:$true] %s918
          %921 = dma.hbm_to_vmem [thread:$0]  %s916, 16, %s919, %s909
        $region96: #{mtsp_forward.1} parent=71 // pred_fallthru
          _
        // Predicated region
        $region97: #{mtsp_forward.1} parent=71 // pred_check
          %p922 = pneg %p300
        $region98: #{mtsp_forward.1} parent=71 // pred_check_branch
          %924 = sbr.rel (%p922) target = $region100
        $region99: #{mtsp_forward.1} parent=71 // pred_region
          %s925 = sand.u32 %s40, 1
          %s926 = scalar_lea.sflag [#allocation5], %s925
          %s927 = sand.u32 %s290, 1
          %s928 = smul.addr %s927, 1024
          %s929 = scalar_lea.vmem [#allocation14], %s928
          %s931 = ssub.s32 16384, 16384
          %932 = vsyncadd %s926, %s931
          %s933 = smul.addr %s40, 256
          %s934 = smul.addr %s933, 64
          %s935 = scalar_lea.hbm %s10, %s934
          %s936 = sshll.u32 %s929, 4
          %s937 = int_to_ptr.vmem [resolvable:$true] %s936
          %942 = dma.hbm_to_vmem [thread:$0]  %s935, 16384, %s937, %s926, 1024, 1024, 64
        $region100: #{mtsp_forward.1} parent=71 // pred_fallthru
          _
        // Predicated region
        $region101: #{mtsp_forward.1} parent=71 // pred_check
          %p943 = pneg %p326
        $region102: #{mtsp_forward.1} parent=71 // pred_check_branch
          %945 = sbr.rel (%p943) target = $region104
        $region103: #{mtsp_forward.1} parent=71 // pred_region
          %s946 = sand.u32 %s40, 1
          %s947 = scalar_lea.sflag [#allocation5], %s946
          %s948 = sand.u32 %s316, 1
          %s949 = smul.addr %s948, 16
          %s950 = scalar_lea.vmem [#allocation15], %s949
          %s952 = ssub.s32 256, 256
          %953 = vsyncadd %s947, %s952
          %s954 = smul.addr %s40, 16
          %s955 = smul.addr %s954, 16
          %s956 = scalar_lea.hbm %s11, %s955
          %s958 = sshll.u32 %s950, 4
          %s959 = int_to_ptr.vmem [resolvable:$true] %s958
          %961 = dma.hbm_to_vmem [thread:$0]  %s956, 256, %s959, %s947
        $region104: #{mtsp_forward.1} parent=71 // pred_fallthru
          _
        // Predicated region
        $region105: #{mtsp_forward.1} parent=71 // pred_check
          %p962 = pneg %p352
        $region106: #{mtsp_forward.1} parent=71 // pred_check_branch
          %964 = sbr.rel (%p962) target = $region108
        $region107: #{mtsp_forward.1} parent=71 // pred_region
          %s965 = sand.u32 %s40, 1
          %s966 = scalar_lea.sflag [#allocation5], %s965
          %s967 = sand.u32 %s342, 1
          %s968 = smul.addr %s967, 1024
          %s969 = scalar_lea.vmem [#allocation16], %s968
          %s971 = ssub.s32 16384, 16384
          %972 = vsyncadd %s966, %s971
          %s973 = smul.addr %s40, 256
          %s974 = smul.addr %s973, 64
          %s975 = scalar_lea.hbm %s12, %s974
          %s976 = sshll.u32 %s969, 4
          %s977 = int_to_ptr.vmem [resolvable:$true] %s976
          %982 = dma.hbm_to_vmem [thread:$0]  %s975, 16384, %s977, %s966, 64, 64, 4
        $region108: #{mtsp_forward.1} parent=71 // pred_fallthru
          _
        // Predicated region
        $region109: #{mtsp_forward.1} parent=71 // pred_check
          %p983 = pneg %p378
        $region110: #{mtsp_forward.1} parent=71 // pred_check_branch
          %985 = sbr.rel (%p983) target = $region112
        $region111: #{mtsp_forward.1} parent=71 // pred_region
          %s986 = sand.u32 %s40, 1
          %s987 = scalar_lea.sflag [#allocation5], %s986
          %s988 = sand.u32 %s368, 1
          %s989 = scalar_lea.vmem [#allocation17], %s988
          %s991 = ssub.s32 16, 16
          %992 = vsyncadd %s987, %s991
          %s993 = smul.addr %s40, 16
          %s994 = scalar_lea.hbm %s13, %s993
          %s996 = sshll.u32 %s989, 4
          %s997 = int_to_ptr.vmem [resolvable:$true] %s996
          %999 = dma.hbm_to_vmem [thread:$0]  %s994, 16, %s997, %s987
        $region112: #{mtsp_forward.1} parent=71 // pred_fallthru
          _
        // Predicated region
        $region113: #{mtsp_forward.1} parent=71 // pred_check
          %p1000 = pneg %p404
        $region114: #{mtsp_forward.1} parent=71 // pred_check_branch
          %1002 = sbr.rel (%p1000) target = $region116
        $region115: #{mtsp_forward.1} parent=71 // pred_region
          %s1003 = sand.u32 %s40, 1
          %s1004 = scalar_lea.sflag [#allocation5], %s1003
          %s1005 = sand.u32 %s394, 1
          %s1006 = scalar_lea.vmem [#allocation18], %s1005
          %s1008 = ssub.s32 16, 16
          %1009 = vsyncadd %s1004, %s1008
          %s1010 = smul.addr %s40, 16
          %s1011 = scalar_lea.hbm %s14, %s1010
          %s1013 = sshll.u32 %s1006, 4
          %s1014 = int_to_ptr.vmem [resolvable:$true] %s1013
          %1016 = dma.hbm_to_vmem [thread:$0]  %s1011, 16, %s1014, %s1004
        $region116: #{mtsp_forward.1} parent=71 // pred_fallthru
          _
        // Predicated region
        $region117: #{mtsp_forward.1} parent=71 // pred_check
          %p1017 = pneg %p430
        $region118: #{mtsp_forward.1} parent=71 // pred_check_branch
          %1019 = sbr.rel (%p1017) target = $region120
        $region119: #{mtsp_forward.1} parent=71 // pred_region
          %s1020 = sand.u32 %s40, 1
          %s1021 = scalar_lea.sflag [#allocation5], %s1020
          %s1022 = sand.u32 %s420, 1
          %s1023 = scalar_lea.vmem [#allocation19], %s1022
          %s1025 = ssub.s32 16, 16
          %1026 = vsyncadd %s1021, %s1025
          %s1027 = smul.addr %s40, 16
          %s1028 = scalar_lea.hbm %s15, %s1027
          %s1030 = sshll.u32 %s1023, 4
          %s1031 = int_to_ptr.vmem [resolvable:$true] %s1030
          %1033 = dma.hbm_to_vmem [thread:$0]  %s1028, 16, %s1031, %s1021
        $region120: #{mtsp_forward.1} parent=71 // pred_fallthru
          _
      $region72: #{mtsp_forward.1} parent=5 // pred_fallthru
        _
      %p1034 = scmp.le.s32.totalorder 1, %s40
      %p1035 = scmp.lt.s32.totalorder %s40, 5
      %p1036 = pnand %p1034, %p1035
      %p1037 = pneg %p1036
      // Predicated region
      $region121: #{mtsp_forward.1} parent=5 // pred_check
        _
      $region122: #{mtsp_forward.1} parent=5 // pred_check_branch
        %1039 = sbr.rel (%p1036) target = $region124
      $region123: #{mtsp_forward.1} parent=5 // pred_region
        %s1040 = ssub.s32 %s40, 1
        // Predicated region
        $region125: #{mtsp_forward.1} parent=123 // pred_check
          %p1041 = pneg %p103
        $region126: #{mtsp_forward.1} parent=123 // pred_check_branch
          %1043 = sbr.rel (%p1041) target = $region128
        $region127: #{mtsp_forward.1} parent=123 // pred_region
          %1044 = dma.done [#allocation5], 32
        $region128: #{mtsp_forward.1} parent=123 // pred_fallthru
          _
        // Predicated region
        $region129: #{mtsp_forward.1} parent=123 // pred_check
          %p1045 = pneg %p124
        $region130: #{mtsp_forward.1} parent=123 // pred_check_branch
          %1047 = sbr.rel (%p1045) target = $region132
        $region131: #{mtsp_forward.1} parent=123 // pred_region
          %1048 = dma.done [#allocation7], 16
        $region132: #{mtsp_forward.1} parent=123 // pred_fallthru
          _
        %s1049 = sand.u32 %s45, 1
        %s1050 = scalar_lea.sflag [#allocation5], %s1049
        %s1051 = sand.u32 %s137, 1
        %s1052 = smul.addr %s1051, 192
        %s1053 = scalar_lea.vmem [#allocation8], %s1052
        // Predicated region
        $region133: #{mtsp_forward.1} parent=123 // pred_check
          %p1054 = pneg %p150
        $region134: #{mtsp_forward.1} parent=123 // pred_check_branch
          %1056 = sbr.rel (%p1054) target = $region136
        $region135: #{mtsp_forward.1} parent=123 // pred_region
          %1057 = dma.done %s1050, 3072
        $region136: #{mtsp_forward.1} parent=123 // pred_fallthru
          _
        %s1058 = sand.u32 %s45, 1
        %s1059 = scalar_lea.sflag [#allocation5], %s1058
        %s1060 = sand.u32 %s163, 1
        %s1061 = smul.addr %s1060, 3
        %s1062 = scalar_lea.vmem [#allocation9], %s1061
        // Predicated region
        $region137: #{mtsp_forward.1} parent=123 // pred_check
          %p1063 = pneg %p176
        $region138: #{mtsp_forward.1} parent=123 // pred_check_branch
          %1065 = sbr.rel (%p1063) target = $region140
        $region139: #{mtsp_forward.1} parent=123 // pred_region
          %1066 = dma.done %s1059, 48
        $region140: #{mtsp_forward.1} parent=123 // pred_fallthru
          _
        %s1067 = sand.u32 %s45, 1
        %s1068 = scalar_lea.sflag [#allocation5], %s1067
        %s1069 = sand.u32 %s189, 1
        %s1070 = smul.addr %s1069, 64
        %s1071 = scalar_lea.vmem [#allocation10], %s1070
        // Predicated region
        $region141: #{mtsp_forward.1} parent=123 // pred_check
          %p1072 = pneg %p202
        $region142: #{mtsp_forward.1} parent=123 // pred_check_branch
          %1074 = sbr.rel (%p1072) target = $region144
        $region143: #{mtsp_forward.1} parent=123 // pred_region
          %1075 = dma.done %s1068, 1024
        $region144: #{mtsp_forward.1} parent=123 // pred_fallthru
          _
        %s1076 = sand.u32 %s45, 1
        %s1077 = scalar_lea.sflag [#allocation5], %s1076
        %s1078 = sand.u32 %s215, 1
        %s1079 = scalar_lea.vmem [#allocation11], %s1078
        // Predicated region
        $region145: #{mtsp_forward.1} parent=123 // pred_check
          %p1080 = pneg %p228
        $region146: #{mtsp_forward.1} parent=123 // pred_check_branch
          %1082 = sbr.rel (%p1080) target = $region148
        $region147: #{mtsp_forward.1} parent=123 // pred_region
          %1083 = dma.done %s1077, 16
        $region148: #{mtsp_forward.1} parent=123 // pred_fallthru
          _
        %s1084 = sand.u32 %s45, 1
        %s1085 = scalar_lea.sflag [#allocation5], %s1084
        %s1086 = sand.u32 %s241, 1
        %s1087 = scalar_lea.vmem [#allocation12], %s1086
        // Predicated region
        $region149: #{mtsp_forward.1} parent=123 // pred_check
          %p1088 = pneg %p254
        $region150: #{mtsp_forward.1} parent=123 // pred_check_branch
          %1090 = sbr.rel (%p1088) target = $region152
        $region151: #{mtsp_forward.1} parent=123 // pred_region
          %1091 = dma.done %s1085, 16
        $region152: #{mtsp_forward.1} parent=123 // pred_fallthru
          _
        %s1092 = sand.u32 %s45, 1
        %s1093 = scalar_lea.sflag [#allocation5], %s1092
        %s1094 = sand.u32 %s267, 1
        %s1095 = scalar_lea.vmem [#allocation13], %s1094
        // Predicated region
        $region153: #{mtsp_forward.1} parent=123 // pred_check
          %p1096 = pneg %p280
        $region154: #{mtsp_forward.1} parent=123 // pred_check_branch
          %1098 = sbr.rel (%p1096) target = $region156
        $region155: #{mtsp_forward.1} parent=123 // pred_region
          %1099 = dma.done %s1093, 16
        $region156: #{mtsp_forward.1} parent=123 // pred_fallthru
          _
        %s1100 = sand.u32 %s45, 1
        %s1101 = scalar_lea.sflag [#allocation5], %s1100
        %s1102 = sand.u32 %s293, 1
        %s1103 = smul.addr %s1102, 1024
        %s1104 = scalar_lea.vmem [#allocation14], %s1103
        // Predicated region
        $region157: #{mtsp_forward.1} parent=123 // pred_check
          %p1105 = pneg %p306
        $region158: #{mtsp_forward.1} parent=123 // pred_check_branch
          %1107 = sbr.rel (%p1105) target = $region160
        $region159: #{mtsp_forward.1} parent=123 // pred_region
          %1108 = dma.done %s1101, 16384
        $region160: #{mtsp_forward.1} parent=123 // pred_fallthru
          _
        %s1109 = sand.u32 %s45, 1
        %s1110 = scalar_lea.sflag [#allocation5], %s1109
        %s1111 = sand.u32 %s319, 1
        %s1112 = smul.addr %s1111, 16
        %s1113 = scalar_lea.vmem [#allocation15], %s1112
        // Predicated region
        $region161: #{mtsp_forward.1} parent=123 // pred_check
          %p1114 = pneg %p332
        $region162: #{mtsp_forward.1} parent=123 // pred_check_branch
          %1116 = sbr.rel (%p1114) target = $region164
        $region163: #{mtsp_forward.1} parent=123 // pred_region
          %1117 = dma.done %s1110, 256
        $region164: #{mtsp_forward.1} parent=123 // pred_fallthru
          _
        %s1118 = sand.u32 %s45, 1
        %s1119 = scalar_lea.sflag [#allocation5], %s1118
        %s1120 = sand.u32 %s345, 1
        %s1121 = smul.addr %s1120, 1024
        %s1122 = scalar_lea.vmem [#allocation16], %s1121
        // Predicated region
        $region165: #{mtsp_forward.1} parent=123 // pred_check
          %p1123 = pneg %p358
        $region166: #{mtsp_forward.1} parent=123 // pred_check_branch
          %1125 = sbr.rel (%p1123) target = $region168
        $region167: #{mtsp_forward.1} parent=123 // pred_region
          %1126 = dma.done %s1119, 16384
        $region168: #{mtsp_forward.1} parent=123 // pred_fallthru
          _
        %s1127 = sand.u32 %s45, 1
        %s1128 = scalar_lea.sflag [#allocation5], %s1127
        %s1129 = sand.u32 %s371, 1
        %s1130 = scalar_lea.vmem [#allocation17], %s1129
        // Predicated region
        $region169: #{mtsp_forward.1} parent=123 // pred_check
          %p1131 = pneg %p384
        $region170: #{mtsp_forward.1} parent=123 // pred_check_branch
          %1133 = sbr.rel (%p1131) target = $region172
        $region171: #{mtsp_forward.1} parent=123 // pred_region
          %1134 = dma.done %s1128, 16
        $region172: #{mtsp_forward.1} parent=123 // pred_fallthru
          _
        %s1135 = sand.u32 %s45, 1
        %s1136 = scalar_lea.sflag [#allocation5], %s1135
        %s1137 = sand.u32 %s397, 1
        %s1138 = scalar_lea.vmem [#allocation18], %s1137
        // Predicated region
        $region173: #{mtsp_forward.1} parent=123 // pred_check
          %p1139 = pneg %p410
        $region174: #{mtsp_forward.1} parent=123 // pred_check_branch
          %1141 = sbr.rel (%p1139) target = $region176
        $region175: #{mtsp_forward.1} parent=123 // pred_region
          %1142 = dma.done %s1136, 16
        $region176: #{mtsp_forward.1} parent=123 // pred_fallthru
          _
        %s1143 = sand.u32 %s45, 1
        %s1144 = scalar_lea.sflag [#allocation5], %s1143
        %s1145 = sand.u32 %s423, 1
        %s1146 = scalar_lea.vmem [#allocation19], %s1145
        // Predicated region
        $region177: #{mtsp_forward.1} parent=123 // pred_check
          %p1147 = pneg %p436
        $region178: #{mtsp_forward.1} parent=123 // pred_check_branch
          %1149 = sbr.rel (%p1147) target = $region180
        $region179: #{mtsp_forward.1} parent=123 // pred_region
          %1150 = dma.done %s1144, 16
        $region180: #{mtsp_forward.1} parent=123 // pred_fallthru
          _
        // Predicated region
        $region181: #{mtsp_forward.1} parent=123 // pred_check
          %p1151 = pneg %p457
        $region182: #{mtsp_forward.1} parent=123 // pred_check_branch
          %1153 = sbr.rel (%p1151) target = $region184
        $region183: #{mtsp_forward.1} parent=123 // pred_region
          %1154 = dma.done [#allocation7], 1024
        $region184: #{mtsp_forward.1} parent=123 // pred_fallthru
          _
        // Predicated region
        $region185: #{mtsp_forward.1} parent=123 // pred_check
          %p1155 = pneg %p478
        $region186: #{mtsp_forward.1} parent=123 // pred_check_branch
          %1157 = sbr.rel (%p1155) target = $region188
        $region187: #{mtsp_forward.1} parent=123 // pred_region
          %1158 = dma.done [#allocation22], 16
        $region188: #{mtsp_forward.1} parent=123 // pred_fallthru
          _
        // Predicated region
        $region189: #{mtsp_forward.1} parent=123 // pred_check
          %p1159 = pneg %p499
        $region190: #{mtsp_forward.1} parent=123 // pred_check_branch
          %1161 = sbr.rel (%p1159) target = $region192
        $region191: #{mtsp_forward.1} parent=123 // pred_region
          %1162 = dma.done [#allocation22], 16
        $region192: #{mtsp_forward.1} parent=123 // pred_fallthru
          _
        // Predicated region
        $region193: #{mtsp_forward.1} parent=123 // pred_check
          %p1163 = pneg %p520
        $region194: #{mtsp_forward.1} parent=123 // pred_check_branch
          %1165 = sbr.rel (%p1163) target = $region196
        $region195: #{mtsp_forward.1} parent=123 // pred_region
          %1166 = dma.done [#allocation25], 16
        $region196: #{mtsp_forward.1} parent=123 // pred_fallthru
          _
        // Predicated region
        $region197: #{mtsp_forward.1} parent=123 // pred_check
          %p1167 = pneg %p562
        $region198: #{mtsp_forward.1} parent=123 // pred_check_branch
          %1169 = sbr.rel (%p1167) target = $region200
        $region199: #{mtsp_forward.1} parent=123 // pred_region
          %1170 = dma.done [#allocation25], 16
        $region200: #{mtsp_forward.1} parent=123 // pred_fallthru
          _
        // Predicated region
        $region201: #{mtsp_forward.1} parent=123 // pred_check
          %p1171 = pneg %p583
        $region202: #{mtsp_forward.1} parent=123 // pred_check_branch
          %1173 = sbr.rel (%p1171) target = $region204
        $region203: #{mtsp_forward.1} parent=123 // pred_region
          %1174 = dma.done [#allocation28], 16
        $region204: #{mtsp_forward.1} parent=123 // pred_fallthru
          _
        // Predicated region
        $region205: #{mtsp_forward.1} parent=123 // pred_check
          %p1175 = pneg %p604
        $region206: #{mtsp_forward.1} parent=123 // pred_check_branch
          %1177 = sbr.rel (%p1175) target = $region208
        $region207: #{mtsp_forward.1} parent=123 // pred_region
          %1178 = dma.done [#allocation28], 16
        $region208: #{mtsp_forward.1} parent=123 // pred_fallthru
          _
        // Predicated region
        $region209: #{mtsp_forward.1} parent=123 // pred_check
          %p1179 = pneg %p625
        $region210: #{mtsp_forward.1} parent=123 // pred_check_branch
          %1181 = sbr.rel (%p1179) target = $region212
        $region211: #{mtsp_forward.1} parent=123 // pred_region
          %1182 = dma.done [#allocation31], 16
        $region212: #{mtsp_forward.1} parent=123 // pred_fallthru
          _
        %p1183 = pneg %p61
        %p1184 = pneg %p58
        %p1185 = pneg %p82
        %p1186 = pneg %p79
        %p1187 = pneg %p103
        %p1188 = pneg %p100
        %p1189 = pneg %p124
        %p1190 = pneg %p121
        %s1191 = sand.u32 %s45, 1
        %s1192 = scalar_lea.sflag [#allocation5], %s1191
        %s1193 = sand.u32 %s137, 1
        %s1194 = smul.addr %s1193, 192
        %s1195 = scalar_lea.vmem [#allocation8], %s1194
        %p1196 = pneg %p150
        %p1197 = pneg %p147
        %s1198 = sand.u32 %s45, 1
        %s1199 = scalar_lea.sflag [#allocation5], %s1198
        %s1200 = sand.u32 %s163, 1
        %s1201 = smul.addr %s1200, 3
        %s1202 = scalar_lea.vmem [#allocation9], %s1201
        %p1203 = pneg %p176
        %p1204 = pneg %p173
        %s1205 = sand.u32 %s45, 1
        %s1206 = scalar_lea.sflag [#allocation5], %s1205
        %s1207 = sand.u32 %s189, 1
        %s1208 = smul.addr %s1207, 64
        %s1209 = scalar_lea.vmem [#allocation10], %s1208
        %p1210 = pneg %p202
        %p1211 = pneg %p199
        %s1212 = sand.u32 %s45, 1
        %s1213 = scalar_lea.sflag [#allocation5], %s1212
        %s1214 = sand.u32 %s215, 1
        %s1215 = scalar_lea.vmem [#allocation11], %s1214
        %p1216 = pneg %p228
        %p1217 = pneg %p225
        %s1218 = sand.u32 %s45, 1
        %s1219 = scalar_lea.sflag [#allocation5], %s1218
        %s1220 = sand.u32 %s241, 1
        %s1221 = scalar_lea.vmem [#allocation12], %s1220
        %p1222 = pneg %p254
        %p1223 = pneg %p251
        %s1224 = sand.u32 %s45, 1
        %s1225 = scalar_lea.sflag [#allocation5], %s1224
        %s1226 = sand.u32 %s267, 1
        %s1227 = scalar_lea.vmem [#allocation13], %s1226
        %p1228 = pneg %p280
        %p1229 = pneg %p277
        %s1230 = sand.u32 %s45, 1
        %s1231 = scalar_lea.sflag [#allocation5], %s1230
        %s1232 = sand.u32 %s293, 1
        %s1233 = smul.addr %s1232, 1024
        %s1234 = scalar_lea.vmem [#allocation14], %s1233
        %p1235 = pneg %p306
        %p1236 = pneg %p303
        %s1237 = sand.u32 %s45, 1
        %s1238 = scalar_lea.sflag [#allocation5], %s1237
        %s1239 = sand.u32 %s319, 1
        %s1240 = smul.addr %s1239, 16
        %s1241 = scalar_lea.vmem [#allocation15], %s1240
        %p1242 = pneg %p332
        %p1243 = pneg %p329
        %s1244 = sand.u32 %s45, 1
        %s1245 = scalar_lea.sflag [#allocation5], %s1244
        %s1246 = sand.u32 %s345, 1
        %s1247 = smul.addr %s1246, 1024
        %s1248 = scalar_lea.vmem [#allocation16], %s1247
        %p1249 = pneg %p358
        %p1250 = pneg %p355
        %s1251 = sand.u32 %s45, 1
        %s1252 = scalar_lea.sflag [#allocation5], %s1251
        %s1253 = sand.u32 %s371, 1
        %s1254 = scalar_lea.vmem [#allocation17], %s1253
        %p1255 = pneg %p384
        %p1256 = pneg %p381
        %s1257 = sand.u32 %s45, 1
        %s1258 = scalar_lea.sflag [#allocation5], %s1257
        %s1259 = sand.u32 %s397, 1
        %s1260 = scalar_lea.vmem [#allocation18], %s1259
        %p1261 = pneg %p410
        %p1262 = pneg %p407
        %s1263 = sand.u32 %s45, 1
        %s1264 = scalar_lea.sflag [#allocation5], %s1263
        %s1265 = sand.u32 %s423, 1
        %s1266 = scalar_lea.vmem [#allocation19], %s1265
        %p1267 = pneg %p436
        %p1268 = pneg %p433
        %p1269 = pneg %p457
        %p1270 = pneg %p454
        %p1271 = pneg %p478
        %p1272 = pneg %p475
        %p1273 = pneg %p499
        %p1274 = pneg %p496
        %p1275 = pneg %p520
        %p1276 = pneg %p517
        %p1277 = pneg %p541
        %p1278 = pneg %p538
        %p1279 = pneg %p562
        %p1280 = pneg %p559
        %p1281 = pneg %p583
        %p1282 = pneg %p580
        %p1283 = pneg %p604
        %p1284 = pneg %p601
        %p1285 = pneg %p625
        %p1286 = pneg %p622
        %p1287 = pneg %p646
        %p1288 = pneg %p643
        %p1289 = pneg %p667
        %p1290 = pneg %p664
        %p1292 = scmp.eq.s32.totalorder %s45, 0
        // Predicated region
        $region213: #{mtsp_forward.1} parent=123 // pred_check
          %p1293 = pneg %p1292
        $region214: #{mtsp_forward.1} parent=123 // pred_check_branch
          %1295 = sbr.rel (%p1293) target = $region216
        $region215: #{mtsp_forward.1} parent=123 // pred_region
          %v1296 = vld [vmem:[%s0] sm:$0xff]
          %v1297 = vld [vmem:[%s0 + $0x8] sm:$0xff]
          %v1298 = vld [vmem:[#allocation4] sm:$0x3]
          %1300 = vset.pattern.permute.xlu0 0
          %1301 = vperm.xlu0 %1300, %v1296
          %v1302 = vpop.permute.xlu0 %1301
          %1305 = vset.pattern.permute.xlu0 0
          %1306 = vperm.xlu0 %1305, %v1297
          %v1307 = vpop.permute.xlu0 %1306
          %v1309 = vlaneseq
          %v1310 = vshrl.u32 %v1309, 7
          %v1311 = vsub.s32 0, %v1310
          %v1312 = vrot.slane %v1298, %v1311
          %v1313 = vmul.f32 %v1302, %v1312
          %v1314 = vmul.f32 %v1307, %v1312
          %1315 = vset.pattern.permute.xlu0 1
          %1316 = vperm.xlu0 %1315, %v1296
          %v1317 = vpop.permute.xlu0 %1316
          %1319 = vset.pattern.permute.xlu0 1
          %1320 = vperm.xlu0 %1319, %v1297
          %v1321 = vpop.permute.xlu0 %1320
          %v1323 = vlaneseq
          %v1324 = vshrl.u32 %v1323, 7
          %v1325 = vsub.s32 1, %v1324
          %v1326 = vrot.slane %v1298, %v1325
          %v1327 = vmul.f32 %v1317, %v1326
          %v1328 = vmul.f32 %v1321, %v1326
          %v1329 = vadd.f32 %v1313, %v1327
          %v1330 = vadd.f32 %v1314, %v1328
          %v1331 = vld [vmem:[#allocation6] sm:$0x1]
          %v1333 = vlaneseq
          %v1334 = vshrl.u32 %v1333, 7
          %v1335 = vsub.s32 0, %v1334
          %v1336 = vrot.slane %v1331, %v1335
          %v1338 = vadd.f32 %v1329, %v1336
          %v1339 = vadd.f32 %v1330, %v1336
          %v1340 = vld [vmem:[%s1] sm:$0xff]
          %v1341 = vadd.f32 %v1338, %v1340
          %v1342 = vadd.f32 %v1339, %v1340
          %1343 = vst [vmem:[#allocation2] sm:$0xff] %v1341
          %1344 = vst [vmem:[#allocation2 + $0x8] sm:$0xff] %v1342
        $region216: #{mtsp_forward.1} parent=123 // pred_fallthru
          _
        %v1345 = vld [vmem:[#allocation2] sm:$0xff]
        %v1346 = vld [vmem:[#allocation2 + $0x8] sm:$0xff]
        %v1347 = vpack.c.bf16 %v1346, %v1345
        %v1348 = vld [vmem:[%s1053] sm:$0xff]
        %v1349 = vld [vmem:[%s1053 + $0x8] sm:$0xf]
        %v1350 = vld [vmem:[%s1053 + $0xc] sm:$0xff]
        %v1351 = vld [vmem:[%s1053 + $0x14] sm:$0xf]
        %v1352 = vld [vmem:[%s1053 + $0x18] sm:$0xff]
        %v1353 = vld [vmem:[%s1053 + $0x20] sm:$0xf]
        %v1354 = vld [vmem:[%s1053 + $0x24] sm:$0xff]
        %v1355 = vld [vmem:[%s1053 + $0x2c] sm:$0xf]
        %v1356 = vld [vmem:[%s1053 + $0x30] sm:$0xff]
        %v1357 = vld [vmem:[%s1053 + $0x38] sm:$0xf]
        %v1358 = vld [vmem:[%s1053 + $0x3c] sm:$0xff]
        %v1359 = vld [vmem:[%s1053 + $0x44] sm:$0xf]
        %v1360 = vld [vmem:[%s1053 + $0x48] sm:$0xff]
        %v1361 = vld [vmem:[%s1053 + $0x50] sm:$0xf]
        %v1362 = vld [vmem:[%s1053 + $0x54] sm:$0xff]
        %v1363 = vld [vmem:[%s1053 + $0x5c] sm:$0xf]
        %v1364 = vld [vmem:[%s1053 + $0x60] sm:$0xff]
        %v1365 = vld [vmem:[%s1053 + $0x68] sm:$0xf]
        %v1366 = vld [vmem:[%s1053 + $0x6c] sm:$0xff]
        %v1367 = vld [vmem:[%s1053 + $0x74] sm:$0xf]
        %v1368 = vld [vmem:[%s1053 + $0x78] sm:$0xff]
        %v1369 = vld [vmem:[%s1053 + $0x80] sm:$0xf]
        %v1370 = vld [vmem:[%s1053 + $0x84] sm:$0xff]
        %v1371 = vld [vmem:[%s1053 + $0x8c] sm:$0xf]
        %v1372 = vld [vmem:[%s1053 + $0x90] sm:$0xff]
        %v1373 = vld [vmem:[%s1053 + $0x98] sm:$0xf]
        %v1374 = vld [vmem:[%s1053 + $0x9c] sm:$0xff]
        %v1375 = vld [vmem:[%s1053 + $0xa4] sm:$0xf]
        %v1376 = vld [vmem:[%s1053 + $0xa8] sm:$0xff]
        %v1377 = vld [vmem:[%s1053 + $0xb0] sm:$0xf]
        %v1378 = vld [vmem:[%s1053 + $0xb4] sm:$0xff]
        %v1379 = vld [vmem:[%s1053 + $0xbc] sm:$0xf]
        %v1380 = vld [vmem:[%s1062] sm:$0x7]
        %v1382 = vlaneseq
        %v1383 = vshrl.u32 %v1382, 7
        %v1384 = vsub.s32 0, %v1383
        %v1385 = vrot.slane %v1380, %v1384
        %v1386 = vlaneseq
        %v1387 = vshrl.u32 %v1386, 7
        %v1388 = vsub.s32 1, %v1387
        %v1389 = vrot.slane %v1380, %v1388
        %v1390 = vlaneseq
        %v1391 = vshrl.u32 %v1390, 7
        %v1392 = vsub.s32 2, %v1391
        %v1393 = vrot.slane %v1380, %v1392
        %v1429 = vunpack.c.l.b16 %v1348
        %v1430 = vunpack.c.h.b16 %v1348
        %v1431 = vunpack.c.l.b16 %v1349
        %v1432 = vunpack.c.l.b16 %v1350
        %v1433 = vunpack.c.h.b16 %v1350
        %v1434 = vunpack.c.l.b16 %v1351
        %v1435 = vunpack.c.l.b16 %v1352
        %v1436 = vunpack.c.h.b16 %v1352
        %v1437 = vunpack.c.l.b16 %v1353
        %v1438 = vunpack.c.l.b16 %v1354
        %v1439 = vunpack.c.h.b16 %v1354
        %v1440 = vunpack.c.l.b16 %v1355
        %v1441 = vunpack.c.l.b16 %v1356
        %v1442 = vunpack.c.h.b16 %v1356
        %v1443 = vunpack.c.l.b16 %v1357
        %v1444 = vunpack.c.l.b16 %v1358
        %v1445 = vunpack.c.h.b16 %v1358
        %v1446 = vunpack.c.l.b16 %v1359
        %v1447 = vunpack.c.l.b16 %v1360
        %v1448 = vunpack.c.h.b16 %v1360
        %v1449 = vunpack.c.l.b16 %v1361
        %v1450 = vunpack.c.l.b16 %v1362
        %v1451 = vunpack.c.h.b16 %v1362
        %v1452 = vunpack.c.l.b16 %v1363
        %v1453 = vunpack.c.l.b16 %v1364
        %v1454 = vunpack.c.h.b16 %v1364
        %v1455 = vunpack.c.l.b16 %v1365
        %v1456 = vunpack.c.l.b16 %v1366
        %v1457 = vunpack.c.h.b16 %v1366
        %v1458 = vunpack.c.l.b16 %v1367
        %v1459 = vunpack.c.l.b16 %v1368
        %v1460 = vunpack.c.h.b16 %v1368
        %v1461 = vunpack.c.l.b16 %v1369
        %v1462 = vunpack.c.l.b16 %v1370
        %v1463 = vunpack.c.h.b16 %v1370
        %v1464 = vunpack.c.l.b16 %v1371
        %v1465 = vunpack.c.l.b16 %v1372
        %v1466 = vunpack.c.h.b16 %v1372
        %v1467 = vunpack.c.l.b16 %v1373
        %v1468 = vunpack.c.l.b16 %v1374
        %v1469 = vunpack.c.h.b16 %v1374
        %v1470 = vunpack.c.l.b16 %v1375
        %v1471 = vunpack.c.l.b16 %v1376
        %v1472 = vunpack.c.h.b16 %v1376
        %v1473 = vunpack.c.l.b16 %v1377
        %v1474 = vunpack.c.l.b16 %v1378
        %v1475 = vunpack.c.h.b16 %v1378
        %v1476 = vunpack.c.l.b16 %v1379
        %v1477 = vpack.c.b16 %v1432, %v1429
        %v1478 = vpack.c.b16 %v1433, %v1430
        %v1479 = vpack.c.b16 %v1434, %v1431
        %v1480 = vpack.c.b16 %v1438, %v1435
        %v1481 = vpack.c.b16 %v1439, %v1436
        %v1482 = vpack.c.b16 %v1440, %v1437
        %v1483 = vpack.c.b16 %v1444, %v1441
        %v1484 = vpack.c.b16 %v1445, %v1442
        %v1485 = vpack.c.b16 %v1446, %v1443
        %v1486 = vpack.c.b16 %v1450, %v1447
        %v1487 = vpack.c.b16 %v1451, %v1448
        %v1488 = vpack.c.b16 %v1452, %v1449
        %v1489 = vpack.c.b16 %v1456, %v1453
        %v1490 = vpack.c.b16 %v1457, %v1454
        %v1491 = vpack.c.b16 %v1458, %v1455
        %v1492 = vpack.c.b16 %v1462, %v1459
        %v1493 = vpack.c.b16 %v1463, %v1460
        %v1494 = vpack.c.b16 %v1464, %v1461
        %v1495 = vpack.c.b16 %v1468, %v1465
        %v1496 = vpack.c.b16 %v1469, %v1466
        %v1497 = vpack.c.b16 %v1470, %v1467
        %v1498 = vpack.c.b16 %v1474, %v1471
        %v1499 = vpack.c.b16 %v1475, %v1472
        %v1500 = vpack.c.b16 %v1476, %v1473
        %1525 = vmatprep.subr.bf16.mxu0 %v1478
        %1526 = vmatpush1.bf16.msra.mxu0 %v1477
        %1527 = vmatprep.subr.bf16.mxu0 %v1481
        %1528 = vmatpush1.bf16.msra.mxu0 %v1480
        %1529 = vmatprep.subr.bf16.mxu0 %v1484
        %1530 = vmatpush1.bf16.msra.mxu0 %v1483
        %1531 = vmatprep.subr.bf16.mxu0 %v1487
        %1532 = vmatpush1.bf16.msra.mxu0 %v1486
        %1533 = vmatprep.subr.bf16.mxu0 %v1490
        %1534 = vmatpush1.bf16.msra.mxu0 %v1489
        %1535 = vmatprep.subr.bf16.mxu0 %v1493
        %1536 = vmatpush1.bf16.msra.mxu0 %v1492
        %1537 = vmatprep.subr.bf16.mxu0 %v1496
        %1538 = vmatpush1.bf16.msra.mxu0 %v1495
        %1539 = vmatprep.subr.bf16.mxu0 %v1499
        %1540 = vmatpush1.bf16.msra.mxu0 %v1498
        %1541 = vmatprep.subr.bf16.mxu0 0
        %1542 = vmatpush1.bf16.msra.mxu0 0
        %1543 = vmatprep.subr.bf16.mxu0 0
        %1544 = vmatpush1.bf16.msra.mxu0 0
        %1545 = vmatprep.subr.bf16.mxu0 0
        %1546 = vmatpush1.bf16.msra.mxu0 0
        %1547 = vmatprep.subr.bf16.mxu0 0
        %1548 = vmatpush1.bf16.msra.mxu0 0
        %1549 = vmatprep.subr.bf16.mxu0 0
        %1550 = vmatpush1.bf16.msra.mxu0 0
        %1551 = vmatprep.subr.bf16.mxu0 0
        %1552 = vmatpush1.bf16.msra.mxu0 0
        %1553 = vmatprep.subr.bf16.mxu0 0
        %1554 = vmatpush1.bf16.msra.mxu0 0
        %1555 = vmatprep.subr.bf16.mxu0 0
        %1556 = vmatpush1.bf16.msra.mxu0 0
        %1557 = vmatprep.mubr.bf16.mxu0 0
        %1558 = vmatmul.mubr.bf16.gmra.mrb[0].mxu0 %v1347
        %v1559 = vpop.f32.mrb[0].mxu0
        %v1560 = vadd.f32 %v1385, %v1559
        %v1561 = vpop.f32.mrb[0].mxu0
        %v1562 = vadd.f32 %v1389, %v1561
        %v1563 = vpop.f32.mrb[0].mxu0
        %v1564 = vadd.f32 %v1385, %v1563
        %v1565 = vpop.f32.mrb[0].mxu0
        %v1566 = vadd.f32 %v1389, %v1565
        %1567 = vdwg.mxu0
        %1568 = vmatprep.subr.bf16.mxu0 0
        %1569 = vmatpush1.bf16.msra.mxu0 %v1479
        %1570 = vmatprep.subr.bf16.mxu0 0
        %1571 = vmatpush1.bf16.msra.mxu0 %v1482
        %1572 = vmatprep.subr.bf16.mxu0 0
        %1573 = vmatpush1.bf16.msra.mxu0 %v1485
        %1574 = vmatprep.subr.bf16.mxu0 0
        %1575 = vmatpush1.bf16.msra.mxu0 %v1488
        %1576 = vmatprep.subr.bf16.mxu0 0
        %1577 = vmatpush1.bf16.msra.mxu0 %v1491
        %1578 = vmatprep.subr.bf16.mxu0 0
        %1579 = vmatpush1.bf16.msra.mxu0 %v1494
        %1580 = vmatprep.subr.bf16.mxu0 0
        %1581 = vmatpush1.bf16.msra.mxu0 %v1497
        %1582 = vmatprep.subr.bf16.mxu0 0
        %1583 = vmatpush1.bf16.msra.mxu0 %v1500
        %1584 = vmatprep.subr.bf16.mxu0 0
        %1585 = vmatpush1.bf16.msra.mxu0 0
        %1586 = vmatprep.subr.bf16.mxu0 0
        %1587 = vmatpush1.bf16.msra.mxu0 0
        %1588 = vmatprep.subr.bf16.mxu0 0
        %1589 = vmatpush1.bf16.msra.mxu0 0
        %1590 = vmatprep.subr.bf16.mxu0 0
        %1591 = vmatpush1.bf16.msra.mxu0 0
        %1592 = vmatprep.subr.bf16.mxu0 0
        %1593 = vmatpush1.bf16.msra.mxu0 0
        %1594 = vmatprep.subr.bf16.mxu0 0
        %1595 = vmatpush1.bf16.msra.mxu0 0
        %1596 = vmatprep.subr.bf16.mxu0 0
        %1597 = vmatpush1.bf16.msra.mxu0 0
        %1598 = vmatprep.subr.bf16.mxu0 0
        %1599 = vmatpush1.bf16.msra.mxu0 0
        %1600 = vmatprep.mubr.bf16.mxu0 0
        %1601 = vmatmul.mubr.bf16.gmra.mrb[0].mxu0 %v1347
        %v1602 = vpop.f32.mrb[0].mxu0
        %v1603 = vadd.f32 %v1393, %v1602
        %v1604 = vpop.f32.mrb[0].mxu0
        %v1605 = vpop.f32.mrb[0].mxu0
        %v1606 = vadd.f32 %v1393, %v1605
        %v1607 = vpop.f32.mrb[0].mxu0
        %1608 = vdwg.mxu0
        %vm1609 = vcmask 130048
        %v1611 = vsel %vm1609, %v1560, 0
        %v1614 = vsel %vm1609, %v1562, 0
        %1616 = vmatprep.subr.mxu0 0.0
        %1617 = vmatpush1.xpose.msra.mxu0 %v1614
        %1618 = vmatprep.subr.mxu0 0.0
        %1619 = vmatpush1.xpose.msra.mxu0 0.0
        %1620 = vmatprep.subr.mxu0 0.0
        %1621 = vmatpush1.xpose.msra.mxu0 0.0
        %1622 = vmatprep.subr.mxu0 0.0
        %1623 = vmatpush1.xpose.msra.mxu0 0.0
        %1624 = vmatprep.subr.mxu0 0.0
        %1625 = vmatpush1.xpose.msra.mxu0 0.0
        %1626 = vmatprep.subr.mxu0 0.0
        %1627 = vmatpush1.xpose.msra.mxu0 0.0
        %1628 = vmatprep.subr.mxu0 0.0
        %1629 = vmatpush1.xpose.msra.mxu0 0.0
        %1630 = vmatprep.subr.mxu0 0.0
        %1631 = vmatpush1.xpose.msra.mxu0 0.0
        %1632 = vmatprep.subr.mxu0 0.0
        %1633 = vmatpush1.xpose.msra.mxu0 0.0
        %1634 = vmatprep.subr.mxu0 0.0
        %1635 = vmatpush1.xpose.msra.mxu0 0.0
        %1636 = vmatprep.subr.mxu0 0.0
        %1637 = vmatpush1.xpose.msra.mxu0 0.0
        %1638 = vmatprep.subr.mxu0 0.0
        %1639 = vmatpush1.xpose.msra.mxu0 0.0
        %1640 = vmatprep.subr.mxu0 0.0
        %1641 = vmatpush1.xpose.msra.mxu0 0.0
        %1642 = vmatprep.subr.mxu0 0.0
        %1643 = vmatpush1.xpose.msra.mxu0 0.0
        %1644 = vmatprep.subr.mxu0 0.0
        %1645 = vmatpush1.xpose.msra.mxu0 0.0
        %1646 = vmatprep.subr.mxu0 0.0
        %1647 = vmatpush1.xpose.msra.mxu0 0.0
        %1648 = vmatprep.subr.mxu0 0.0
        %1649 = vmatpush1.xpose.msra.mxu0 0.0
        %1650 = vmatprep.subr.mxu0 0.0
        %1651 = vmatpush1.xpose.msra.mxu0 0.0
        %1652 = vmatprep.subr.mxu0 0.0
        %1653 = vmatpush1.xpose.msra.mxu0 0.0
        %1654 = vmatprep.subr.mxu0 0.0
        %1655 = vmatpush1.xpose.msra.mxu0 0.0
        %1656 = vmatprep.subr.mxu0 0.0
        %1657 = vmatpush1.xpose.msra.mxu0 0.0
        %1658 = vmatprep.subr.mxu0 0.0
        %1659 = vmatpush1.xpose.msra.mxu0 0.0
        %1660 = vmatprep.subr.mxu0 0.0
        %1661 = vmatpush1.xpose.msra.mxu0 0.0
        %1662 = vmatprep.subr.mxu0 0.0
        %1663 = vmatpush1.xpose.msra.mxu0 0.0
        %1664 = vmatprep.subr.mxu0 0.0
        %1665 = vmatpush1.xpose.msra.mxu0 0.0
        %1666 = vmatprep.subr.mxu0 0.0
        %1667 = vmatpush1.xpose.msra.mxu0 0.0
        %1668 = vmatprep.subr.mxu0 0.0
        %1669 = vmatpush1.xpose.msra.mxu0 0.0
        %1670 = vmatprep.subr.mxu0 0.0
        %1671 = vmatpush1.xpose.msra.mxu0 0.0
        %1672 = vmatprep.subr.mxu0 0.0
        %1673 = vmatpush1.xpose.msra.mxu0 0.0
        %1674 = vmatprep.subr.mxu0 0.0
        %1675 = vmatpush1.xpose.msra.mxu0 0.0
        %1676 = vmatprep.subr.mxu0 0.0
        %1677 = vmatpush1.xpose.msra.mxu0 0.0
        %1678 = vmatprep.subr.mxu0 0.0
        %1679 = vmatpush1.xpose.msra.mxu0 0.0
        %1680 = vmatprep.mubr.f32.mxu0 0.0
        %1681 = vmatmul.mubr.f32.gmra.mrb[0].mxu0 %v1611
        %v1682 = vpop.f32.mrb[0].mxu0
        %v1683 = vadd.f32 0.0, %v1682
        %v1684 = vpop.f32.mrb[0].mxu0
        %1685 = vdwg.mxu0
        %v1687 = vsel %vm1609, %v1564, 0
        %v1690 = vsel %vm1609, %v1566, 0
        %1692 = vmatprep.subr.mxu0 0.0
        %1693 = vmatpush1.xpose.msra.mxu0 %v1690
        %1694 = vmatprep.subr.mxu0 0.0
        %1695 = vmatpush1.xpose.msra.mxu0 0.0
        %1696 = vmatprep.subr.mxu0 0.0
        %1697 = vmatpush1.xpose.msra.mxu0 0.0
        %1698 = vmatprep.subr.mxu0 0.0
        %1699 = vmatpush1.xpose.msra.mxu0 0.0
        %1700 = vmatprep.subr.mxu0 0.0
        %1701 = vmatpush1.xpose.msra.mxu0 0.0
        %1702 = vmatprep.subr.mxu0 0.0
        %1703 = vmatpush1.xpose.msra.mxu0 0.0
        %1704 = vmatprep.subr.mxu0 0.0
        %1705 = vmatpush1.xpose.msra.mxu0 0.0
        %1706 = vmatprep.subr.mxu0 0.0
        %1707 = vmatpush1.xpose.msra.mxu0 0.0
        %1708 = vmatprep.subr.mxu0 0.0
        %1709 = vmatpush1.xpose.msra.mxu0 0.0
        %1710 = vmatprep.subr.mxu0 0.0
        %1711 = vmatpush1.xpose.msra.mxu0 0.0
        %1712 = vmatprep.subr.mxu0 0.0
        %1713 = vmatpush1.xpose.msra.mxu0 0.0
        %1714 = vmatprep.subr.mxu0 0.0
        %1715 = vmatpush1.xpose.msra.mxu0 0.0
        %1716 = vmatprep.subr.mxu0 0.0
        %1717 = vmatpush1.xpose.msra.mxu0 0.0
        %1718 = vmatprep.subr.mxu0 0.0
        %1719 = vmatpush1.xpose.msra.mxu0 0.0
        %1720 = vmatprep.subr.mxu0 0.0
        %1721 = vmatpush1.xpose.msra.mxu0 0.0
        %1722 = vmatprep.subr.mxu0 0.0
        %1723 = vmatpush1.xpose.msra.mxu0 0.0
        %1724 = vmatprep.subr.mxu0 0.0
        %1725 = vmatpush1.xpose.msra.mxu0 0.0
        %1726 = vmatprep.subr.mxu0 0.0
        %1727 = vmatpush1.xpose.msra.mxu0 0.0
        %1728 = vmatprep.subr.mxu0 0.0
        %1729 = vmatpush1.xpose.msra.mxu0 0.0
        %1730 = vmatprep.subr.mxu0 0.0
        %1731 = vmatpush1.xpose.msra.mxu0 0.0
        %1732 = vmatprep.subr.mxu0 0.0
        %1733 = vmatpush1.xpose.msra.mxu0 0.0
        %1734 = vmatprep.subr.mxu0 0.0
        %1735 = vmatpush1.xpose.msra.mxu0 0.0
        %1736 = vmatprep.subr.mxu0 0.0
        %1737 = vmatpush1.xpose.msra.mxu0 0.0
        %1738 = vmatprep.subr.mxu0 0.0
        %1739 = vmatpush1.xpose.msra.mxu0 0.0
        %1740 = vmatprep.subr.mxu0 0.0
        %1741 = vmatpush1.xpose.msra.mxu0 0.0
        %1742 = vmatprep.subr.mxu0 0.0
        %1743 = vmatpush1.xpose.msra.mxu0 0.0
        %1744 = vmatprep.subr.mxu0 0.0
        %1745 = vmatpush1.xpose.msra.mxu0 0.0
        %1746 = vmatprep.subr.mxu0 0.0
        %1747 = vmatpush1.xpose.msra.mxu0 0.0
        %1748 = vmatprep.subr.mxu0 0.0
        %1749 = vmatpush1.xpose.msra.mxu0 0.0
        %1750 = vmatprep.subr.mxu0 0.0
        %1751 = vmatpush1.xpose.msra.mxu0 0.0
        %1752 = vmatprep.subr.mxu0 0.0
        %1753 = vmatpush1.xpose.msra.mxu0 0.0
        %1754 = vmatprep.subr.mxu0 0.0
        %1755 = vmatpush1.xpose.msra.mxu0 0.0
        %1756 = vmatprep.mubr.f32.mxu0 0.0
        %1757 = vmatmul.mubr.f32.gmra.mrb[0].mxu0 %v1687
        %v1758 = vpop.f32.mrb[0].mxu0
        %v1759 = vadd.f32 0.0, %v1758
        %v1760 = vpop.f32.mrb[0].mxu0
        %1761 = vdwg.mxu0
        %v1762 = vmul.f32 %v1683, 0.25
        %v1763 = vmul.f32 %v1759, 0.25
        %vm1764 = vcmask 64512
        %v1765 = vsel %vm1764, %v1762, -inf
        %1766 = vmax.xlane.f32.xlu0 %v1765
        %v1767 = vpop.xlane.xlu0 %1766
        %v1768 = vsel %vm1764, %v1763, -inf
        %1769 = vmax.xlane.f32.xlu0 %v1768
        %v1770 = vpop.xlane.xlu0 %1769
        %v1771 = vsub.f32 %v1762, %v1767
        %v1772 = vsub.f32 %v1763, %v1770
        %v1773 = vmul.f32 %v1771, 1.442695
        %v1774 = vpow.pop %v1773
        %v1775 = vmul.f32 %v1772, 1.442695
        %v1776 = vpow.pop %v1775
        %v1777 = vsel %vm1764, %v1774, 0.0
        %1778 = vadd.xlane.f32.xlu0 %v1777
        %v1779 = vpop.xlane.xlu0 %1778
        %v1780 = vsel %vm1764, %v1776, 0.0
        %1781 = vadd.xlane.f32.xlu0 %v1780
        %v1782 = vpop.xlane.xlu0 %1781
        %v1783 = vrcp.pop %v1779
        %v1784 = vmul.f32 %v1774, %v1783
        %v1785 = vrcp.pop %v1782
        %v1786 = vmul.f32 %v1776, %v1785
        %v1788 = vsel %vm1764, %v1784, 0
        %1790 = vmatprep.subr.mxu0 0.0
        %1791 = vmatpush1.msra.mxu0 %v1603
        %1792 = vmatprep.subr.mxu0 0.0
        %1793 = vmatpush1.msra.mxu0 0.0
        %1794 = vmatprep.subr.mxu0 0.0
        %1795 = vmatpush1.msra.mxu0 0.0
        %1796 = vmatprep.subr.mxu0 0.0
        %1797 = vmatpush1.msra.mxu0 0.0
        %1798 = vmatprep.subr.mxu0 0.0
        %1799 = vmatpush1.msra.mxu0 0.0
        %1800 = vmatprep.subr.mxu0 0.0
        %1801 = vmatpush1.msra.mxu0 0.0
        %1802 = vmatprep.subr.mxu0 0.0
        %1803 = vmatpush1.msra.mxu0 0.0
        %1804 = vmatprep.subr.mxu0 0.0
        %1805 = vmatpush1.msra.mxu0 0.0
        %1806 = vmatprep.subr.mxu0 0.0
        %1807 = vmatpush1.msra.mxu0 0.0
        %1808 = vmatprep.subr.mxu0 0.0
        %1809 = vmatpush1.msra.mxu0 0.0
        %1810 = vmatprep.subr.mxu0 0.0
        %1811 = vmatpush1.msra.mxu0 0.0
        %1812 = vmatprep.subr.mxu0 0.0
        %1813 = vmatpush1.msra.mxu0 0.0
        %1814 = vmatprep.subr.mxu0 0.0
        %1815 = vmatpush1.msra.mxu0 0.0
        %1816 = vmatprep.subr.mxu0 0.0
        %1817 = vmatpush1.msra.mxu0 0.0
        %1818 = vmatprep.subr.mxu0 0.0
        %1819 = vmatpush1.msra.mxu0 0.0
        %1820 = vmatprep.subr.mxu0 0.0
        %1821 = vmatpush1.msra.mxu0 0.0
        %1822 = vmatprep.subr.mxu0 0.0
        %1823 = vmatpush1.msra.mxu0 0.0
        %1824 = vmatprep.subr.mxu0 0.0
        %1825 = vmatpush1.msra.mxu0 0.0
        %1826 = vmatprep.subr.mxu0 0.0
        %1827 = vmatpush1.msra.mxu0 0.0
        %1828 = vmatprep.subr.mxu0 0.0
        %1829 = vmatpush1.msra.mxu0 0.0
        %1830 = vmatprep.subr.mxu0 0.0
        %1831 = vmatpush1.msra.mxu0 0.0
        %1832 = vmatprep.subr.mxu0 0.0
        %1833 = vmatpush1.msra.mxu0 0.0
        %1834 = vmatprep.subr.mxu0 0.0
        %1835 = vmatpush1.msra.mxu0 0.0
        %1836 = vmatprep.subr.mxu0 0.0
        %1837 = vmatpush1.msra.mxu0 0.0
        %1838 = vmatprep.subr.mxu0 0.0
        %1839 = vmatpush1.msra.mxu0 0.0
        %1840 = vmatprep.subr.mxu0 0.0
        %1841 = vmatpush1.msra.mxu0 0.0
        %1842 = vmatprep.subr.mxu0 0.0
        %1843 = vmatpush1.msra.mxu0 0.0
        %1844 = vmatprep.subr.mxu0 0.0
        %1845 = vmatpush1.msra.mxu0 0.0
        %1846 = vmatprep.subr.mxu0 0.0
        %1847 = vmatpush1.msra.mxu0 0.0
        %1848 = vmatprep.subr.mxu0 0.0
        %1849 = vmatpush1.msra.mxu0 0.0
        %1850 = vmatprep.subr.mxu0 0.0
        %1851 = vmatpush1.msra.mxu0 0.0
        %1852 = vmatprep.subr.mxu0 0.0
        %1853 = vmatpush1.msra.mxu0 0.0
        %1854 = vmatprep.mubr.f32.mxu0 0.0
        %1855 = vmatmul.mubr.f32.gmra.mrb[0].mxu0 %v1788
        %v1856 = vpop.f32.mrb[0].mxu0
        %v1857 = vadd.f32 0.0, %v1856
        %v1858 = vpop.f32.mrb[0].mxu0
        %1859 = vdwg.mxu0
        %v1861 = vsel %vm1764, %v1786, 0
        %1863 = vmatprep.subr.mxu0 0.0
        %1864 = vmatpush1.msra.mxu0 %v1606
        %1865 = vmatprep.subr.mxu0 0.0
        %1866 = vmatpush1.msra.mxu0 0.0
        %1867 = vmatprep.subr.mxu0 0.0
        %1868 = vmatpush1.msra.mxu0 0.0
        %1869 = vmatprep.subr.mxu0 0.0
        %1870 = vmatpush1.msra.mxu0 0.0
        %1871 = vmatprep.subr.mxu0 0.0
        %1872 = vmatpush1.msra.mxu0 0.0
        %1873 = vmatprep.subr.mxu0 0.0
        %1874 = vmatpush1.msra.mxu0 0.0
        %1875 = vmatprep.subr.mxu0 0.0
        %1876 = vmatpush1.msra.mxu0 0.0
        %1877 = vmatprep.subr.mxu0 0.0
        %1878 = vmatpush1.msra.mxu0 0.0
        %1879 = vmatprep.subr.mxu0 0.0
        %1880 = vmatpush1.msra.mxu0 0.0
        %1881 = vmatprep.subr.mxu0 0.0
        %1882 = vmatpush1.msra.mxu0 0.0
        %1883 = vmatprep.subr.mxu0 0.0
        %1884 = vmatpush1.msra.mxu0 0.0
        %1885 = vmatprep.subr.mxu0 0.0
        %1886 = vmatpush1.msra.mxu0 0.0
        %1887 = vmatprep.subr.mxu0 0.0
        %1888 = vmatpush1.msra.mxu0 0.0
        %1889 = vmatprep.subr.mxu0 0.0
        %1890 = vmatpush1.msra.mxu0 0.0
        %1891 = vmatprep.subr.mxu0 0.0
        %1892 = vmatpush1.msra.mxu0 0.0
        %1893 = vmatprep.subr.mxu0 0.0
        %1894 = vmatpush1.msra.mxu0 0.0
        %1895 = vmatprep.subr.mxu0 0.0
        %1896 = vmatpush1.msra.mxu0 0.0
        %1897 = vmatprep.subr.mxu0 0.0
        %1898 = vmatpush1.msra.mxu0 0.0
        %1899 = vmatprep.subr.mxu0 0.0
        %1900 = vmatpush1.msra.mxu0 0.0
        %1901 = vmatprep.subr.mxu0 0.0
        %1902 = vmatpush1.msra.mxu0 0.0
        %1903 = vmatprep.subr.mxu0 0.0
        %1904 = vmatpush1.msra.mxu0 0.0
        %1905 = vmatprep.subr.mxu0 0.0
        %1906 = vmatpush1.msra.mxu0 0.0
        %1907 = vmatprep.subr.mxu0 0.0
        %1908 = vmatpush1.msra.mxu0 0.0
        %1909 = vmatprep.subr.mxu0 0.0
        %1910 = vmatpush1.msra.mxu0 0.0
        %1911 = vmatprep.subr.mxu0 0.0
        %1912 = vmatpush1.msra.mxu0 0.0
        %1913 = vmatprep.subr.mxu0 0.0
        %1914 = vmatpush1.msra.mxu0 0.0
        %1915 = vmatprep.subr.mxu0 0.0
        %1916 = vmatpush1.msra.mxu0 0.0
        %1917 = vmatprep.subr.mxu0 0.0
        %1918 = vmatpush1.msra.mxu0 0.0
        %1919 = vmatprep.subr.mxu0 0.0
        %1920 = vmatpush1.msra.mxu0 0.0
        %1921 = vmatprep.subr.mxu0 0.0
        %1922 = vmatpush1.msra.mxu0 0.0
        %1923 = vmatprep.subr.mxu0 0.0
        %1924 = vmatpush1.msra.mxu0 0.0
        %1925 = vmatprep.subr.mxu0 0.0
        %1926 = vmatpush1.msra.mxu0 0.0
        %1927 = vmatprep.mubr.f32.mxu0 0.0
        %1928 = vmatmul.mubr.f32.gmra.mrb[0].mxu0 %v1861
        %v1929 = vpop.f32.mrb[0].mxu0
        %v1930 = vadd.f32 0.0, %v1929
        %v1931 = vpop.f32.mrb[0].mxu0
        %1932 = vdwg.mxu0
        %1933 = vrot.lane.b32.xlu0 %v1560, 112
        %v1934 = vpop.permute.xlu0 %1933
        %1935 = vrot.lane.b32.xlu0 %v1562, 112
        %v1936 = vpop.permute.xlu0 %1935
        %v1937 = vsel %vm1609, %v1934, 0
        %v1939 = vsel %vm1609, %v1936, 0
        %1941 = vmatprep.subr.mxu0 0.0
        %1942 = vmatpush1.xpose.msra.mxu0 %v1939
        %1943 = vmatprep.subr.mxu0 0.0
        %1944 = vmatpush1.xpose.msra.mxu0 0.0
        %1945 = vmatprep.subr.mxu0 0.0
        %1946 = vmatpush1.xpose.msra.mxu0 0.0
        %1947 = vmatprep.subr.mxu0 0.0
        %1948 = vmatpush1.xpose.msra.mxu0 0.0
        %1949 = vmatprep.subr.mxu0 0.0
        %1950 = vmatpush1.xpose.msra.mxu0 0.0
        %1951 = vmatprep.subr.mxu0 0.0
        %1952 = vmatpush1.xpose.msra.mxu0 0.0
        %1953 = vmatprep.subr.mxu0 0.0
        %1954 = vmatpush1.xpose.msra.mxu0 0.0
        %1955 = vmatprep.subr.mxu0 0.0
        %1956 = vmatpush1.xpose.msra.mxu0 0.0
        %1957 = vmatprep.subr.mxu0 0.0
        %1958 = vmatpush1.xpose.msra.mxu0 0.0
        %1959 = vmatprep.subr.mxu0 0.0
        %1960 = vmatpush1.xpose.msra.mxu0 0.0
        %1961 = vmatprep.subr.mxu0 0.0
        %1962 = vmatpush1.xpose.msra.mxu0 0.0
        %1963 = vmatprep.subr.mxu0 0.0
        %1964 = vmatpush1.xpose.msra.mxu0 0.0
        %1965 = vmatprep.subr.mxu0 0.0
        %1966 = vmatpush1.xpose.msra.mxu0 0.0
        %1967 = vmatprep.subr.mxu0 0.0
        %1968 = vmatpush1.xpose.msra.mxu0 0.0
        %1969 = vmatprep.subr.mxu0 0.0
        %1970 = vmatpush1.xpose.msra.mxu0 0.0
        %1971 = vmatprep.subr.mxu0 0.0
        %1972 = vmatpush1.xpose.msra.mxu0 0.0
        %1973 = vmatprep.subr.mxu0 0.0
        %1974 = vmatpush1.xpose.msra.mxu0 0.0
        %1975 = vmatprep.subr.mxu0 0.0
        %1976 = vmatpush1.xpose.msra.mxu0 0.0
        %1977 = vmatprep.subr.mxu0 0.0
        %1978 = vmatpush1.xpose.msra.mxu0 0.0
        %1979 = vmatprep.subr.mxu0 0.0
        %1980 = vmatpush1.xpose.msra.mxu0 0.0
        %1981 = vmatprep.subr.mxu0 0.0
        %1982 = vmatpush1.xpose.msra.mxu0 0.0
        %1983 = vmatprep.subr.mxu0 0.0
        %1984 = vmatpush1.xpose.msra.mxu0 0.0
        %1985 = vmatprep.subr.mxu0 0.0
        %1986 = vmatpush1.xpose.msra.mxu0 0.0
        %1987 = vmatprep.subr.mxu0 0.0
        %1988 = vmatpush1.xpose.msra.mxu0 0.0
        %1989 = vmatprep.subr.mxu0 0.0
        %1990 = vmatpush1.xpose.msra.mxu0 0.0
        %1991 = vmatprep.subr.mxu0 0.0
        %1992 = vmatpush1.xpose.msra.mxu0 0.0
        %1993 = vmatprep.subr.mxu0 0.0
        %1994 = vmatpush1.xpose.msra.mxu0 0.0
        %1995 = vmatprep.subr.mxu0 0.0
        %1996 = vmatpush1.xpose.msra.mxu0 0.0
        %1997 = vmatprep.subr.mxu0 0.0
        %1998 = vmatpush1.xpose.msra.mxu0 0.0
        %1999 = vmatprep.subr.mxu0 0.0
        %2000 = vmatpush1.xpose.msra.mxu0 0.0
        %2001 = vmatprep.subr.mxu0 0.0
        %2002 = vmatpush1.xpose.msra.mxu0 0.0
        %2003 = vmatprep.subr.mxu0 0.0
        %2004 = vmatpush1.xpose.msra.mxu0 0.0
        %2005 = vmatprep.mubr.f32.mxu0 0.0
        %2006 = vmatmul.mubr.f32.gmra.mrb[0].mxu0 %v1937
        %v2007 = vpop.f32.mrb[0].mxu0
        %v2008 = vadd.f32 0.0, %v2007
        %v2009 = vpop.f32.mrb[0].mxu0
        %2010 = vdwg.mxu0
        %2011 = vrot.lane.b32.xlu0 %v1564, 112
        %v2012 = vpop.permute.xlu0 %2011
        %2013 = vrot.lane.b32.xlu0 %v1566, 112
        %v2014 = vpop.permute.xlu0 %2013
        %v2015 = vsel %vm1609, %v2012, 0
        %v2017 = vsel %vm1609, %v2014, 0
        %2019 = vmatprep.subr.mxu0 0.0
        %2020 = vmatpush1.xpose.msra.mxu0 %v2017
        %2021 = vmatprep.subr.mxu0 0.0
        %2022 = vmatpush1.xpose.msra.mxu0 0.0
        %2023 = vmatprep.subr.mxu0 0.0
        %2024 = vmatpush1.xpose.msra.mxu0 0.0
        %2025 = vmatprep.subr.mxu0 0.0
        %2026 = vmatpush1.xpose.msra.mxu0 0.0
        %2027 = vmatprep.subr.mxu0 0.0
        %2028 = vmatpush1.xpose.msra.mxu0 0.0
        %2029 = vmatprep.subr.mxu0 0.0
        %2030 = vmatpush1.xpose.msra.mxu0 0.0
        %2031 = vmatprep.subr.mxu0 0.0
        %2032 = vmatpush1.xpose.msra.mxu0 0.0
        %2033 = vmatprep.subr.mxu0 0.0
        %2034 = vmatpush1.xpose.msra.mxu0 0.0
        %2035 = vmatprep.subr.mxu0 0.0
        %2036 = vmatpush1.xpose.msra.mxu0 0.0
        %2037 = vmatprep.subr.mxu0 0.0
        %2038 = vmatpush1.xpose.msra.mxu0 0.0
        %2039 = vmatprep.subr.mxu0 0.0
        %2040 = vmatpush1.xpose.msra.mxu0 0.0
        %2041 = vmatprep.subr.mxu0 0.0
        %2042 = vmatpush1.xpose.msra.mxu0 0.0
        %2043 = vmatprep.subr.mxu0 0.0
        %2044 = vmatpush1.xpose.msra.mxu0 0.0
        %2045 = vmatprep.subr.mxu0 0.0
        %2046 = vmatpush1.xpose.msra.mxu0 0.0
        %2047 = vmatprep.subr.mxu0 0.0
        %2048 = vmatpush1.xpose.msra.mxu0 0.0
        %2049 = vmatprep.subr.mxu0 0.0
        %2050 = vmatpush1.xpose.msra.mxu0 0.0
        %2051 = vmatprep.subr.mxu0 0.0
        %2052 = vmatpush1.xpose.msra.mxu0 0.0
        %2053 = vmatprep.subr.mxu0 0.0
        %2054 = vmatpush1.xpose.msra.mxu0 0.0
        %2055 = vmatprep.subr.mxu0 0.0
        %2056 = vmatpush1.xpose.msra.mxu0 0.0
        %2057 = vmatprep.subr.mxu0 0.0
        %2058 = vmatpush1.xpose.msra.mxu0 0.0
        %2059 = vmatprep.subr.mxu0 0.0
        %2060 = vmatpush1.xpose.msra.mxu0 0.0
        %2061 = vmatprep.subr.mxu0 0.0
        %2062 = vmatpush1.xpose.msra.mxu0 0.0
        %2063 = vmatprep.subr.mxu0 0.0
        %2064 = vmatpush1.xpose.msra.mxu0 0.0
        %2065 = vmatprep.subr.mxu0 0.0
        %2066 = vmatpush1.xpose.msra.mxu0 0.0
        %2067 = vmatprep.subr.mxu0 0.0
        %2068 = vmatpush1.xpose.msra.mxu0 0.0
        %2069 = vmatprep.subr.mxu0 0.0
        %2070 = vmatpush1.xpose.msra.mxu0 0.0
        %2071 = vmatprep.subr.mxu0 0.0
        %2072 = vmatpush1.xpose.msra.mxu0 0.0
        %2073 = vmatprep.subr.mxu0 0.0
        %2074 = vmatpush1.xpose.msra.mxu0 0.0
        %2075 = vmatprep.subr.mxu0 0.0
        %2076 = vmatpush1.xpose.msra.mxu0 0.0
        %2077 = vmatprep.subr.mxu0 0.0
        %2078 = vmatpush1.xpose.msra.mxu0 0.0
        %2079 = vmatprep.subr.mxu0 0.0
        %2080 = vmatpush1.xpose.msra.mxu0 0.0
        %2081 = vmatprep.subr.mxu0 0.0
        %2082 = vmatpush1.xpose.msra.mxu0 0.0
        %2083 = vmatprep.mubr.f32.mxu0 0.0
        %2084 = vmatmul.mubr.f32.gmra.mrb[0].mxu0 %v2015
        %v2085 = vpop.f32.mrb[0].mxu0
        %v2086 = vadd.f32 0.0, %v2085
        %v2087 = vpop.f32.mrb[0].mxu0
        %2088 = vdwg.mxu0
        %v2089 = vmul.f32 %v2008, 0.25
        %v2090 = vmul.f32 %v2086, 0.25
        %v2091 = vsel %vm1764, %v2089, -inf
        %2092 = vmax.xlane.f32.xlu0 %v2091
        %v2093 = vpop.xlane.xlu0 %2092
        %v2094 = vsel %vm1764, %v2090, -inf
        %2095 = vmax.xlane.f32.xlu0 %v2094
        %v2096 = vpop.xlane.xlu0 %2095
        %v2097 = vsub.f32 %v2089, %v2093
        %v2098 = vsub.f32 %v2090, %v2096
        %v2099 = vmul.f32 %v2097, 1.442695
        %v2100 = vpow.pop %v2099
        %v2101 = vmul.f32 %v2098, 1.442695
        %v2102 = vpow.pop %v2101
        %v2103 = vsel %vm1764, %v2100, 0.0
        %2104 = vadd.xlane.f32.xlu0 %v2103
        %v2105 = vpop.xlane.xlu0 %2104
        %v2106 = vsel %vm1764, %v2102, 0.0
        %2107 = vadd.xlane.f32.xlu0 %v2106
        %v2108 = vpop.xlane.xlu0 %2107
        %v2109 = vrcp.pop %v2105
        %v2110 = vmul.f32 %v2100, %v2109
        %v2111 = vrcp.pop %v2108
        %v2112 = vmul.f32 %v2102, %v2111
        %2114 = vrot.lane.b32.xlu0 %v1603, 112
        %v2115 = vpop.permute.xlu0 %2114
        %v2118 = vsel %vm1764, %v2110, 0
        %2120 = vmatprep.subr.mxu0 0.0
        %2121 = vmatpush1.msra.mxu0 %v2115
        %2122 = vmatprep.subr.mxu0 0.0
        %2123 = vmatpush1.msra.mxu0 0.0
        %2124 = vmatprep.subr.mxu0 0.0
        %2125 = vmatpush1.msra.mxu0 0.0
        %2126 = vmatprep.subr.mxu0 0.0
        %2127 = vmatpush1.msra.mxu0 0.0
        %2128 = vmatprep.subr.mxu0 0.0
        %2129 = vmatpush1.msra.mxu0 0.0
        %2130 = vmatprep.subr.mxu0 0.0
        %2131 = vmatpush1.msra.mxu0 0.0
        %2132 = vmatprep.subr.mxu0 0.0
        %2133 = vmatpush1.msra.mxu0 0.0
        %2134 = vmatprep.subr.mxu0 0.0
        %2135 = vmatpush1.msra.mxu0 0.0
        %2136 = vmatprep.subr.mxu0 0.0
        %2137 = vmatpush1.msra.mxu0 0.0
        %2138 = vmatprep.subr.mxu0 0.0
        %2139 = vmatpush1.msra.mxu0 0.0
        %2140 = vmatprep.subr.mxu0 0.0
        %2141 = vmatpush1.msra.mxu0 0.0
        %2142 = vmatprep.subr.mxu0 0.0
        %2143 = vmatpush1.msra.mxu0 0.0
        %2144 = vmatprep.subr.mxu0 0.0
        %2145 = vmatpush1.msra.mxu0 0.0
        %2146 = vmatprep.subr.mxu0 0.0
        %2147 = vmatpush1.msra.mxu0 0.0
        %2148 = vmatprep.subr.mxu0 0.0
        %2149 = vmatpush1.msra.mxu0 0.0
        %2150 = vmatprep.subr.mxu0 0.0
        %2151 = vmatpush1.msra.mxu0 0.0
        %2152 = vmatprep.subr.mxu0 0.0
        %2153 = vmatpush1.msra.mxu0 0.0
        %2154 = vmatprep.subr.mxu0 0.0
        %2155 = vmatpush1.msra.mxu0 0.0
        %2156 = vmatprep.subr.mxu0 0.0
        %2157 = vmatpush1.msra.mxu0 0.0
        %2158 = vmatprep.subr.mxu0 0.0
        %2159 = vmatpush1.msra.mxu0 0.0
        %2160 = vmatprep.subr.mxu0 0.0
        %2161 = vmatpush1.msra.mxu0 0.0
        %2162 = vmatprep.subr.mxu0 0.0
        %2163 = vmatpush1.msra.mxu0 0.0
        %2164 = vmatprep.subr.mxu0 0.0
        %2165 = vmatpush1.msra.mxu0 0.0
        %2166 = vmatprep.subr.mxu0 0.0
        %2167 = vmatpush1.msra.mxu0 0.0
        %2168 = vmatprep.subr.mxu0 0.0
        %2169 = vmatpush1.msra.mxu0 0.0
        %2170 = vmatprep.subr.mxu0 0.0
        %2171 = vmatpush1.msra.mxu0 0.0
        %2172 = vmatprep.subr.mxu0 0.0
        %2173 = vmatpush1.msra.mxu0 0.0
        %2174 = vmatprep.subr.mxu0 0.0
        %2175 = vmatpush1.msra.mxu0 0.0
        %2176 = vmatprep.subr.mxu0 0.0
        %2177 = vmatpush1.msra.mxu0 0.0
        %2178 = vmatprep.subr.mxu0 0.0
        %2179 = vmatpush1.msra.mxu0 0.0
        %2180 = vmatprep.subr.mxu0 0.0
        %2181 = vmatpush1.msra.mxu0 0.0
        %2182 = vmatprep.subr.mxu0 0.0
        %2183 = vmatpush1.msra.mxu0 0.0
        %2184 = vmatprep.mubr.f32.mxu0 0.0
        %2185 = vmatmul.mubr.f32.gmra.mrb[0].mxu0 %v2118
        %v2186 = vpop.f32.mrb[0].mxu0
        %v2187 = vadd.f32 0.0, %v2186
        %v2188 = vpop.f32.mrb[0].mxu0
        %2189 = vdwg.mxu0
        %2191 = vrot.lane.b32.xlu0 %v1606, 112
        %v2192 = vpop.permute.xlu0 %2191
        %v2195 = vsel %vm1764, %v2112, 0
        %2197 = vmatprep.subr.mxu0 0.0
        %2198 = vmatpush1.msra.mxu0 %v2192
        %2199 = vmatprep.subr.mxu0 0.0
        %2200 = vmatpush1.msra.mxu0 0.0
        %2201 = vmatprep.subr.mxu0 0.0
        %2202 = vmatpush1.msra.mxu0 0.0
        %2203 = vmatprep.subr.mxu0 0.0
        %2204 = vmatpush1.msra.mxu0 0.0
        %2205 = vmatprep.subr.mxu0 0.0
        %2206 = vmatpush1.msra.mxu0 0.0
        %2207 = vmatprep.subr.mxu0 0.0
        %2208 = vmatpush1.msra.mxu0 0.0
        %2209 = vmatprep.subr.mxu0 0.0
        %2210 = vmatpush1.msra.mxu0 0.0
        %2211 = vmatprep.subr.mxu0 0.0
        %2212 = vmatpush1.msra.mxu0 0.0
        %2213 = vmatprep.subr.mxu0 0.0
        %2214 = vmatpush1.msra.mxu0 0.0
        %2215 = vmatprep.subr.mxu0 0.0
        %2216 = vmatpush1.msra.mxu0 0.0
        %2217 = vmatprep.subr.mxu0 0.0
        %2218 = vmatpush1.msra.mxu0 0.0
        %2219 = vmatprep.subr.mxu0 0.0
        %2220 = vmatpush1.msra.mxu0 0.0
        %2221 = vmatprep.subr.mxu0 0.0
        %2222 = vmatpush1.msra.mxu0 0.0
        %2223 = vmatprep.subr.mxu0 0.0
        %2224 = vmatpush1.msra.mxu0 0.0
        %2225 = vmatprep.subr.mxu0 0.0
        %2226 = vmatpush1.msra.mxu0 0.0
        %2227 = vmatprep.subr.mxu0 0.0
        %2228 = vmatpush1.msra.mxu0 0.0
        %2229 = vmatprep.subr.mxu0 0.0
        %2230 = vmatpush1.msra.mxu0 0.0
        %2231 = vmatprep.subr.mxu0 0.0
        %2232 = vmatpush1.msra.mxu0 0.0
        %2233 = vmatprep.subr.mxu0 0.0
        %2234 = vmatpush1.msra.mxu0 0.0
        %2235 = vmatprep.subr.mxu0 0.0
        %2236 = vmatpush1.msra.mxu0 0.0
        %2237 = vmatprep.subr.mxu0 0.0
        %2238 = vmatpush1.msra.mxu0 0.0
        %2239 = vmatprep.subr.mxu0 0.0
        %2240 = vmatpush1.msra.mxu0 0.0
        %2241 = vmatprep.subr.mxu0 0.0
        %2242 = vmatpush1.msra.mxu0 0.0
        %2243 = vmatprep.subr.mxu0 0.0
        %2244 = vmatpush1.msra.mxu0 0.0
        %2245 = vmatprep.subr.mxu0 0.0
        %2246 = vmatpush1.msra.mxu0 0.0
        %2247 = vmatprep.subr.mxu0 0.0
        %2248 = vmatpush1.msra.mxu0 0.0
        %2249 = vmatprep.subr.mxu0 0.0
        %2250 = vmatpush1.msra.mxu0 0.0
        %2251 = vmatprep.subr.mxu0 0.0
        %2252 = vmatpush1.msra.mxu0 0.0
        %2253 = vmatprep.subr.mxu0 0.0
        %2254 = vmatpush1.msra.mxu0 0.0
        %2255 = vmatprep.subr.mxu0 0.0
        %2256 = vmatpush1.msra.mxu0 0.0
        %2257 = vmatprep.subr.mxu0 0.0
        %2258 = vmatpush1.msra.mxu0 0.0
        %2259 = vmatprep.subr.mxu0 0.0
        %2260 = vmatpush1.msra.mxu0 0.0
        %2261 = vmatprep.mubr.f32.mxu0 0.0
        %2262 = vmatmul.mubr.f32.gmra.mrb[0].mxu0 %v2195
        %v2263 = vpop.f32.mrb[0].mxu0
        %v2264 = vadd.f32 0.0, %v2263
        %v2265 = vpop.f32.mrb[0].mxu0
        %2266 = vdwg.mxu0
        %2267 = vrot.lane.b32.xlu0 %v1560, 96
        %v2268 = vpop.permute.xlu0 %2267
        %2269 = vrot.lane.b32.xlu0 %v1562, 96
        %v2270 = vpop.permute.xlu0 %2269
        %v2271 = vsel %vm1609, %v2268, 0
        %v2273 = vsel %vm1609, %v2270, 0
        %2275 = vmatprep.subr.mxu0 0.0
        %2276 = vmatpush1.xpose.msra.mxu0 %v2273
        %2277 = vmatprep.subr.mxu0 0.0
        %2278 = vmatpush1.xpose.msra.mxu0 0.0
        %2279 = vmatprep.subr.mxu0 0.0
        %2280 = vmatpush1.xpose.msra.mxu0 0.0
        %2281 = vmatprep.subr.mxu0 0.0
        %2282 = vmatpush1.xpose.msra.mxu0 0.0
        %2283 = vmatprep.subr.mxu0 0.0
        %2284 = vmatpush1.xpose.msra.mxu0 0.0
        %2285 = vmatprep.subr.mxu0 0.0
        %2286 = vmatpush1.xpose.msra.mxu0 0.0
        %2287 = vmatprep.subr.mxu0 0.0
        %2288 = vmatpush1.xpose.msra.mxu0 0.0
        %2289 = vmatprep.subr.mxu0 0.0
        %2290 = vmatpush1.xpose.msra.mxu0 0.0
        %2291 = vmatprep.subr.mxu0 0.0
        %2292 = vmatpush1.xpose.msra.mxu0 0.0
        %2293 = vmatprep.subr.mxu0 0.0
        %2294 = vmatpush1.xpose.msra.mxu0 0.0
        %2295 = vmatprep.subr.mxu0 0.0
        %2296 = vmatpush1.xpose.msra.mxu0 0.0
        %2297 = vmatprep.subr.mxu0 0.0
        %2298 = vmatpush1.xpose.msra.mxu0 0.0
        %2299 = vmatprep.subr.mxu0 0.0
        %2300 = vmatpush1.xpose.msra.mxu0 0.0
        %2301 = vmatprep.subr.mxu0 0.0
        %2302 = vmatpush1.xpose.msra.mxu0 0.0
        %2303 = vmatprep.subr.mxu0 0.0
        %2304 = vmatpush1.xpose.msra.mxu0 0.0
        %2305 = vmatprep.subr.mxu0 0.0
        %2306 = vmatpush1.xpose.msra.mxu0 0.0
        %2307 = vmatprep.subr.mxu0 0.0
        %2308 = vmatpush1.xpose.msra.mxu0 0.0
        %2309 = vmatprep.subr.mxu0 0.0
        %2310 = vmatpush1.xpose.msra.mxu0 0.0
        %2311 = vmatprep.subr.mxu0 0.0
        %2312 = vmatpush1.xpose.msra.mxu0 0.0
        %2313 = vmatprep.subr.mxu0 0.0
        %2314 = vmatpush1.xpose.msra.mxu0 0.0
        %2315 = vmatprep.subr.mxu0 0.0
        %2316 = vmatpush1.xpose.msra.mxu0 0.0
        %2317 = vmatprep.subr.mxu0 0.0
        %2318 = vmatpush1.xpose.msra.mxu0 0.0
        %2319 = vmatprep.subr.mxu0 0.0
        %2320 = vmatpush1.xpose.msra.mxu0 0.0
        %2321 = vmatprep.subr.mxu0 0.0
        %2322 = vmatpush1.xpose.msra.mxu0 0.0
        %2323 = vmatprep.subr.mxu0 0.0
        %2324 = vmatpush1.xpose.msra.mxu0 0.0
        %2325 = vmatprep.subr.mxu0 0.0
        %2326 = vmatpush1.xpose.msra.mxu0 0.0
        %2327 = vmatprep.subr.mxu0 0.0
        %2328 = vmatpush1.xpose.msra.mxu0 0.0
        %2329 = vmatprep.subr.mxu0 0.0
        %2330 = vmatpush1.xpose.msra.mxu0 0.0
        %2331 = vmatprep.subr.mxu0 0.0
        %2332 = vmatpush1.xpose.msra.mxu0 0.0
        %2333 = vmatprep.subr.mxu0 0.0
        %2334 = vmatpush1.xpose.msra.mxu0 0.0
        %2335 = vmatprep.subr.mxu0 0.0
        %2336 = vmatpush1.xpose.msra.mxu0 0.0
        %2337 = vmatprep.subr.mxu0 0.0
        %2338 = vmatpush1.xpose.msra.mxu0 0.0
        %2339 = vmatprep.mubr.f32.mxu0 0.0
        %2340 = vmatmul.mubr.f32.gmra.mrb[0].mxu0 %v2271
        %v2341 = vpop.f32.mrb[0].mxu0
        %v2342 = vadd.f32 0.0, %v2341
        %v2343 = vpop.f32.mrb[0].mxu0
        %2344 = vdwg.mxu0
        %2345 = vrot.lane.b32.xlu0 %v1564, 96
        %v2346 = vpop.permute.xlu0 %2345
        %2347 = vrot.lane.b32.xlu0 %v1566, 96
        %v2348 = vpop.permute.xlu0 %2347
        %v2349 = vsel %vm1609, %v2346, 0
        %v2351 = vsel %vm1609, %v2348, 0
        %2353 = vmatprep.subr.mxu0 0.0
        %2354 = vmatpush1.xpose.msra.mxu0 %v2351
        %2355 = vmatprep.subr.mxu0 0.0
        %2356 = vmatpush1.xpose.msra.mxu0 0.0
        %2357 = vmatprep.subr.mxu0 0.0
        %2358 = vmatpush1.xpose.msra.mxu0 0.0
        %2359 = vmatprep.subr.mxu0 0.0
        %2360 = vmatpush1.xpose.msra.mxu0 0.0
        %2361 = vmatprep.subr.mxu0 0.0
        %2362 = vmatpush1.xpose.msra.mxu0 0.0
        %2363 = vmatprep.subr.mxu0 0.0
        %2364 = vmatpush1.xpose.msra.mxu0 0.0
        %2365 = vmatprep.subr.mxu0 0.0
        %2366 = vmatpush1.xpose.msra.mxu0 0.0
        %2367 = vmatprep.subr.mxu0 0.0
        %2368 = vmatpush1.xpose.msra.mxu0 0.0
        %2369 = vmatprep.subr.mxu0 0.0
        %2370 = vmatpush1.xpose.msra.mxu0 0.0
        %2371 = vmatprep.subr.mxu0 0.0
        %2372 = vmatpush1.xpose.msra.mxu0 0.0
        %2373 = vmatprep.subr.mxu0 0.0
        %2374 = vmatpush1.xpose.msra.mxu0 0.0
        %2375 = vmatprep.subr.mxu0 0.0
        %2376 = vmatpush1.xpose.msra.mxu0 0.0
        %2377 = vmatprep.subr.mxu0 0.0
        %2378 = vmatpush1.xpose.msra.mxu0 0.0
        %2379 = vmatprep.subr.mxu0 0.0
        %2380 = vmatpush1.xpose.msra.mxu0 0.0
        %2381 = vmatprep.subr.mxu0 0.0
        %2382 = vmatpush1.xpose.msra.mxu0 0.0
        %2383 = vmatprep.subr.mxu0 0.0
        %2384 = vmatpush1.xpose.msra.mxu0 0.0
        %2385 = vmatprep.subr.mxu0 0.0
        %2386 = vmatpush1.xpose.msra.mxu0 0.0
        %2387 = vmatprep.subr.mxu0 0.0
        %2388 = vmatpush1.xpose.msra.mxu0 0.0
        %2389 = vmatprep.subr.mxu0 0.0
        %2390 = vmatpush1.xpose.msra.mxu0 0.0
        %2391 = vmatprep.subr.mxu0 0.0
        %2392 = vmatpush1.xpose.msra.mxu0 0.0
        %2393 = vmatprep.subr.mxu0 0.0
        %2394 = vmatpush1.xpose.msra.mxu0 0.0
        %2395 = vmatprep.subr.mxu0 0.0
        %2396 = vmatpush1.xpose.msra.mxu0 0.0
        %2397 = vmatprep.subr.mxu0 0.0
        %2398 = vmatpush1.xpose.msra.mxu0 0.0
        %2399 = vmatprep.subr.mxu0 0.0
        %2400 = vmatpush1.xpose.msra.mxu0 0.0
        %2401 = vmatprep.subr.mxu0 0.0
        %2402 = vmatpush1.xpose.msra.mxu0 0.0
        %2403 = vmatprep.subr.mxu0 0.0
        %2404 = vmatpush1.xpose.msra.mxu0 0.0
        %2405 = vmatprep.subr.mxu0 0.0
        %2406 = vmatpush1.xpose.msra.mxu0 0.0
        %2407 = vmatprep.subr.mxu0 0.0
        %2408 = vmatpush1.xpose.msra.mxu0 0.0
        %2409 = vmatprep.subr.mxu0 0.0
        %2410 = vmatpush1.xpose.msra.mxu0 0.0
        %2411 = vmatprep.subr.mxu0 0.0
        %2412 = vmatpush1.xpose.msra.mxu0 0.0
        %2413 = vmatprep.subr.mxu0 0.0
        %2414 = vmatpush1.xpose.msra.mxu0 0.0
        %2415 = vmatprep.subr.mxu0 0.0
        %2416 = vmatpush1.xpose.msra.mxu0 0.0
        %2417 = vmatprep.mubr.f32.mxu0 0.0
        %2418 = vmatmul.mubr.f32.gmra.mrb[0].mxu0 %v2349
        %v2419 = vpop.f32.mrb[0].mxu0
        %v2420 = vadd.f32 0.0, %v2419
        %v2421 = vpop.f32.mrb[0].mxu0
        %2422 = vdwg.mxu0
        %v2423 = vmul.f32 %v2342, 0.25
        %v2424 = vmul.f32 %v2420, 0.25
        %v2425 = vsel %vm1764, %v2423, -inf
        %2426 = vmax.xlane.f32.xlu0 %v2425
        %v2427 = vpop.xlane.xlu0 %2426
        %v2428 = vsel %vm1764, %v2424, -inf
        %2429 = vmax.xlane.f32.xlu0 %v2428
        %v2430 = vpop.xlane.xlu0 %2429
        %v2431 = vsub.f32 %v2423, %v2427
        %v2432 = vsub.f32 %v2424, %v2430
        %v2433 = vmul.f32 %v2431, 1.442695
        %v2434 = vpow.pop %v2433
        %v2435 = vmul.f32 %v2432, 1.442695
        %v2436 = vpow.pop %v2435
        %v2437 = vsel %vm1764, %v2434, 0.0
        %2438 = vadd.xlane.f32.xlu0 %v2437
        %v2439 = vpop.xlane.xlu0 %2438
        %v2440 = vsel %vm1764, %v2436, 0.0
        %2441 = vadd.xlane.f32.xlu0 %v2440
        %v2442 = vpop.xlane.xlu0 %2441
        %v2443 = vrcp.pop %v2439
        %v2444 = vmul.f32 %v2434, %v2443
        %v2445 = vrcp.pop %v2442
        %v2446 = vmul.f32 %v2436, %v2445
        %2447 = vrot.lane.b32.xlu0 %v1603, 96
        %v2448 = vpop.permute.xlu0 %2447
        %v2451 = vsel %vm1764, %v2444, 0
        %2453 = vmatprep.subr.mxu0 0.0
        %2454 = vmatpush1.msra.mxu0 %v2448
        %2455 = vmatprep.subr.mxu0 0.0
        %2456 = vmatpush1.msra.mxu0 0.0
        %2457 = vmatprep.subr.mxu0 0.0
        %2458 = vmatpush1.msra.mxu0 0.0
        %2459 = vmatprep.subr.mxu0 0.0
        %2460 = vmatpush1.msra.mxu0 0.0
        %2461 = vmatprep.subr.mxu0 0.0
        %2462 = vmatpush1.msra.mxu0 0.0
        %2463 = vmatprep.subr.mxu0 0.0
        %2464 = vmatpush1.msra.mxu0 0.0
        %2465 = vmatprep.subr.mxu0 0.0
        %2466 = vmatpush1.msra.mxu0 0.0
        %2467 = vmatprep.subr.mxu0 0.0
        %2468 = vmatpush1.msra.mxu0 0.0
        %2469 = vmatprep.subr.mxu0 0.0
        %2470 = vmatpush1.msra.mxu0 0.0
        %2471 = vmatprep.subr.mxu0 0.0
        %2472 = vmatpush1.msra.mxu0 0.0
        %2473 = vmatprep.subr.mxu0 0.0
        %2474 = vmatpush1.msra.mxu0 0.0
        %2475 = vmatprep.subr.mxu0 0.0
        %2476 = vmatpush1.msra.mxu0 0.0
        %2477 = vmatprep.subr.mxu0 0.0
        %2478 = vmatpush1.msra.mxu0 0.0
        %2479 = vmatprep.subr.mxu0 0.0
        %2480 = vmatpush1.msra.mxu0 0.0
        %2481 = vmatprep.subr.mxu0 0.0
        %2482 = vmatpush1.msra.mxu0 0.0
        %2483 = vmatprep.subr.mxu0 0.0
        %2484 = vmatpush1.msra.mxu0 0.0
        %2485 = vmatprep.subr.mxu0 0.0
        %2486 = vmatpush1.msra.mxu0 0.0
        %2487 = vmatprep.subr.mxu0 0.0
        %2488 = vmatpush1.msra.mxu0 0.0
        %2489 = vmatprep.subr.mxu0 0.0
        %2490 = vmatpush1.msra.mxu0 0.0
        %2491 = vmatprep.subr.mxu0 0.0
        %2492 = vmatpush1.msra.mxu0 0.0
        %2493 = vmatprep.subr.mxu0 0.0
        %2494 = vmatpush1.msra.mxu0 0.0
        %2495 = vmatprep.subr.mxu0 0.0
        %2496 = vmatpush1.msra.mxu0 0.0
        %2497 = vmatprep.subr.mxu0 0.0
        %2498 = vmatpush1.msra.mxu0 0.0
        %2499 = vmatprep.subr.mxu0 0.0
        %2500 = vmatpush1.msra.mxu0 0.0
        %2501 = vmatprep.subr.mxu0 0.0
        %2502 = vmatpush1.msra.mxu0 0.0
        %2503 = vmatprep.subr.mxu0 0.0
        %2504 = vmatpush1.msra.mxu0 0.0
        %2505 = vmatprep.subr.mxu0 0.0
        %2506 = vmatpush1.msra.mxu0 0.0
        %2507 = vmatprep.subr.mxu0 0.0
        %2508 = vmatpush1.msra.mxu0 0.0
        %2509 = vmatprep.subr.mxu0 0.0
        %2510 = vmatpush1.msra.mxu0 0.0
        %2511 = vmatprep.subr.mxu0 0.0
        %2512 = vmatpush1.msra.mxu0 0.0
        %2513 = vmatprep.subr.mxu0 0.0
        %2514 = vmatpush1.msra.mxu0 0.0
        %2515 = vmatprep.subr.mxu0 0.0
        %2516 = vmatpush1.msra.mxu0 0.0
        %2517 = vmatprep.mubr.f32.mxu0 0.0
        %2518 = vmatmul.mubr.f32.gmra.mrb[0].mxu0 %v2451
        %v2519 = vpop.f32.mrb[0].mxu0
        %v2520 = vadd.f32 0.0, %v2519
        %v2521 = vpop.f32.mrb[0].mxu0
        %2522 = vdwg.mxu0
        %2523 = vrot.lane.b32.xlu0 %v1606, 96
        %v2524 = vpop.permute.xlu0 %2523
        %v2527 = vsel %vm1764, %v2446, 0
        %2529 = vmatprep.subr.mxu0 0.0
        %2530 = vmatpush1.msra.mxu0 %v2524
        %2531 = vmatprep.subr.mxu0 0.0
        %2532 = vmatpush1.msra.mxu0 0.0
        %2533 = vmatprep.subr.mxu0 0.0
        %2534 = vmatpush1.msra.mxu0 0.0
        %2535 = vmatprep.subr.mxu0 0.0
        %2536 = vmatpush1.msra.mxu0 0.0
        %2537 = vmatprep.subr.mxu0 0.0
        %2538 = vmatpush1.msra.mxu0 0.0
        %2539 = vmatprep.subr.mxu0 0.0
        %2540 = vmatpush1.msra.mxu0 0.0
        %2541 = vmatprep.subr.mxu0 0.0
        %2542 = vmatpush1.msra.mxu0 0.0
        %2543 = vmatprep.subr.mxu0 0.0
        %2544 = vmatpush1.msra.mxu0 0.0
        %2545 = vmatprep.subr.mxu0 0.0
        %2546 = vmatpush1.msra.mxu0 0.0
        %2547 = vmatprep.subr.mxu0 0.0
        %2548 = vmatpush1.msra.mxu0 0.0
        %2549 = vmatprep.subr.mxu0 0.0
        %2550 = vmatpush1.msra.mxu0 0.0
        %2551 = vmatprep.subr.mxu0 0.0
        %2552 = vmatpush1.msra.mxu0 0.0
        %2553 = vmatprep.subr.mxu0 0.0
        %2554 = vmatpush1.msra.mxu0 0.0
        %2555 = vmatprep.subr.mxu0 0.0
        %2556 = vmatpush1.msra.mxu0 0.0
        %2557 = vmatprep.subr.mxu0 0.0
        %2558 = vmatpush1.msra.mxu0 0.0
        %2559 = vmatprep.subr.mxu0 0.0
        %2560 = vmatpush1.msra.mxu0 0.0
        %2561 = vmatprep.subr.mxu0 0.0
        %2562 = vmatpush1.msra.mxu0 0.0
        %2563 = vmatprep.subr.mxu0 0.0
        %2564 = vmatpush1.msra.mxu0 0.0
        %2565 = vmatprep.subr.mxu0 0.0
        %2566 = vmatpush1.msra.mxu0 0.0
        %2567 = vmatprep.subr.mxu0 0.0
        %2568 = vmatpush1.msra.mxu0 0.0
        %2569 = vmatprep.subr.mxu0 0.0
        %2570 = vmatpush1.msra.mxu0 0.0
        %2571 = vmatprep.subr.mxu0 0.0
        %2572 = vmatpush1.msra.mxu0 0.0
        %2573 = vmatprep.subr.mxu0 0.0
        %2574 = vmatpush1.msra.mxu0 0.0
        %2575 = vmatprep.subr.mxu0 0.0
        %2576 = vmatpush1.msra.mxu0 0.0
        %2577 = vmatprep.subr.mxu0 0.0
        %2578 = vmatpush1.msra.mxu0 0.0
        %2579 = vmatprep.subr.mxu0 0.0
        %2580 = vmatpush1.msra.mxu0 0.0
        %2581 = vmatprep.subr.mxu0 0.0
        %2582 = vmatpush1.msra.mxu0 0.0
        %2583 = vmatprep.subr.mxu0 0.0
        %2584 = vmatpush1.msra.mxu0 0.0
        %2585 = vmatprep.subr.mxu0 0.0
        %2586 = vmatpush1.msra.mxu0 0.0
        %2587 = vmatprep.subr.mxu0 0.0
        %2588 = vmatpush1.msra.mxu0 0.0
        %2589 = vmatprep.subr.mxu0 0.0
        %2590 = vmatpush1.msra.mxu0 0.0
        %2591 = vmatprep.subr.mxu0 0.0
        %2592 = vmatpush1.msra.mxu0 0.0
        %2593 = vmatprep.mubr.f32.mxu0 0.0
        %2594 = vmatmul.mubr.f32.gmra.mrb[0].mxu0 %v2527
        %v2595 = vpop.f32.mrb[0].mxu0
        %v2596 = vadd.f32 0.0, %v2595
        %v2597 = vpop.f32.mrb[0].mxu0
        %2598 = vdwg.mxu0
        %2599 = vrot.lane.b32.xlu0 %v1560, 80
        %v2600 = vpop.permute.xlu0 %2599
        %2601 = vrot.lane.b32.xlu0 %v1562, 80
        %v2602 = vpop.permute.xlu0 %2601
        %v2603 = vsel %vm1609, %v2600, 0
        %v2605 = vsel %vm1609, %v2602, 0
        %2607 = vmatprep.subr.mxu0 0.0
        %2608 = vmatpush1.xpose.msra.mxu0 %v2605
        %2609 = vmatprep.subr.mxu0 0.0
        %2610 = vmatpush1.xpose.msra.mxu0 0.0
        %2611 = vmatprep.subr.mxu0 0.0
        %2612 = vmatpush1.xpose.msra.mxu0 0.0
        %2613 = vmatprep.subr.mxu0 0.0
        %2614 = vmatpush1.xpose.msra.mxu0 0.0
        %2615 = vmatprep.subr.mxu0 0.0
        %2616 = vmatpush1.xpose.msra.mxu0 0.0
        %2617 = vmatprep.subr.mxu0 0.0
        %2618 = vmatpush1.xpose.msra.mxu0 0.0
        %2619 = vmatprep.subr.mxu0 0.0
        %2620 = vmatpush1.xpose.msra.mxu0 0.0
        %2621 = vmatprep.subr.mxu0 0.0
        %2622 = vmatpush1.xpose.msra.mxu0 0.0
        %2623 = vmatprep.subr.mxu0 0.0
        %2624 = vmatpush1.xpose.msra.mxu0 0.0
        %2625 = vmatprep.subr.mxu0 0.0
        %2626 = vmatpush1.xpose.msra.mxu0 0.0
        %2627 = vmatprep.subr.mxu0 0.0
        %2628 = vmatpush1.xpose.msra.mxu0 0.0
        %2629 = vmatprep.subr.mxu0 0.0
        %2630 = vmatpush1.xpose.msra.mxu0 0.0
        %2631 = vmatprep.subr.mxu0 0.0
        %2632 = vmatpush1.xpose.msra.mxu0 0.0
        %2633 = vmatprep.subr.mxu0 0.0
        %2634 = vmatpush1.xpose.msra.mxu0 0.0
        %2635 = vmatprep.subr.mxu0 0.0
        %2636 = vmatpush1.xpose.msra.mxu0 0.0
        %2637 = vmatprep.subr.mxu0 0.0
        %2638 = vmatpush1.xpose.msra.mxu0 0.0
        %2639 = vmatprep.subr.mxu0 0.0
        %2640 = vmatpush1.xpose.msra.mxu0 0.0
        %2641 = vmatprep.subr.mxu0 0.0
        %2642 = vmatpush1.xpose.msra.mxu0 0.0
        %2643 = vmatprep.subr.mxu0 0.0
        %2644 = vmatpush1.xpose.msra.mxu0 0.0
        %2645 = vmatprep.subr.mxu0 0.0
        %2646 = vmatpush1.xpose.msra.mxu0 0.0
        %2647 = vmatprep.subr.mxu0 0.0
        %2648 = vmatpush1.xpose.msra.mxu0 0.0
        %2649 = vmatprep.subr.mxu0 0.0
        %2650 = vmatpush1.xpose.msra.mxu0 0.0
        %2651 = vmatprep.subr.mxu0 0.0
        %2652 = vmatpush1.xpose.msra.mxu0 0.0
        %2653 = vmatprep.subr.mxu0 0.0
        %2654 = vmatpush1.xpose.msra.mxu0 0.0
        %2655 = vmatprep.subr.mxu0 0.0
        %2656 = vmatpush1.xpose.msra.mxu0 0.0
        %2657 = vmatprep.subr.mxu0 0.0
        %2658 = vmatpush1.xpose.msra.mxu0 0.0
        %2659 = vmatprep.subr.mxu0 0.0
        %2660 = vmatpush1.xpose.msra.mxu0 0.0
        %2661 = vmatprep.subr.mxu0 0.0
        %2662 = vmatpush1.xpose.msra.mxu0 0.0
        %2663 = vmatprep.subr.mxu0 0.0
        %2664 = vmatpush1.xpose.msra.mxu0 0.0
        %2665 = vmatprep.subr.mxu0 0.0
        %2666 = vmatpush1.xpose.msra.mxu0 0.0
        %2667 = vmatprep.subr.mxu0 0.0
        %2668 = vmatpush1.xpose.msra.mxu0 0.0
        %2669 = vmatprep.subr.mxu0 0.0
        %2670 = vmatpush1.xpose.msra.mxu0 0.0
        %2671 = vmatprep.mubr.f32.mxu0 0.0
        %2672 = vmatmul.mubr.f32.gmra.mrb[0].mxu0 %v2603
        %v2673 = vpop.f32.mrb[0].mxu0
        %v2674 = vadd.f32 0.0, %v2673
        %v2675 = vpop.f32.mrb[0].mxu0
        %2676 = vdwg.mxu0
        %2677 = vrot.lane.b32.xlu0 %v1564, 80
        %v2678 = vpop.permute.xlu0 %2677
        %2679 = vrot.lane.b32.xlu0 %v1566, 80
        %v2680 = vpop.permute.xlu0 %2679
        %v2681 = vsel %vm1609, %v2678, 0
        %v2683 = vsel %vm1609, %v2680, 0
        %2685 = vmatprep.subr.mxu0 0.0
        %2686 = vmatpush1.xpose.msra.mxu0 %v2683
        %2687 = vmatprep.subr.mxu0 0.0
        %2688 = vmatpush1.xpose.msra.mxu0 0.0
        %2689 = vmatprep.subr.mxu0 0.0
        %2690 = vmatpush1.xpose.msra.mxu0 0.0
        %2691 = vmatprep.subr.mxu0 0.0
        %2692 = vmatpush1.xpose.msra.mxu0 0.0
        %2693 = vmatprep.subr.mxu0 0.0
        %2694 = vmatpush1.xpose.msra.mxu0 0.0
        %2695 = vmatprep.subr.mxu0 0.0
        %2696 = vmatpush1.xpose.msra.mxu0 0.0
        %2697 = vmatprep.subr.mxu0 0.0
        %2698 = vmatpush1.xpose.msra.mxu0 0.0
        %2699 = vmatprep.subr.mxu0 0.0
        %2700 = vmatpush1.xpose.msra.mxu0 0.0
        %2701 = vmatprep.subr.mxu0 0.0
        %2702 = vmatpush1.xpose.msra.mxu0 0.0
        %2703 = vmatprep.subr.mxu0 0.0
        %2704 = vmatpush1.xpose.msra.mxu0 0.0
        %2705 = vmatprep.subr.mxu0 0.0
        %2706 = vmatpush1.xpose.msra.mxu0 0.0
        %2707 = vmatprep.subr.mxu0 0.0
        %2708 = vmatpush1.xpose.msra.mxu0 0.0
        %2709 = vmatprep.subr.mxu0 0.0
        %2710 = vmatpush1.xpose.msra.mxu0 0.0
        %2711 = vmatprep.subr.mxu0 0.0
        %2712 = vmatpush1.xpose.msra.mxu0 0.0
        %2713 = vmatprep.subr.mxu0 0.0
        %2714 = vmatpush1.xpose.msra.mxu0 0.0
        %2715 = vmatprep.subr.mxu0 0.0
        %2716 = vmatpush1.xpose.msra.mxu0 0.0
        %2717 = vmatprep.subr.mxu0 0.0
        %2718 = vmatpush1.xpose.msra.mxu0 0.0
        %2719 = vmatprep.subr.mxu0 0.0
        %2720 = vmatpush1.xpose.msra.mxu0 0.0
        %2721 = vmatprep.subr.mxu0 0.0
        %2722 = vmatpush1.xpose.msra.mxu0 0.0
        %2723 = vmatprep.subr.mxu0 0.0
        %2724 = vmatpush1.xpose.msra.mxu0 0.0
        %2725 = vmatprep.subr.mxu0 0.0
        %2726 = vmatpush1.xpose.msra.mxu0 0.0
        %2727 = vmatprep.subr.mxu0 0.0
        %2728 = vmatpush1.xpose.msra.mxu0 0.0
        %2729 = vmatprep.subr.mxu0 0.0
        %2730 = vmatpush1.xpose.msra.mxu0 0.0
        %2731 = vmatprep.subr.mxu0 0.0
        %2732 = vmatpush1.xpose.msra.mxu0 0.0
        %2733 = vmatprep.subr.mxu0 0.0
        %2734 = vmatpush1.xpose.msra.mxu0 0.0
        %2735 = vmatprep.subr.mxu0 0.0
        %2736 = vmatpush1.xpose.msra.mxu0 0.0
        %2737 = vmatprep.subr.mxu0 0.0
        %2738 = vmatpush1.xpose.msra.mxu0 0.0
        %2739 = vmatprep.subr.mxu0 0.0
        %2740 = vmatpush1.xpose.msra.mxu0 0.0
        %2741 = vmatprep.subr.mxu0 0.0
        %2742 = vmatpush1.xpose.msra.mxu0 0.0
        %2743 = vmatprep.subr.mxu0 0.0
        %2744 = vmatpush1.xpose.msra.mxu0 0.0
        %2745 = vmatprep.subr.mxu0 0.0
        %2746 = vmatpush1.xpose.msra.mxu0 0.0
        %2747 = vmatprep.subr.mxu0 0.0
        %2748 = vmatpush1.xpose.msra.mxu0 0.0
        %2749 = vmatprep.mubr.f32.mxu0 0.0
        %2750 = vmatmul.mubr.f32.gmra.mrb[0].mxu0 %v2681
        %v2751 = vpop.f32.mrb[0].mxu0
        %v2752 = vadd.f32 0.0, %v2751
        %v2753 = vpop.f32.mrb[0].mxu0
        %2754 = vdwg.mxu0
        %v2755 = vmul.f32 %v2674, 0.25
        %v2756 = vmul.f32 %v2752, 0.25
        %v2757 = vsel %vm1764, %v2755, -inf
        %2758 = vmax.xlane.f32.xlu0 %v2757
        %v2759 = vpop.xlane.xlu0 %2758
        %v2760 = vsel %vm1764, %v2756, -inf
        %2761 = vmax.xlane.f32.xlu0 %v2760
        %v2762 = vpop.xlane.xlu0 %2761
        %v2763 = vsub.f32 %v2755, %v2759
        %v2764 = vsub.f32 %v2756, %v2762
        %v2765 = vmul.f32 %v2763, 1.442695
        %v2766 = vpow.pop %v2765
        %v2767 = vmul.f32 %v2764, 1.442695
        %v2768 = vpow.pop %v2767
        %v2769 = vsel %vm1764, %v2766, 0.0
        %2770 = vadd.xlane.f32.xlu0 %v2769
        %v2771 = vpop.xlane.xlu0 %2770
        %v2772 = vsel %vm1764, %v2768, 0.0
        %2773 = vadd.xlane.f32.xlu0 %v2772
        %v2774 = vpop.xlane.xlu0 %2773
        %v2775 = vrcp.pop %v2771
        %v2776 = vmul.f32 %v2766, %v2775
        %v2777 = vrcp.pop %v2774
        %v2778 = vmul.f32 %v2768, %v2777
        %2779 = vrot.lane.b32.xlu0 %v1603, 80
        %v2780 = vpop.permute.xlu0 %2779
        %v2783 = vsel %vm1764, %v2776, 0
        %2785 = vmatprep.subr.mxu0 0.0
        %2786 = vmatpush1.msra.mxu0 %v2780
        %2787 = vmatprep.subr.mxu0 0.0
        %2788 = vmatpush1.msra.mxu0 0.0
        %2789 = vmatprep.subr.mxu0 0.0
        %2790 = vmatpush1.msra.mxu0 0.0
        %2791 = vmatprep.subr.mxu0 0.0
        %2792 = vmatpush1.msra.mxu0 0.0
        %2793 = vmatprep.subr.mxu0 0.0
        %2794 = vmatpush1.msra.mxu0 0.0
        %2795 = vmatprep.subr.mxu0 0.0
        %2796 = vmatpush1.msra.mxu0 0.0
        %2797 = vmatprep.subr.mxu0 0.0
        %2798 = vmatpush1.msra.mxu0 0.0
        %2799 = vmatprep.subr.mxu0 0.0
        %2800 = vmatpush1.msra.mxu0 0.0
        %2801 = vmatprep.subr.mxu0 0.0
        %2802 = vmatpush1.msra.mxu0 0.0
        %2803 = vmatprep.subr.mxu0 0.0
        %2804 = vmatpush1.msra.mxu0 0.0
        %2805 = vmatprep.subr.mxu0 0.0
        %2806 = vmatpush1.msra.mxu0 0.0
        %2807 = vmatprep.subr.mxu0 0.0
        %2808 = vmatpush1.msra.mxu0 0.0
        %2809 = vmatprep.subr.mxu0 0.0
        %2810 = vmatpush1.msra.mxu0 0.0
        %2811 = vmatprep.subr.mxu0 0.0
        %2812 = vmatpush1.msra.mxu0 0.0
        %2813 = vmatprep.subr.mxu0 0.0
        %2814 = vmatpush1.msra.mxu0 0.0
        %2815 = vmatprep.subr.mxu0 0.0
        %2816 = vmatpush1.msra.mxu0 0.0
        %2817 = vmatprep.subr.mxu0 0.0
        %2818 = vmatpush1.msra.mxu0 0.0
        %2819 = vmatprep.subr.mxu0 0.0
        %2820 = vmatpush1.msra.mxu0 0.0
        %2821 = vmatprep.subr.mxu0 0.0
        %2822 = vmatpush1.msra.mxu0 0.0
        %2823 = vmatprep.subr.mxu0 0.0
        %2824 = vmatpush1.msra.mxu0 0.0
        %2825 = vmatprep.subr.mxu0 0.0
        %2826 = vmatpush1.msra.mxu0 0.0
        %2827 = vmatprep.subr.mxu0 0.0
        %2828 = vmatpush1.msra.mxu0 0.0
        %2829 = vmatprep.subr.mxu0 0.0
        %2830 = vmatpush1.msra.mxu0 0.0
        %2831 = vmatprep.subr.mxu0 0.0
        %2832 = vmatpush1.msra.mxu0 0.0
        %2833 = vmatprep.subr.mxu0 0.0
        %2834 = vmatpush1.msra.mxu0 0.0
        %2835 = vmatprep.subr.mxu0 0.0
        %2836 = vmatpush1.msra.mxu0 0.0
        %2837 = vmatprep.subr.mxu0 0.0
        %2838 = vmatpush1.msra.mxu0 0.0
        %2839 = vmatprep.subr.mxu0 0.0
        %2840 = vmatpush1.msra.mxu0 0.0
        %2841 = vmatprep.subr.mxu0 0.0
        %2842 = vmatpush1.msra.mxu0 0.0
        %2843 = vmatprep.subr.mxu0 0.0
        %2844 = vmatpush1.msra.mxu0 0.0
        %2845 = vmatprep.subr.mxu0 0.0
        %2846 = vmatpush1.msra.mxu0 0.0
        %2847 = vmatprep.subr.mxu0 0.0
        %2848 = vmatpush1.msra.mxu0 0.0
        %2849 = vmatprep.mubr.f32.mxu0 0.0
        %2850 = vmatmul.mubr.f32.gmra.mrb[0].mxu0 %v2783
        %v2851 = vpop.f32.mrb[0].mxu0
        %v2852 = vadd.f32 0.0, %v2851
        %v2853 = vpop.f32.mrb[0].mxu0
        %2854 = vdwg.mxu0
        %2855 = vrot.lane.b32.xlu0 %v1606, 80
        %v2856 = vpop.permute.xlu0 %2855
        %v2859 = vsel %vm1764, %v2778, 0
        %2861 = vmatprep.subr.mxu0 0.0
        %2862 = vmatpush1.msra.mxu0 %v2856
        %2863 = vmatprep.subr.mxu0 0.0
        %2864 = vmatpush1.msra.mxu0 0.0
        %2865 = vmatprep.subr.mxu0 0.0
        %2866 = vmatpush1.msra.mxu0 0.0
        %2867 = vmatprep.subr.mxu0 0.0
        %2868 = vmatpush1.msra.mxu0 0.0
        %2869 = vmatprep.subr.mxu0 0.0
        %2870 = vmatpush1.msra.mxu0 0.0
        %2871 = vmatprep.subr.mxu0 0.0
        %2872 = vmatpush1.msra.mxu0 0.0
        %2873 = vmatprep.subr.mxu0 0.0
        %2874 = vmatpush1.msra.mxu0 0.0
        %2875 = vmatprep.subr.mxu0 0.0
        %2876 = vmatpush1.msra.mxu0 0.0
        %2877 = vmatprep.subr.mxu0 0.0
        %2878 = vmatpush1.msra.mxu0 0.0
        %2879 = vmatprep.subr.mxu0 0.0
        %2880 = vmatpush1.msra.mxu0 0.0
        %2881 = vmatprep.subr.mxu0 0.0
        %2882 = vmatpush1.msra.mxu0 0.0
        %2883 = vmatprep.subr.mxu0 0.0
        %2884 = vmatpush1.msra.mxu0 0.0
        %2885 = vmatprep.subr.mxu0 0.0
        %2886 = vmatpush1.msra.mxu0 0.0
        %2887 = vmatprep.subr.mxu0 0.0
        %2888 = vmatpush1.msra.mxu0 0.0
        %2889 = vmatprep.subr.mxu0 0.0
        %2890 = vmatpush1.msra.mxu0 0.0
        %2891 = vmatprep.subr.mxu0 0.0
        %2892 = vmatpush1.msra.mxu0 0.0
        %2893 = vmatprep.subr.mxu0 0.0
        %2894 = vmatpush1.msra.mxu0 0.0
        %2895 = vmatprep.subr.mxu0 0.0
        %2896 = vmatpush1.msra.mxu0 0.0
        %2897 = vmatprep.subr.mxu0 0.0
        %2898 = vmatpush1.msra.mxu0 0.0
        %2899 = vmatprep.subr.mxu0 0.0
        %2900 = vmatpush1.msra.mxu0 0.0
        %2901 = vmatprep.subr.mxu0 0.0
        %2902 = vmatpush1.msra.mxu0 0.0
        %2903 = vmatprep.subr.mxu0 0.0
        %2904 = vmatpush1.msra.mxu0 0.0
        %2905 = vmatprep.subr.mxu0 0.0
        %2906 = vmatpush1.msra.mxu0 0.0
        %2907 = vmatprep.subr.mxu0 0.0
        %2908 = vmatpush1.msra.mxu0 0.0
        %2909 = vmatprep.subr.mxu0 0.0
        %2910 = vmatpush1.msra.mxu0 0.0
        %2911 = vmatprep.subr.mxu0 0.0
        %2912 = vmatpush1.msra.mxu0 0.0
        %2913 = vmatprep.subr.mxu0 0.0
        %2914 = vmatpush1.msra.mxu0 0.0
        %2915 = vmatprep.subr.mxu0 0.0
        %2916 = vmatpush1.msra.mxu0 0.0
        %2917 = vmatprep.subr.mxu0 0.0
        %2918 = vmatpush1.msra.mxu0 0.0
        %2919 = vmatprep.subr.mxu0 0.0
        %2920 = vmatpush1.msra.mxu0 0.0
        %2921 = vmatprep.subr.mxu0 0.0
        %2922 = vmatpush1.msra.mxu0 0.0
        %2923 = vmatprep.subr.mxu0 0.0
        %2924 = vmatpush1.msra.mxu0 0.0
        %2925 = vmatprep.mubr.f32.mxu0 0.0
        %2926 = vmatmul.mubr.f32.gmra.mrb[0].mxu0 %v2859
        %v2927 = vpop.f32.mrb[0].mxu0
        %v2928 = vadd.f32 0.0, %v2927
        %v2929 = vpop.f32.mrb[0].mxu0
        %2930 = vdwg.mxu0
        %2931 = vrot.lane.b32.xlu0 %v1560, 64
        %v2932 = vpop.permute.xlu0 %2931
        %2933 = vrot.lane.b32.xlu0 %v1562, 64
        %v2934 = vpop.permute.xlu0 %2933
        %v2935 = vsel %vm1609, %v2932, 0
        %v2937 = vsel %vm1609, %v2934, 0
        %2939 = vmatprep.subr.mxu0 0.0
        %2940 = vmatpush1.xpose.msra.mxu0 %v2937
        %2941 = vmatprep.subr.mxu0 0.0
        %2942 = vmatpush1.xpose.msra.mxu0 0.0
        %2943 = vmatprep.subr.mxu0 0.0
        %2944 = vmatpush1.xpose.msra.mxu0 0.0
        %2945 = vmatprep.subr.mxu0 0.0
        %2946 = vmatpush1.xpose.msra.mxu0 0.0
        %2947 = vmatprep.subr.mxu0 0.0
        %2948 = vmatpush1.xpose.msra.mxu0 0.0
        %2949 = vmatprep.subr.mxu0 0.0
        %2950 = vmatpush1.xpose.msra.mxu0 0.0
        %2951 = vmatprep.subr.mxu0 0.0
        %2952 = vmatpush1.xpose.msra.mxu0 0.0
        %2953 = vmatprep.subr.mxu0 0.0
        %2954 = vmatpush1.xpose.msra.mxu0 0.0
        %2955 = vmatprep.subr.mxu0 0.0
        %2956 = vmatpush1.xpose.msra.mxu0 0.0
        %2957 = vmatprep.subr.mxu0 0.0
        %2958 = vmatpush1.xpose.msra.mxu0 0.0
        %2959 = vmatprep.subr.mxu0 0.0
        %2960 = vmatpush1.xpose.msra.mxu0 0.0
        %2961 = vmatprep.subr.mxu0 0.0
        %2962 = vmatpush1.xpose.msra.mxu0 0.0
        %2963 = vmatprep.subr.mxu0 0.0
        %2964 = vmatpush1.xpose.msra.mxu0 0.0
        %2965 = vmatprep.subr.mxu0 0.0
        %2966 = vmatpush1.xpose.msra.mxu0 0.0
        %2967 = vmatprep.subr.mxu0 0.0
        %2968 = vmatpush1.xpose.msra.mxu0 0.0
        %2969 = vmatprep.subr.mxu0 0.0
        %2970 = vmatpush1.xpose.msra.mxu0 0.0
        %2971 = vmatprep.subr.mxu0 0.0
        %2972 = vmatpush1.xpose.msra.mxu0 0.0
        %2973 = vmatprep.subr.mxu0 0.0
        %2974 = vmatpush1.xpose.msra.mxu0 0.0
        %2975 = vmatprep.subr.mxu0 0.0
        %2976 = vmatpush1.xpose.msra.mxu0 0.0
        %2977 = vmatprep.subr.mxu0 0.0
        %2978 = vmatpush1.xpose.msra.mxu0 0.0
        %2979 = vmatprep.subr.mxu0 0.0
        %2980 = vmatpush1.xpose.msra.mxu0 0.0
        %2981 = vmatprep.subr.mxu0 0.0
        %2982 = vmatpush1.xpose.msra.mxu0 0.0
        %2983 = vmatprep.subr.mxu0 0.0
        %2984 = vmatpush1.xpose.msra.mxu0 0.0
        %2985 = vmatprep.subr.mxu0 0.0
        %2986 = vmatpush1.xpose.msra.mxu0 0.0
        %2987 = vmatprep.subr.mxu0 0.0
        %2988 = vmatpush1.xpose.msra.mxu0 0.0
        %2989 = vmatprep.subr.mxu0 0.0
        %2990 = vmatpush1.xpose.msra.mxu0 0.0
        %2991 = vmatprep.subr.mxu0 0.0
        %2992 = vmatpush1.xpose.msra.mxu0 0.0
        %2993 = vmatprep.subr.mxu0 0.0
        %2994 = vmatpush1.xpose.msra.mxu0 0.0
        %2995 = vmatprep.subr.mxu0 0.0
        %2996 = vmatpush1.xpose.msra.mxu0 0.0
        %2997 = vmatprep.subr.mxu0 0.0
        %2998 = vmatpush1.xpose.msra.mxu0 0.0
        %2999 = vmatprep.subr.mxu0 0.0
        %3000 = vmatpush1.xpose.msra.mxu0 0.0
        %3001 = vmatprep.subr.mxu0 0.0
        %3002 = vmatpush1.xpose.msra.mxu0 0.0
        %3003 = vmatprep.mubr.f32.mxu0 0.0
        %3004 = vmatmul.mubr.f32.gmra.mrb[0].mxu0 %v2935
        %v3005 = vpop.f32.mrb[0].mxu0
        %v3006 = vadd.f32 0.0, %v3005
        %v3007 = vpop.f32.mrb[0].mxu0
        %3008 = vdwg.mxu0
        %3009 = vrot.lane.b32.xlu0 %v1564, 64
        %v3010 = vpop.permute.xlu0 %3009
        %3011 = vrot.lane.b32.xlu0 %v1566, 64
        %v3012 = vpop.permute.xlu0 %3011
        %v3013 = vsel %vm1609, %v3010, 0
        %v3015 = vsel %vm1609, %v3012, 0
        %3017 = vmatprep.subr.mxu0 0.0
        %3018 = vmatpush1.xpose.msra.mxu0 %v3015
        %3019 = vmatprep.subr.mxu0 0.0
        %3020 = vmatpush1.xpose.msra.mxu0 0.0
        %3021 = vmatprep.subr.mxu0 0.0
        %3022 = vmatpush1.xpose.msra.mxu0 0.0
        %3023 = vmatprep.subr.mxu0 0.0
        %3024 = vmatpush1.xpose.msra.mxu0 0.0
        %3025 = vmatprep.subr.mxu0 0.0
        %3026 = vmatpush1.xpose.msra.mxu0 0.0
        %3027 = vmatprep.subr.mxu0 0.0
        %3028 = vmatpush1.xpose.msra.mxu0 0.0
        %3029 = vmatprep.subr.mxu0 0.0
        %3030 = vmatpush1.xpose.msra.mxu0 0.0
        %3031 = vmatprep.subr.mxu0 0.0
        %3032 = vmatpush1.xpose.msra.mxu0 0.0
        %3033 = vmatprep.subr.mxu0 0.0
        %3034 = vmatpush1.xpose.msra.mxu0 0.0
        %3035 = vmatprep.subr.mxu0 0.0
        %3036 = vmatpush1.xpose.msra.mxu0 0.0
        %3037 = vmatprep.subr.mxu0 0.0
        %3038 = vmatpush1.xpose.msra.mxu0 0.0
        %3039 = vmatprep.subr.mxu0 0.0
        %3040 = vmatpush1.xpose.msra.mxu0 0.0
        %3041 = vmatprep.subr.mxu0 0.0
        %3042 = vmatpush1.xpose.msra.mxu0 0.0
        %3043 = vmatprep.subr.mxu0 0.0
        %3044 = vmatpush1.xpose.msra.mxu0 0.0
        %3045 = vmatprep.subr.mxu0 0.0
        %3046 = vmatpush1.xpose.msra.mxu0 0.0
        %3047 = vmatprep.subr.mxu0 0.0
        %3048 = vmatpush1.xpose.msra.mxu0 0.0
        %3049 = vmatprep.subr.mxu0 0.0
        %3050 = vmatpush1.xpose.msra.mxu0 0.0
        %3051 = vmatprep.subr.mxu0 0.0
        %3052 = vmatpush1.xpose.msra.mxu0 0.0
        %3053 = vmatprep.subr.mxu0 0.0
        %3054 = vmatpush1.xpose.msra.mxu0 0.0
        %3055 = vmatprep.subr.mxu0 0.0
        %3056 = vmatpush1.xpose.msra.mxu0 0.0
        %3057 = vmatprep.subr.mxu0 0.0
        %3058 = vmatpush1.xpose.msra.mxu0 0.0
        %3059 = vmatprep.subr.mxu0 0.0
        %3060 = vmatpush1.xpose.msra.mxu0 0.0
        %3061 = vmatprep.subr.mxu0 0.0
        %3062 = vmatpush1.xpose.msra.mxu0 0.0
        %3063 = vmatprep.subr.mxu0 0.0
        %3064 = vmatpush1.xpose.msra.mxu0 0.0
        %3065 = vmatprep.subr.mxu0 0.0
        %3066 = vmatpush1.xpose.msra.mxu0 0.0
        %3067 = vmatprep.subr.mxu0 0.0
        %3068 = vmatpush1.xpose.msra.mxu0 0.0
        %3069 = vmatprep.subr.mxu0 0.0
        %3070 = vmatpush1.xpose.msra.mxu0 0.0
        %3071 = vmatprep.subr.mxu0 0.0
        %3072 = vmatpush1.xpose.msra.mxu0 0.0
        %3073 = vmatprep.subr.mxu0 0.0
        %3074 = vmatpush1.xpose.msra.mxu0 0.0
        %3075 = vmatprep.subr.mxu0 0.0
        %3076 = vmatpush1.xpose.msra.mxu0 0.0
        %3077 = vmatprep.subr.mxu0 0.0
        %3078 = vmatpush1.xpose.msra.mxu0 0.0
        %3079 = vmatprep.subr.mxu0 0.0
        %3080 = vmatpush1.xpose.msra.mxu0 0.0
        %3081 = vmatprep.mubr.f32.mxu0 0.0
        %3082 = vmatmul.mubr.f32.gmra.mrb[0].mxu0 %v3013
        %v3083 = vpop.f32.mrb[0].mxu0
        %v3084 = vadd.f32 0.0, %v3083
        %v3085 = vpop.f32.mrb[0].mxu0
        %3086 = vdwg.mxu0
        %v3087 = vmul.f32 %v3006, 0.25
        %v3088 = vmul.f32 %v3084, 0.25
        %v3089 = vsel %vm1764, %v3087, -inf
        %3090 = vmax.xlane.f32.xlu0 %v3089
        %v3091 = vpop.xlane.xlu0 %3090
        %v3092 = vsel %vm1764, %v3088, -inf
        %3093 = vmax.xlane.f32.xlu0 %v3092
        %v3094 = vpop.xlane.xlu0 %3093
        %v3095 = vsub.f32 %v3087, %v3091
        %v3096 = vsub.f32 %v3088, %v3094
        %v3097 = vmul.f32 %v3095, 1.442695
        %v3098 = vpow.pop %v3097
        %v3099 = vmul.f32 %v3096, 1.442695
        %v3100 = vpow.pop %v3099
        %v3101 = vsel %vm1764, %v3098, 0.0
        %3102 = vadd.xlane.f32.xlu0 %v3101
        %v3103 = vpop.xlane.xlu0 %3102
        %v3104 = vsel %vm1764, %v3100, 0.0
        %3105 = vadd.xlane.f32.xlu0 %v3104
        %v3106 = vpop.xlane.xlu0 %3105
        %v3107 = vrcp.pop %v3103
        %v3108 = vmul.f32 %v3098, %v3107
        %v3109 = vrcp.pop %v3106
        %v3110 = vmul.f32 %v3100, %v3109
        %3111 = vrot.lane.b32.xlu0 %v1603, 64
        %v3112 = vpop.permute.xlu0 %3111
        %v3115 = vsel %vm1764, %v3108, 0
        %3117 = vmatprep.subr.mxu0 0.0
        %3118 = vmatpush1.msra.mxu0 %v3112
        %3119 = vmatprep.subr.mxu0 0.0
        %3120 = vmatpush1.msra.mxu0 0.0
        %3121 = vmatprep.subr.mxu0 0.0
        %3122 = vmatpush1.msra.mxu0 0.0
        %3123 = vmatprep.subr.mxu0 0.0
        %3124 = vmatpush1.msra.mxu0 0.0
        %3125 = vmatprep.subr.mxu0 0.0
        %3126 = vmatpush1.msra.mxu0 0.0
        %3127 = vmatprep.subr.mxu0 0.0
        %3128 = vmatpush1.msra.mxu0 0.0
        %3129 = vmatprep.subr.mxu0 0.0
        %3130 = vmatpush1.msra.mxu0 0.0
        %3131 = vmatprep.subr.mxu0 0.0
        %3132 = vmatpush1.msra.mxu0 0.0
        %3133 = vmatprep.subr.mxu0 0.0
        %3134 = vmatpush1.msra.mxu0 0.0
        %3135 = vmatprep.subr.mxu0 0.0
        %3136 = vmatpush1.msra.mxu0 0.0
        %3137 = vmatprep.subr.mxu0 0.0
        %3138 = vmatpush1.msra.mxu0 0.0
        %3139 = vmatprep.subr.mxu0 0.0
        %3140 = vmatpush1.msra.mxu0 0.0
        %3141 = vmatprep.subr.mxu0 0.0
        %3142 = vmatpush1.msra.mxu0 0.0
        %3143 = vmatprep.subr.mxu0 0.0
        %3144 = vmatpush1.msra.mxu0 0.0
        %3145 = vmatprep.subr.mxu0 0.0
        %3146 = vmatpush1.msra.mxu0 0.0
        %3147 = vmatprep.subr.mxu0 0.0
        %3148 = vmatpush1.msra.mxu0 0.0
        %3149 = vmatprep.subr.mxu0 0.0
        %3150 = vmatpush1.msra.mxu0 0.0
        %3151 = vmatprep.subr.mxu0 0.0
        %3152 = vmatpush1.msra.mxu0 0.0
        %3153 = vmatprep.subr.mxu0 0.0
        %3154 = vmatpush1.msra.mxu0 0.0
        %3155 = vmatprep.subr.mxu0 0.0
        %3156 = vmatpush1.msra.mxu0 0.0
        %3157 = vmatprep.subr.mxu0 0.0
        %3158 = vmatpush1.msra.mxu0 0.0
        %3159 = vmatprep.subr.mxu0 0.0
        %3160 = vmatpush1.msra.mxu0 0.0
        %3161 = vmatprep.subr.mxu0 0.0
        %3162 = vmatpush1.msra.mxu0 0.0
        %3163 = vmatprep.subr.mxu0 0.0
        %3164 = vmatpush1.msra.mxu0 0.0
        %3165 = vmatprep.subr.mxu0 0.0
        %3166 = vmatpush1.msra.mxu0 0.0
        %3167 = vmatprep.subr.mxu0 0.0
        %3168 = vmatpush1.msra.mxu0 0.0
        %3169 = vmatprep.subr.mxu0 0.0
        %3170 = vmatpush1.msra.mxu0 0.0
        %3171 = vmatprep.subr.mxu0 0.0
        %3172 = vmatpush1.msra.mxu0 0.0
        %3173 = vmatprep.subr.mxu0 0.0
        %3174 = vmatpush1.msra.mxu0 0.0
        %3175 = vmatprep.subr.mxu0 0.0
        %3176 = vmatpush1.msra.mxu0 0.0
        %3177 = vmatprep.subr.mxu0 0.0
        %3178 = vmatpush1.msra.mxu0 0.0
        %3179 = vmatprep.subr.mxu0 0.0
        %3180 = vmatpush1.msra.mxu0 0.0
        %3181 = vmatprep.mubr.f32.mxu0 0.0
        %3182 = vmatmul.mubr.f32.gmra.mrb[0].mxu0 %v3115
        %v3183 = vpop.f32.mrb[0].mxu0
        %v3184 = vadd.f32 0.0, %v3183
        %v3185 = vpop.f32.mrb[0].mxu0
        %3186 = vdwg.mxu0
        %3187 = vrot.lane.b32.xlu0 %v1606, 64
        %v3188 = vpop.permute.xlu0 %3187
        %v3191 = vsel %vm1764, %v3110, 0
        %3193 = vmatprep.subr.mxu0 0.0
        %3194 = vmatpush1.msra.mxu0 %v3188
        %3195 = vmatprep.subr.mxu0 0.0
        %3196 = vmatpush1.msra.mxu0 0.0
        %3197 = vmatprep.subr.mxu0 0.0
        %3198 = vmatpush1.msra.mxu0 0.0
        %3199 = vmatprep.subr.mxu0 0.0
        %3200 = vmatpush1.msra.mxu0 0.0
        %3201 = vmatprep.subr.mxu0 0.0
        %3202 = vmatpush1.msra.mxu0 0.0
        %3203 = vmatprep.subr.mxu0 0.0
        %3204 = vmatpush1.msra.mxu0 0.0
        %3205 = vmatprep.subr.mxu0 0.0
        %3206 = vmatpush1.msra.mxu0 0.0
        %3207 = vmatprep.subr.mxu0 0.0
        %3208 = vmatpush1.msra.mxu0 0.0
        %3209 = vmatprep.subr.mxu0 0.0
        %3210 = vmatpush1.msra.mxu0 0.0
        %3211 = vmatprep.subr.mxu0 0.0
        %3212 = vmatpush1.msra.mxu0 0.0
        %3213 = vmatprep.subr.mxu0 0.0
        %3214 = vmatpush1.msra.mxu0 0.0
        %3215 = vmatprep.subr.mxu0 0.0
        %3216 = vmatpush1.msra.mxu0 0.0
        %3217 = vmatprep.subr.mxu0 0.0
        %3218 = vmatpush1.msra.mxu0 0.0
        %3219 = vmatprep.subr.mxu0 0.0
        %3220 = vmatpush1.msra.mxu0 0.0
        %3221 = vmatprep.subr.mxu0 0.0
        %3222 = vmatpush1.msra.mxu0 0.0
        %3223 = vmatprep.subr.mxu0 0.0
        %3224 = vmatpush1.msra.mxu0 0.0
        %3225 = vmatprep.subr.mxu0 0.0
        %3226 = vmatpush1.msra.mxu0 0.0
        %3227 = vmatprep.subr.mxu0 0.0
        %3228 = vmatpush1.msra.mxu0 0.0
        %3229 = vmatprep.subr.mxu0 0.0
        %3230 = vmatpush1.msra.mxu0 0.0
        %3231 = vmatprep.subr.mxu0 0.0
        %3232 = vmatpush1.msra.mxu0 0.0
        %3233 = vmatprep.subr.mxu0 0.0
        %3234 = vmatpush1.msra.mxu0 0.0
        %3235 = vmatprep.subr.mxu0 0.0
        %3236 = vmatpush1.msra.mxu0 0.0
        %3237 = vmatprep.subr.mxu0 0.0
        %3238 = vmatpush1.msra.mxu0 0.0
        %3239 = vmatprep.subr.mxu0 0.0
        %3240 = vmatpush1.msra.mxu0 0.0
        %3241 = vmatprep.subr.mxu0 0.0
        %3242 = vmatpush1.msra.mxu0 0.0
        %3243 = vmatprep.subr.mxu0 0.0
        %3244 = vmatpush1.msra.mxu0 0.0
        %3245 = vmatprep.subr.mxu0 0.0
        %3246 = vmatpush1.msra.mxu0 0.0
        %3247 = vmatprep.subr.mxu0 0.0
        %3248 = vmatpush1.msra.mxu0 0.0
        %3249 = vmatprep.subr.mxu0 0.0
        %3250 = vmatpush1.msra.mxu0 0.0
        %3251 = vmatprep.subr.mxu0 0.0
        %3252 = vmatpush1.msra.mxu0 0.0
        %3253 = vmatprep.subr.mxu0 0.0
        %3254 = vmatpush1.msra.mxu0 0.0
        %3255 = vmatprep.subr.mxu0 0.0
        %3256 = vmatpush1.msra.mxu0 0.0
        %3257 = vmatprep.mubr.f32.mxu0 0.0
        %3258 = vmatmul.mubr.f32.gmra.mrb[0].mxu0 %v3191
        %v3259 = vpop.f32.mrb[0].mxu0
        %v3260 = vadd.f32 0.0, %v3259
        %v3261 = vpop.f32.mrb[0].mxu0
        %3262 = vdwg.mxu0
        %3263 = vrot.lane.b32.xlu0 %v1560, 48
        %v3264 = vpop.permute.xlu0 %3263
        %3265 = vrot.lane.b32.xlu0 %v1562, 48
        %v3266 = vpop.permute.xlu0 %3265
        %v3267 = vsel %vm1609, %v3264, 0
        %v3269 = vsel %vm1609, %v3266, 0
        %3271 = vmatprep.subr.mxu0 0.0
        %3272 = vmatpush1.xpose.msra.mxu0 %v3269
        %3273 = vmatprep.subr.mxu0 0.0
        %3274 = vmatpush1.xpose.msra.mxu0 0.0
        %3275 = vmatprep.subr.mxu0 0.0
        %3276 = vmatpush1.xpose.msra.mxu0 0.0
        %3277 = vmatprep.subr.mxu0 0.0
        %3278 = vmatpush1.xpose.msra.mxu0 0.0
        %3279 = vmatprep.subr.mxu0 0.0
        %3280 = vmatpush1.xpose.msra.mxu0 0.0
        %3281 = vmatprep.subr.mxu0 0.0
        %3282 = vmatpush1.xpose.msra.mxu0 0.0
        %3283 = vmatprep.subr.mxu0 0.0
        %3284 = vmatpush1.xpose.msra.mxu0 0.0
        %3285 = vmatprep.subr.mxu0 0.0
        %3286 = vmatpush1.xpose.msra.mxu0 0.0
        %3287 = vmatprep.subr.mxu0 0.0
        %3288 = vmatpush1.xpose.msra.mxu0 0.0
        %3289 = vmatprep.subr.mxu0 0.0
        %3290 = vmatpush1.xpose.msra.mxu0 0.0
        %3291 = vmatprep.subr.mxu0 0.0
        %3292 = vmatpush1.xpose.msra.mxu0 0.0
        %3293 = vmatprep.subr.mxu0 0.0
        %3294 = vmatpush1.xpose.msra.mxu0 0.0
        %3295 = vmatprep.subr.mxu0 0.0
        %3296 = vmatpush1.xpose.msra.mxu0 0.0
        %3297 = vmatprep.subr.mxu0 0.0
        %3298 = vmatpush1.xpose.msra.mxu0 0.0
        %3299 = vmatprep.subr.mxu0 0.0
        %3300 = vmatpush1.xpose.msra.mxu0 0.0
        %3301 = vmatprep.subr.mxu0 0.0
        %3302 = vmatpush1.xpose.msra.mxu0 0.0
        %3303 = vmatprep.subr.mxu0 0.0
        %3304 = vmatpush1.xpose.msra.mxu0 0.0
        %3305 = vmatprep.subr.mxu0 0.0
        %3306 = vmatpush1.xpose.msra.mxu0 0.0
        %3307 = vmatprep.subr.mxu0 0.0
        %3308 = vmatpush1.xpose.msra.mxu0 0.0
        %3309 = vmatprep.subr.mxu0 0.0
        %3310 = vmatpush1.xpose.msra.mxu0 0.0
        %3311 = vmatprep.subr.mxu0 0.0
        %3312 = vmatpush1.xpose.msra.mxu0 0.0
        %3313 = vmatprep.subr.mxu0 0.0
        %3314 = vmatpush1.xpose.msra.mxu0 0.0
        %3315 = vmatprep.subr.mxu0 0.0
        %3316 = vmatpush1.xpose.msra.mxu0 0.0
        %3317 = vmatprep.subr.mxu0 0.0
        %3318 = vmatpush1.xpose.msra.mxu0 0.0
        %3319 = vmatprep.subr.mxu0 0.0
        %3320 = vmatpush1.xpose.msra.mxu0 0.0
        %3321 = vmatprep.subr.mxu0 0.0
        %3322 = vmatpush1.xpose.msra.mxu0 0.0
        %3323 = vmatprep.subr.mxu0 0.0
        %3324 = vmatpush1.xpose.msra.mxu0 0.0
        %3325 = vmatprep.subr.mxu0 0.0
        %3326 = vmatpush1.xpose.msra.mxu0 0.0
        %3327 = vmatprep.subr.mxu0 0.0
        %3328 = vmatpush1.xpose.msra.mxu0 0.0
        %3329 = vmatprep.subr.mxu0 0.0
        %3330 = vmatpush1.xpose.msra.mxu0 0.0
        %3331 = vmatprep.subr.mxu0 0.0
        %3332 = vmatpush1.xpose.msra.mxu0 0.0
        %3333 = vmatprep.subr.mxu0 0.0
        %3334 = vmatpush1.xpose.msra.mxu0 0.0
        %3335 = vmatprep.mubr.f32.mxu0 0.0
        %3336 = vmatmul.mubr.f32.gmra.mrb[0].mxu0 %v3267
        %v3337 = vpop.f32.mrb[0].mxu0
        %v3338 = vadd.f32 0.0, %v3337
        %v3339 = vpop.f32.mrb[0].mxu0
        %3340 = vdwg.mxu0
        %3341 = vrot.lane.b32.xlu0 %v1564, 48
        %v3342 = vpop.permute.xlu0 %3341
        %3343 = vrot.lane.b32.xlu0 %v1566, 48
        %v3344 = vpop.permute.xlu0 %3343
        %v3345 = vsel %vm1609, %v3342, 0
        %v3347 = vsel %vm1609, %v3344, 0
        %3349 = vmatprep.subr.mxu0 0.0
        %3350 = vmatpush1.xpose.msra.mxu0 %v3347
        %3351 = vmatprep.subr.mxu0 0.0
        %3352 = vmatpush1.xpose.msra.mxu0 0.0
        %3353 = vmatprep.subr.mxu0 0.0
        %3354 = vmatpush1.xpose.msra.mxu0 0.0
        %3355 = vmatprep.subr.mxu0 0.0
        %3356 = vmatpush1.xpose.msra.mxu0 0.0
        %3357 = vmatprep.subr.mxu0 0.0
        %3358 = vmatpush1.xpose.msra.mxu0 0.0
        %3359 = vmatprep.subr.mxu0 0.0
        %3360 = vmatpush1.xpose.msra.mxu0 0.0
        %3361 = vmatprep.subr.mxu0 0.0
        %3362 = vmatpush1.xpose.msra.mxu0 0.0
        %3363 = vmatprep.subr.mxu0 0.0
        %3364 = vmatpush1.xpose.msra.mxu0 0.0
        %3365 = vmatprep.subr.mxu0 0.0
        %3366 = vmatpush1.xpose.msra.mxu0 0.0
        %3367 = vmatprep.subr.mxu0 0.0
        %3368 = vmatpush1.xpose.msra.mxu0 0.0
        %3369 = vmatprep.subr.mxu0 0.0
        %3370 = vmatpush1.xpose.msra.mxu0 0.0
        %3371 = vmatprep.subr.mxu0 0.0
        %3372 = vmatpush1.xpose.msra.mxu0 0.0
        %3373 = vmatprep.subr.mxu0 0.0
        %3374 = vmatpush1.xpose.msra.mxu0 0.0
        %3375 = vmatprep.subr.mxu0 0.0
        %3376 = vmatpush1.xpose.msra.mxu0 0.0
        %3377 = vmatprep.subr.mxu0 0.0
        %3378 = vmatpush1.xpose.msra.mxu0 0.0
        %3379 = vmatprep.subr.mxu0 0.0
        %3380 = vmatpush1.xpose.msra.mxu0 0.0
        %3381 = vmatprep.subr.mxu0 0.0
        %3382 = vmatpush1.xpose.msra.mxu0 0.0
        %3383 = vmatprep.subr.mxu0 0.0
        %3384 = vmatpush1.xpose.msra.mxu0 0.0
        %3385 = vmatprep.subr.mxu0 0.0
        %3386 = vmatpush1.xpose.msra.mxu0 0.0
        %3387 = vmatprep.subr.mxu0 0.0
        %3388 = vmatpush1.xpose.msra.mxu0 0.0
        %3389 = vmatprep.subr.mxu0 0.0
        %3390 = vmatpush1.xpose.msra.mxu0 0.0
        %3391 = vmatprep.subr.mxu0 0.0
        %3392 = vmatpush1.xpose.msra.mxu0 0.0
        %3393 = vmatprep.subr.mxu0 0.0
        %3394 = vmatpush1.xpose.msra.mxu0 0.0
        %3395 = vmatprep.subr.mxu0 0.0
        %3396 = vmatpush1.xpose.msra.mxu0 0.0
        %3397 = vmatprep.subr.mxu0 0.0
        %3398 = vmatpush1.xpose.msra.mxu0 0.0
        %3399 = vmatprep.subr.mxu0 0.0
        %3400 = vmatpush1.xpose.msra.mxu0 0.0
        %3401 = vmatprep.subr.mxu0 0.0
        %3402 = vmatpush1.xpose.msra.mxu0 0.0
        %3403 = vmatprep.subr.mxu0 0.0
        %3404 = vmatpush1.xpose.msra.mxu0 0.0
        %3405 = vmatprep.subr.mxu0 0.0
        %3406 = vmatpush1.xpose.msra.mxu0 0.0
        %3407 = vmatprep.subr.mxu0 0.0
        %3408 = vmatpush1.xpose.msra.mxu0 0.0
        %3409 = vmatprep.subr.mxu0 0.0
        %3410 = vmatpush1.xpose.msra.mxu0 0.0
        %3411 = vmatprep.subr.mxu0 0.0
        %3412 = vmatpush1.xpose.msra.mxu0 0.0
        %3413 = vmatprep.mubr.f32.mxu0 0.0
        %3414 = vmatmul.mubr.f32.gmra.mrb[0].mxu0 %v3345
        %v3415 = vpop.f32.mrb[0].mxu0
        %v3416 = vadd.f32 0.0, %v3415
        %v3417 = vpop.f32.mrb[0].mxu0
        %3418 = vdwg.mxu0
        %v3419 = vmul.f32 %v3338, 0.25
        %v3420 = vmul.f32 %v3416, 0.25
        %v3421 = vsel %vm1764, %v3419, -inf
        %3422 = vmax.xlane.f32.xlu0 %v3421
        %v3423 = vpop.xlane.xlu0 %3422
        %v3424 = vsel %vm1764, %v3420, -inf
        %3425 = vmax.xlane.f32.xlu0 %v3424
        %v3426 = vpop.xlane.xlu0 %3425
        %v3427 = vsub.f32 %v3419, %v3423
        %v3428 = vsub.f32 %v3420, %v3426
        %v3429 = vmul.f32 %v3427, 1.442695
        %v3430 = vpow.pop %v3429
        %v3431 = vmul.f32 %v3428, 1.442695
        %v3432 = vpow.pop %v3431
        %v3433 = vsel %vm1764, %v3430, 0.0
        %3434 = vadd.xlane.f32.xlu0 %v3433
        %v3435 = vpop.xlane.xlu0 %3434
        %v3436 = vsel %vm1764, %v3432, 0.0
        %3437 = vadd.xlane.f32.xlu0 %v3436
        %v3438 = vpop.xlane.xlu0 %3437
        %v3439 = vrcp.pop %v3435
        %v3440 = vmul.f32 %v3430, %v3439
        %v3441 = vrcp.pop %v3438
        %v3442 = vmul.f32 %v3432, %v3441
        %3443 = vrot.lane.b32.xlu0 %v1603, 48
        %v3444 = vpop.permute.xlu0 %3443
        %v3447 = vsel %vm1764, %v3440, 0
        %3449 = vmatprep.subr.mxu0 0.0
        %3450 = vmatpush1.msra.mxu0 %v3444
        %3451 = vmatprep.subr.mxu0 0.0
        %3452 = vmatpush1.msra.mxu0 0.0
        %3453 = vmatprep.subr.mxu0 0.0
        %3454 = vmatpush1.msra.mxu0 0.0
        %3455 = vmatprep.subr.mxu0 0.0
        %3456 = vmatpush1.msra.mxu0 0.0
        %3457 = vmatprep.subr.mxu0 0.0
        %3458 = vmatpush1.msra.mxu0 0.0
        %3459 = vmatprep.subr.mxu0 0.0
        %3460 = vmatpush1.msra.mxu0 0.0
        %3461 = vmatprep.subr.mxu0 0.0
        %3462 = vmatpush1.msra.mxu0 0.0
        %3463 = vmatprep.subr.mxu0 0.0
        %3464 = vmatpush1.msra.mxu0 0.0
        %3465 = vmatprep.subr.mxu0 0.0
        %3466 = vmatpush1.msra.mxu0 0.0
        %3467 = vmatprep.subr.mxu0 0.0
        %3468 = vmatpush1.msra.mxu0 0.0
        %3469 = vmatprep.subr.mxu0 0.0
        %3470 = vmatpush1.msra.mxu0 0.0
        %3471 = vmatprep.subr.mxu0 0.0
        %3472 = vmatpush1.msra.mxu0 0.0
        %3473 = vmatprep.subr.mxu0 0.0
        %3474 = vmatpush1.msra.mxu0 0.0
        %3475 = vmatprep.subr.mxu0 0.0
        %3476 = vmatpush1.msra.mxu0 0.0
        %3477 = vmatprep.subr.mxu0 0.0
        %3478 = vmatpush1.msra.mxu0 0.0
        %3479 = vmatprep.subr.mxu0 0.0
        %3480 = vmatpush1.msra.mxu0 0.0
        %3481 = vmatprep.subr.mxu0 0.0
        %3482 = vmatpush1.msra.mxu0 0.0
        %3483 = vmatprep.subr.mxu0 0.0
        %3484 = vmatpush1.msra.mxu0 0.0
        %3485 = vmatprep.subr.mxu0 0.0
        %3486 = vmatpush1.msra.mxu0 0.0
        %3487 = vmatprep.subr.mxu0 0.0
        %3488 = vmatpush1.msra.mxu0 0.0
        %3489 = vmatprep.subr.mxu0 0.0
        %3490 = vmatpush1.msra.mxu0 0.0
        %3491 = vmatprep.subr.mxu0 0.0
        %3492 = vmatpush1.msra.mxu0 0.0
        %3493 = vmatprep.subr.mxu0 0.0
        %3494 = vmatpush1.msra.mxu0 0.0
        %3495 = vmatprep.subr.mxu0 0.0
        %3496 = vmatpush1.msra.mxu0 0.0
        %3497 = vmatprep.subr.mxu0 0.0
        %3498 = vmatpush1.msra.mxu0 0.0
        %3499 = vmatprep.subr.mxu0 0.0
        %3500 = vmatpush1.msra.mxu0 0.0
        %3501 = vmatprep.subr.mxu0 0.0
        %3502 = vmatpush1.msra.mxu0 0.0
        %3503 = vmatprep.subr.mxu0 0.0
        %3504 = vmatpush1.msra.mxu0 0.0
        %3505 = vmatprep.subr.mxu0 0.0
        %3506 = vmatpush1.msra.mxu0 0.0
        %3507 = vmatprep.subr.mxu0 0.0
        %3508 = vmatpush1.msra.mxu0 0.0
        %3509 = vmatprep.subr.mxu0 0.0
        %3510 = vmatpush1.msra.mxu0 0.0
        %3511 = vmatprep.subr.mxu0 0.0
        %3512 = vmatpush1.msra.mxu0 0.0
        %3513 = vmatprep.mubr.f32.mxu0 0.0
        %3514 = vmatmul.mubr.f32.gmra.mrb[0].mxu0 %v3447
        %v3515 = vpop.f32.mrb[0].mxu0
        %v3516 = vadd.f32 0.0, %v3515
        %v3517 = vpop.f32.mrb[0].mxu0
        %3518 = vdwg.mxu0
        %3519 = vrot.lane.b32.xlu0 %v1606, 48
        %v3520 = vpop.permute.xlu0 %3519
        %v3523 = vsel %vm1764, %v3442, 0
        %3525 = vmatprep.subr.mxu0 0.0
        %3526 = vmatpush1.msra.mxu0 %v3520
        %3527 = vmatprep.subr.mxu0 0.0
        %3528 = vmatpush1.msra.mxu0 0.0
        %3529 = vmatprep.subr.mxu0 0.0
        %3530 = vmatpush1.msra.mxu0 0.0
        %3531 = vmatprep.subr.mxu0 0.0
        %3532 = vmatpush1.msra.mxu0 0.0
        %3533 = vmatprep.subr.mxu0 0.0
        %3534 = vmatpush1.msra.mxu0 0.0
        %3535 = vmatprep.subr.mxu0 0.0
        %3536 = vmatpush1.msra.mxu0 0.0
        %3537 = vmatprep.subr.mxu0 0.0
        %3538 = vmatpush1.msra.mxu0 0.0
        %3539 = vmatprep.subr.mxu0 0.0
        %3540 = vmatpush1.msra.mxu0 0.0
        %3541 = vmatprep.subr.mxu0 0.0
        %3542 = vmatpush1.msra.mxu0 0.0
        %3543 = vmatprep.subr.mxu0 0.0
        %3544 = vmatpush1.msra.mxu0 0.0
        %3545 = vmatprep.subr.mxu0 0.0
        %3546 = vmatpush1.msra.mxu0 0.0
        %3547 = vmatprep.subr.mxu0 0.0
        %3548 = vmatpush1.msra.mxu0 0.0
        %3549 = vmatprep.subr.mxu0 0.0
        %3550 = vmatpush1.msra.mxu0 0.0
        %3551 = vmatprep.subr.mxu0 0.0
        %3552 = vmatpush1.msra.mxu0 0.0
        %3553 = vmatprep.subr.mxu0 0.0
        %3554 = vmatpush1.msra.mxu0 0.0
        %3555 = vmatprep.subr.mxu0 0.0
        %3556 = vmatpush1.msra.mxu0 0.0
        %3557 = vmatprep.subr.mxu0 0.0
        %3558 = vmatpush1.msra.mxu0 0.0
        %3559 = vmatprep.subr.mxu0 0.0
        %3560 = vmatpush1.msra.mxu0 0.0
        %3561 = vmatprep.subr.mxu0 0.0
        %3562 = vmatpush1.msra.mxu0 0.0
        %3563 = vmatprep.subr.mxu0 0.0
        %3564 = vmatpush1.msra.mxu0 0.0
        %3565 = vmatprep.subr.mxu0 0.0
        %3566 = vmatpush1.msra.mxu0 0.0
        %3567 = vmatprep.subr.mxu0 0.0
        %3568 = vmatpush1.msra.mxu0 0.0
        %3569 = vmatprep.subr.mxu0 0.0
        %3570 = vmatpush1.msra.mxu0 0.0
        %3571 = vmatprep.subr.mxu0 0.0
        %3572 = vmatpush1.msra.mxu0 0.0
        %3573 = vmatprep.subr.mxu0 0.0
        %3574 = vmatpush1.msra.mxu0 0.0
        %3575 = vmatprep.subr.mxu0 0.0
        %3576 = vmatpush1.msra.mxu0 0.0
        %3577 = vmatprep.subr.mxu0 0.0
        %3578 = vmatpush1.msra.mxu0 0.0
        %3579 = vmatprep.subr.mxu0 0.0
        %3580 = vmatpush1.msra.mxu0 0.0
        %3581 = vmatprep.subr.mxu0 0.0
        %3582 = vmatpush1.msra.mxu0 0.0
        %3583 = vmatprep.subr.mxu0 0.0
        %3584 = vmatpush1.msra.mxu0 0.0
        %3585 = vmatprep.subr.mxu0 0.0
        %3586 = vmatpush1.msra.mxu0 0.0
        %3587 = vmatprep.subr.mxu0 0.0
        %3588 = vmatpush1.msra.mxu0 0.0
        %3589 = vmatprep.mubr.f32.mxu0 0.0
        %3590 = vmatmul.mubr.f32.gmra.mrb[0].mxu0 %v3523
        %v3591 = vpop.f32.mrb[0].mxu0
        %v3592 = vadd.f32 0.0, %v3591
        %v3593 = vpop.f32.mrb[0].mxu0
        %3594 = vdwg.mxu0
        %3595 = vrot.lane.b32.xlu0 %v1560, 32
        %v3596 = vpop.permute.xlu0 %3595
        %3597 = vrot.lane.b32.xlu0 %v1562, 32
        %v3598 = vpop.permute.xlu0 %3597
        %v3599 = vsel %vm1609, %v3596, 0
        %v3601 = vsel %vm1609, %v3598, 0
        %3603 = vmatprep.subr.mxu0 0.0
        %3604 = vmatpush1.xpose.msra.mxu0 %v3601
        %3605 = vmatprep.subr.mxu0 0.0
        %3606 = vmatpush1.xpose.msra.mxu0 0.0
        %3607 = vmatprep.subr.mxu0 0.0
        %3608 = vmatpush1.xpose.msra.mxu0 0.0
        %3609 = vmatprep.subr.mxu0 0.0
        %3610 = vmatpush1.xpose.msra.mxu0 0.0
        %3611 = vmatprep.subr.mxu0 0.0
        %3612 = vmatpush1.xpose.msra.mxu0 0.0
        %3613 = vmatprep.subr.mxu0 0.0
        %3614 = vmatpush1.xpose.msra.mxu0 0.0
        %3615 = vmatprep.subr.mxu0 0.0
        %3616 = vmatpush1.xpose.msra.mxu0 0.0
        %3617 = vmatprep.subr.mxu0 0.0
        %3618 = vmatpush1.xpose.msra.mxu0 0.0
        %3619 = vmatprep.subr.mxu0 0.0
        %3620 = vmatpush1.xpose.msra.mxu0 0.0
        %3621 = vmatprep.subr.mxu0 0.0
        %3622 = vmatpush1.xpose.msra.mxu0 0.0
        %3623 = vmatprep.subr.mxu0 0.0
        %3624 = vmatpush1.xpose.msra.mxu0 0.0
        %3625 = vmatprep.subr.mxu0 0.0
        %3626 = vmatpush1.xpose.msra.mxu0 0.0
        %3627 = vmatprep.subr.mxu0 0.0
        %3628 = vmatpush1.xpose.msra.mxu0 0.0
        %3629 = vmatprep.subr.mxu0 0.0
        %3630 = vmatpush1.xpose.msra.mxu0 0.0
        %3631 = vmatprep.subr.mxu0 0.0
        %3632 = vmatpush1.xpose.msra.mxu0 0.0
        %3633 = vmatprep.subr.mxu0 0.0
        %3634 = vmatpush1.xpose.msra.mxu0 0.0
        %3635 = vmatprep.subr.mxu0 0.0
        %3636 = vmatpush1.xpose.msra.mxu0 0.0
        %3637 = vmatprep.subr.mxu0 0.0
        %3638 = vmatpush1.xpose.msra.mxu0 0.0
        %3639 = vmatprep.subr.mxu0 0.0
        %3640 = vmatpush1.xpose.msra.mxu0 0.0
        %3641 = vmatprep.subr.mxu0 0.0
        %3642 = vmatpush1.xpose.msra.mxu0 0.0
        %3643 = vmatprep.subr.mxu0 0.0
        %3644 = vmatpush1.xpose.msra.mxu0 0.0
        %3645 = vmatprep.subr.mxu0 0.0
        %3646 = vmatpush1.xpose.msra.mxu0 0.0
        %3647 = vmatprep.subr.mxu0 0.0
        %3648 = vmatpush1.xpose.msra.mxu0 0.0
        %3649 = vmatprep.subr.mxu0 0.0
        %3650 = vmatpush1.xpose.msra.mxu0 0.0
        %3651 = vmatprep.subr.mxu0 0.0
        %3652 = vmatpush1.xpose.msra.mxu0 0.0
        %3653 = vmatprep.subr.mxu0 0.0
        %3654 = vmatpush1.xpose.msra.mxu0 0.0
        %3655 = vmatprep.subr.mxu0 0.0
        %3656 = vmatpush1.xpose.msra.mxu0 0.0
        %3657 = vmatprep.subr.mxu0 0.0
        %3658 = vmatpush1.xpose.msra.mxu0 0.0
        %3659 = vmatprep.subr.mxu0 0.0
        %3660 = vmatpush1.xpose.msra.mxu0 0.0
        %3661 = vmatprep.subr.mxu0 0.0
        %3662 = vmatpush1.xpose.msra.mxu0 0.0
        %3663 = vmatprep.subr.mxu0 0.0
        %3664 = vmatpush1.xpose.msra.mxu0 0.0
        %3665 = vmatprep.subr.mxu0 0.0
        %3666 = vmatpush1.xpose.msra.mxu0 0.0
        %3667 = vmatprep.mubr.f32.mxu0 0.0
        %3668 = vmatmul.mubr.f32.gmra.mrb[0].mxu0 %v3599
        %v3669 = vpop.f32.mrb[0].mxu0
        %v3670 = vadd.f32 0.0, %v3669
        %v3671 = vpop.f32.mrb[0].mxu0
        %3672 = vdwg.mxu0
        %3673 = vrot.lane.b32.xlu0 %v1564, 32
        %v3674 = vpop.permute.xlu0 %3673
        %3675 = vrot.lane.b32.xlu0 %v1566, 32
        %v3676 = vpop.permute.xlu0 %3675
        %v3677 = vsel %vm1609, %v3674, 0
        %v3679 = vsel %vm1609, %v3676, 0
        %3681 = vmatprep.subr.mxu0 0.0
        %3682 = vmatpush1.xpose.msra.mxu0 %v3679
        %3683 = vmatprep.subr.mxu0 0.0
        %3684 = vmatpush1.xpose.msra.mxu0 0.0
        %3685 = vmatprep.subr.mxu0 0.0
        %3686 = vmatpush1.xpose.msra.mxu0 0.0
        %3687 = vmatprep.subr.mxu0 0.0
        %3688 = vmatpush1.xpose.msra.mxu0 0.0
        %3689 = vmatprep.subr.mxu0 0.0
        %3690 = vmatpush1.xpose.msra.mxu0 0.0
        %3691 = vmatprep.subr.mxu0 0.0
        %3692 = vmatpush1.xpose.msra.mxu0 0.0
        %3693 = vmatprep.subr.mxu0 0.0
        %3694 = vmatpush1.xpose.msra.mxu0 0.0
        %3695 = vmatprep.subr.mxu0 0.0
        %3696 = vmatpush1.xpose.msra.mxu0 0.0
        %3697 = vmatprep.subr.mxu0 0.0
        %3698 = vmatpush1.xpose.msra.mxu0 0.0
        %3699 = vmatprep.subr.mxu0 0.0
        %3700 = vmatpush1.xpose.msra.mxu0 0.0
        %3701 = vmatprep.subr.mxu0 0.0
        %3702 = vmatpush1.xpose.msra.mxu0 0.0
        %3703 = vmatprep.subr.mxu0 0.0
        %3704 = vmatpush1.xpose.msra.mxu0 0.0
        %3705 = vmatprep.subr.mxu0 0.0
        %3706 = vmatpush1.xpose.msra.mxu0 0.0
        %3707 = vmatprep.subr.mxu0 0.0
        %3708 = vmatpush1.xpose.msra.mxu0 0.0
        %3709 = vmatprep.subr.mxu0 0.0
        %3710 = vmatpush1.xpose.msra.mxu0 0.0
        %3711 = vmatprep.subr.mxu0 0.0
        %3712 = vmatpush1.xpose.msra.mxu0 0.0
        %3713 = vmatprep.subr.mxu0 0.0
        %3714 = vmatpush1.xpose.msra.mxu0 0.0
        %3715 = vmatprep.subr.mxu0 0.0
        %3716 = vmatpush1.xpose.msra.mxu0 0.0
        %3717 = vmatprep.subr.mxu0 0.0
        %3718 = vmatpush1.xpose.msra.mxu0 0.0
        %3719 = vmatprep.subr.mxu0 0.0
        %3720 = vmatpush1.xpose.msra.mxu0 0.0
        %3721 = vmatprep.subr.mxu0 0.0
        %3722 = vmatpush1.xpose.msra.mxu0 0.0
        %3723 = vmatprep.subr.mxu0 0.0
        %3724 = vmatpush1.xpose.msra.mxu0 0.0
        %3725 = vmatprep.subr.mxu0 0.0
        %3726 = vmatpush1.xpose.msra.mxu0 0.0
        %3727 = vmatprep.subr.mxu0 0.0
        %3728 = vmatpush1.xpose.msra.mxu0 0.0
        %3729 = vmatprep.subr.mxu0 0.0
        %3730 = vmatpush1.xpose.msra.mxu0 0.0
        %3731 = vmatprep.subr.mxu0 0.0
        %3732 = vmatpush1.xpose.msra.mxu0 0.0
        %3733 = vmatprep.subr.mxu0 0.0
        %3734 = vmatpush1.xpose.msra.mxu0 0.0
        %3735 = vmatprep.subr.mxu0 0.0
        %3736 = vmatpush1.xpose.msra.mxu0 0.0
        %3737 = vmatprep.subr.mxu0 0.0
        %3738 = vmatpush1.xpose.msra.mxu0 0.0
        %3739 = vmatprep.subr.mxu0 0.0
        %3740 = vmatpush1.xpose.msra.mxu0 0.0
        %3741 = vmatprep.subr.mxu0 0.0
        %3742 = vmatpush1.xpose.msra.mxu0 0.0
        %3743 = vmatprep.subr.mxu0 0.0
        %3744 = vmatpush1.xpose.msra.mxu0 0.0
        %3745 = vmatprep.mubr.f32.mxu0 0.0
        %3746 = vmatmul.mubr.f32.gmra.mrb[0].mxu0 %v3677
        %v3747 = vpop.f32.mrb[0].mxu0
        %v3748 = vadd.f32 0.0, %v3747
        %v3749 = vpop.f32.mrb[0].mxu0
        %3750 = vdwg.mxu0
        %v3751 = vmul.f32 %v3670, 0.25
        %v3752 = vmul.f32 %v3748, 0.25
        %v3753 = vsel %vm1764, %v3751, -inf
        %3754 = vmax.xlane.f32.xlu0 %v3753
        %v3755 = vpop.xlane.xlu0 %3754
        %v3756 = vsel %vm1764, %v3752, -inf
        %3757 = vmax.xlane.f32.xlu0 %v3756
        %v3758 = vpop.xlane.xlu0 %3757
        %v3759 = vsub.f32 %v3751, %v3755
        %v3760 = vsub.f32 %v3752, %v3758
        %v3761 = vmul.f32 %v3759, 1.442695
        %v3762 = vpow.pop %v3761
        %v3763 = vmul.f32 %v3760, 1.442695
        %v3764 = vpow.pop %v3763
        %v3765 = vsel %vm1764, %v3762, 0.0
        %3766 = vadd.xlane.f32.xlu0 %v3765
        %v3767 = vpop.xlane.xlu0 %3766
        %v3768 = vsel %vm1764, %v3764, 0.0
        %3769 = vadd.xlane.f32.xlu0 %v3768
        %v3770 = vpop.xlane.xlu0 %3769
        %v3771 = vrcp.pop %v3767
        %v3772 = vmul.f32 %v3762, %v3771
        %v3773 = vrcp.pop %v3770
        %v3774 = vmul.f32 %v3764, %v3773
        %3775 = vrot.lane.b32.xlu0 %v1603, 32
        %v3776 = vpop.permute.xlu0 %3775
        %v3779 = vsel %vm1764, %v3772, 0
        %3781 = vmatprep.subr.mxu0 0.0
        %3782 = vmatpush1.msra.mxu0 %v3776
        %3783 = vmatprep.subr.mxu0 0.0
        %3784 = vmatpush1.msra.mxu0 0.0
        %3785 = vmatprep.subr.mxu0 0.0
        %3786 = vmatpush1.msra.mxu0 0.0
        %3787 = vmatprep.subr.mxu0 0.0
        %3788 = vmatpush1.msra.mxu0 0.0
        %3789 = vmatprep.subr.mxu0 0.0
        %3790 = vmatpush1.msra.mxu0 0.0
        %3791 = vmatprep.subr.mxu0 0.0
        %3792 = vmatpush1.msra.mxu0 0.0
        %3793 = vmatprep.subr.mxu0 0.0
        %3794 = vmatpush1.msra.mxu0 0.0
        %3795 = vmatprep.subr.mxu0 0.0
        %3796 = vmatpush1.msra.mxu0 0.0
        %3797 = vmatprep.subr.mxu0 0.0
        %3798 = vmatpush1.msra.mxu0 0.0
        %3799 = vmatprep.subr.mxu0 0.0
        %3800 = vmatpush1.msra.mxu0 0.0
        %3801 = vmatprep.subr.mxu0 0.0
        %3802 = vmatpush1.msra.mxu0 0.0
        %3803 = vmatprep.subr.mxu0 0.0
        %3804 = vmatpush1.msra.mxu0 0.0
        %3805 = vmatprep.subr.mxu0 0.0
        %3806 = vmatpush1.msra.mxu0 0.0
        %3807 = vmatprep.subr.mxu0 0.0
        %3808 = vmatpush1.msra.mxu0 0.0
        %3809 = vmatprep.subr.mxu0 0.0
        %3810 = vmatpush1.msra.mxu0 0.0
        %3811 = vmatprep.subr.mxu0 0.0
        %3812 = vmatpush1.msra.mxu0 0.0
        %3813 = vmatprep.subr.mxu0 0.0
        %3814 = vmatpush1.msra.mxu0 0.0
        %3815 = vmatprep.subr.mxu0 0.0
        %3816 = vmatpush1.msra.mxu0 0.0
        %3817 = vmatprep.subr.mxu0 0.0
        %3818 = vmatpush1.msra.mxu0 0.0
        %3819 = vmatprep.subr.mxu0 0.0
        %3820 = vmatpush1.msra.mxu0 0.0
        %3821 = vmatprep.subr.mxu0 0.0
        %3822 = vmatpush1.msra.mxu0 0.0
        %3823 = vmatprep.subr.mxu0 0.0
        %3824 = vmatpush1.msra.mxu0 0.0
        %3825 = vmatprep.subr.mxu0 0.0
        %3826 = vmatpush1.msra.mxu0 0.0
        %3827 = vmatprep.subr.mxu0 0.0
        %3828 = vmatpush1.msra.mxu0 0.0
        %3829 = vmatprep.subr.mxu0 0.0
        %3830 = vmatpush1.msra.mxu0 0.0
        %3831 = vmatprep.subr.mxu0 0.0
        %3832 = vmatpush1.msra.mxu0 0.0
        %3833 = vmatprep.subr.mxu0 0.0
        %3834 = vmatpush1.msra.mxu0 0.0
        %3835 = vmatprep.subr.mxu0 0.0
        %3836 = vmatpush1.msra.mxu0 0.0
        %3837 = vmatprep.subr.mxu0 0.0
        %3838 = vmatpush1.msra.mxu0 0.0
        %3839 = vmatprep.subr.mxu0 0.0
        %3840 = vmatpush1.msra.mxu0 0.0
        %3841 = vmatprep.subr.mxu0 0.0
        %3842 = vmatpush1.msra.mxu0 0.0
        %3843 = vmatprep.subr.mxu0 0.0
        %3844 = vmatpush1.msra.mxu0 0.0
        %3845 = vmatprep.mubr.f32.mxu0 0.0
        %3846 = vmatmul.mubr.f32.gmra.mrb[0].mxu0 %v3779
        %v3847 = vpop.f32.mrb[0].mxu0
        %v3848 = vadd.f32 0.0, %v3847
        %v3849 = vpop.f32.mrb[0].mxu0
        %3850 = vdwg.mxu0
        %3851 = vrot.lane.b32.xlu0 %v1606, 32
        %v3852 = vpop.permute.xlu0 %3851
        %v3855 = vsel %vm1764, %v3774, 0
        %3857 = vmatprep.subr.mxu0 0.0
        %3858 = vmatpush1.msra.mxu0 %v3852
        %3859 = vmatprep.subr.mxu0 0.0
        %3860 = vmatpush1.msra.mxu0 0.0
        %3861 = vmatprep.subr.mxu0 0.0
        %3862 = vmatpush1.msra.mxu0 0.0
        %3863 = vmatprep.subr.mxu0 0.0
        %3864 = vmatpush1.msra.mxu0 0.0
        %3865 = vmatprep.subr.mxu0 0.0
        %3866 = vmatpush1.msra.mxu0 0.0
        %3867 = vmatprep.subr.mxu0 0.0
        %3868 = vmatpush1.msra.mxu0 0.0
        %3869 = vmatprep.subr.mxu0 0.0
        %3870 = vmatpush1.msra.mxu0 0.0
        %3871 = vmatprep.subr.mxu0 0.0
        %3872 = vmatpush1.msra.mxu0 0.0
        %3873 = vmatprep.subr.mxu0 0.0
        %3874 = vmatpush1.msra.mxu0 0.0
        %3875 = vmatprep.subr.mxu0 0.0
        %3876 = vmatpush1.msra.mxu0 0.0
        %3877 = vmatprep.subr.mxu0 0.0
        %3878 = vmatpush1.msra.mxu0 0.0
        %3879 = vmatprep.subr.mxu0 0.0
        %3880 = vmatpush1.msra.mxu0 0.0
        %3881 = vmatprep.subr.mxu0 0.0
        %3882 = vmatpush1.msra.mxu0 0.0
        %3883 = vmatprep.subr.mxu0 0.0
        %3884 = vmatpush1.msra.mxu0 0.0
        %3885 = vmatprep.subr.mxu0 0.0
        %3886 = vmatpush1.msra.mxu0 0.0
        %3887 = vmatprep.subr.mxu0 0.0
        %3888 = vmatpush1.msra.mxu0 0.0
        %3889 = vmatprep.subr.mxu0 0.0
        %3890 = vmatpush1.msra.mxu0 0.0
        %3891 = vmatprep.subr.mxu0 0.0
        %3892 = vmatpush1.msra.mxu0 0.0
        %3893 = vmatprep.subr.mxu0 0.0
        %3894 = vmatpush1.msra.mxu0 0.0
        %3895 = vmatprep.subr.mxu0 0.0
        %3896 = vmatpush1.msra.mxu0 0.0
        %3897 = vmatprep.subr.mxu0 0.0
        %3898 = vmatpush1.msra.mxu0 0.0
        %3899 = vmatprep.subr.mxu0 0.0
        %3900 = vmatpush1.msra.mxu0 0.0
        %3901 = vmatprep.subr.mxu0 0.0
        %3902 = vmatpush1.msra.mxu0 0.0
        %3903 = vmatprep.subr.mxu0 0.0
        %3904 = vmatpush1.msra.mxu0 0.0
        %3905 = vmatprep.subr.mxu0 0.0
        %3906 = vmatpush1.msra.mxu0 0.0
        %3907 = vmatprep.subr.mxu0 0.0
        %3908 = vmatpush1.msra.mxu0 0.0
        %3909 = vmatprep.subr.mxu0 0.0
        %3910 = vmatpush1.msra.mxu0 0.0
        %3911 = vmatprep.subr.mxu0 0.0
        %3912 = vmatpush1.msra.mxu0 0.0
        %3913 = vmatprep.subr.mxu0 0.0
        %3914 = vmatpush1.msra.mxu0 0.0
        %3915 = vmatprep.subr.mxu0 0.0
        %3916 = vmatpush1.msra.mxu0 0.0
        %3917 = vmatprep.subr.mxu0 0.0
        %3918 = vmatpush1.msra.mxu0 0.0
        %3919 = vmatprep.subr.mxu0 0.0
        %3920 = vmatpush1.msra.mxu0 0.0
        %3921 = vmatprep.mubr.f32.mxu0 0.0
        %3922 = vmatmul.mubr.f32.gmra.mrb[0].mxu0 %v3855
        %v3923 = vpop.f32.mrb[0].mxu0
        %v3924 = vadd.f32 0.0, %v3923
        %v3925 = vpop.f32.mrb[0].mxu0
        %3926 = vdwg.mxu0
        %3927 = vrot.lane.b32.xlu0 %v1560, 16
        %v3928 = vpop.permute.xlu0 %3927
        %3929 = vrot.lane.b32.xlu0 %v1562, 16
        %v3930 = vpop.permute.xlu0 %3929
        %v3931 = vsel %vm1609, %v3928, 0
        %v3933 = vsel %vm1609, %v3930, 0
        %3935 = vmatprep.subr.mxu0 0.0
        %3936 = vmatpush1.xpose.msra.mxu0 %v3933
        %3937 = vmatprep.subr.mxu0 0.0
        %3938 = vmatpush1.xpose.msra.mxu0 0.0
        %3939 = vmatprep.subr.mxu0 0.0
        %3940 = vmatpush1.xpose.msra.mxu0 0.0
        %3941 = vmatprep.subr.mxu0 0.0
        %3942 = vmatpush1.xpose.msra.mxu0 0.0
        %3943 = vmatprep.subr.mxu0 0.0
        %3944 = vmatpush1.xpose.msra.mxu0 0.0
        %3945 = vmatprep.subr.mxu0 0.0
        %3946 = vmatpush1.xpose.msra.mxu0 0.0
        %3947 = vmatprep.subr.mxu0 0.0
        %3948 = vmatpush1.xpose.msra.mxu0 0.0
        %3949 = vmatprep.subr.mxu0 0.0
        %3950 = vmatpush1.xpose.msra.mxu0 0.0
        %3951 = vmatprep.subr.mxu0 0.0
        %3952 = vmatpush1.xpose.msra.mxu0 0.0
        %3953 = vmatprep.subr.mxu0 0.0
        %3954 = vmatpush1.xpose.msra.mxu0 0.0
        %3955 = vmatprep.subr.mxu0 0.0
        %3956 = vmatpush1.xpose.msra.mxu0 0.0
        %3957 = vmatprep.subr.mxu0 0.0
        %3958 = vmatpush1.xpose.msra.mxu0 0.0
        %3959 = vmatprep.subr.mxu0 0.0
        %3960 = vmatpush1.xpose.msra.mxu0 0.0
        %3961 = vmatprep.subr.mxu0 0.0
        %3962 = vmatpush1.xpose.msra.mxu0 0.0
        %3963 = vmatprep.subr.mxu0 0.0
        %3964 = vmatpush1.xpose.msra.mxu0 0.0
        %3965 = vmatprep.subr.mxu0 0.0
        %3966 = vmatpush1.xpose.msra.mxu0 0.0
        %3967 = vmatprep.subr.mxu0 0.0
        %3968 = vmatpush1.xpose.msra.mxu0 0.0
        %3969 = vmatprep.subr.mxu0 0.0
        %3970 = vmatpush1.xpose.msra.mxu0 0.0
        %3971 = vmatprep.subr.mxu0 0.0
        %3972 = vmatpush1.xpose.msra.mxu0 0.0
        %3973 = vmatprep.subr.mxu0 0.0
        %3974 = vmatpush1.xpose.msra.mxu0 0.0
        %3975 = vmatprep.subr.mxu0 0.0
        %3976 = vmatpush1.xpose.msra.mxu0 0.0
        %3977 = vmatprep.subr.mxu0 0.0
        %3978 = vmatpush1.xpose.msra.mxu0 0.0
        %3979 = vmatprep.subr.mxu0 0.0
        %3980 = vmatpush1.xpose.msra.mxu0 0.0
        %3981 = vmatprep.subr.mxu0 0.0
        %3982 = vmatpush1.xpose.msra.mxu0 0.0
        %3983 = vmatprep.subr.mxu0 0.0
        %3984 = vmatpush1.xpose.msra.mxu0 0.0
        %3985 = vmatprep.subr.mxu0 0.0
        %3986 = vmatpush1.xpose.msra.mxu0 0.0
        %3987 = vmatprep.subr.mxu0 0.0
        %3988 = vmatpush1.xpose.msra.mxu0 0.0
        %3989 = vmatprep.subr.mxu0 0.0
        %3990 = vmatpush1.xpose.msra.mxu0 0.0
        %3991 = vmatprep.subr.mxu0 0.0
        %3992 = vmatpush1.xpose.msra.mxu0 0.0
        %3993 = vmatprep.subr.mxu0 0.0
        %3994 = vmatpush1.xpose.msra.mxu0 0.0
        %3995 = vmatprep.subr.mxu0 0.0
        %3996 = vmatpush1.xpose.msra.mxu0 0.0
        %3997 = vmatprep.subr.mxu0 0.0
        %3998 = vmatpush1.xpose.msra.mxu0 0.0
        %3999 = vmatprep.mubr.f32.mxu0 0.0
        %4000 = vmatmul.mubr.f32.gmra.mrb[0].mxu0 %v3931
        %v4001 = vpop.f32.mrb[0].mxu0
        %v4002 = vadd.f32 0.0, %v4001
        %v4003 = vpop.f32.mrb[0].mxu0
        %4004 = vdwg.mxu0
        %4005 = vrot.lane.b32.xlu0 %v1564, 16
        %v4006 = vpop.permute.xlu0 %4005
        %4007 = vrot.lane.b32.xlu0 %v1566, 16
        %v4008 = vpop.permute.xlu0 %4007
        %v4009 = vsel %vm1609, %v4006, 0
        %v4011 = vsel %vm1609, %v4008, 0
        %4013 = vmatprep.subr.mxu0 0.0
        %4014 = vmatpush1.xpose.msra.mxu0 %v4011
        %4015 = vmatprep.subr.mxu0 0.0
        %4016 = vmatpush1.xpose.msra.mxu0 0.0
        %4017 = vmatprep.subr.mxu0 0.0
        %4018 = vmatpush1.xpose.msra.mxu0 0.0
        %4019 = vmatprep.subr.mxu0 0.0
        %4020 = vmatpush1.xpose.msra.mxu0 0.0
        %4021 = vmatprep.subr.mxu0 0.0
        %4022 = vmatpush1.xpose.msra.mxu0 0.0
        %4023 = vmatprep.subr.mxu0 0.0
        %4024 = vmatpush1.xpose.msra.mxu0 0.0
        %4025 = vmatprep.subr.mxu0 0.0
        %4026 = vmatpush1.xpose.msra.mxu0 0.0
        %4027 = vmatprep.subr.mxu0 0.0
        %4028 = vmatpush1.xpose.msra.mxu0 0.0
        %4029 = vmatprep.subr.mxu0 0.0
        %4030 = vmatpush1.xpose.msra.mxu0 0.0
        %4031 = vmatprep.subr.mxu0 0.0
        %4032 = vmatpush1.xpose.msra.mxu0 0.0
        %4033 = vmatprep.subr.mxu0 0.0
        %4034 = vmatpush1.xpose.msra.mxu0 0.0
        %4035 = vmatprep.subr.mxu0 0.0
        %4036 = vmatpush1.xpose.msra.mxu0 0.0
        %4037 = vmatprep.subr.mxu0 0.0
        %4038 = vmatpush1.xpose.msra.mxu0 0.0
        %4039 = vmatprep.subr.mxu0 0.0
        %4040 = vmatpush1.xpose.msra.mxu0 0.0
        %4041 = vmatprep.subr.mxu0 0.0
        %4042 = vmatpush1.xpose.msra.mxu0 0.0
        %4043 = vmatprep.subr.mxu0 0.0
        %4044 = vmatpush1.xpose.msra.mxu0 0.0
        %4045 = vmatprep.subr.mxu0 0.0
        %4046 = vmatpush1.xpose.msra.mxu0 0.0
        %4047 = vmatprep.subr.mxu0 0.0
        %4048 = vmatpush1.xpose.msra.mxu0 0.0
        %4049 = vmatprep.subr.mxu0 0.0
        %4050 = vmatpush1.xpose.msra.mxu0 0.0
        %4051 = vmatprep.subr.mxu0 0.0
        %4052 = vmatpush1.xpose.msra.mxu0 0.0
        %4053 = vmatprep.subr.mxu0 0.0
        %4054 = vmatpush1.xpose.msra.mxu0 0.0
        %4055 = vmatprep.subr.mxu0 0.0
        %4056 = vmatpush1.xpose.msra.mxu0 0.0
        %4057 = vmatprep.subr.mxu0 0.0
        %4058 = vmatpush1.xpose.msra.mxu0 0.0
        %4059 = vmatprep.subr.mxu0 0.0
        %4060 = vmatpush1.xpose.msra.mxu0 0.0
        %4061 = vmatprep.subr.mxu0 0.0
        %4062 = vmatpush1.xpose.msra.mxu0 0.0
        %4063 = vmatprep.subr.mxu0 0.0
        %4064 = vmatpush1.xpose.msra.mxu0 0.0
        %4065 = vmatprep.subr.mxu0 0.0
        %4066 = vmatpush1.xpose.msra.mxu0 0.0
        %4067 = vmatprep.subr.mxu0 0.0
        %4068 = vmatpush1.xpose.msra.mxu0 0.0
        %4069 = vmatprep.subr.mxu0 0.0
        %4070 = vmatpush1.xpose.msra.mxu0 0.0
        %4071 = vmatprep.subr.mxu0 0.0
        %4072 = vmatpush1.xpose.msra.mxu0 0.0
        %4073 = vmatprep.subr.mxu0 0.0
        %4074 = vmatpush1.xpose.msra.mxu0 0.0
        %4075 = vmatprep.subr.mxu0 0.0
        %4076 = vmatpush1.xpose.msra.mxu0 0.0
        %4077 = vmatprep.mubr.f32.mxu0 0.0
        %4078 = vmatmul.mubr.f32.gmra.mrb[0].mxu0 %v4009
        %v4079 = vpop.f32.mrb[0].mxu0
        %v4080 = vadd.f32 0.0, %v4079
        %v4081 = vpop.f32.mrb[0].mxu0
        %4082 = vdwg.mxu0
        %v4083 = vmul.f32 %v4002, 0.25
        %v4084 = vmul.f32 %v4080, 0.25
        %v4085 = vsel %vm1764, %v4083, -inf
        %4086 = vmax.xlane.f32.xlu0 %v4085
        %v4087 = vpop.xlane.xlu0 %4086
        %v4088 = vsel %vm1764, %v4084, -inf
        %4089 = vmax.xlane.f32.xlu0 %v4088
        %v4090 = vpop.xlane.xlu0 %4089
        %v4091 = vsub.f32 %v4083, %v4087
        %v4092 = vsub.f32 %v4084, %v4090
        %v4093 = vmul.f32 %v4091, 1.442695
        %v4094 = vpow.pop %v4093
        %v4095 = vmul.f32 %v4092, 1.442695
        %v4096 = vpow.pop %v4095
        %v4097 = vsel %vm1764, %v4094, 0.0
        %4098 = vadd.xlane.f32.xlu0 %v4097
        %v4099 = vpop.xlane.xlu0 %4098
        %v4100 = vsel %vm1764, %v4096, 0.0
        %4101 = vadd.xlane.f32.xlu0 %v4100
        %v4102 = vpop.xlane.xlu0 %4101
        %v4103 = vrcp.pop %v4099
        %v4104 = vmul.f32 %v4094, %v4103
        %v4105 = vrcp.pop %v4102
        %v4106 = vmul.f32 %v4096, %v4105
        %4107 = vrot.lane.b32.xlu0 %v1603, 16
        %v4108 = vpop.permute.xlu0 %4107
        %v4111 = vsel %vm1764, %v4104, 0
        %4113 = vmatprep.subr.mxu0 0.0
        %4114 = vmatpush1.msra.mxu0 %v4108
        %4115 = vmatprep.subr.mxu0 0.0
        %4116 = vmatpush1.msra.mxu0 0.0
        %4117 = vmatprep.subr.mxu0 0.0
        %4118 = vmatpush1.msra.mxu0 0.0
        %4119 = vmatprep.subr.mxu0 0.0
        %4120 = vmatpush1.msra.mxu0 0.0
        %4121 = vmatprep.subr.mxu0 0.0
        %4122 = vmatpush1.msra.mxu0 0.0
        %4123 = vmatprep.subr.mxu0 0.0
        %4124 = vmatpush1.msra.mxu0 0.0
        %4125 = vmatprep.subr.mxu0 0.0
        %4126 = vmatpush1.msra.mxu0 0.0
        %4127 = vmatprep.subr.mxu0 0.0
        %4128 = vmatpush1.msra.mxu0 0.0
        %4129 = vmatprep.subr.mxu0 0.0
        %4130 = vmatpush1.msra.mxu0 0.0
        %4131 = vmatprep.subr.mxu0 0.0
        %4132 = vmatpush1.msra.mxu0 0.0
        %4133 = vmatprep.subr.mxu0 0.0
        %4134 = vmatpush1.msra.mxu0 0.0
        %4135 = vmatprep.subr.mxu0 0.0
        %4136 = vmatpush1.msra.mxu0 0.0
        %4137 = vmatprep.subr.mxu0 0.0
        %4138 = vmatpush1.msra.mxu0 0.0
        %4139 = vmatprep.subr.mxu0 0.0
        %4140 = vmatpush1.msra.mxu0 0.0
        %4141 = vmatprep.subr.mxu0 0.0
        %4142 = vmatpush1.msra.mxu0 0.0
        %4143 = vmatprep.subr.mxu0 0.0
        %4144 = vmatpush1.msra.mxu0 0.0
        %4145 = vmatprep.subr.mxu0 0.0
        %4146 = vmatpush1.msra.mxu0 0.0
        %4147 = vmatprep.subr.mxu0 0.0
        %4148 = vmatpush1.msra.mxu0 0.0
        %4149 = vmatprep.subr.mxu0 0.0
        %4150 = vmatpush1.msra.mxu0 0.0
        %4151 = vmatprep.subr.mxu0 0.0
        %4152 = vmatpush1.msra.mxu0 0.0
        %4153 = vmatprep.subr.mxu0 0.0
        %4154 = vmatpush1.msra.mxu0 0.0
        %4155 = vmatprep.subr.mxu0 0.0
        %4156 = vmatpush1.msra.mxu0 0.0
        %4157 = vmatprep.subr.mxu0 0.0
        %4158 = vmatpush1.msra.mxu0 0.0
        %4159 = vmatprep.subr.mxu0 0.0
        %4160 = vmatpush1.msra.mxu0 0.0
        %4161 = vmatprep.subr.mxu0 0.0
        %4162 = vmatpush1.msra.mxu0 0.0
        %4163 = vmatprep.subr.mxu0 0.0
        %4164 = vmatpush1.msra.mxu0 0.0
        %4165 = vmatprep.subr.mxu0 0.0
        %4166 = vmatpush1.msra.mxu0 0.0
        %4167 = vmatprep.subr.mxu0 0.0
        %4168 = vmatpush1.msra.mxu0 0.0
        %4169 = vmatprep.subr.mxu0 0.0
        %4170 = vmatpush1.msra.mxu0 0.0
        %4171 = vmatprep.subr.mxu0 0.0
        %4172 = vmatpush1.msra.mxu0 0.0
        %4173 = vmatprep.subr.mxu0 0.0
        %4174 = vmatpush1.msra.mxu0 0.0
        %4175 = vmatprep.subr.mxu0 0.0
        %4176 = vmatpush1.msra.mxu0 0.0
        %4177 = vmatprep.mubr.f32.mxu0 0.0
        %4178 = vmatmul.mubr.f32.gmra.mrb[0].mxu0 %v4111
        %v4179 = vpop.f32.mrb[0].mxu0
        %v4180 = vadd.f32 0.0, %v4179
        %v4181 = vpop.f32.mrb[0].mxu0
        %4182 = vdwg.mxu0
        %4183 = vrot.lane.b32.xlu0 %v1606, 16
        %v4184 = vpop.permute.xlu0 %4183
        %v4187 = vsel %vm1764, %v4106, 0
        %4189 = vmatprep.subr.mxu0 0.0
        %4190 = vmatpush1.msra.mxu0 %v4184
        %4191 = vmatprep.subr.mxu0 0.0
        %4192 = vmatpush1.msra.mxu0 0.0
        %4193 = vmatprep.subr.mxu0 0.0
        %4194 = vmatpush1.msra.mxu0 0.0
        %4195 = vmatprep.subr.mxu0 0.0
        %4196 = vmatpush1.msra.mxu0 0.0
        %4197 = vmatprep.subr.mxu0 0.0
        %4198 = vmatpush1.msra.mxu0 0.0
        %4199 = vmatprep.subr.mxu0 0.0
        %4200 = vmatpush1.msra.mxu0 0.0
        %4201 = vmatprep.subr.mxu0 0.0
        %4202 = vmatpush1.msra.mxu0 0.0
        %4203 = vmatprep.subr.mxu0 0.0
        %4204 = vmatpush1.msra.mxu0 0.0
        %4205 = vmatprep.subr.mxu0 0.0
        %4206 = vmatpush1.msra.mxu0 0.0
        %4207 = vmatprep.subr.mxu0 0.0
        %4208 = vmatpush1.msra.mxu0 0.0
        %4209 = vmatprep.subr.mxu0 0.0
        %4210 = vmatpush1.msra.mxu0 0.0
        %4211 = vmatprep.subr.mxu0 0.0
        %4212 = vmatpush1.msra.mxu0 0.0
        %4213 = vmatprep.subr.mxu0 0.0
        %4214 = vmatpush1.msra.mxu0 0.0
        %4215 = vmatprep.subr.mxu0 0.0
        %4216 = vmatpush1.msra.mxu0 0.0
        %4217 = vmatprep.subr.mxu0 0.0
        %4218 = vmatpush1.msra.mxu0 0.0
        %4219 = vmatprep.subr.mxu0 0.0
        %4220 = vmatpush1.msra.mxu0 0.0
        %4221 = vmatprep.subr.mxu0 0.0
        %4222 = vmatpush1.msra.mxu0 0.0
        %4223 = vmatprep.subr.mxu0 0.0
        %4224 = vmatpush1.msra.mxu0 0.0
        %4225 = vmatprep.subr.mxu0 0.0
        %4226 = vmatpush1.msra.mxu0 0.0
        %4227 = vmatprep.subr.mxu0 0.0
        %4228 = vmatpush1.msra.mxu0 0.0
        %4229 = vmatprep.subr.mxu0 0.0
        %4230 = vmatpush1.msra.mxu0 0.0
        %4231 = vmatprep.subr.mxu0 0.0
        %4232 = vmatpush1.msra.mxu0 0.0
        %4233 = vmatprep.subr.mxu0 0.0
        %4234 = vmatpush1.msra.mxu0 0.0
        %4235 = vmatprep.subr.mxu0 0.0
        %4236 = vmatpush1.msra.mxu0 0.0
        %4237 = vmatprep.subr.mxu0 0.0
        %4238 = vmatpush1.msra.mxu0 0.0
        %4239 = vmatprep.subr.mxu0 0.0
        %4240 = vmatpush1.msra.mxu0 0.0
        %4241 = vmatprep.subr.mxu0 0.0
        %4242 = vmatpush1.msra.mxu0 0.0
        %4243 = vmatprep.subr.mxu0 0.0
        %4244 = vmatpush1.msra.mxu0 0.0
        %4245 = vmatprep.subr.mxu0 0.0
        %4246 = vmatpush1.msra.mxu0 0.0
        %4247 = vmatprep.subr.mxu0 0.0
        %4248 = vmatpush1.msra.mxu0 0.0
        %4249 = vmatprep.subr.mxu0 0.0
        %4250 = vmatpush1.msra.mxu0 0.0
        %4251 = vmatprep.subr.mxu0 0.0
        %4252 = vmatpush1.msra.mxu0 0.0
        %4253 = vmatprep.mubr.f32.mxu0 0.0
        %4254 = vmatmul.mubr.f32.gmra.mrb[0].mxu0 %v4187
        %v4255 = vpop.f32.mrb[0].mxu0
        %v4256 = vadd.f32 0.0, %v4255
        %v4257 = vpop.f32.mrb[0].mxu0
        %4258 = vdwg.mxu0
        %4261 = vrot.lane.b32.xlu0 %v2187, 16
        %v4262 = vpop.permute.xlu0 %4261
        %4263 = vrot.lane.b32.xlu0 %v2264, 16
        %v4264 = vpop.permute.xlu0 %4263
        %4269 = vrot.lane.b32.xlu0 %v2520, 32
        %v4270 = vpop.permute.xlu0 %4269
        %4271 = vrot.lane.b32.xlu0 %v2596, 32
        %v4272 = vpop.permute.xlu0 %4271
        %4277 = vrot.lane.b32.xlu0 %v2852, 48
        %v4278 = vpop.permute.xlu0 %4277
        %4279 = vrot.lane.b32.xlu0 %v2928, 48
        %v4280 = vpop.permute.xlu0 %4279
        %4285 = vrot.lane.b32.xlu0 %v3184, 64
        %v4286 = vpop.permute.xlu0 %4285
        %4287 = vrot.lane.b32.xlu0 %v3260, 64
        %v4288 = vpop.permute.xlu0 %4287
        %4293 = vrot.lane.b32.xlu0 %v3516, 80
        %v4294 = vpop.permute.xlu0 %4293
        %4295 = vrot.lane.b32.xlu0 %v3592, 80
        %v4296 = vpop.permute.xlu0 %4295
        %4301 = vrot.lane.b32.xlu0 %v3848, 96
        %v4302 = vpop.permute.xlu0 %4301
        %4303 = vrot.lane.b32.xlu0 %v3924, 96
        %v4304 = vpop.permute.xlu0 %4303
        %4309 = vrot.lane.b32.xlu0 %v4180, 112
        %v4310 = vpop.permute.xlu0 %4309
        %4311 = vrot.lane.b32.xlu0 %v4256, 112
        %v4312 = vpop.permute.xlu0 %4311
        %v4315 = vsel %vm1609, %v1857, %v4262
        %v4316 = vsel %vm1609, %v1930, %v4264
        %vm4317 = vcmask 261120
        %v4318 = vsel %vm4317, %v4315, %v4270
        %v4319 = vsel %vm4317, %v4316, %v4272
        %vm4320 = vcmask 392192
        %v4321 = vsel %vm4320, %v4318, %v4278
        %v4322 = vsel %vm4320, %v4319, %v4280
        %vm4323 = vcmask 523264
        %v4324 = vsel %vm4323, %v4321, %v4286
        %v4325 = vsel %vm4323, %v4322, %v4288
        %vm4326 = vcmask 654336
        %v4327 = vsel %vm4326, %v4324, %v4294
        %v4328 = vsel %vm4326, %v4325, %v4296
        %vm4329 = vcmask 785408
        %v4330 = vsel %vm4329, %v4327, %v4302
        %v4331 = vsel %vm4329, %v4328, %v4304
        %vm4332 = vcmask 916480
        %v4333 = vsel %vm4332, %v4330, %v4310
        %v4334 = vsel %vm4332, %v4331, %v4312
        %v4335 = vpack.c.bf16 %v4334, %v4333
        %v4336 = vld [vmem:[%s1071] sm:$0xf]
        %v4337 = vld [vmem:[%s1071 + $0x4] sm:$0xf]
        %v4338 = vld [vmem:[%s1071 + $0x8] sm:$0xf]
        %v4339 = vld [vmem:[%s1071 + $0xc] sm:$0xf]
        %v4340 = vld [vmem:[%s1071 + $0x10] sm:$0xf]
        %v4341 = vld [vmem:[%s1071 + $0x14] sm:$0xf]
        %v4342 = vld [vmem:[%s1071 + $0x18] sm:$0xf]
        %v4343 = vld [vmem:[%s1071 + $0x1c] sm:$0xf]
        %v4344 = vld [vmem:[%s1071 + $0x20] sm:$0xf]
        %v4345 = vld [vmem:[%s1071 + $0x24] sm:$0xf]
        %v4346 = vld [vmem:[%s1071 + $0x28] sm:$0xf]
        %v4347 = vld [vmem:[%s1071 + $0x2c] sm:$0xf]
        %v4348 = vld [vmem:[%s1071 + $0x30] sm:$0xf]
        %v4349 = vld [vmem:[%s1071 + $0x34] sm:$0xf]
        %v4350 = vld [vmem:[%s1071 + $0x38] sm:$0xf]
        %v4351 = vld [vmem:[%s1071 + $0x3c] sm:$0xf]
        %v4352 = vld [vmem:[%s1079] sm:$0x1]
        %v4354 = vlaneseq
        %v4355 = vshrl.u32 %v4354, 7
        %v4356 = vsub.s32 0, %v4355
        %v4357 = vrot.slane %v4352, %v4356
        %v4375 = vunpack.c.l.b16 %v4336
        %v4376 = vunpack.c.l.b16 %v4337
        %v4377 = vunpack.c.l.b16 %v4338
        %v4378 = vunpack.c.l.b16 %v4339
        %v4379 = vunpack.c.l.b16 %v4340
        %v4380 = vunpack.c.l.b16 %v4341
        %v4381 = vunpack.c.l.b16 %v4342
        %v4382 = vunpack.c.l.b16 %v4343
        %v4383 = vunpack.c.l.b16 %v4344
        %v4384 = vunpack.c.l.b16 %v4345
        %v4385 = vunpack.c.l.b16 %v4346
        %v4386 = vunpack.c.l.b16 %v4347
        %v4387 = vunpack.c.l.b16 %v4348
        %v4388 = vunpack.c.l.b16 %v4349
        %v4389 = vunpack.c.l.b16 %v4350
        %v4390 = vunpack.c.l.b16 %v4351
        %v4391 = vpack.c.b16 %v4376, %v4375
        %v4392 = vpack.c.b16 %v4378, %v4377
        %v4393 = vpack.c.b16 %v4380, %v4379
        %v4394 = vpack.c.b16 %v4382, %v4381
        %v4395 = vpack.c.b16 %v4384, %v4383
        %v4396 = vpack.c.b16 %v4386, %v4385
        %v4397 = vpack.c.b16 %v4388, %v4387
        %v4398 = vpack.c.b16 %v4390, %v4389
        %4407 = vmatprep.subr.bf16.mxu0 0
        %4408 = vmatpush1.bf16.msra.mxu0 %v4391
        %4409 = vmatprep.subr.bf16.mxu0 0
        %4410 = vmatpush1.bf16.msra.mxu0 %v4392
        %4411 = vmatprep.subr.bf16.mxu0 0
        %4412 = vmatpush1.bf16.msra.mxu0 %v4393
        %4413 = vmatprep.subr.bf16.mxu0 0
        %4414 = vmatpush1.bf16.msra.mxu0 %v4394
        %4415 = vmatprep.subr.bf16.mxu0 0
        %4416 = vmatpush1.bf16.msra.mxu0 %v4395
        %4417 = vmatprep.subr.bf16.mxu0 0
        %4418 = vmatpush1.bf16.msra.mxu0 %v4396
        %4419 = vmatprep.subr.bf16.mxu0 0
        %4420 = vmatpush1.bf16.msra.mxu0 %v4397
        %4421 = vmatprep.subr.bf16.mxu0 0
        %4422 = vmatpush1.bf16.msra.mxu0 %v4398
        %4423 = vmatprep.subr.bf16.mxu0 0
        %4424 = vmatpush1.bf16.msra.mxu0 0
        %4425 = vmatprep.subr.bf16.mxu0 0
        %4426 = vmatpush1.bf16.msra.mxu0 0
        %4427 = vmatprep.subr.bf16.mxu0 0
        %4428 = vmatpush1.bf16.msra.mxu0 0
        %4429 = vmatprep.subr.bf16.mxu0 0
        %4430 = vmatpush1.bf16.msra.mxu0 0
        %4431 = vmatprep.subr.bf16.mxu0 0
        %4432 = vmatpush1.bf16.msra.mxu0 0
        %4433 = vmatprep.subr.bf16.mxu0 0
        %4434 = vmatpush1.bf16.msra.mxu0 0
        %4435 = vmatprep.subr.bf16.mxu0 0
        %4436 = vmatpush1.bf16.msra.mxu0 0
        %4437 = vmatprep.subr.bf16.mxu0 0
        %4438 = vmatpush1.bf16.msra.mxu0 0
        %4439 = vmatprep.mubr.bf16.mxu0 0
        %4440 = vmatmul.mubr.bf16.gmra.mrb[0].mxu0 %v4335
        %v4441 = vpop.f32.mrb[0].mxu0
        %v4442 = vadd.f32 %v4357, %v4441
        %v4443 = vpop.f32.mrb[0].mxu0
        %v4444 = vpop.f32.mrb[0].mxu0
        %v4445 = vadd.f32 %v4357, %v4444
        %v4446 = vpop.f32.mrb[0].mxu0
        %4447 = vdwg.mxu0
        %v4448 = vadd.f32 %v1345, %v4442
        %v4449 = vadd.f32 %v1346, %v4445
        %v4450 = vld [vmem:[%s1087] sm:$0x1]
        %v4451 = vld [vmem:[%s1095] sm:$0x1]
        %4452 = vadd.xlane.f32.xlu0 %v4448
        %v4453 = vpop.xlane.xlu0 %4452
        %4454 = vadd.xlane.f32.xlu0 %v4449
        %v4455 = vpop.xlane.xlu0 %4454
        %v4456 = vrcp.pop 128.0
        %v4457 = vmul.f32 %v4453, %v4456
        %v4458 = vmul.f32 %v4455, %v4456
        %v4459 = vsub.f32 %v4448, %v4457
        %v4460 = vsub.f32 %v4449, %v4458
        %v4461 = vmul.f32 %v4459, %v4459
        %v4462 = vmul.f32 %v4460, %v4460
        %4463 = vadd.xlane.f32.xlu0 %v4461
        %v4464 = vpop.xlane.xlu0 %4463
        %4465 = vadd.xlane.f32.xlu0 %v4462
        %v4466 = vpop.xlane.xlu0 %4465
        %v4467 = vmul.f32 %v4464, %v4456
        %v4468 = vmul.f32 %v4466, %v4456
        %v4469 = vadd.f32 %v4467, 1e-05
        %v4470 = vadd.f32 %v4468, 1e-05
        %v4471 = vrsqrt.pop %v4469
        %v4472 = vrsqrt.pop %v4470
        %v4473 = vmul.f32 %v4459, %v4471
        %v4474 = vmul.f32 %v4460, %v4472
        %v4476 = vlaneseq
        %v4477 = vshrl.u32 %v4476, 7
        %v4478 = vsub.s32 0, %v4477
        %v4479 = vrot.slane %v4450, %v4478
        %v4481 = vmul.f32 %v4473, %v4479
        %v4482 = vmul.f32 %v4474, %v4479
        %v4484 = vlaneseq
        %v4485 = vshrl.u32 %v4484, 7
        %v4486 = vsub.s32 0, %v4485
        %v4487 = vrot.slane %v4451, %v4486
        %v4489 = vadd.f32 %v4481, %v4487
        %v4490 = vadd.f32 %v4482, %v4487
        %v4491 = vpack.c.bf16 %v4490, %v4489
        %v4492 = vld [vmem:[%s1104] sm:$0xff]
        %v4493 = vld [vmem:[%s1104 + $0x8] sm:$0xff]
        %v4494 = vld [vmem:[%s1104 + $0x10] sm:$0xff]
        %v4495 = vld [vmem:[%s1104 + $0x18] sm:$0xff]
        %v4496 = vld [vmem:[%s1104 + $0x20] sm:$0xff]
        %v4497 = vld [vmem:[%s1104 + $0x28] sm:$0xff]
        %v4498 = vld [vmem:[%s1104 + $0x30] sm:$0xff]
        %v4499 = vld [vmem:[%s1104 + $0x38] sm:$0xff]
        %v4500 = vld [vmem:[%s1104 + $0x40] sm:$0xff]
        %v4501 = vld [vmem:[%s1104 + $0x48] sm:$0xff]
        %v4502 = vld [vmem:[%s1104 + $0x50] sm:$0xff]
        %v4503 = vld [vmem:[%s1104 + $0x58] sm:$0xff]
        %v4504 = vld [vmem:[%s1104 + $0x60] sm:$0xff]
        %v4505 = vld [vmem:[%s1104 + $0x68] sm:$0xff]
        %v4506 = vld [vmem:[%s1104 + $0x70] sm:$0xff]
        %v4507 = vld [vmem:[%s1104 + $0x78] sm:$0xff]
        %v4508 = vld [vmem:[%s1104 + $0x80] sm:$0xff]
        %v4509 = vld [vmem:[%s1104 + $0x88] sm:$0xff]
        %v4510 = vld [vmem:[%s1104 + $0x90] sm:$0xff]
        %v4511 = vld [vmem:[%s1104 + $0x98] sm:$0xff]
        %v4512 = vld [vmem:[%s1104 + $0xa0] sm:$0xff]
        %v4513 = vld [vmem:[%s1104 + $0xa8] sm:$0xff]
        %v4514 = vld [vmem:[%s1104 + $0xb0] sm:$0xff]
        %v4515 = vld [vmem:[%s1104 + $0xb8] sm:$0xff]
        %v4516 = vld [vmem:[%s1104 + $0xc0] sm:$0xff]
        %v4517 = vld [vmem:[%s1104 + $0xc8] sm:$0xff]
        %v4518 = vld [vmem:[%s1104 + $0xd0] sm:$0xff]
        %v4519 = vld [vmem:[%s1104 + $0xd8] sm:$0xff]
        %v4520 = vld [vmem:[%s1104 + $0xe0] sm:$0xff]
        %v4521 = vld [vmem:[%s1104 + $0xe8] sm:$0xff]
        %v4522 = vld [vmem:[%s1104 + $0xf0] sm:$0xff]
        %v4523 = vld [vmem:[%s1104 + $0xf8] sm:$0xff]
        %v4524 = vld [vmem:[%s1104 + $0x100] sm:$0xff]
        %v4525 = vld [vmem:[%s1104 + $0x108] sm:$0xff]
        %v4526 = vld [vmem:[%s1104 + $0x110] sm:$0xff]
        %v4527 = vld [vmem:[%s1104 + $0x118] sm:$0xff]
        %v4528 = vld [vmem:[%s1104 + $0x120] sm:$0xff]
        %v4529 = vld [vmem:[%s1104 + $0x128] sm:$0xff]
        %v4530 = vld [vmem:[%s1104 + $0x130] sm:$0xff]
        %v4531 = vld [vmem:[%s1104 + $0x138] sm:$0xff]
        %v4532 = vld [vmem:[%s1104 + $0x140] sm:$0xff]
        %v4533 = vld [vmem:[%s1104 + $0x148] sm:$0xff]
        %v4534 = vld [vmem:[%s1104 + $0x150] sm:$0xff]
        %v4535 = vld [vmem:[%s1104 + $0x158] sm:$0xff]
        %v4536 = vld [vmem:[%s1104 + $0x160] sm:$0xff]
        %v4537 = vld [vmem:[%s1104 + $0x168] sm:$0xff]
        %v4538 = vld [vmem:[%s1104 + $0x170] sm:$0xff]
        %v4539 = vld [vmem:[%s1104 + $0x178] sm:$0xff]
        %v4540 = vld [vmem:[%s1104 + $0x180] sm:$0xff]
        %v4541 = vld [vmem:[%s1104 + $0x188] sm:$0xff]
        %v4542 = vld [vmem:[%s1104 + $0x190] sm:$0xff]
        %v4543 = vld [vmem:[%s1104 + $0x198] sm:$0xff]
        %v4544 = vld [vmem:[%s1104 + $0x1a0] sm:$0xff]
        %v4545 = vld [vmem:[%s1104 + $0x1a8] sm:$0xff]
        %v4546 = vld [vmem:[%s1104 + $0x1b0] sm:$0xff]
        %v4547 = vld [vmem:[%s1104 + $0x1b8] sm:$0xff]
        %v4548 = vld [vmem:[%s1104 + $0x1c0] sm:$0xff]
        %v4549 = vld [vmem:[%s1104 + $0x1c8] sm:$0xff]
        %v4550 = vld [vmem:[%s1104 + $0x1d0] sm:$0xff]
        %v4551 = vld [vmem:[%s1104 + $0x1d8] sm:$0xff]
        %v4552 = vld [vmem:[%s1104 + $0x1e0] sm:$0xff]
        %v4553 = vld [vmem:[%s1104 + $0x1e8] sm:$0xff]
        %v4554 = vld [vmem:[%s1104 + $0x1f0] sm:$0xff]
        %v4555 = vld [vmem:[%s1104 + $0x1f8] sm:$0xff]
        %v4556 = vld [vmem:[%s1104 + $0x200] sm:$0xff]
        %v4557 = vld [vmem:[%s1104 + $0x208] sm:$0xff]
        %v4558 = vld [vmem:[%s1104 + $0x210] sm:$0xff]
        %v4559 = vld [vmem:[%s1104 + $0x218] sm:$0xff]
        %v4560 = vld [vmem:[%s1104 + $0x220] sm:$0xff]
        %v4561 = vld [vmem:[%s1104 + $0x228] sm:$0xff]
        %v4562 = vld [vmem:[%s1104 + $0x230] sm:$0xff]
        %v4563 = vld [vmem:[%s1104 + $0x238] sm:$0xff]
        %v4564 = vld [vmem:[%s1104 + $0x240] sm:$0xff]
        %v4565 = vld [vmem:[%s1104 + $0x248] sm:$0xff]
        %v4566 = vld [vmem:[%s1104 + $0x250] sm:$0xff]
        %v4567 = vld [vmem:[%s1104 + $0x258] sm:$0xff]
        %v4568 = vld [vmem:[%s1104 + $0x260] sm:$0xff]
        %v4569 = vld [vmem:[%s1104 + $0x268] sm:$0xff]
        %v4570 = vld [vmem:[%s1104 + $0x270] sm:$0xff]
        %v4571 = vld [vmem:[%s1104 + $0x278] sm:$0xff]
        %v4572 = vld [vmem:[%s1104 + $0x280] sm:$0xff]
        %v4573 = vld [vmem:[%s1104 + $0x288] sm:$0xff]
        %v4574 = vld [vmem:[%s1104 + $0x290] sm:$0xff]
        %v4575 = vld [vmem:[%s1104 + $0x298] sm:$0xff]
        %v4576 = vld [vmem:[%s1104 + $0x2a0] sm:$0xff]
        %v4577 = vld [vmem:[%s1104 + $0x2a8] sm:$0xff]
        %v4578 = vld [vmem:[%s1104 + $0x2b0] sm:$0xff]
        %v4579 = vld [vmem:[%s1104 + $0x2b8] sm:$0xff]
        %v4580 = vld [vmem:[%s1104 + $0x2c0] sm:$0xff]
        %v4581 = vld [vmem:[%s1104 + $0x2c8] sm:$0xff]
        %v4582 = vld [vmem:[%s1104 + $0x2d0] sm:$0xff]
        %v4583 = vld [vmem:[%s1104 + $0x2d8] sm:$0xff]
        %v4584 = vld [vmem:[%s1104 + $0x2e0] sm:$0xff]
        %v4585 = vld [vmem:[%s1104 + $0x2e8] sm:$0xff]
        %v4586 = vld [vmem:[%s1104 + $0x2f0] sm:$0xff]
        %v4587 = vld [vmem:[%s1104 + $0x2f8] sm:$0xff]
        %v4588 = vld [vmem:[%s1104 + $0x300] sm:$0xff]
        %v4589 = vld [vmem:[%s1104 + $0x308] sm:$0xff]
        %v4590 = vld [vmem:[%s1104 + $0x310] sm:$0xff]
        %v4591 = vld [vmem:[%s1104 + $0x318] sm:$0xff]
        %v4592 = vld [vmem:[%s1104 + $0x320] sm:$0xff]
        %v4593 = vld [vmem:[%s1104 + $0x328] sm:$0xff]
        %v4594 = vld [vmem:[%s1104 + $0x330] sm:$0xff]
        %v4595 = vld [vmem:[%s1104 + $0x338] sm:$0xff]
        %v4596 = vld [vmem:[%s1104 + $0x340] sm:$0xff]
        %v4597 = vld [vmem:[%s1104 + $0x348] sm:$0xff]
        %v4598 = vld [vmem:[%s1104 + $0x350] sm:$0xff]
        %v4599 = vld [vmem:[%s1104 + $0x358] sm:$0xff]
        %v4600 = vld [vmem:[%s1104 + $0x360] sm:$0xff]
        %v4601 = vld [vmem:[%s1104 + $0x368] sm:$0xff]
        %v4602 = vld [vmem:[%s1104 + $0x370] sm:$0xff]
        %v4603 = vld [vmem:[%s1104 + $0x378] sm:$0xff]
        %v4604 = vld [vmem:[%s1104 + $0x380] sm:$0xff]
        %v4605 = vld [vmem:[%s1104 + $0x388] sm:$0xff]
        %v4606 = vld [vmem:[%s1104 + $0x390] sm:$0xff]
        %v4607 = vld [vmem:[%s1104 + $0x398] sm:$0xff]
        %v4608 = vld [vmem:[%s1104 + $0x3a0] sm:$0xff]
        %v4609 = vld [vmem:[%s1104 + $0x3a8] sm:$0xff]
        %v4610 = vld [vmem:[%s1104 + $0x3b0] sm:$0xff]
        %v4611 = vld [vmem:[%s1104 + $0x3b8] sm:$0xff]
        %v4612 = vld [vmem:[%s1104 + $0x3c0] sm:$0xff]
        %v4613 = vld [vmem:[%s1104 + $0x3c8] sm:$0xff]
        %v4614 = vld [vmem:[%s1104 + $0x3d0] sm:$0xff]
        %v4615 = vld [vmem:[%s1104 + $0x3d8] sm:$0xff]
        %v4616 = vld [vmem:[%s1104 + $0x3e0] sm:$0xff]
        %v4617 = vld [vmem:[%s1104 + $0x3e8] sm:$0xff]
        %v4618 = vld [vmem:[%s1104 + $0x3f0] sm:$0xff]
        %v4619 = vld [vmem:[%s1104 + $0x3f8] sm:$0xff]
        %v4620 = vld [vmem:[%s1113] sm:$0xff]
        %v4621 = vld [vmem:[%s1113 + $0x8] sm:$0xff]
        %v4624 = vlaneseq
        %v4625 = vshrl.u32 %v4624, 7
        %v4626 = vsub.s32 0, %v4625
        %v4627 = vrot.slane %v4620, %v4626
        %v4628 = vlaneseq
        %v4629 = vshrl.u32 %v4628, 7
        %v4630 = vsub.s32 1, %v4629
        %v4631 = vrot.slane %v4620, %v4630
        %v4632 = vlaneseq
        %v4633 = vshrl.u32 %v4632, 7
        %v4634 = vsub.s32 2, %v4633
        %v4635 = vrot.slane %v4620, %v4634
        %v4636 = vlaneseq
        %v4637 = vshrl.u32 %v4636, 7
        %v4638 = vsub.s32 3, %v4637
        %v4639 = vrot.slane %v4620, %v4638
        %v4640 = vlaneseq
        %v4641 = vshrl.u32 %v4640, 7
        %v4642 = vsub.s32 4, %v4641
        %v4643 = vrot.slane %v4620, %v4642
        %v4644 = vlaneseq
        %v4645 = vshrl.u32 %v4644, 7
        %v4646 = vsub.s32 5, %v4645
        %v4647 = vrot.slane %v4620, %v4646
        %v4648 = vlaneseq
        %v4649 = vshrl.u32 %v4648, 7
        %v4650 = vsub.s32 6, %v4649
        %v4651 = vrot.slane %v4620, %v4650
        %v4652 = vlaneseq
        %v4653 = vshrl.u32 %v4652, 7
        %v4654 = vsub.s32 7, %v4653
        %v4655 = vrot.slane %v4620, %v4654
        %v4656 = vlaneseq
        %v4657 = vshrl.u32 %v4656, 7
        %v4658 = vsub.s32 0, %v4657
        %v4659 = vrot.slane %v4621, %v4658
        %v4660 = vlaneseq
        %v4661 = vshrl.u32 %v4660, 7
        %v4662 = vsub.s32 1, %v4661
        %v4663 = vrot.slane %v4621, %v4662
        %v4664 = vlaneseq
        %v4665 = vshrl.u32 %v4664, 7
        %v4666 = vsub.s32 2, %v4665
        %v4667 = vrot.slane %v4621, %v4666
        %v4668 = vlaneseq
        %v4669 = vshrl.u32 %v4668, 7
        %v4670 = vsub.s32 3, %v4669
        %v4671 = vrot.slane %v4621, %v4670
        %v4672 = vlaneseq
        %v4673 = vshrl.u32 %v4672, 7
        %v4674 = vsub.s32 4, %v4673
        %v4675 = vrot.slane %v4621, %v4674
        %v4676 = vlaneseq
        %v4677 = vshrl.u32 %v4676, 7
        %v4678 = vsub.s32 5, %v4677
        %v4679 = vrot.slane %v4621, %v4678
        %v4680 = vlaneseq
        %v4681 = vshrl.u32 %v4680, 7
        %v4682 = vsub.s32 6, %v4681
        %v4683 = vrot.slane %v4621, %v4682
        %v4684 = vlaneseq
        %v4685 = vshrl.u32 %v4684, 7
        %v4686 = vsub.s32 7, %v4685
        %v4687 = vrot.slane %v4621, %v4686
        %v4832 = vunpack.c.l.b16 %v4492
        %v4833 = vunpack.c.h.b16 %v4492
        %v4834 = vunpack.c.l.b16 %v4493
        %v4835 = vunpack.c.h.b16 %v4493
        %v4836 = vunpack.c.l.b16 %v4494
        %v4837 = vunpack.c.h.b16 %v4494
        %v4838 = vunpack.c.l.b16 %v4495
        %v4839 = vunpack.c.h.b16 %v4495
        %v4840 = vunpack.c.l.b16 %v4496
        %v4841 = vunpack.c.h.b16 %v4496
        %v4842 = vunpack.c.l.b16 %v4497
        %v4843 = vunpack.c.h.b16 %v4497
        %v4844 = vunpack.c.l.b16 %v4498
        %v4845 = vunpack.c.h.b16 %v4498
        %v4846 = vunpack.c.l.b16 %v4499
        %v4847 = vunpack.c.h.b16 %v4499
        %v4848 = vunpack.c.l.b16 %v4500
        %v4849 = vunpack.c.h.b16 %v4500
        %v4850 = vunpack.c.l.b16 %v4501
        %v4851 = vunpack.c.h.b16 %v4501
        %v4852 = vunpack.c.l.b16 %v4502
        %v4853 = vunpack.c.h.b16 %v4502
        %v4854 = vunpack.c.l.b16 %v4503
        %v4855 = vunpack.c.h.b16 %v4503
        %v4856 = vunpack.c.l.b16 %v4504
        %v4857 = vunpack.c.h.b16 %v4504
        %v4858 = vunpack.c.l.b16 %v4505
        %v4859 = vunpack.c.h.b16 %v4505
        %v4860 = vunpack.c.l.b16 %v4506
        %v4861 = vunpack.c.h.b16 %v4506
        %v4862 = vunpack.c.l.b16 %v4507
        %v4863 = vunpack.c.h.b16 %v4507
        %v4864 = vunpack.c.l.b16 %v4508
        %v4865 = vunpack.c.h.b16 %v4508
        %v4866 = vunpack.c.l.b16 %v4509
        %v4867 = vunpack.c.h.b16 %v4509
        %v4868 = vunpack.c.l.b16 %v4510
        %v4869 = vunpack.c.h.b16 %v4510
        %v4870 = vunpack.c.l.b16 %v4511
        %v4871 = vunpack.c.h.b16 %v4511
        %v4872 = vunpack.c.l.b16 %v4512
        %v4873 = vunpack.c.h.b16 %v4512
        %v4874 = vunpack.c.l.b16 %v4513
        %v4875 = vunpack.c.h.b16 %v4513
        %v4876 = vunpack.c.l.b16 %v4514
        %v4877 = vunpack.c.h.b16 %v4514
        %v4878 = vunpack.c.l.b16 %v4515
        %v4879 = vunpack.c.h.b16 %v4515
        %v4880 = vunpack.c.l.b16 %v4516
        %v4881 = vunpack.c.h.b16 %v4516
        %v4882 = vunpack.c.l.b16 %v4517
        %v4883 = vunpack.c.h.b16 %v4517
        %v4884 = vunpack.c.l.b16 %v4518
        %v4885 = vunpack.c.h.b16 %v4518
        %v4886 = vunpack.c.l.b16 %v4519
        %v4887 = vunpack.c.h.b16 %v4519
        %v4888 = vunpack.c.l.b16 %v4520
        %v4889 = vunpack.c.h.b16 %v4520
        %v4890 = vunpack.c.l.b16 %v4521
        %v4891 = vunpack.c.h.b16 %v4521
        %v4892 = vunpack.c.l.b16 %v4522
        %v4893 = vunpack.c.h.b16 %v4522
        %v4894 = vunpack.c.l.b16 %v4523
        %v4895 = vunpack.c.h.b16 %v4523
        %v4896 = vunpack.c.l.b16 %v4524
        %v4897 = vunpack.c.h.b16 %v4524
        %v4898 = vunpack.c.l.b16 %v4525
        %v4899 = vunpack.c.h.b16 %v4525
        %v4900 = vunpack.c.l.b16 %v4526
        %v4901 = vunpack.c.h.b16 %v4526
        %v4902 = vunpack.c.l.b16 %v4527
        %v4903 = vunpack.c.h.b16 %v4527
        %v4904 = vunpack.c.l.b16 %v4528
        %v4905 = vunpack.c.h.b16 %v4528
        %v4906 = vunpack.c.l.b16 %v4529
        %v4907 = vunpack.c.h.b16 %v4529
        %v4908 = vunpack.c.l.b16 %v4530
        %v4909 = vunpack.c.h.b16 %v4530
        %v4910 = vunpack.c.l.b16 %v4531
        %v4911 = vunpack.c.h.b16 %v4531
        %v4912 = vunpack.c.l.b16 %v4532
        %v4913 = vunpack.c.h.b16 %v4532
        %v4914 = vunpack.c.l.b16 %v4533
        %v4915 = vunpack.c.h.b16 %v4533
        %v4916 = vunpack.c.l.b16 %v4534
        %v4917 = vunpack.c.h.b16 %v4534
        %v4918 = vunpack.c.l.b16 %v4535
        %v4919 = vunpack.c.h.b16 %v4535
        %v4920 = vunpack.c.l.b16 %v4536
        %v4921 = vunpack.c.h.b16 %v4536
        %v4922 = vunpack.c.l.b16 %v4537
        %v4923 = vunpack.c.h.b16 %v4537
        %v4924 = vunpack.c.l.b16 %v4538
        %v4925 = vunpack.c.h.b16 %v4538
        %v4926 = vunpack.c.l.b16 %v4539
        %v4927 = vunpack.c.h.b16 %v4539
        %v4928 = vunpack.c.l.b16 %v4540
        %v4929 = vunpack.c.h.b16 %v4540
        %v4930 = vunpack.c.l.b16 %v4541
        %v4931 = vunpack.c.h.b16 %v4541
        %v4932 = vunpack.c.l.b16 %v4542
        %v4933 = vunpack.c.h.b16 %v4542
        %v4934 = vunpack.c.l.b16 %v4543
        %v4935 = vunpack.c.h.b16 %v4543
        %v4936 = vunpack.c.l.b16 %v4544
        %v4937 = vunpack.c.h.b16 %v4544
        %v4938 = vunpack.c.l.b16 %v4545
        %v4939 = vunpack.c.h.b16 %v4545
        %v4940 = vunpack.c.l.b16 %v4546
        %v4941 = vunpack.c.h.b16 %v4546
        %v4942 = vunpack.c.l.b16 %v4547
        %v4943 = vunpack.c.h.b16 %v4547
        %v4944 = vunpack.c.l.b16 %v4548
        %v4945 = vunpack.c.h.b16 %v4548
        %v4946 = vunpack.c.l.b16 %v4549
        %v4947 = vunpack.c.h.b16 %v4549
        %v4948 = vunpack.c.l.b16 %v4550
        %v4949 = vunpack.c.h.b16 %v4550
        %v4950 = vunpack.c.l.b16 %v4551
        %v4951 = vunpack.c.h.b16 %v4551
        %v4952 = vunpack.c.l.b16 %v4552
        %v4953 = vunpack.c.h.b16 %v4552
        %v4954 = vunpack.c.l.b16 %v4553
        %v4955 = vunpack.c.h.b16 %v4553
        %v4956 = vunpack.c.l.b16 %v4554
        %v4957 = vunpack.c.h.b16 %v4554
        %v4958 = vunpack.c.l.b16 %v4555
        %v4959 = vunpack.c.h.b16 %v4555
        %v4960 = vunpack.c.l.b16 %v4556
        %v4961 = vunpack.c.h.b16 %v4556
        %v4962 = vunpack.c.l.b16 %v4557
        %v4963 = vunpack.c.h.b16 %v4557
        %v4964 = vunpack.c.l.b16 %v4558
        %v4965 = vunpack.c.h.b16 %v4558
        %v4966 = vunpack.c.l.b16 %v4559
        %v4967 = vunpack.c.h.b16 %v4559
        %v4968 = vunpack.c.l.b16 %v4560
        %v4969 = vunpack.c.h.b16 %v4560
        %v4970 = vunpack.c.l.b16 %v4561
        %v4971 = vunpack.c.h.b16 %v4561
        %v4972 = vunpack.c.l.b16 %v4562
        %v4973 = vunpack.c.h.b16 %v4562
        %v4974 = vunpack.c.l.b16 %v4563
        %v4975 = vunpack.c.h.b16 %v4563
        %v4976 = vunpack.c.l.b16 %v4564
        %v4977 = vunpack.c.h.b16 %v4564
        %v4978 = vunpack.c.l.b16 %v4565
        %v4979 = vunpack.c.h.b16 %v4565
        %v4980 = vunpack.c.l.b16 %v4566
        %v4981 = vunpack.c.h.b16 %v4566
        %v4982 = vunpack.c.l.b16 %v4567
        %v4983 = vunpack.c.h.b16 %v4567
        %v4984 = vunpack.c.l.b16 %v4568
        %v4985 = vunpack.c.h.b16 %v4568
        %v4986 = vunpack.c.l.b16 %v4569
        %v4987 = vunpack.c.h.b16 %v4569
        %v4988 = vunpack.c.l.b16 %v4570
        %v4989 = vunpack.c.h.b16 %v4570
        %v4990 = vunpack.c.l.b16 %v4571
        %v4991 = vunpack.c.h.b16 %v4571
        %v4992 = vunpack.c.l.b16 %v4572
        %v4993 = vunpack.c.h.b16 %v4572
        %v4994 = vunpack.c.l.b16 %v4573
        %v4995 = vunpack.c.h.b16 %v4573
        %v4996 = vunpack.c.l.b16 %v4574
        %v4997 = vunpack.c.h.b16 %v4574
        %v4998 = vunpack.c.l.b16 %v4575
        %v4999 = vunpack.c.h.b16 %v4575
        %v5000 = vunpack.c.l.b16 %v4576
        %v5001 = vunpack.c.h.b16 %v4576
        %v5002 = vunpack.c.l.b16 %v4577
        %v5003 = vunpack.c.h.b16 %v4577
        %v5004 = vunpack.c.l.b16 %v4578
        %v5005 = vunpack.c.h.b16 %v4578
        %v5006 = vunpack.c.l.b16 %v4579
        %v5007 = vunpack.c.h.b16 %v4579
        %v5008 = vunpack.c.l.b16 %v4580
        %v5009 = vunpack.c.h.b16 %v4580
        %v5010 = vunpack.c.l.b16 %v4581
        %v5011 = vunpack.c.h.b16 %v4581
        %v5012 = vunpack.c.l.b16 %v4582
        %v5013 = vunpack.c.h.b16 %v4582
        %v5014 = vunpack.c.l.b16 %v4583
        %v5015 = vunpack.c.h.b16 %v4583
        %v5016 = vunpack.c.l.b16 %v4584
        %v5017 = vunpack.c.h.b16 %v4584
        %v5018 = vunpack.c.l.b16 %v4585
        %v5019 = vunpack.c.h.b16 %v4585
        %v5020 = vunpack.c.l.b16 %v4586
        %v5021 = vunpack.c.h.b16 %v4586
        %v5022 = vunpack.c.l.b16 %v4587
        %v5023 = vunpack.c.h.b16 %v4587
        %v5024 = vunpack.c.l.b16 %v4588
        %v5025 = vunpack.c.h.b16 %v4588
        %v5026 = vunpack.c.l.b16 %v4589
        %v5027 = vunpack.c.h.b16 %v4589
        %v5028 = vunpack.c.l.b16 %v4590
        %v5029 = vunpack.c.h.b16 %v4590
        %v5030 = vunpack.c.l.b16 %v4591
        %v5031 = vunpack.c.h.b16 %v4591
        %v5032 = vunpack.c.l.b16 %v4592
        %v5033 = vunpack.c.h.b16 %v4592
        %v5034 = vunpack.c.l.b16 %v4593
        %v5035 = vunpack.c.h.b16 %v4593
        %v5036 = vunpack.c.l.b16 %v4594
        %v5037 = vunpack.c.h.b16 %v4594
        %v5038 = vunpack.c.l.b16 %v4595
        %v5039 = vunpack.c.h.b16 %v4595
        %v5040 = vunpack.c.l.b16 %v4596
        %v5041 = vunpack.c.h.b16 %v4596
        %v5042 = vunpack.c.l.b16 %v4597
        %v5043 = vunpack.c.h.b16 %v4597
        %v5044 = vunpack.c.l.b16 %v4598
        %v5045 = vunpack.c.h.b16 %v4598
        %v5046 = vunpack.c.l.b16 %v4599
        %v5047 = vunpack.c.h.b16 %v4599
        %v5048 = vunpack.c.l.b16 %v4600
        %v5049 = vunpack.c.h.b16 %v4600
        %v5050 = vunpack.c.l.b16 %v4601
        %v5051 = vunpack.c.h.b16 %v4601
        %v5052 = vunpack.c.l.b16 %v4602
        %v5053 = vunpack.c.h.b16 %v4602
        %v5054 = vunpack.c.l.b16 %v4603
        %v5055 = vunpack.c.h.b16 %v4603
        %v5056 = vunpack.c.l.b16 %v4604
        %v5057 = vunpack.c.h.b16 %v4604
        %v5058 = vunpack.c.l.b16 %v4605
        %v5059 = vunpack.c.h.b16 %v4605
        %v5060 = vunpack.c.l.b16 %v4606
        %v5061 = vunpack.c.h.b16 %v4606
        %v5062 = vunpack.c.l.b16 %v4607
        %v5063 = vunpack.c.h.b16 %v4607
        %v5064 = vunpack.c.l.b16 %v4608
        %v5065 = vunpack.c.h.b16 %v4608
        %v5066 = vunpack.c.l.b16 %v4609
        %v5067 = vunpack.c.h.b16 %v4609
        %v5068 = vunpack.c.l.b16 %v4610
        %v5069 = vunpack.c.h.b16 %v4610
        %v5070 = vunpack.c.l.b16 %v4611
        %v5071 = vunpack.c.h.b16 %v4611
        %v5072 = vunpack.c.l.b16 %v4612
        %v5073 = vunpack.c.h.b16 %v4612
        %v5074 = vunpack.c.l.b16 %v4613
        %v5075 = vunpack.c.h.b16 %v4613
        %v5076 = vunpack.c.l.b16 %v4614
        %v5077 = vunpack.c.h.b16 %v4614
        %v5078 = vunpack.c.l.b16 %v4615
        %v5079 = vunpack.c.h.b16 %v4615
        %v5080 = vunpack.c.l.b16 %v4616
        %v5081 = vunpack.c.h.b16 %v4616
        %v5082 = vunpack.c.l.b16 %v4617
        %v5083 = vunpack.c.h.b16 %v4617
        %v5084 = vunpack.c.l.b16 %v4618
        %v5085 = vunpack.c.h.b16 %v4618
        %v5086 = vunpack.c.l.b16 %v4619
        %v5087 = vunpack.c.h.b16 %v4619
        %v5088 = vpack.c.b16 %v4848, %v4832
        %v5089 = vpack.c.b16 %v4849, %v4833
        %v5090 = vpack.c.b16 %v4850, %v4834
        %v5091 = vpack.c.b16 %v4851, %v4835
        %v5092 = vpack.c.b16 %v4852, %v4836
        %v5093 = vpack.c.b16 %v4853, %v4837
        %v5094 = vpack.c.b16 %v4854, %v4838
        %v5095 = vpack.c.b16 %v4855, %v4839
        %v5096 = vpack.c.b16 %v4856, %v4840
        %v5097 = vpack.c.b16 %v4857, %v4841
        %v5098 = vpack.c.b16 %v4858, %v4842
        %v5099 = vpack.c.b16 %v4859, %v4843
        %v5100 = vpack.c.b16 %v4860, %v4844
        %v5101 = vpack.c.b16 %v4861, %v4845
        %v5102 = vpack.c.b16 %v4862, %v4846
        %v5103 = vpack.c.b16 %v4863, %v4847
        %v5104 = vpack.c.b16 %v4880, %v4864
        %v5105 = vpack.c.b16 %v4881, %v4865
        %v5106 = vpack.c.b16 %v4882, %v4866
        %v5107 = vpack.c.b16 %v4883, %v4867
        %v5108 = vpack.c.b16 %v4884, %v4868
        %v5109 = vpack.c.b16 %v4885, %v4869
        %v5110 = vpack.c.b16 %v4886, %v4870
        %v5111 = vpack.c.b16 %v4887, %v4871
        %v5112 = vpack.c.b16 %v4888, %v4872
        %v5113 = vpack.c.b16 %v4889, %v4873
        %v5114 = vpack.c.b16 %v4890, %v4874
        %v5115 = vpack.c.b16 %v4891, %v4875
        %v5116 = vpack.c.b16 %v4892, %v4876
        %v5117 = vpack.c.b16 %v4893, %v4877
        %v5118 = vpack.c.b16 %v4894, %v4878
        %v5119 = vpack.c.b16 %v4895, %v4879
        %v5120 = vpack.c.b16 %v4912, %v4896
        %v5121 = vpack.c.b16 %v4913, %v4897
        %v5122 = vpack.c.b16 %v4914, %v4898
        %v5123 = vpack.c.b16 %v4915, %v4899
        %v5124 = vpack.c.b16 %v4916, %v4900
        %v5125 = vpack.c.b16 %v4917, %v4901
        %v5126 = vpack.c.b16 %v4918, %v4902
        %v5127 = vpack.c.b16 %v4919, %v4903
        %v5128 = vpack.c.b16 %v4920, %v4904
        %v5129 = vpack.c.b16 %v4921, %v4905
        %v5130 = vpack.c.b16 %v4922, %v4906
        %v5131 = vpack.c.b16 %v4923, %v4907
        %v5132 = vpack.c.b16 %v4924, %v4908
        %v5133 = vpack.c.b16 %v4925, %v4909
        %v5134 = vpack.c.b16 %v4926, %v4910
        %v5135 = vpack.c.b16 %v4927, %v4911
        %v5136 = vpack.c.b16 %v4944, %v4928
        %v5137 = vpack.c.b16 %v4945, %v4929
        %v5138 = vpack.c.b16 %v4946, %v4930
        %v5139 = vpack.c.b16 %v4947, %v4931
        %v5140 = vpack.c.b16 %v4948, %v4932
        %v5141 = vpack.c.b16 %v4949, %v4933
        %v5142 = vpack.c.b16 %v4950, %v4934
        %v5143 = vpack.c.b16 %v4951, %v4935
        %v5144 = vpack.c.b16 %v4952, %v4936
        %v5145 = vpack.c.b16 %v4953, %v4937
        %v5146 = vpack.c.b16 %v4954, %v4938
        %v5147 = vpack.c.b16 %v4955, %v4939
        %v5148 = vpack.c.b16 %v4956, %v4940
        %v5149 = vpack.c.b16 %v4957, %v4941
        %v5150 = vpack.c.b16 %v4958, %v4942
        %v5151 = vpack.c.b16 %v4959, %v4943
        %v5152 = vpack.c.b16 %v4976, %v4960
        %v5153 = vpack.c.b16 %v4977, %v4961
        %v5154 = vpack.c.b16 %v4978, %v4962
        %v5155 = vpack.c.b16 %v4979, %v4963
        %v5156 = vpack.c.b16 %v4980, %v4964
        %v5157 = vpack.c.b16 %v4981, %v4965
        %v5158 = vpack.c.b16 %v4982, %v4966
        %v5159 = vpack.c.b16 %v4983, %v4967
        %v5160 = vpack.c.b16 %v4984, %v4968
        %v5161 = vpack.c.b16 %v4985, %v4969
        %v5162 = vpack.c.b16 %v4986, %v4970
        %v5163 = vpack.c.b16 %v4987, %v4971
        %v5164 = vpack.c.b16 %v4988, %v4972
        %v5165 = vpack.c.b16 %v4989, %v4973
        %v5166 = vpack.c.b16 %v4990, %v4974
        %v5167 = vpack.c.b16 %v4991, %v4975
        %v5168 = vpack.c.b16 %v5008, %v4992
        %v5169 = vpack.c.b16 %v5009, %v4993
        %v5170 = vpack.c.b16 %v5010, %v4994
        %v5171 = vpack.c.b16 %v5011, %v4995
        %v5172 = vpack.c.b16 %v5012, %v4996
        %v5173 = vpack.c.b16 %v5013, %v4997
        %v5174 = vpack.c.b16 %v5014, %v4998
        %v5175 = vpack.c.b16 %v5015, %v4999
        %v5176 = vpack.c.b16 %v5016, %v5000
        %v5177 = vpack.c.b16 %v5017, %v5001
        %v5178 = vpack.c.b16 %v5018, %v5002
        %v5179 = vpack.c.b16 %v5019, %v5003
        %v5180 = vpack.c.b16 %v5020, %v5004
        %v5181 = vpack.c.b16 %v5021, %v5005
        %v5182 = vpack.c.b16 %v5022, %v5006
        %v5183 = vpack.c.b16 %v5023, %v5007
        %v5184 = vpack.c.b16 %v5040, %v5024
        %v5185 = vpack.c.b16 %v5041, %v5025
        %v5186 = vpack.c.b16 %v5042, %v5026
        %v5187 = vpack.c.b16 %v5043, %v5027
        %v5188 = vpack.c.b16 %v5044, %v5028
        %v5189 = vpack.c.b16 %v5045, %v5029
        %v5190 = vpack.c.b16 %v5046, %v5030
        %v5191 = vpack.c.b16 %v5047, %v5031
        %v5192 = vpack.c.b16 %v5048, %v5032
        %v5193 = vpack.c.b16 %v5049, %v5033
        %v5194 = vpack.c.b16 %v5050, %v5034
        %v5195 = vpack.c.b16 %v5051, %v5035
        %v5196 = vpack.c.b16 %v5052, %v5036
        %v5197 = vpack.c.b16 %v5053, %v5037
        %v5198 = vpack.c.b16 %v5054, %v5038
        %v5199 = vpack.c.b16 %v5055, %v5039
        %v5200 = vpack.c.b16 %v5072, %v5056
        %v5201 = vpack.c.b16 %v5073, %v5057
        %v5202 = vpack.c.b16 %v5074, %v5058
        %v5203 = vpack.c.b16 %v5075, %v5059
        %v5204 = vpack.c.b16 %v5076, %v5060
        %v5205 = vpack.c.b16 %v5077, %v5061
        %v5206 = vpack.c.b16 %v5078, %v5062
        %v5207 = vpack.c.b16 %v5079, %v5063
        %v5208 = vpack.c.b16 %v5080, %v5064
        %v5209 = vpack.c.b16 %v5081, %v5065
        %v5210 = vpack.c.b16 %v5082, %v5066
        %v5211 = vpack.c.b16 %v5083, %v5067
        %v5212 = vpack.c.b16 %v5084, %v5068
        %v5213 = vpack.c.b16 %v5085, %v5069
        %v5214 = vpack.c.b16 %v5086, %v5070
        %v5215 = vpack.c.b16 %v5087, %v5071
        %5344 = vmatprep.subr.bf16.mxu0 %v5089
        %5345 = vmatpush1.bf16.msra.mxu0 %v5088
        %5346 = vmatprep.subr.bf16.mxu0 %v5105
        %5347 = vmatpush1.bf16.msra.mxu0 %v5104
        %5348 = vmatprep.subr.bf16.mxu0 %v5121
        %5349 = vmatpush1.bf16.msra.mxu0 %v5120
        %5350 = vmatprep.subr.bf16.mxu0 %v5137
        %5351 = vmatpush1.bf16.msra.mxu0 %v5136
        %5352 = vmatprep.subr.bf16.mxu0 %v5153
        %5353 = vmatpush1.bf16.msra.mxu0 %v5152
        %5354 = vmatprep.subr.bf16.mxu0 %v5169
        %5355 = vmatpush1.bf16.msra.mxu0 %v5168
        %5356 = vmatprep.subr.bf16.mxu0 %v5185
        %5357 = vmatpush1.bf16.msra.mxu0 %v5184
        %5358 = vmatprep.subr.bf16.mxu0 %v5201
        %5359 = vmatpush1.bf16.msra.mxu0 %v5200
        %5360 = vmatprep.subr.bf16.mxu0 0
        %5361 = vmatpush1.bf16.msra.mxu0 0
        %5362 = vmatprep.subr.bf16.mxu0 0
        %5363 = vmatpush1.bf16.msra.mxu0 0
        %5364 = vmatprep.subr.bf16.mxu0 0
        %5365 = vmatpush1.bf16.msra.mxu0 0
        %5366 = vmatprep.subr.bf16.mxu0 0
        %5367 = vmatpush1.bf16.msra.mxu0 0
        %5368 = vmatprep.subr.bf16.mxu0 0
        %5369 = vmatpush1.bf16.msra.mxu0 0
        %5370 = vmatprep.subr.bf16.mxu0 0
        %5371 = vmatpush1.bf16.msra.mxu0 0
        %5372 = vmatprep.subr.bf16.mxu0 0
        %5373 = vmatpush1.bf16.msra.mxu0 0
        %5374 = vmatprep.subr.bf16.mxu0 0
        %5375 = vmatpush1.bf16.msra.mxu0 0
        %5376 = vmatprep.mubr.bf16.mxu0 0
        %5377 = vmatmul.mubr.bf16.gmra.mrb[0].mxu0 %v4491
        %v5378 = vpop.f32.mrb[0].mxu0
        %v5379 = vadd.f32 %v4627, %v5378
        %v5380 = vpop.f32.mrb[0].mxu0
        %v5381 = vadd.f32 %v4631, %v5380
        %v5382 = vpop.f32.mrb[0].mxu0
        %v5383 = vadd.f32 %v4627, %v5382
        %v5384 = vpop.f32.mrb[0].mxu0
        %v5385 = vadd.f32 %v4631, %v5384
        %5386 = vdwg.mxu0
        %5387 = vmatprep.subr.bf16.mxu0 %v5091
        %5388 = vmatpush1.bf16.msra.mxu0 %v5090
        %5389 = vmatprep.subr.bf16.mxu0 %v5107
        %5390 = vmatpush1.bf16.msra.mxu0 %v5106
        %5391 = vmatprep.subr.bf16.mxu0 %v5123
        %5392 = vmatpush1.bf16.msra.mxu0 %v5122
        %5393 = vmatprep.subr.bf16.mxu0 %v5139
        %5394 = vmatpush1.bf16.msra.mxu0 %v5138
        %5395 = vmatprep.subr.bf16.mxu0 %v5155
        %5396 = vmatpush1.bf16.msra.mxu0 %v5154
        %5397 = vmatprep.subr.bf16.mxu0 %v5171
        %5398 = vmatpush1.bf16.msra.mxu0 %v5170
        %5399 = vmatprep.subr.bf16.mxu0 %v5187
        %5400 = vmatpush1.bf16.msra.mxu0 %v5186
        %5401 = vmatprep.subr.bf16.mxu0 %v5203
        %5402 = vmatpush1.bf16.msra.mxu0 %v5202
        %5403 = vmatprep.subr.bf16.mxu0 0
        %5404 = vmatpush1.bf16.msra.mxu0 0
        %5405 = vmatprep.subr.bf16.mxu0 0
        %5406 = vmatpush1.bf16.msra.mxu0 0
        %5407 = vmatprep.subr.bf16.mxu0 0
        %5408 = vmatpush1.bf16.msra.mxu0 0
        %5409 = vmatprep.subr.bf16.mxu0 0
        %5410 = vmatpush1.bf16.msra.mxu0 0
        %5411 = vmatprep.subr.bf16.mxu0 0
        %5412 = vmatpush1.bf16.msra.mxu0 0
        %5413 = vmatprep.subr.bf16.mxu0 0
        %5414 = vmatpush1.bf16.msra.mxu0 0
        %5415 = vmatprep.subr.bf16.mxu0 0
        %5416 = vmatpush1.bf16.msra.mxu0 0
        %5417 = vmatprep.subr.bf16.mxu0 0
        %5418 = vmatpush1.bf16.msra.mxu0 0
        %5419 = vmatprep.mubr.bf16.mxu0 0
        %5420 = vmatmul.mubr.bf16.gmra.mrb[0].mxu0 %v4491
        %v5421 = vpop.f32.mrb[0].mxu0
        %v5422 = vadd.f32 %v4635, %v5421
        %v5423 = vpop.f32.mrb[0].mxu0
        %v5424 = vadd.f32 %v4639, %v5423
        %v5425 = vpop.f32.mrb[0].mxu0
        %v5426 = vadd.f32 %v4635, %v5425
        %v5427 = vpop.f32.mrb[0].mxu0
        %v5428 = vadd.f32 %v4639, %v5427
        %5429 = vdwg.mxu0
        %5430 = vmatprep.subr.bf16.mxu0 %v5093
        %5431 = vmatpush1.bf16.msra.mxu0 %v5092
        %5432 = vmatprep.subr.bf16.mxu0 %v5109
        %5433 = vmatpush1.bf16.msra.mxu0 %v5108
        %5434 = vmatprep.subr.bf16.mxu0 %v5125
        %5435 = vmatpush1.bf16.msra.mxu0 %v5124
        %5436 = vmatprep.subr.bf16.mxu0 %v5141
        %5437 = vmatpush1.bf16.msra.mxu0 %v5140
        %5438 = vmatprep.subr.bf16.mxu0 %v5157
        %5439 = vmatpush1.bf16.msra.mxu0 %v5156
        %5440 = vmatprep.subr.bf16.mxu0 %v5173
        %5441 = vmatpush1.bf16.msra.mxu0 %v5172
        %5442 = vmatprep.subr.bf16.mxu0 %v5189
        %5443 = vmatpush1.bf16.msra.mxu0 %v5188
        %5444 = vmatprep.subr.bf16.mxu0 %v5205
        %5445 = vmatpush1.bf16.msra.mxu0 %v5204
        %5446 = vmatprep.subr.bf16.mxu0 0
        %5447 = vmatpush1.bf16.msra.mxu0 0
        %5448 = vmatprep.subr.bf16.mxu0 0
        %5449 = vmatpush1.bf16.msra.mxu0 0
        %5450 = vmatprep.subr.bf16.mxu0 0
        %5451 = vmatpush1.bf16.msra.mxu0 0
        %5452 = vmatprep.subr.bf16.mxu0 0
        %5453 = vmatpush1.bf16.msra.mxu0 0
        %5454 = vmatprep.subr.bf16.mxu0 0
        %5455 = vmatpush1.bf16.msra.mxu0 0
        %5456 = vmatprep.subr.bf16.mxu0 0
        %5457 = vmatpush1.bf16.msra.mxu0 0
        %5458 = vmatprep.subr.bf16.mxu0 0
        %5459 = vmatpush1.bf16.msra.mxu0 0
        %5460 = vmatprep.subr.bf16.mxu0 0
        %5461 = vmatpush1.bf16.msra.mxu0 0
        %5462 = vmatprep.mubr.bf16.mxu0 0
        %5463 = vmatmul.mubr.bf16.gmra.mrb[0].mxu0 %v4491
        %v5464 = vpop.f32.mrb[0].mxu0
        %v5465 = vadd.f32 %v4643, %v5464
        %v5466 = vpop.f32.mrb[0].mxu0
        %v5467 = vadd.f32 %v4647, %v5466
        %v5468 = vpop.f32.mrb[0].mxu0
        %v5469 = vadd.f32 %v4643, %v5468
        %v5470 = vpop.f32.mrb[0].mxu0
        %v5471 = vadd.f32 %v4647, %v5470
        %5472 = vdwg.mxu0
        %5473 = vmatprep.subr.bf16.mxu0 %v5095
        %5474 = vmatpush1.bf16.msra.mxu0 %v5094
        %5475 = vmatprep.subr.bf16.mxu0 %v5111
        %5476 = vmatpush1.bf16.msra.mxu0 %v5110
        %5477 = vmatprep.subr.bf16.mxu0 %v5127
        %5478 = vmatpush1.bf16.msra.mxu0 %v5126
        %5479 = vmatprep.subr.bf16.mxu0 %v5143
        %5480 = vmatpush1.bf16.msra.mxu0 %v5142
        %5481 = vmatprep.subr.bf16.mxu0 %v5159
        %5482 = vmatpush1.bf16.msra.mxu0 %v5158
        %5483 = vmatprep.subr.bf16.mxu0 %v5175
        %5484 = vmatpush1.bf16.msra.mxu0 %v5174
        %5485 = vmatprep.subr.bf16.mxu0 %v5191
        %5486 = vmatpush1.bf16.msra.mxu0 %v5190
        %5487 = vmatprep.subr.bf16.mxu0 %v5207
        %5488 = vmatpush1.bf16.msra.mxu0 %v5206
        %5489 = vmatprep.subr.bf16.mxu0 0
        %5490 = vmatpush1.bf16.msra.mxu0 0
        %5491 = vmatprep.subr.bf16.mxu0 0
        %5492 = vmatpush1.bf16.msra.mxu0 0
        %5493 = vmatprep.subr.bf16.mxu0 0
        %5494 = vmatpush1.bf16.msra.mxu0 0
        %5495 = vmatprep.subr.bf16.mxu0 0
        %5496 = vmatpush1.bf16.msra.mxu0 0
        %5497 = vmatprep.subr.bf16.mxu0 0
        %5498 = vmatpush1.bf16.msra.mxu0 0
        %5499 = vmatprep.subr.bf16.mxu0 0
        %5500 = vmatpush1.bf16.msra.mxu0 0
        %5501 = vmatprep.subr.bf16.mxu0 0
        %5502 = vmatpush1.bf16.msra.mxu0 0
        %5503 = vmatprep.subr.bf16.mxu0 0
        %5504 = vmatpush1.bf16.msra.mxu0 0
        %5505 = vmatprep.mubr.bf16.mxu0 0
        %5506 = vmatmul.mubr.bf16.gmra.mrb[0].mxu0 %v4491
        %v5507 = vpop.f32.mrb[0].mxu0
        %v5508 = vadd.f32 %v4651, %v5507
        %v5509 = vpop.f32.mrb[0].mxu0
        %v5510 = vadd.f32 %v4655, %v5509
        %v5511 = vpop.f32.mrb[0].mxu0
        %v5512 = vadd.f32 %v4651, %v5511
        %v5513 = vpop.f32.mrb[0].mxu0
        %v5514 = vadd.f32 %v4655, %v5513
        %5515 = vdwg.mxu0
        %5516 = vmatprep.subr.bf16.mxu0 %v5097
        %5517 = vmatpush1.bf16.msra.mxu0 %v5096
        %5518 = vmatprep.subr.bf16.mxu0 %v5113
        %5519 = vmatpush1.bf16.msra.mxu0 %v5112
        %5520 = vmatprep.subr.bf16.mxu0 %v5129
        %5521 = vmatpush1.bf16.msra.mxu0 %v5128
        %5522 = vmatprep.subr.bf16.mxu0 %v5145
        %5523 = vmatpush1.bf16.msra.mxu0 %v5144
        %5524 = vmatprep.subr.bf16.mxu0 %v5161
        %5525 = vmatpush1.bf16.msra.mxu0 %v5160
        %5526 = vmatprep.subr.bf16.mxu0 %v5177
        %5527 = vmatpush1.bf16.msra.mxu0 %v5176
        %5528 = vmatprep.subr.bf16.mxu0 %v5193
        %5529 = vmatpush1.bf16.msra.mxu0 %v5192
        %5530 = vmatprep.subr.bf16.mxu0 %v5209
        %5531 = vmatpush1.bf16.msra.mxu0 %v5208
        %5532 = vmatprep.subr.bf16.mxu0 0
        %5533 = vmatpush1.bf16.msra.mxu0 0
        %5534 = vmatprep.subr.bf16.mxu0 0
        %5535 = vmatpush1.bf16.msra.mxu0 0
        %5536 = vmatprep.subr.bf16.mxu0 0
        %5537 = vmatpush1.bf16.msra.mxu0 0
        %5538 = vmatprep.subr.bf16.mxu0 0
        %5539 = vmatpush1.bf16.msra.mxu0 0
        %5540 = vmatprep.subr.bf16.mxu0 0
        %5541 = vmatpush1.bf16.msra.mxu0 0
        %5542 = vmatprep.subr.bf16.mxu0 0
        %5543 = vmatpush1.bf16.msra.mxu0 0
        %5544 = vmatprep.subr.bf16.mxu0 0
        %5545 = vmatpush1.bf16.msra.mxu0 0
        %5546 = vmatprep.subr.bf16.mxu0 0
        %5547 = vmatpush1.bf16.msra.mxu0 0
        %5548 = vmatprep.mubr.bf16.mxu0 0
        %5549 = vmatmul.mubr.bf16.gmra.mrb[0].mxu0 %v4491
        %v5550 = vpop.f32.mrb[0].mxu0
        %v5551 = vadd.f32 %v4659, %v5550
        %v5552 = vpop.f32.mrb[0].mxu0
        %v5553 = vadd.f32 %v4663, %v5552
        %v5554 = vpop.f32.mrb[0].mxu0
        %v5555 = vadd.f32 %v4659, %v5554
        %v5556 = vpop.f32.mrb[0].mxu0
        %v5557 = vadd.f32 %v4663, %v5556
        %5558 = vdwg.mxu0
        %5559 = vmatprep.subr.bf16.mxu0 %v5099
        %5560 = vmatpush1.bf16.msra.mxu0 %v5098
        %5561 = vmatprep.subr.bf16.mxu0 %v5115
        %5562 = vmatpush1.bf16.msra.mxu0 %v5114
        %5563 = vmatprep.subr.bf16.mxu0 %v5131
        %5564 = vmatpush1.bf16.msra.mxu0 %v5130
        %5565 = vmatprep.subr.bf16.mxu0 %v5147
        %5566 = vmatpush1.bf16.msra.mxu0 %v5146
        %5567 = vmatprep.subr.bf16.mxu0 %v5163
        %5568 = vmatpush1.bf16.msra.mxu0 %v5162
        %5569 = vmatprep.subr.bf16.mxu0 %v5179
        %5570 = vmatpush1.bf16.msra.mxu0 %v5178
        %5571 = vmatprep.subr.bf16.mxu0 %v5195
        %5572 = vmatpush1.bf16.msra.mxu0 %v5194
        %5573 = vmatprep.subr.bf16.mxu0 %v5211
        %5574 = vmatpush1.bf16.msra.mxu0 %v5210
        %5575 = vmatprep.subr.bf16.mxu0 0
        %5576 = vmatpush1.bf16.msra.mxu0 0
        %5577 = vmatprep.subr.bf16.mxu0 0
        %5578 = vmatpush1.bf16.msra.mxu0 0
        %5579 = vmatprep.subr.bf16.mxu0 0
        %5580 = vmatpush1.bf16.msra.mxu0 0
        %5581 = vmatprep.subr.bf16.mxu0 0
        %5582 = vmatpush1.bf16.msra.mxu0 0
        %5583 = vmatprep.subr.bf16.mxu0 0
        %5584 = vmatpush1.bf16.msra.mxu0 0
        %5585 = vmatprep.subr.bf16.mxu0 0
        %5586 = vmatpush1.bf16.msra.mxu0 0
        %5587 = vmatprep.subr.bf16.mxu0 0
        %5588 = vmatpush1.bf16.msra.mxu0 0
        %5589 = vmatprep.subr.bf16.mxu0 0
        %5590 = vmatpush1.bf16.msra.mxu0 0
        %5591 = vmatprep.mubr.bf16.mxu0 0
        %5592 = vmatmul.mubr.bf16.gmra.mrb[0].mxu0 %v4491
        %v5593 = vpop.f32.mrb[0].mxu0
        %v5594 = vadd.f32 %v4667, %v5593
        %v5595 = vpop.f32.mrb[0].mxu0
        %v5596 = vadd.f32 %v4671, %v5595
        %v5597 = vpop.f32.mrb[0].mxu0
        %v5598 = vadd.f32 %v4667, %v5597
        %v5599 = vpop.f32.mrb[0].mxu0
        %v5600 = vadd.f32 %v4671, %v5599
        %5601 = vdwg.mxu0
        %5602 = vmatprep.subr.bf16.mxu0 %v5101
        %5603 = vmatpush1.bf16.msra.mxu0 %v5100
        %5604 = vmatprep.subr.bf16.mxu0 %v5117
        %5605 = vmatpush1.bf16.msra.mxu0 %v5116
        %5606 = vmatprep.subr.bf16.mxu0 %v5133
        %5607 = vmatpush1.bf16.msra.mxu0 %v5132
        %5608 = vmatprep.subr.bf16.mxu0 %v5149
        %5609 = vmatpush1.bf16.msra.mxu0 %v5148
        %5610 = vmatprep.subr.bf16.mxu0 %v5165
        %5611 = vmatpush1.bf16.msra.mxu0 %v5164
        %5612 = vmatprep.subr.bf16.mxu0 %v5181
        %5613 = vmatpush1.bf16.msra.mxu0 %v5180
        %5614 = vmatprep.subr.bf16.mxu0 %v5197
        %5615 = vmatpush1.bf16.msra.mxu0 %v5196
        %5616 = vmatprep.subr.bf16.mxu0 %v5213
        %5617 = vmatpush1.bf16.msra.mxu0 %v5212
        %5618 = vmatprep.subr.bf16.mxu0 0
        %5619 = vmatpush1.bf16.msra.mxu0 0
        %5620 = vmatprep.subr.bf16.mxu0 0
        %5621 = vmatpush1.bf16.msra.mxu0 0
        %5622 = vmatprep.subr.bf16.mxu0 0
        %5623 = vmatpush1.bf16.msra.mxu0 0
        %5624 = vmatprep.subr.bf16.mxu0 0
        %5625 = vmatpush1.bf16.msra.mxu0 0
        %5626 = vmatprep.subr.bf16.mxu0 0
        %5627 = vmatpush1.bf16.msra.mxu0 0
        %5628 = vmatprep.subr.bf16.mxu0 0
        %5629 = vmatpush1.bf16.msra.mxu0 0
        %5630 = vmatprep.subr.bf16.mxu0 0
        %5631 = vmatpush1.bf16.msra.mxu0 0
        %5632 = vmatprep.subr.bf16.mxu0 0
        %5633 = vmatpush1.bf16.msra.mxu0 0
        %5634 = vmatprep.mubr.bf16.mxu0 0
        %5635 = vmatmul.mubr.bf16.gmra.mrb[0].mxu0 %v4491
        %v5636 = vpop.f32.mrb[0].mxu0
        %v5637 = vadd.f32 %v4675, %v5636
        %v5638 = vpop.f32.mrb[0].mxu0
        %v5639 = vadd.f32 %v4679, %v5638
        %v5640 = vpop.f32.mrb[0].mxu0
        %v5641 = vadd.f32 %v4675, %v5640
        %v5642 = vpop.f32.mrb[0].mxu0
        %v5643 = vadd.f32 %v4679, %v5642
        %5644 = vdwg.mxu0
        %5645 = vmatprep.subr.bf16.mxu0 %v5103
        %5646 = vmatpush1.bf16.msra.mxu0 %v5102
        %5647 = vmatprep.subr.bf16.mxu0 %v5119
        %5648 = vmatpush1.bf16.msra.mxu0 %v5118
        %5649 = vmatprep.subr.bf16.mxu0 %v5135
        %5650 = vmatpush1.bf16.msra.mxu0 %v5134
        %5651 = vmatprep.subr.bf16.mxu0 %v5151
        %5652 = vmatpush1.bf16.msra.mxu0 %v5150
        %5653 = vmatprep.subr.bf16.mxu0 %v5167
        %5654 = vmatpush1.bf16.msra.mxu0 %v5166
        %5655 = vmatprep.subr.bf16.mxu0 %v5183
        %5656 = vmatpush1.bf16.msra.mxu0 %v5182
        %5657 = vmatprep.subr.bf16.mxu0 %v5199
        %5658 = vmatpush1.bf16.msra.mxu0 %v5198
        %5659 = vmatprep.subr.bf16.mxu0 %v5215
        %5660 = vmatpush1.bf16.msra.mxu0 %v5214
        %5661 = vmatprep.subr.bf16.mxu0 0
        %5662 = vmatpush1.bf16.msra.mxu0 0
        %5663 = vmatprep.subr.bf16.mxu0 0
        %5664 = vmatpush1.bf16.msra.mxu0 0
        %5665 = vmatprep.subr.bf16.mxu0 0
        %5666 = vmatpush1.bf16.msra.mxu0 0
        %5667 = vmatprep.subr.bf16.mxu0 0
        %5668 = vmatpush1.bf16.msra.mxu0 0
        %5669 = vmatprep.subr.bf16.mxu0 0
        %5670 = vmatpush1.bf16.msra.mxu0 0
        %5671 = vmatprep.subr.bf16.mxu0 0
        %5672 = vmatpush1.bf16.msra.mxu0 0
        %5673 = vmatprep.subr.bf16.mxu0 0
        %5674 = vmatpush1.bf16.msra.mxu0 0
        %5675 = vmatprep.subr.bf16.mxu0 0
        %5676 = vmatpush1.bf16.msra.mxu0 0
        %5677 = vmatprep.mubr.bf16.mxu0 0
        %5678 = vmatmul.mubr.bf16.gmra.mrb[0].mxu0 %v4491
        %v5679 = vpop.f32.mrb[0].mxu0
        %v5680 = vadd.f32 %v4683, %v5679
        %v5681 = vpop.f32.mrb[0].mxu0
        %v5682 = vadd.f32 %v4687, %v5681
        %v5683 = vpop.f32.mrb[0].mxu0
        %v5684 = vadd.f32 %v4683, %v5683
        %v5685 = vpop.f32.mrb[0].mxu0
        %v5686 = vadd.f32 %v4687, %v5685
        %5687 = vdwg.mxu0
        %v5688 = vmax.f32 %v5379, 0.0
        %v5689 = vmax.f32 %v5381, 0.0
        %v5690 = vmax.f32 %v5422, 0.0
        %v5691 = vmax.f32 %v5424, 0.0
        %v5692 = vmax.f32 %v5465, 0.0
        %v5693 = vmax.f32 %v5467, 0.0
        %v5694 = vmax.f32 %v5508, 0.0
        %v5695 = vmax.f32 %v5510, 0.0
        %v5696 = vmax.f32 %v5551, 0.0
        %v5697 = vmax.f32 %v5553, 0.0
        %v5698 = vmax.f32 %v5594, 0.0
        %v5699 = vmax.f32 %v5596, 0.0
        %v5700 = vmax.f32 %v5637, 0.0
        %v5701 = vmax.f32 %v5639, 0.0
        %v5702 = vmax.f32 %v5680, 0.0
        %v5703 = vmax.f32 %v5682, 0.0
        %v5704 = vmax.f32 %v5383, 0.0
        %v5705 = vmax.f32 %v5385, 0.0
        %v5706 = vmax.f32 %v5426, 0.0
        %v5707 = vmax.f32 %v5428, 0.0
        %v5708 = vmax.f32 %v5469, 0.0
        %v5709 = vmax.f32 %v5471, 0.0
        %v5710 = vmax.f32 %v5512, 0.0
        %v5711 = vmax.f32 %v5514, 0.0
        %v5712 = vmax.f32 %v5555, 0.0
        %v5713 = vmax.f32 %v5557, 0.0
        %v5714 = vmax.f32 %v5598, 0.0
        %v5715 = vmax.f32 %v5600, 0.0
        %v5716 = vmax.f32 %v5641, 0.0
        %v5717 = vmax.f32 %v5643, 0.0
        %v5718 = vmax.f32 %v5684, 0.0
        %v5719 = vmax.f32 %v5686, 0.0
        %v5720 = vpack.c.bf16 %v5704, %v5688
        %v5721 = vpack.c.bf16 %v5705, %v5689
        %v5722 = vpack.c.bf16 %v5706, %v5690
        %v5723 = vpack.c.bf16 %v5707, %v5691
        %v5724 = vpack.c.bf16 %v5708, %v5692
        %v5725 = vpack.c.bf16 %v5709, %v5693
        %v5726 = vpack.c.bf16 %v5710, %v5694
        %v5727 = vpack.c.bf16 %v5711, %v5695
        %v5728 = vpack.c.bf16 %v5712, %v5696
        %v5729 = vpack.c.bf16 %v5713, %v5697
        %v5730 = vpack.c.bf16 %v5714, %v5698
        %v5731 = vpack.c.bf16 %v5715, %v5699
        %v5732 = vpack.c.bf16 %v5716, %v5700
        %v5733 = vpack.c.bf16 %v5717, %v5701
        %v5734 = vpack.c.bf16 %v5718, %v5702
        %v5735 = vpack.c.bf16 %v5719, %v5703
        %v5736 = vld [vmem:[%s1122] sm:$0xf]
        %v5737 = vld [vmem:[%s1122 + $0x4] sm:$0xf]
        %v5738 = vld [vmem:[%s1122 + $0x8] sm:$0xf]
        %v5739 = vld [vmem:[%s1122 + $0xc] sm:$0xf]
        %v5740 = vld [vmem:[%s1122 + $0x10] sm:$0xf]
        %v5741 = vld [vmem:[%s1122 + $0x14] sm:$0xf]
        %v5742 = vld [vmem:[%s1122 + $0x18] sm:$0xf]
        %v5743 = vld [vmem:[%s1122 + $0x1c] sm:$0xf]
        %v5744 = vld [vmem:[%s1122 + $0x20] sm:$0xf]
        %v5745 = vld [vmem:[%s1122 + $0x24] sm:$0xf]
        %v5746 = vld [vmem:[%s1122 + $0x28] sm:$0xf]
        %v5747 = vld [vmem:[%s1122 + $0x2c] sm:$0xf]
        %v5748 = vld [vmem:[%s1122 + $0x30] sm:$0xf]
        %v5749 = vld [vmem:[%s1122 + $0x34] sm:$0xf]
        %v5750 = vld [vmem:[%s1122 + $0x38] sm:$0xf]
        %v5751 = vld [vmem:[%s1122 + $0x3c] sm:$0xf]
        %v5752 = vld [vmem:[%s1122 + $0x40] sm:$0xf]
        %v5753 = vld [vmem:[%s1122 + $0x44] sm:$0xf]
        %v5754 = vld [vmem:[%s1122 + $0x48] sm:$0xf]
        %v5755 = vld [vmem:[%s1122 + $0x4c] sm:$0xf]
        %v5756 = vld [vmem:[%s1122 + $0x50] sm:$0xf]
        %v5757 = vld [vmem:[%s1122 + $0x54] sm:$0xf]
        %v5758 = vld [vmem:[%s1122 + $0x58] sm:$0xf]
        %v5759 = vld [vmem:[%s1122 + $0x5c] sm:$0xf]
        %v5760 = vld [vmem:[%s1122 + $0x60] sm:$0xf]
        %v5761 = vld [vmem:[%s1122 + $0x64] sm:$0xf]
        %v5762 = vld [vmem:[%s1122 + $0x68] sm:$0xf]
        %v5763 = vld [vmem:[%s1122 + $0x6c] sm:$0xf]
        %v5764 = vld [vmem:[%s1122 + $0x70] sm:$0xf]
        %v5765 = vld [vmem:[%s1122 + $0x74] sm:$0xf]
        %v5766 = vld [vmem:[%s1122 + $0x78] sm:$0xf]
        %v5767 = vld [vmem:[%s1122 + $0x7c] sm:$0xf]
        %v5768 = vld [vmem:[%s1122 + $0x80] sm:$0xf]
        %v5769 = vld [vmem:[%s1122 + $0x84] sm:$0xf]
        %v5770 = vld [vmem:[%s1122 + $0x88] sm:$0xf]
        %v5771 = vld [vmem:[%s1122 + $0x8c] sm:$0xf]
        %v5772 = vld [vmem:[%s1122 + $0x90] sm:$0xf]
        %v5773 = vld [vmem:[%s1122 + $0x94] sm:$0xf]
        %v5774 = vld [vmem:[%s1122 + $0x98] sm:$0xf]
        %v5775 = vld [vmem:[%s1122 + $0x9c] sm:$0xf]
        %v5776 = vld [vmem:[%s1122 + $0xa0] sm:$0xf]
        %v5777 = vld [vmem:[%s1122 + $0xa4] sm:$0xf]
        %v5778 = vld [vmem:[%s1122 + $0xa8] sm:$0xf]
        %v5779 = vld [vmem:[%s1122 + $0xac] sm:$0xf]
        %v5780 = vld [vmem:[%s1122 + $0xb0] sm:$0xf]
        %v5781 = vld [vmem:[%s1122 + $0xb4] sm:$0xf]
        %v5782 = vld [vmem:[%s1122 + $0xb8] sm:$0xf]
        %v5783 = vld [vmem:[%s1122 + $0xbc] sm:$0xf]
        %v5784 = vld [vmem:[%s1122 + $0xc0] sm:$0xf]
        %v5785 = vld [vmem:[%s1122 + $0xc4] sm:$0xf]
        %v5786 = vld [vmem:[%s1122 + $0xc8] sm:$0xf]
        %v5787 = vld [vmem:[%s1122 + $0xcc] sm:$0xf]
        %v5788 = vld [vmem:[%s1122 + $0xd0] sm:$0xf]
        %v5789 = vld [vmem:[%s1122 + $0xd4] sm:$0xf]
        %v5790 = vld [vmem:[%s1122 + $0xd8] sm:$0xf]
        %v5791 = vld [vmem:[%s1122 + $0xdc] sm:$0xf]
        %v5792 = vld [vmem:[%s1122 + $0xe0] sm:$0xf]
        %v5793 = vld [vmem:[%s1122 + $0xe4] sm:$0xf]
        %v5794 = vld [vmem:[%s1122 + $0xe8] sm:$0xf]
        %v5795 = vld [vmem:[%s1122 + $0xec] sm:$0xf]
        %v5796 = vld [vmem:[%s1122 + $0xf0] sm:$0xf]
        %v5797 = vld [vmem:[%s1122 + $0xf4] sm:$0xf]
        %v5798 = vld [vmem:[%s1122 + $0xf8] sm:$0xf]
        %v5799 = vld [vmem:[%s1122 + $0xfc] sm:$0xf]
        %v5800 = vld [vmem:[%s1122 + $0x100] sm:$0xf]
        %v5801 = vld [vmem:[%s1122 + $0x104] sm:$0xf]
        %v5802 = vld [vmem:[%s1122 + $0x108] sm:$0xf]
        %v5803 = vld [vmem:[%s1122 + $0x10c] sm:$0xf]
        %v5804 = vld [vmem:[%s1122 + $0x110] sm:$0xf]
        %v5805 = vld [vmem:[%s1122 + $0x114] sm:$0xf]
        %v5806 = vld [vmem:[%s1122 + $0x118] sm:$0xf]
        %v5807 = vld [vmem:[%s1122 + $0x11c] sm:$0xf]
        %v5808 = vld [vmem:[%s1122 + $0x120] sm:$0xf]
        %v5809 = vld [vmem:[%s1122 + $0x124] sm:$0xf]
        %v5810 = vld [vmem:[%s1122 + $0x128] sm:$0xf]
        %v5811 = vld [vmem:[%s1122 + $0x12c] sm:$0xf]
        %v5812 = vld [vmem:[%s1122 + $0x130] sm:$0xf]
        %v5813 = vld [vmem:[%s1122 + $0x134] sm:$0xf]
        %v5814 = vld [vmem:[%s1122 + $0x138] sm:$0xf]
        %v5815 = vld [vmem:[%s1122 + $0x13c] sm:$0xf]
        %v5816 = vld [vmem:[%s1122 + $0x140] sm:$0xf]
        %v5817 = vld [vmem:[%s1122 + $0x144] sm:$0xf]
        %v5818 = vld [vmem:[%s1122 + $0x148] sm:$0xf]
        %v5819 = vld [vmem:[%s1122 + $0x14c] sm:$0xf]
        %v5820 = vld [vmem:[%s1122 + $0x150] sm:$0xf]
        %v5821 = vld [vmem:[%s1122 + $0x154] sm:$0xf]
        %v5822 = vld [vmem:[%s1122 + $0x158] sm:$0xf]
        %v5823 = vld [vmem:[%s1122 + $0x15c] sm:$0xf]
        %v5824 = vld [vmem:[%s1122 + $0x160] sm:$0xf]
        %v5825 = vld [vmem:[%s1122 + $0x164] sm:$0xf]
        %v5826 = vld [vmem:[%s1122 + $0x168] sm:$0xf]
        %v5827 = vld [vmem:[%s1122 + $0x16c] sm:$0xf]
        %v5828 = vld [vmem:[%s1122 + $0x170] sm:$0xf]
        %v5829 = vld [vmem:[%s1122 + $0x174] sm:$0xf]
        %v5830 = vld [vmem:[%s1122 + $0x178] sm:$0xf]
        %v5831 = vld [vmem:[%s1122 + $0x17c] sm:$0xf]
        %v5832 = vld [vmem:[%s1122 + $0x180] sm:$0xf]
        %v5833 = vld [vmem:[%s1122 + $0x184] sm:$0xf]
        %v5834 = vld [vmem:[%s1122 + $0x188] sm:$0xf]
        %v5835 = vld [vmem:[%s1122 + $0x18c] sm:$0xf]
        %v5836 = vld [vmem:[%s1122 + $0x190] sm:$0xf]
        %v5837 = vld [vmem:[%s1122 + $0x194] sm:$0xf]
        %v5838 = vld [vmem:[%s1122 + $0x198] sm:$0xf]
        %v5839 = vld [vmem:[%s1122 + $0x19c] sm:$0xf]
        %v5840 = vld [vmem:[%s1122 + $0x1a0] sm:$0xf]
        %v5841 = vld [vmem:[%s1122 + $0x1a4] sm:$0xf]
        %v5842 = vld [vmem:[%s1122 + $0x1a8] sm:$0xf]
        %v5843 = vld [vmem:[%s1122 + $0x1ac] sm:$0xf]
        %v5844 = vld [vmem:[%s1122 + $0x1b0] sm:$0xf]
        %v5845 = vld [vmem:[%s1122 + $0x1b4] sm:$0xf]
        %v5846 = vld [vmem:[%s1122 + $0x1b8] sm:$0xf]
        %v5847 = vld [vmem:[%s1122 + $0x1bc] sm:$0xf]
        %v5848 = vld [vmem:[%s1122 + $0x1c0] sm:$0xf]
        %v5849 = vld [vmem:[%s1122 + $0x1c4] sm:$0xf]
        %v5850 = vld [vmem:[%s1122 + $0x1c8] sm:$0xf]
        %v5851 = vld [vmem:[%s1122 + $0x1cc] sm:$0xf]
        %v5852 = vld [vmem:[%s1122 + $0x1d0] sm:$0xf]
        %v5853 = vld [vmem:[%s1122 + $0x1d4] sm:$0xf]
        %v5854 = vld [vmem:[%s1122 + $0x1d8] sm:$0xf]
        %v5855 = vld [vmem:[%s1122 + $0x1dc] sm:$0xf]
        %v5856 = vld [vmem:[%s1122 + $0x1e0] sm:$0xf]
        %v5857 = vld [vmem:[%s1122 + $0x1e4] sm:$0xf]
        %v5858 = vld [vmem:[%s1122 + $0x1e8] sm:$0xf]
        %v5859 = vld [vmem:[%s1122 + $0x1ec] sm:$0xf]
        %v5860 = vld [vmem:[%s1122 + $0x1f0] sm:$0xf]
        %v5861 = vld [vmem:[%s1122 + $0x1f4] sm:$0xf]
        %v5862 = vld [vmem:[%s1122 + $0x1f8] sm:$0xf]
        %v5863 = vld [vmem:[%s1122 + $0x1fc] sm:$0xf]
        %v5864 = vld [vmem:[%s1122 + $0x200] sm:$0xf]
        %v5865 = vld [vmem:[%s1122 + $0x204] sm:$0xf]
        %v5866 = vld [vmem:[%s1122 + $0x208] sm:$0xf]
        %v5867 = vld [vmem:[%s1122 + $0x20c] sm:$0xf]
        %v5868 = vld [vmem:[%s1122 + $0x210] sm:$0xf]
        %v5869 = vld [vmem:[%s1122 + $0x214] sm:$0xf]
        %v5870 = vld [vmem:[%s1122 + $0x218] sm:$0xf]
        %v5871 = vld [vmem:[%s1122 + $0x21c] sm:$0xf]
        %v5872 = vld [vmem:[%s1122 + $0x220] sm:$0xf]
        %v5873 = vld [vmem:[%s1122 + $0x224] sm:$0xf]
        %v5874 = vld [vmem:[%s1122 + $0x228] sm:$0xf]
        %v5875 = vld [vmem:[%s1122 + $0x22c] sm:$0xf]
        %v5876 = vld [vmem:[%s1122 + $0x230] sm:$0xf]
        %v5877 = vld [vmem:[%s1122 + $0x234] sm:$0xf]
        %v5878 = vld [vmem:[%s1122 + $0x238] sm:$0xf]
        %v5879 = vld [vmem:[%s1122 + $0x23c] sm:$0xf]
        %v5880 = vld [vmem:[%s1122 + $0x240] sm:$0xf]
        %v5881 = vld [vmem:[%s1122 + $0x244] sm:$0xf]
        %v5882 = vld [vmem:[%s1122 + $0x248] sm:$0xf]
        %v5883 = vld [vmem:[%s1122 + $0x24c] sm:$0xf]
        %v5884 = vld [vmem:[%s1122 + $0x250] sm:$0xf]
        %v5885 = vld [vmem:[%s1122 + $0x254] sm:$0xf]
        %v5886 = vld [vmem:[%s1122 + $0x258] sm:$0xf]
        %v5887 = vld [vmem:[%s1122 + $0x25c] sm:$0xf]
        %v5888 = vld [vmem:[%s1122 + $0x260] sm:$0xf]
        %v5889 = vld [vmem:[%s1122 + $0x264] sm:$0xf]
        %v5890 = vld [vmem:[%s1122 + $0x268] sm:$0xf]
        %v5891 = vld [vmem:[%s1122 + $0x26c] sm:$0xf]
        %v5892 = vld [vmem:[%s1122 + $0x270] sm:$0xf]
        %v5893 = vld [vmem:[%s1122 + $0x274] sm:$0xf]
        %v5894 = vld [vmem:[%s1122 + $0x278] sm:$0xf]
        %v5895 = vld [vmem:[%s1122 + $0x27c] sm:$0xf]
        %v5896 = vld [vmem:[%s1122 + $0x280] sm:$0xf]
        %v5897 = vld [vmem:[%s1122 + $0x284] sm:$0xf]
        %v5898 = vld [vmem:[%s1122 + $0x288] sm:$0xf]
        %v5899 = vld [vmem:[%s1122 + $0x28c] sm:$0xf]
        %v5900 = vld [vmem:[%s1122 + $0x290] sm:$0xf]
        %v5901 = vld [vmem:[%s1122 + $0x294] sm:$0xf]
        %v5902 = vld [vmem:[%s1122 + $0x298] sm:$0xf]
        %v5903 = vld [vmem:[%s1122 + $0x29c] sm:$0xf]
        %v5904 = vld [vmem:[%s1122 + $0x2a0] sm:$0xf]
        %v5905 = vld [vmem:[%s1122 + $0x2a4] sm:$0xf]
        %v5906 = vld [vmem:[%s1122 + $0x2a8] sm:$0xf]
        %v5907 = vld [vmem:[%s1122 + $0x2ac] sm:$0xf]
        %v5908 = vld [vmem:[%s1122 + $0x2b0] sm:$0xf]
        %v5909 = vld [vmem:[%s1122 + $0x2b4] sm:$0xf]
        %v5910 = vld [vmem:[%s1122 + $0x2b8] sm:$0xf]
        %v5911 = vld [vmem:[%s1122 + $0x2bc] sm:$0xf]
        %v5912 = vld [vmem:[%s1122 + $0x2c0] sm:$0xf]
        %v5913 = vld [vmem:[%s1122 + $0x2c4] sm:$0xf]
        %v5914 = vld [vmem:[%s1122 + $0x2c8] sm:$0xf]
        %v5915 = vld [vmem:[%s1122 + $0x2cc] sm:$0xf]
        %v5916 = vld [vmem:[%s1122 + $0x2d0] sm:$0xf]
        %v5917 = vld [vmem:[%s1122 + $0x2d4] sm:$0xf]
        %v5918 = vld [vmem:[%s1122 + $0x2d8] sm:$0xf]
        %v5919 = vld [vmem:[%s1122 + $0x2dc] sm:$0xf]
        %v5920 = vld [vmem:[%s1122 + $0x2e0] sm:$0xf]
        %v5921 = vld [vmem:[%s1122 + $0x2e4] sm:$0xf]
        %v5922 = vld [vmem:[%s1122 + $0x2e8] sm:$0xf]
        %v5923 = vld [vmem:[%s1122 + $0x2ec] sm:$0xf]
        %v5924 = vld [vmem:[%s1122 + $0x2f0] sm:$0xf]
        %v5925 = vld [vmem:[%s1122 + $0x2f4] sm:$0xf]
        %v5926 = vld [vmem:[%s1122 + $0x2f8] sm:$0xf]
        %v5927 = vld [vmem:[%s1122 + $0x2fc] sm:$0xf]
        %v5928 = vld [vmem:[%s1122 + $0x300] sm:$0xf]
        %v5929 = vld [vmem:[%s1122 + $0x304] sm:$0xf]
        %v5930 = vld [vmem:[%s1122 + $0x308] sm:$0xf]
        %v5931 = vld [vmem:[%s1122 + $0x30c] sm:$0xf]
        %v5932 = vld [vmem:[%s1122 + $0x310] sm:$0xf]
        %v5933 = vld [vmem:[%s1122 + $0x314] sm:$0xf]
        %v5934 = vld [vmem:[%s1122 + $0x318] sm:$0xf]
        %v5935 = vld [vmem:[%s1122 + $0x31c] sm:$0xf]
        %v5936 = vld [vmem:[%s1122 + $0x320] sm:$0xf]
        %v5937 = vld [vmem:[%s1122 + $0x324] sm:$0xf]
        %v5938 = vld [vmem:[%s1122 + $0x328] sm:$0xf]
        %v5939 = vld [vmem:[%s1122 + $0x32c] sm:$0xf]
        %v5940 = vld [vmem:[%s1122 + $0x330] sm:$0xf]
        %v5941 = vld [vmem:[%s1122 + $0x334] sm:$0xf]
        %v5942 = vld [vmem:[%s1122 + $0x338] sm:$0xf]
        %v5943 = vld [vmem:[%s1122 + $0x33c] sm:$0xf]
        %v5944 = vld [vmem:[%s1122 + $0x340] sm:$0xf]
        %v5945 = vld [vmem:[%s1122 + $0x344] sm:$0xf]
        %v5946 = vld [vmem:[%s1122 + $0x348] sm:$0xf]
        %v5947 = vld [vmem:[%s1122 + $0x34c] sm:$0xf]
        %v5948 = vld [vmem:[%s1122 + $0x350] sm:$0xf]
        %v5949 = vld [vmem:[%s1122 + $0x354] sm:$0xf]
        %v5950 = vld [vmem:[%s1122 + $0x358] sm:$0xf]
        %v5951 = vld [vmem:[%s1122 + $0x35c] sm:$0xf]
        %v5952 = vld [vmem:[%s1122 + $0x360] sm:$0xf]
        %v5953 = vld [vmem:[%s1122 + $0x364] sm:$0xf]
        %v5954 = vld [vmem:[%s1122 + $0x368] sm:$0xf]
        %v5955 = vld [vmem:[%s1122 + $0x36c] sm:$0xf]
        %v5956 = vld [vmem:[%s1122 + $0x370] sm:$0xf]
        %v5957 = vld [vmem:[%s1122 + $0x374] sm:$0xf]
        %v5958 = vld [vmem:[%s1122 + $0x378] sm:$0xf]
        %v5959 = vld [vmem:[%s1122 + $0x37c] sm:$0xf]
        %v5960 = vld [vmem:[%s1122 + $0x380] sm:$0xf]
        %v5961 = vld [vmem:[%s1122 + $0x384] sm:$0xf]
        %v5962 = vld [vmem:[%s1122 + $0x388] sm:$0xf]
        %v5963 = vld [vmem:[%s1122 + $0x38c] sm:$0xf]
        %v5964 = vld [vmem:[%s1122 + $0x390] sm:$0xf]
        %v5965 = vld [vmem:[%s1122 + $0x394] sm:$0xf]
        %v5966 = vld [vmem:[%s1122 + $0x398] sm:$0xf]
        %v5967 = vld [vmem:[%s1122 + $0x39c] sm:$0xf]
        %v5968 = vld [vmem:[%s1122 + $0x3a0] sm:$0xf]
        %v5969 = vld [vmem:[%s1122 + $0x3a4] sm:$0xf]
        %v5970 = vld [vmem:[%s1122 + $0x3a8] sm:$0xf]
        %v5971 = vld [vmem:[%s1122 + $0x3ac] sm:$0xf]
        %v5972 = vld [vmem:[%s1122 + $0x3b0] sm:$0xf]
        %v5973 = vld [vmem:[%s1122 + $0x3b4] sm:$0xf]
        %v5974 = vld [vmem:[%s1122 + $0x3b8] sm:$0xf]
        %v5975 = vld [vmem:[%s1122 + $0x3bc] sm:$0xf]
        %v5976 = vld [vmem:[%s1122 + $0x3c0] sm:$0xf]
        %v5977 = vld [vmem:[%s1122 + $0x3c4] sm:$0xf]
        %v5978 = vld [vmem:[%s1122 + $0x3c8] sm:$0xf]
        %v5979 = vld [vmem:[%s1122 + $0x3cc] sm:$0xf]
        %v5980 = vld [vmem:[%s1122 + $0x3d0] sm:$0xf]
        %v5981 = vld [vmem:[%s1122 + $0x3d4] sm:$0xf]
        %v5982 = vld [vmem:[%s1122 + $0x3d8] sm:$0xf]
        %v5983 = vld [vmem:[%s1122 + $0x3dc] sm:$0xf]
        %v5984 = vld [vmem:[%s1122 + $0x3e0] sm:$0xf]
        %v5985 = vld [vmem:[%s1122 + $0x3e4] sm:$0xf]
        %v5986 = vld [vmem:[%s1122 + $0x3e8] sm:$0xf]
        %v5987 = vld [vmem:[%s1122 + $0x3ec] sm:$0xf]
        %v5988 = vld [vmem:[%s1122 + $0x3f0] sm:$0xf]
        %v5989 = vld [vmem:[%s1122 + $0x3f4] sm:$0xf]
        %v5990 = vld [vmem:[%s1122 + $0x3f8] sm:$0xf]
        %v5991 = vld [vmem:[%s1122 + $0x3fc] sm:$0xf]
        %v5992 = vld [vmem:[%s1130] sm:$0x1]
        %v5994 = vlaneseq
        %v5995 = vshrl.u32 %v5994, 7
        %v5996 = vsub.s32 0, %v5995
        %v5997 = vrot.slane %v5992, %v5996
        %v6255 = vunpack.c.l.b16 %v5736
        %v6256 = vunpack.c.l.b16 %v5737
        %v6257 = vunpack.c.l.b16 %v5738
        %v6258 = vunpack.c.l.b16 %v5739
        %v6259 = vunpack.c.l.b16 %v5740
        %v6260 = vunpack.c.l.b16 %v5741
        %v6261 = vunpack.c.l.b16 %v5742
        %v6262 = vunpack.c.l.b16 %v5743
        %v6263 = vunpack.c.l.b16 %v5744
        %v6264 = vunpack.c.l.b16 %v5745
        %v6265 = vunpack.c.l.b16 %v5746
        %v6266 = vunpack.c.l.b16 %v5747
        %v6267 = vunpack.c.l.b16 %v5748
        %v6268 = vunpack.c.l.b16 %v5749
        %v6269 = vunpack.c.l.b16 %v5750
        %v6270 = vunpack.c.l.b16 %v5751
        %v6271 = vunpack.c.l.b16 %v5752
        %v6272 = vunpack.c.l.b16 %v5753
        %v6273 = vunpack.c.l.b16 %v5754
        %v6274 = vunpack.c.l.b16 %v5755
        %v6275 = vunpack.c.l.b16 %v5756
        %v6276 = vunpack.c.l.b16 %v5757
        %v6277 = vunpack.c.l.b16 %v5758
        %v6278 = vunpack.c.l.b16 %v5759
        %v6279 = vunpack.c.l.b16 %v5760
        %v6280 = vunpack.c.l.b16 %v5761
        %v6281 = vunpack.c.l.b16 %v5762
        %v6282 = vunpack.c.l.b16 %v5763
        %v6283 = vunpack.c.l.b16 %v5764
        %v6284 = vunpack.c.l.b16 %v5765
        %v6285 = vunpack.c.l.b16 %v5766
        %v6286 = vunpack.c.l.b16 %v5767
        %v6287 = vunpack.c.l.b16 %v5768
        %v6288 = vunpack.c.l.b16 %v5769
        %v6289 = vunpack.c.l.b16 %v5770
        %v6290 = vunpack.c.l.b16 %v5771
        %v6291 = vunpack.c.l.b16 %v5772
        %v6292 = vunpack.c.l.b16 %v5773
        %v6293 = vunpack.c.l.b16 %v5774
        %v6294 = vunpack.c.l.b16 %v5775
        %v6295 = vunpack.c.l.b16 %v5776
        %v6296 = vunpack.c.l.b16 %v5777
        %v6297 = vunpack.c.l.b16 %v5778
        %v6298 = vunpack.c.l.b16 %v5779
        %v6299 = vunpack.c.l.b16 %v5780
        %v6300 = vunpack.c.l.b16 %v5781
        %v6301 = vunpack.c.l.b16 %v5782
        %v6302 = vunpack.c.l.b16 %v5783
        %v6303 = vunpack.c.l.b16 %v5784
        %v6304 = vunpack.c.l.b16 %v5785
        %v6305 = vunpack.c.l.b16 %v5786
        %v6306 = vunpack.c.l.b16 %v5787
        %v6307 = vunpack.c.l.b16 %v5788
        %v6308 = vunpack.c.l.b16 %v5789
        %v6309 = vunpack.c.l.b16 %v5790
        %v6310 = vunpack.c.l.b16 %v5791
        %v6311 = vunpack.c.l.b16 %v5792
        %v6312 = vunpack.c.l.b16 %v5793
        %v6313 = vunpack.c.l.b16 %v5794
        %v6314 = vunpack.c.l.b16 %v5795
        %v6315 = vunpack.c.l.b16 %v5796
        %v6316 = vunpack.c.l.b16 %v5797
        %v6317 = vunpack.c.l.b16 %v5798
        %v6318 = vunpack.c.l.b16 %v5799
        %v6319 = vunpack.c.l.b16 %v5800
        %v6320 = vunpack.c.l.b16 %v5801
        %v6321 = vunpack.c.l.b16 %v5802
        %v6322 = vunpack.c.l.b16 %v5803
        %v6323 = vunpack.c.l.b16 %v5804
        %v6324 = vunpack.c.l.b16 %v5805
        %v6325 = vunpack.c.l.b16 %v5806
        %v6326 = vunpack.c.l.b16 %v5807
        %v6327 = vunpack.c.l.b16 %v5808
        %v6328 = vunpack.c.l.b16 %v5809
        %v6329 = vunpack.c.l.b16 %v5810
        %v6330 = vunpack.c.l.b16 %v5811
        %v6331 = vunpack.c.l.b16 %v5812
        %v6332 = vunpack.c.l.b16 %v5813
        %v6333 = vunpack.c.l.b16 %v5814
        %v6334 = vunpack.c.l.b16 %v5815
        %v6335 = vunpack.c.l.b16 %v5816
        %v6336 = vunpack.c.l.b16 %v5817
        %v6337 = vunpack.c.l.b16 %v5818
        %v6338 = vunpack.c.l.b16 %v5819
        %v6339 = vunpack.c.l.b16 %v5820
        %v6340 = vunpack.c.l.b16 %v5821
        %v6341 = vunpack.c.l.b16 %v5822
        %v6342 = vunpack.c.l.b16 %v5823
        %v6343 = vunpack.c.l.b16 %v5824
        %v6344 = vunpack.c.l.b16 %v5825
        %v6345 = vunpack.c.l.b16 %v5826
        %v6346 = vunpack.c.l.b16 %v5827
        %v6347 = vunpack.c.l.b16 %v5828
        %v6348 = vunpack.c.l.b16 %v5829
        %v6349 = vunpack.c.l.b16 %v5830
        %v6350 = vunpack.c.l.b16 %v5831
        %v6351 = vunpack.c.l.b16 %v5832
        %v6352 = vunpack.c.l.b16 %v5833
        %v6353 = vunpack.c.l.b16 %v5834
        %v6354 = vunpack.c.l.b16 %v5835
        %v6355 = vunpack.c.l.b16 %v5836
        %v6356 = vunpack.c.l.b16 %v5837
        %v6357 = vunpack.c.l.b16 %v5838
        %v6358 = vunpack.c.l.b16 %v5839
        %v6359 = vunpack.c.l.b16 %v5840
        %v6360 = vunpack.c.l.b16 %v5841
        %v6361 = vunpack.c.l.b16 %v5842
        %v6362 = vunpack.c.l.b16 %v5843
        %v6363 = vunpack.c.l.b16 %v5844
        %v6364 = vunpack.c.l.b16 %v5845
        %v6365 = vunpack.c.l.b16 %v5846
        %v6366 = vunpack.c.l.b16 %v5847
        %v6367 = vunpack.c.l.b16 %v5848
        %v6368 = vunpack.c.l.b16 %v5849
        %v6369 = vunpack.c.l.b16 %v5850
        %v6370 = vunpack.c.l.b16 %v5851
        %v6371 = vunpack.c.l.b16 %v5852
        %v6372 = vunpack.c.l.b16 %v5853
        %v6373 = vunpack.c.l.b16 %v5854
        %v6374 = vunpack.c.l.b16 %v5855
        %v6375 = vunpack.c.l.b16 %v5856
        %v6376 = vunpack.c.l.b16 %v5857
        %v6377 = vunpack.c.l.b16 %v5858
        %v6378 = vunpack.c.l.b16 %v5859
        %v6379 = vunpack.c.l.b16 %v5860
        %v6380 = vunpack.c.l.b16 %v5861
        %v6381 = vunpack.c.l.b16 %v5862
        %v6382 = vunpack.c.l.b16 %v5863
        %v6383 = vunpack.c.l.b16 %v5864
        %v6384 = vunpack.c.l.b16 %v5865
        %v6385 = vunpack.c.l.b16 %v5866
        %v6386 = vunpack.c.l.b16 %v5867
        %v6387 = vunpack.c.l.b16 %v5868
        %v6388 = vunpack.c.l.b16 %v5869
        %v6389 = vunpack.c.l.b16 %v5870
        %v6390 = vunpack.c.l.b16 %v5871
        %v6391 = vunpack.c.l.b16 %v5872
        %v6392 = vunpack.c.l.b16 %v5873
        %v6393 = vunpack.c.l.b16 %v5874
        %v6394 = vunpack.c.l.b16 %v5875
        %v6395 = vunpack.c.l.b16 %v5876
        %v6396 = vunpack.c.l.b16 %v5877
        %v6397 = vunpack.c.l.b16 %v5878
        %v6398 = vunpack.c.l.b16 %v5879
        %v6399 = vunpack.c.l.b16 %v5880
        %v6400 = vunpack.c.l.b16 %v5881
        %v6401 = vunpack.c.l.b16 %v5882
        %v6402 = vunpack.c.l.b16 %v5883
        %v6403 = vunpack.c.l.b16 %v5884
        %v6404 = vunpack.c.l.b16 %v5885
        %v6405 = vunpack.c.l.b16 %v5886
        %v6406 = vunpack.c.l.b16 %v5887
        %v6407 = vunpack.c.l.b16 %v5888
        %v6408 = vunpack.c.l.b16 %v5889
        %v6409 = vunpack.c.l.b16 %v5890
        %v6410 = vunpack.c.l.b16 %v5891
        %v6411 = vunpack.c.l.b16 %v5892
        %v6412 = vunpack.c.l.b16 %v5893
        %v6413 = vunpack.c.l.b16 %v5894
        %v6414 = vunpack.c.l.b16 %v5895
        %v6415 = vunpack.c.l.b16 %v5896
        %v6416 = vunpack.c.l.b16 %v5897
        %v6417 = vunpack.c.l.b16 %v5898
        %v6418 = vunpack.c.l.b16 %v5899
        %v6419 = vunpack.c.l.b16 %v5900
        %v6420 = vunpack.c.l.b16 %v5901
        %v6421 = vunpack.c.l.b16 %v5902
        %v6422 = vunpack.c.l.b16 %v5903
        %v6423 = vunpack.c.l.b16 %v5904
        %v6424 = vunpack.c.l.b16 %v5905
        %v6425 = vunpack.c.l.b16 %v5906
        %v6426 = vunpack.c.l.b16 %v5907
        %v6427 = vunpack.c.l.b16 %v5908
        %v6428 = vunpack.c.l.b16 %v5909
        %v6429 = vunpack.c.l.b16 %v5910
        %v6430 = vunpack.c.l.b16 %v5911
        %v6431 = vunpack.c.l.b16 %v5912
        %v6432 = vunpack.c.l.b16 %v5913
        %v6433 = vunpack.c.l.b16 %v5914
        %v6434 = vunpack.c.l.b16 %v5915
        %v6435 = vunpack.c.l.b16 %v5916
        %v6436 = vunpack.c.l.b16 %v5917
        %v6437 = vunpack.c.l.b16 %v5918
        %v6438 = vunpack.c.l.b16 %v5919
        %v6439 = vunpack.c.l.b16 %v5920
        %v6440 = vunpack.c.l.b16 %v5921
        %v6441 = vunpack.c.l.b16 %v5922
        %v6442 = vunpack.c.l.b16 %v5923
        %v6443 = vunpack.c.l.b16 %v5924
        %v6444 = vunpack.c.l.b16 %v5925
        %v6445 = vunpack.c.l.b16 %v5926
        %v6446 = vunpack.c.l.b16 %v5927
        %v6447 = vunpack.c.l.b16 %v5928
        %v6448 = vunpack.c.l.b16 %v5929
        %v6449 = vunpack.c.l.b16 %v5930
        %v6450 = vunpack.c.l.b16 %v5931
        %v6451 = vunpack.c.l.b16 %v5932
        %v6452 = vunpack.c.l.b16 %v5933
        %v6453 = vunpack.c.l.b16 %v5934
        %v6454 = vunpack.c.l.b16 %v5935
        %v6455 = vunpack.c.l.b16 %v5936
        %v6456 = vunpack.c.l.b16 %v5937
        %v6457 = vunpack.c.l.b16 %v5938
        %v6458 = vunpack.c.l.b16 %v5939
        %v6459 = vunpack.c.l.b16 %v5940
        %v6460 = vunpack.c.l.b16 %v5941
        %v6461 = vunpack.c.l.b16 %v5942
        %v6462 = vunpack.c.l.b16 %v5943
        %v6463 = vunpack.c.l.b16 %v5944
        %v6464 = vunpack.c.l.b16 %v5945
        %v6465 = vunpack.c.l.b16 %v5946
        %v6466 = vunpack.c.l.b16 %v5947
        %v6467 = vunpack.c.l.b16 %v5948
        %v6468 = vunpack.c.l.b16 %v5949
        %v6469 = vunpack.c.l.b16 %v5950
        %v6470 = vunpack.c.l.b16 %v5951
        %v6471 = vunpack.c.l.b16 %v5952
        %v6472 = vunpack.c.l.b16 %v5953
        %v6473 = vunpack.c.l.b16 %v5954
        %v6474 = vunpack.c.l.b16 %v5955
        %v6475 = vunpack.c.l.b16 %v5956
        %v6476 = vunpack.c.l.b16 %v5957
        %v6477 = vunpack.c.l.b16 %v5958
        %v6478 = vunpack.c.l.b16 %v5959
        %v6479 = vunpack.c.l.b16 %v5960
        %v6480 = vunpack.c.l.b16 %v5961
        %v6481 = vunpack.c.l.b16 %v5962
        %v6482 = vunpack.c.l.b16 %v5963
        %v6483 = vunpack.c.l.b16 %v5964
        %v6484 = vunpack.c.l.b16 %v5965
        %v6485 = vunpack.c.l.b16 %v5966
        %v6486 = vunpack.c.l.b16 %v5967
        %v6487 = vunpack.c.l.b16 %v5968
        %v6488 = vunpack.c.l.b16 %v5969
        %v6489 = vunpack.c.l.b16 %v5970
        %v6490 = vunpack.c.l.b16 %v5971
        %v6491 = vunpack.c.l.b16 %v5972
        %v6492 = vunpack.c.l.b16 %v5973
        %v6493 = vunpack.c.l.b16 %v5974
        %v6494 = vunpack.c.l.b16 %v5975
        %v6495 = vunpack.c.l.b16 %v5976
        %v6496 = vunpack.c.l.b16 %v5977
        %v6497 = vunpack.c.l.b16 %v5978
        %v6498 = vunpack.c.l.b16 %v5979
        %v6499 = vunpack.c.l.b16 %v5980
        %v6500 = vunpack.c.l.b16 %v5981
        %v6501 = vunpack.c.l.b16 %v5982
        %v6502 = vunpack.c.l.b16 %v5983
        %v6503 = vunpack.c.l.b16 %v5984
        %v6504 = vunpack.c.l.b16 %v5985
        %v6505 = vunpack.c.l.b16 %v5986
        %v6506 = vunpack.c.l.b16 %v5987
        %v6507 = vunpack.c.l.b16 %v5988
        %v6508 = vunpack.c.l.b16 %v5989
        %v6509 = vunpack.c.l.b16 %v5990
        %v6510 = vunpack.c.l.b16 %v5991
        %v6511 = vpack.c.b16 %v6256, %v6255
        %v6512 = vpack.c.b16 %v6258, %v6257
        %v6513 = vpack.c.b16 %v6260, %v6259
        %v6514 = vpack.c.b16 %v6262, %v6261
        %v6515 = vpack.c.b16 %v6264, %v6263
        %v6516 = vpack.c.b16 %v6266, %v6265
        %v6517 = vpack.c.b16 %v6268, %v6267
        %v6518 = vpack.c.b16 %v6270, %v6269
        %v6519 = vpack.c.b16 %v6272, %v6271
        %v6520 = vpack.c.b16 %v6274, %v6273
        %v6521 = vpack.c.b16 %v6276, %v6275
        %v6522 = vpack.c.b16 %v6278, %v6277
        %v6523 = vpack.c.b16 %v6280, %v6279
        %v6524 = vpack.c.b16 %v6282, %v6281
        %v6525 = vpack.c.b16 %v6284, %v6283
        %v6526 = vpack.c.b16 %v6286, %v6285
        %v6527 = vpack.c.b16 %v6288, %v6287
        %v6528 = vpack.c.b16 %v6290, %v6289
        %v6529 = vpack.c.b16 %v6292, %v6291
        %v6530 = vpack.c.b16 %v6294, %v6293
        %v6531 = vpack.c.b16 %v6296, %v6295
        %v6532 = vpack.c.b16 %v6298, %v6297
        %v6533 = vpack.c.b16 %v6300, %v6299
        %v6534 = vpack.c.b16 %v6302, %v6301
        %v6535 = vpack.c.b16 %v6304, %v6303
        %v6536 = vpack.c.b16 %v6306, %v6305
        %v6537 = vpack.c.b16 %v6308, %v6307
        %v6538 = vpack.c.b16 %v6310, %v6309
        %v6539 = vpack.c.b16 %v6312, %v6311
        %v6540 = vpack.c.b16 %v6314, %v6313
        %v6541 = vpack.c.b16 %v6316, %v6315
        %v6542 = vpack.c.b16 %v6318, %v6317
        %v6543 = vpack.c.b16 %v6320, %v6319
        %v6544 = vpack.c.b16 %v6322, %v6321
        %v6545 = vpack.c.b16 %v6324, %v6323
        %v6546 = vpack.c.b16 %v6326, %v6325
        %v6547 = vpack.c.b16 %v6328, %v6327
        %v6548 = vpack.c.b16 %v6330, %v6329
        %v6549 = vpack.c.b16 %v6332, %v6331
        %v6550 = vpack.c.b16 %v6334, %v6333
        %v6551 = vpack.c.b16 %v6336, %v6335
        %v6552 = vpack.c.b16 %v6338, %v6337
        %v6553 = vpack.c.b16 %v6340, %v6339
        %v6554 = vpack.c.b16 %v6342, %v6341
        %v6555 = vpack.c.b16 %v6344, %v6343
        %v6556 = vpack.c.b16 %v6346, %v6345
        %v6557 = vpack.c.b16 %v6348, %v6347
        %v6558 = vpack.c.b16 %v6350, %v6349
        %v6559 = vpack.c.b16 %v6352, %v6351
        %v6560 = vpack.c.b16 %v6354, %v6353
        %v6561 = vpack.c.b16 %v6356, %v6355
        %v6562 = vpack.c.b16 %v6358, %v6357
        %v6563 = vpack.c.b16 %v6360, %v6359
        %v6564 = vpack.c.b16 %v6362, %v6361
        %v6565 = vpack.c.b16 %v6364, %v6363
        %v6566 = vpack.c.b16 %v6366, %v6365
        %v6567 = vpack.c.b16 %v6368, %v6367
        %v6568 = vpack.c.b16 %v6370, %v6369
        %v6569 = vpack.c.b16 %v6372, %v6371
        %v6570 = vpack.c.b16 %v6374, %v6373
        %v6571 = vpack.c.b16 %v6376, %v6375
        %v6572 = vpack.c.b16 %v6378, %v6377
        %v6573 = vpack.c.b16 %v6380, %v6379
        %v6574 = vpack.c.b16 %v6382, %v6381
        %v6575 = vpack.c.b16 %v6384, %v6383
        %v6576 = vpack.c.b16 %v6386, %v6385
        %v6577 = vpack.c.b16 %v6388, %v6387
        %v6578 = vpack.c.b16 %v6390, %v6389
        %v6579 = vpack.c.b16 %v6392, %v6391
        %v6580 = vpack.c.b16 %v6394, %v6393
        %v6581 = vpack.c.b16 %v6396, %v6395
        %v6582 = vpack.c.b16 %v6398, %v6397
        %v6583 = vpack.c.b16 %v6400, %v6399
        %v6584 = vpack.c.b16 %v6402, %v6401
        %v6585 = vpack.c.b16 %v6404, %v6403
        %v6586 = vpack.c.b16 %v6406, %v6405
        %v6587 = vpack.c.b16 %v6408, %v6407
        %v6588 = vpack.c.b16 %v6410, %v6409
        %v6589 = vpack.c.b16 %v6412, %v6411
        %v6590 = vpack.c.b16 %v6414, %v6413
        %v6591 = vpack.c.b16 %v6416, %v6415
        %v6592 = vpack.c.b16 %v6418, %v6417
        %v6593 = vpack.c.b16 %v6420, %v6419
        %v6594 = vpack.c.b16 %v6422, %v6421
        %v6595 = vpack.c.b16 %v6424, %v6423
        %v6596 = vpack.c.b16 %v6426, %v6425
        %v6597 = vpack.c.b16 %v6428, %v6427
        %v6598 = vpack.c.b16 %v6430, %v6429
        %v6599 = vpack.c.b16 %v6432, %v6431
        %v6600 = vpack.c.b16 %v6434, %v6433
        %v6601 = vpack.c.b16 %v6436, %v6435
        %v6602 = vpack.c.b16 %v6438, %v6437
        %v6603 = vpack.c.b16 %v6440, %v6439
        %v6604 = vpack.c.b16 %v6442, %v6441
        %v6605 = vpack.c.b16 %v6444, %v6443
        %v6606 = vpack.c.b16 %v6446, %v6445
        %v6607 = vpack.c.b16 %v6448, %v6447
        %v6608 = vpack.c.b16 %v6450, %v6449
        %v6609 = vpack.c.b16 %v6452, %v6451
        %v6610 = vpack.c.b16 %v6454, %v6453
        %v6611 = vpack.c.b16 %v6456, %v6455
        %v6612 = vpack.c.b16 %v6458, %v6457
        %v6613 = vpack.c.b16 %v6460, %v6459
        %v6614 = vpack.c.b16 %v6462, %v6461
        %v6615 = vpack.c.b16 %v6464, %v6463
        %v6616 = vpack.c.b16 %v6466, %v6465
        %v6617 = vpack.c.b16 %v6468, %v6467
        %v6618 = vpack.c.b16 %v6470, %v6469
        %v6619 = vpack.c.b16 %v6472, %v6471
        %v6620 = vpack.c.b16 %v6474, %v6473
        %v6621 = vpack.c.b16 %v6476, %v6475
        %v6622 = vpack.c.b16 %v6478, %v6477
        %v6623 = vpack.c.b16 %v6480, %v6479
        %v6624 = vpack.c.b16 %v6482, %v6481
        %v6625 = vpack.c.b16 %v6484, %v6483
        %v6626 = vpack.c.b16 %v6486, %v6485
        %v6627 = vpack.c.b16 %v6488, %v6487
        %v6628 = vpack.c.b16 %v6490, %v6489
        %v6629 = vpack.c.b16 %v6492, %v6491
        %v6630 = vpack.c.b16 %v6494, %v6493
        %v6631 = vpack.c.b16 %v6496, %v6495
        %v6632 = vpack.c.b16 %v6498, %v6497
        %v6633 = vpack.c.b16 %v6500, %v6499
        %v6634 = vpack.c.b16 %v6502, %v6501
        %v6635 = vpack.c.b16 %v6504, %v6503
        %v6636 = vpack.c.b16 %v6506, %v6505
        %v6637 = vpack.c.b16 %v6508, %v6507
        %v6638 = vpack.c.b16 %v6510, %v6509
        %6767 = vmatprep.subr.bf16.mxu0 0
        %6768 = vmatpush1.bf16.msra.mxu0 %v6511
        %6769 = vmatprep.subr.bf16.mxu0 0
        %6770 = vmatpush1.bf16.msra.mxu0 %v6512
        %6771 = vmatprep.subr.bf16.mxu0 0
        %6772 = vmatpush1.bf16.msra.mxu0 %v6513
        %6773 = vmatprep.subr.bf16.mxu0 0
        %6774 = vmatpush1.bf16.msra.mxu0 %v6514
        %6775 = vmatprep.subr.bf16.mxu0 0
        %6776 = vmatpush1.bf16.msra.mxu0 %v6515
        %6777 = vmatprep.subr.bf16.mxu0 0
        %6778 = vmatpush1.bf16.msra.mxu0 %v6516
        %6779 = vmatprep.subr.bf16.mxu0 0
        %6780 = vmatpush1.bf16.msra.mxu0 %v6517
        %6781 = vmatprep.subr.bf16.mxu0 0
        %6782 = vmatpush1.bf16.msra.mxu0 %v6518
        %6783 = vmatprep.subr.bf16.mxu0 0
        %6784 = vmatpush1.bf16.msra.mxu0 %v6519
        %6785 = vmatprep.subr.bf16.mxu0 0
        %6786 = vmatpush1.bf16.msra.mxu0 %v6520
        %6787 = vmatprep.subr.bf16.mxu0 0
        %6788 = vmatpush1.bf16.msra.mxu0 %v6521
        %6789 = vmatprep.subr.bf16.mxu0 0
        %6790 = vmatpush1.bf16.msra.mxu0 %v6522
        %6791 = vmatprep.subr.bf16.mxu0 0
        %6792 = vmatpush1.bf16.msra.mxu0 %v6523
        %6793 = vmatprep.subr.bf16.mxu0 0
        %6794 = vmatpush1.bf16.msra.mxu0 %v6524
        %6795 = vmatprep.subr.bf16.mxu0 0
        %6796 = vmatpush1.bf16.msra.mxu0 %v6525
        %6797 = vmatprep.subr.bf16.mxu0 0
        %6798 = vmatpush1.bf16.msra.mxu0 %v6526
        %6799 = vmatprep.mubr.bf16.mxu0 %v5721
        %6800 = vmatmul.mubr.bf16.gmra.mrb[0].mxu0 %v5720
        %v6801 = vpop.f32.mrb[0].mxu0
        %v6802 = vadd.f32 %v5997, %v6801
        %v6803 = vpop.f32.mrb[0].mxu0
        %v6804 = vpop.f32.mrb[0].mxu0
        %v6805 = vadd.f32 %v5997, %v6804
        %v6806 = vpop.f32.mrb[0].mxu0
        %6807 = vdwg.mxu0
        %6808 = vmatprep.subr.bf16.mxu0 0
        %6809 = vmatpush1.bf16.msra.mxu0 %v6527
        %6810 = vmatprep.subr.bf16.mxu0 0
        %6811 = vmatpush1.bf16.msra.mxu0 %v6528
        %6812 = vmatprep.subr.bf16.mxu0 0
        %6813 = vmatpush1.bf16.msra.mxu0 %v6529
        %6814 = vmatprep.subr.bf16.mxu0 0
        %6815 = vmatpush1.bf16.msra.mxu0 %v6530
        %6816 = vmatprep.subr.bf16.mxu0 0
        %6817 = vmatpush1.bf16.msra.mxu0 %v6531
        %6818 = vmatprep.subr.bf16.mxu0 0
        %6819 = vmatpush1.bf16.msra.mxu0 %v6532
        %6820 = vmatprep.subr.bf16.mxu0 0
        %6821 = vmatpush1.bf16.msra.mxu0 %v6533
        %6822 = vmatprep.subr.bf16.mxu0 0
        %6823 = vmatpush1.bf16.msra.mxu0 %v6534
        %6824 = vmatprep.subr.bf16.mxu0 0
        %6825 = vmatpush1.bf16.msra.mxu0 %v6535
        %6826 = vmatprep.subr.bf16.mxu0 0
        %6827 = vmatpush1.bf16.msra.mxu0 %v6536
        %6828 = vmatprep.subr.bf16.mxu0 0
        %6829 = vmatpush1.bf16.msra.mxu0 %v6537
        %6830 = vmatprep.subr.bf16.mxu0 0
        %6831 = vmatpush1.bf16.msra.mxu0 %v6538
        %6832 = vmatprep.subr.bf16.mxu0 0
        %6833 = vmatpush1.bf16.msra.mxu0 %v6539
        %6834 = vmatprep.subr.bf16.mxu0 0
        %6835 = vmatpush1.bf16.msra.mxu0 %v6540
        %6836 = vmatprep.subr.bf16.mxu0 0
        %6837 = vmatpush1.bf16.msra.mxu0 %v6541
        %6838 = vmatprep.subr.bf16.mxu0 0
        %6839 = vmatpush1.bf16.msra.mxu0 %v6542
        %6840 = vmatprep.mubr.bf16.mxu0 %v5723
        %6841 = vmatmul.mubr.bf16.gmra.mrb[0].mxu0 %v5722
        %v6842 = vpop.f32.mrb[0].mxu0
        %v6843 = vadd.f32 %v6802, %v6842
        %v6844 = vpop.f32.mrb[0].mxu0
        %v6845 = vpop.f32.mrb[0].mxu0
        %v6846 = vadd.f32 %v6805, %v6845
        %v6847 = vpop.f32.mrb[0].mxu0
        %6848 = vdwg.mxu0
        %6849 = vmatprep.subr.bf16.mxu0 0
        %6850 = vmatpush1.bf16.msra.mxu0 %v6543
        %6851 = vmatprep.subr.bf16.mxu0 0
        %6852 = vmatpush1.bf16.msra.mxu0 %v6544
        %6853 = vmatprep.subr.bf16.mxu0 0
        %6854 = vmatpush1.bf16.msra.mxu0 %v6545
        %6855 = vmatprep.subr.bf16.mxu0 0
        %6856 = vmatpush1.bf16.msra.mxu0 %v6546
        %6857 = vmatprep.subr.bf16.mxu0 0
        %6858 = vmatpush1.bf16.msra.mxu0 %v6547
        %6859 = vmatprep.subr.bf16.mxu0 0
        %6860 = vmatpush1.bf16.msra.mxu0 %v6548
        %6861 = vmatprep.subr.bf16.mxu0 0
        %6862 = vmatpush1.bf16.msra.mxu0 %v6549
        %6863 = vmatprep.subr.bf16.mxu0 0
        %6864 = vmatpush1.bf16.msra.mxu0 %v6550
        %6865 = vmatprep.subr.bf16.mxu0 0
        %6866 = vmatpush1.bf16.msra.mxu0 %v6551
        %6867 = vmatprep.subr.bf16.mxu0 0
        %6868 = vmatpush1.bf16.msra.mxu0 %v6552
        %6869 = vmatprep.subr.bf16.mxu0 0
        %6870 = vmatpush1.bf16.msra.mxu0 %v6553
        %6871 = vmatprep.subr.bf16.mxu0 0
        %6872 = vmatpush1.bf16.msra.mxu0 %v6554
        %6873 = vmatprep.subr.bf16.mxu0 0
        %6874 = vmatpush1.bf16.msra.mxu0 %v6555
        %6875 = vmatprep.subr.bf16.mxu0 0
        %6876 = vmatpush1.bf16.msra.mxu0 %v6556
        %6877 = vmatprep.subr.bf16.mxu0 0
        %6878 = vmatpush1.bf16.msra.mxu0 %v6557
        %6879 = vmatprep.subr.bf16.mxu0 0
        %6880 = vmatpush1.bf16.msra.mxu0 %v6558
        %6881 = vmatprep.mubr.bf16.mxu0 %v5725
        %6882 = vmatmul.mubr.bf16.gmra.mrb[0].mxu0 %v5724
        %v6883 = vpop.f32.mrb[0].mxu0
        %v6884 = vadd.f32 %v6843, %v6883
        %v6885 = vpop.f32.mrb[0].mxu0
        %v6886 = vpop.f32.mrb[0].mxu0
        %v6887 = vadd.f32 %v6846, %v6886
        %v6888 = vpop.f32.mrb[0].mxu0
        %6889 = vdwg.mxu0
        %6890 = vmatprep.subr.bf16.mxu0 0
        %6891 = vmatpush1.bf16.msra.mxu0 %v6559
        %6892 = vmatprep.subr.bf16.mxu0 0
        %6893 = vmatpush1.bf16.msra.mxu0 %v6560
        %6894 = vmatprep.subr.bf16.mxu0 0
        %6895 = vmatpush1.bf16.msra.mxu0 %v6561
        %6896 = vmatprep.subr.bf16.mxu0 0
        %6897 = vmatpush1.bf16.msra.mxu0 %v6562
        %6898 = vmatprep.subr.bf16.mxu0 0
        %6899 = vmatpush1.bf16.msra.mxu0 %v6563
        %6900 = vmatprep.subr.bf16.mxu0 0
        %6901 = vmatpush1.bf16.msra.mxu0 %v6564
        %6902 = vmatprep.subr.bf16.mxu0 0
        %6903 = vmatpush1.bf16.msra.mxu0 %v6565
        %6904 = vmatprep.subr.bf16.mxu0 0
        %6905 = vmatpush1.bf16.msra.mxu0 %v6566
        %6906 = vmatprep.subr.bf16.mxu0 0
        %6907 = vmatpush1.bf16.msra.mxu0 %v6567
        %6908 = vmatprep.subr.bf16.mxu0 0
        %6909 = vmatpush1.bf16.msra.mxu0 %v6568
        %6910 = vmatprep.subr.bf16.mxu0 0
        %6911 = vmatpush1.bf16.msra.mxu0 %v6569
        %6912 = vmatprep.subr.bf16.mxu0 0
        %6913 = vmatpush1.bf16.msra.mxu0 %v6570
        %6914 = vmatprep.subr.bf16.mxu0 0
        %6915 = vmatpush1.bf16.msra.mxu0 %v6571
        %6916 = vmatprep.subr.bf16.mxu0 0
        %6917 = vmatpush1.bf16.msra.mxu0 %v6572
        %6918 = vmatprep.subr.bf16.mxu0 0
        %6919 = vmatpush1.bf16.msra.mxu0 %v6573
        %6920 = vmatprep.subr.bf16.mxu0 0
        %6921 = vmatpush1.bf16.msra.mxu0 %v6574
        %6922 = vmatprep.mubr.bf16.mxu0 %v5727
        %6923 = vmatmul.mubr.bf16.gmra.mrb[0].mxu0 %v5726
        %v6924 = vpop.f32.mrb[0].mxu0
        %v6925 = vadd.f32 %v6884, %v6924
        %v6926 = vpop.f32.mrb[0].mxu0
        %v6927 = vpop.f32.mrb[0].mxu0
        %v6928 = vadd.f32 %v6887, %v6927
        %v6929 = vpop.f32.mrb[0].mxu0
        %6930 = vdwg.mxu0
        %6931 = vmatprep.subr.bf16.mxu0 0
        %6932 = vmatpush1.bf16.msra.mxu0 %v6575
        %6933 = vmatprep.subr.bf16.mxu0 0
        %6934 = vmatpush1.bf16.msra.mxu0 %v6576
        %6935 = vmatprep.subr.bf16.mxu0 0
        %6936 = vmatpush1.bf16.msra.mxu0 %v6577
        %6937 = vmatprep.subr.bf16.mxu0 0
        %6938 = vmatpush1.bf16.msra.mxu0 %v6578
        %6939 = vmatprep.subr.bf16.mxu0 0
        %6940 = vmatpush1.bf16.msra.mxu0 %v6579
        %6941 = vmatprep.subr.bf16.mxu0 0
        %6942 = vmatpush1.bf16.msra.mxu0 %v6580
        %6943 = vmatprep.subr.bf16.mxu0 0
        %6944 = vmatpush1.bf16.msra.mxu0 %v6581
        %6945 = vmatprep.subr.bf16.mxu0 0
        %6946 = vmatpush1.bf16.msra.mxu0 %v6582
        %6947 = vmatprep.subr.bf16.mxu0 0
        %6948 = vmatpush1.bf16.msra.mxu0 %v6583
        %6949 = vmatprep.subr.bf16.mxu0 0
        %6950 = vmatpush1.bf16.msra.mxu0 %v6584
        %6951 = vmatprep.subr.bf16.mxu0 0
        %6952 = vmatpush1.bf16.msra.mxu0 %v6585
        %6953 = vmatprep.subr.bf16.mxu0 0
        %6954 = vmatpush1.bf16.msra.mxu0 %v6586
        %6955 = vmatprep.subr.bf16.mxu0 0
        %6956 = vmatpush1.bf16.msra.mxu0 %v6587
        %6957 = vmatprep.subr.bf16.mxu0 0
        %6958 = vmatpush1.bf16.msra.mxu0 %v6588
        %6959 = vmatprep.subr.bf16.mxu0 0
        %6960 = vmatpush1.bf16.msra.mxu0 %v6589
        %6961 = vmatprep.subr.bf16.mxu0 0
        %6962 = vmatpush1.bf16.msra.mxu0 %v6590
        %6963 = vmatprep.mubr.bf16.mxu0 %v5729
        %6964 = vmatmul.mubr.bf16.gmra.mrb[0].mxu0 %v5728
        %v6965 = vpop.f32.mrb[0].mxu0
        %v6966 = vadd.f32 %v6925, %v6965
        %v6967 = vpop.f32.mrb[0].mxu0
        %v6968 = vpop.f32.mrb[0].mxu0
        %v6969 = vadd.f32 %v6928, %v6968
        %v6970 = vpop.f32.mrb[0].mxu0
        %6971 = vdwg.mxu0
        %6972 = vmatprep.subr.bf16.mxu0 0
        %6973 = vmatpush1.bf16.msra.mxu0 %v6591
        %6974 = vmatprep.subr.bf16.mxu0 0
        %6975 = vmatpush1.bf16.msra.mxu0 %v6592
        %6976 = vmatprep.subr.bf16.mxu0 0
        %6977 = vmatpush1.bf16.msra.mxu0 %v6593
        %6978 = vmatprep.subr.bf16.mxu0 0
        %6979 = vmatpush1.bf16.msra.mxu0 %v6594
        %6980 = vmatprep.subr.bf16.mxu0 0
        %6981 = vmatpush1.bf16.msra.mxu0 %v6595
        %6982 = vmatprep.subr.bf16.mxu0 0
        %6983 = vmatpush1.bf16.msra.mxu0 %v6596
        %6984 = vmatprep.subr.bf16.mxu0 0
        %6985 = vmatpush1.bf16.msra.mxu0 %v6597
        %6986 = vmatprep.subr.bf16.mxu0 0
        %6987 = vmatpush1.bf16.msra.mxu0 %v6598
        %6988 = vmatprep.subr.bf16.mxu0 0
        %6989 = vmatpush1.bf16.msra.mxu0 %v6599
        %6990 = vmatprep.subr.bf16.mxu0 0
        %6991 = vmatpush1.bf16.msra.mxu0 %v6600
        %6992 = vmatprep.subr.bf16.mxu0 0
        %6993 = vmatpush1.bf16.msra.mxu0 %v6601
        %6994 = vmatprep.subr.bf16.mxu0 0
        %6995 = vmatpush1.bf16.msra.mxu0 %v6602
        %6996 = vmatprep.subr.bf16.mxu0 0
        %6997 = vmatpush1.bf16.msra.mxu0 %v6603
        %6998 = vmatprep.subr.bf16.mxu0 0
        %6999 = vmatpush1.bf16.msra.mxu0 %v6604
        %7000 = vmatprep.subr.bf16.mxu0 0
        %7001 = vmatpush1.bf16.msra.mxu0 %v6605
        %7002 = vmatprep.subr.bf16.mxu0 0
        %7003 = vmatpush1.bf16.msra.mxu0 %v6606
        %7004 = vmatprep.mubr.bf16.mxu0 %v5731
        %7005 = vmatmul.mubr.bf16.gmra.mrb[0].mxu0 %v5730
        %v7006 = vpop.f32.mrb[0].mxu0
        %v7007 = vadd.f32 %v6966, %v7006
        %v7008 = vpop.f32.mrb[0].mxu0
        %v7009 = vpop.f32.mrb[0].mxu0
        %v7010 = vadd.f32 %v6969, %v7009
        %v7011 = vpop.f32.mrb[0].mxu0
        %7012 = vdwg.mxu0
        %7013 = vmatprep.subr.bf16.mxu0 0
        %7014 = vmatpush1.bf16.msra.mxu0 %v6607
        %7015 = vmatprep.subr.bf16.mxu0 0
        %7016 = vmatpush1.bf16.msra.mxu0 %v6608
        %7017 = vmatprep.subr.bf16.mxu0 0
        %7018 = vmatpush1.bf16.msra.mxu0 %v6609
        %7019 = vmatprep.subr.bf16.mxu0 0
        %7020 = vmatpush1.bf16.msra.mxu0 %v6610
        %7021 = vmatprep.subr.bf16.mxu0 0
        %7022 = vmatpush1.bf16.msra.mxu0 %v6611
        %7023 = vmatprep.subr.bf16.mxu0 0
        %7024 = vmatpush1.bf16.msra.mxu0 %v6612
        %7025 = vmatprep.subr.bf16.mxu0 0
        %7026 = vmatpush1.bf16.msra.mxu0 %v6613
        %7027 = vmatprep.subr.bf16.mxu0 0
        %7028 = vmatpush1.bf16.msra.mxu0 %v6614
        %7029 = vmatprep.subr.bf16.mxu0 0
        %7030 = vmatpush1.bf16.msra.mxu0 %v6615
        %7031 = vmatprep.subr.bf16.mxu0 0
        %7032 = vmatpush1.bf16.msra.mxu0 %v6616
        %7033 = vmatprep.subr.bf16.mxu0 0
        %7034 = vmatpush1.bf16.msra.mxu0 %v6617
        %7035 = vmatprep.subr.bf16.mxu0 0
        %7036 = vmatpush1.bf16.msra.mxu0 %v6618
        %7037 = vmatprep.subr.bf16.mxu0 0
        %7038 = vmatpush1.bf16.msra.mxu0 %v6619
        %7039 = vmatprep.subr.bf16.mxu0 0
        %7040 = vmatpush1.bf16.msra.mxu0 %v6620
        %7041 = vmatprep.subr.bf16.mxu0 0
        %7042 = vmatpush1.bf16.msra.mxu0 %v6621
        %7043 = vmatprep.subr.bf16.mxu0 0
        %7044 = vmatpush1.bf16.msra.mxu0 %v6622
        %7045 = vmatprep.mubr.bf16.mxu0 %v5733
        %7046 = vmatmul.mubr.bf16.gmra.mrb[0].mxu0 %v5732
        %v7047 = vpop.f32.mrb[0].mxu0
        %v7048 = vadd.f32 %v7007, %v7047
        %v7049 = vpop.f32.mrb[0].mxu0
        %v7050 = vpop.f32.mrb[0].mxu0
        %v7051 = vadd.f32 %v7010, %v7050
        %v7052 = vpop.f32.mrb[0].mxu0
        %7053 = vdwg.mxu0
        %7054 = vmatprep.subr.bf16.mxu0 0
        %7055 = vmatpush1.bf16.msra.mxu0 %v6623
        %7056 = vmatprep.subr.bf16.mxu0 0
        %7057 = vmatpush1.bf16.msra.mxu0 %v6624
        %7058 = vmatprep.subr.bf16.mxu0 0
        %7059 = vmatpush1.bf16.msra.mxu0 %v6625
        %7060 = vmatprep.subr.bf16.mxu0 0
        %7061 = vmatpush1.bf16.msra.mxu0 %v6626
        %7062 = vmatprep.subr.bf16.mxu0 0
        %7063 = vmatpush1.bf16.msra.mxu0 %v6627
        %7064 = vmatprep.subr.bf16.mxu0 0
        %7065 = vmatpush1.bf16.msra.mxu0 %v6628
        %7066 = vmatprep.subr.bf16.mxu0 0
        %7067 = vmatpush1.bf16.msra.mxu0 %v6629
        %7068 = vmatprep.subr.bf16.mxu0 0
        %7069 = vmatpush1.bf16.msra.mxu0 %v6630
        %7070 = vmatprep.subr.bf16.mxu0 0
        %7071 = vmatpush1.bf16.msra.mxu0 %v6631
        %7072 = vmatprep.subr.bf16.mxu0 0
        %7073 = vmatpush1.bf16.msra.mxu0 %v6632
        %7074 = vmatprep.subr.bf16.mxu0 0
        %7075 = vmatpush1.bf16.msra.mxu0 %v6633
        %7076 = vmatprep.subr.bf16.mxu0 0
        %7077 = vmatpush1.bf16.msra.mxu0 %v6634
        %7078 = vmatprep.subr.bf16.mxu0 0
        %7079 = vmatpush1.bf16.msra.mxu0 %v6635
        %7080 = vmatprep.subr.bf16.mxu0 0
        %7081 = vmatpush1.bf16.msra.mxu0 %v6636
        %7082 = vmatprep.subr.bf16.mxu0 0
        %7083 = vmatpush1.bf16.msra.mxu0 %v6637
        %7084 = vmatprep.subr.bf16.mxu0 0
        %7085 = vmatpush1.bf16.msra.mxu0 %v6638
        %7086 = vmatprep.mubr.bf16.mxu0 %v5735
        %7087 = vmatmul.mubr.bf16.gmra.mrb[0].mxu0 %v5734
        %v7088 = vpop.f32.mrb[0].mxu0
        %v7089 = vadd.f32 %v7048, %v7088
        %v7090 = vpop.f32.mrb[0].mxu0
        %v7091 = vpop.f32.mrb[0].mxu0
        %v7092 = vadd.f32 %v7051, %v7091
        %v7093 = vpop.f32.mrb[0].mxu0
        %7094 = vdwg.mxu0
        %v7095 = vadd.f32 %v4489, %v7089
        %v7096 = vadd.f32 %v4490, %v7092
        %v7097 = vld [vmem:[%s1138] sm:$0x1]
        %v7098 = vld [vmem:[%s1146] sm:$0x1]
        %7099 = vadd.xlane.f32.xlu0 %v7095
        %v7100 = vpop.xlane.xlu0 %7099
        %7101 = vadd.xlane.f32.xlu0 %v7096
        %v7102 = vpop.xlane.xlu0 %7101
        %v7103 = vmul.f32 %v7100, %v4456
        %v7104 = vmul.f32 %v7102, %v4456
        %v7105 = vsub.f32 %v7095, %v7103
        %v7106 = vsub.f32 %v7096, %v7104
        %v7107 = vmul.f32 %v7105, %v7105
        %v7108 = vmul.f32 %v7106, %v7106
        %7109 = vadd.xlane.f32.xlu0 %v7107
        %v7110 = vpop.xlane.xlu0 %7109
        %7111 = vadd.xlane.f32.xlu0 %v7108
        %v7112 = vpop.xlane.xlu0 %7111
        %v7113 = vmul.f32 %v7110, %v4456
        %v7114 = vmul.f32 %v7112, %v4456
        %v7115 = vadd.f32 %v7113, 1e-05
        %v7116 = vadd.f32 %v7114, 1e-05
        %v7117 = vrsqrt.pop %v7115
        %v7118 = vrsqrt.pop %v7116
        %v7119 = vmul.f32 %v7105, %v7117
        %v7120 = vmul.f32 %v7106, %v7118
        %v7122 = vlaneseq
        %v7123 = vshrl.u32 %v7122, 7
        %v7124 = vsub.s32 0, %v7123
        %v7125 = vrot.slane %v7097, %v7124
        %v7127 = vmul.f32 %v7119, %v7125
        %v7128 = vmul.f32 %v7120, %v7125
        %v7130 = vlaneseq
        %v7131 = vshrl.u32 %v7130, 7
        %v7132 = vsub.s32 0, %v7131
        %v7133 = vrot.slane %v7098, %v7132
        %v7135 = vadd.f32 %v7127, %v7133
        %v7136 = vadd.f32 %v7128, %v7133
        %7137 = vst [vmem:[#allocation2] sm:$0xff] %v7135
        %7138 = vst [vmem:[#allocation2 + $0x8] sm:$0xff] %v7136
        %p7139 = scmp.eq.s32.totalorder %s45, 3
        // Predicated region
        $region217: #{mtsp_forward.1} parent=123 // pred_check
          %p7140 = pneg %p7139
        $region218: #{mtsp_forward.1} parent=123 // pred_check_branch
          %7142 = sbr.rel (%p7140) target = $region220
        $region219: #{mtsp_forward.1} parent=123 // pred_region
          %v7143 = vpack.c.bf16 %v7136, %v7135
          %v7144 = vld [vmem:[#allocation20] sm:$0xf]
          %v7145 = vld [vmem:[#allocation20 + $0x4] sm:$0xf]
          %v7146 = vld [vmem:[#allocation20 + $0x8] sm:$0xf]
          %v7147 = vld [vmem:[#allocation20 + $0xc] sm:$0xf]
          %v7148 = vld [vmem:[#allocation20 + $0x10] sm:$0xf]
          %v7149 = vld [vmem:[#allocation20 + $0x14] sm:$0xf]
          %v7150 = vld [vmem:[#allocation20 + $0x18] sm:$0xf]
          %v7151 = vld [vmem:[#allocation20 + $0x1c] sm:$0xf]
          %v7152 = vld [vmem:[#allocation20 + $0x20] sm:$0xf]
          %v7153 = vld [vmem:[#allocation20 + $0x24] sm:$0xf]
          %v7154 = vld [vmem:[#allocation20 + $0x28] sm:$0xf]
          %v7155 = vld [vmem:[#allocation20 + $0x2c] sm:$0xf]
          %v7156 = vld [vmem:[#allocation20 + $0x30] sm:$0xf]
          %v7157 = vld [vmem:[#allocation20 + $0x34] sm:$0xf]
          %v7158 = vld [vmem:[#allocation20 + $0x38] sm:$0xf]
          %v7159 = vld [vmem:[#allocation20 + $0x3c] sm:$0xf]
          %v7160 = vld [vmem:[#allocation21] sm:$0x1]
          %v7162 = vlaneseq
          %v7163 = vshrl.u32 %v7162, 7
          %v7164 = vsub.s32 0, %v7163
          %v7165 = vrot.slane %v7160, %v7164
          %v7183 = vunpack.c.l.b16 %v7144
          %v7184 = vunpack.c.l.b16 %v7145
          %v7185 = vunpack.c.l.b16 %v7146
          %v7186 = vunpack.c.l.b16 %v7147
          %v7187 = vunpack.c.l.b16 %v7148
          %v7188 = vunpack.c.l.b16 %v7149
          %v7189 = vunpack.c.l.b16 %v7150
          %v7190 = vunpack.c.l.b16 %v7151
          %v7191 = vunpack.c.l.b16 %v7152
          %v7192 = vunpack.c.l.b16 %v7153
          %v7193 = vunpack.c.l.b16 %v7154
          %v7194 = vunpack.c.l.b16 %v7155
          %v7195 = vunpack.c.l.b16 %v7156
          %v7196 = vunpack.c.l.b16 %v7157
          %v7197 = vunpack.c.l.b16 %v7158
          %v7198 = vunpack.c.l.b16 %v7159
          %v7199 = vpack.c.b16 %v7184, %v7183
          %v7200 = vpack.c.b16 %v7186, %v7185
          %v7201 = vpack.c.b16 %v7188, %v7187
          %v7202 = vpack.c.b16 %v7190, %v7189
          %v7203 = vpack.c.b16 %v7192, %v7191
          %v7204 = vpack.c.b16 %v7194, %v7193
          %v7205 = vpack.c.b16 %v7196, %v7195
          %v7206 = vpack.c.b16 %v7198, %v7197
          %7215 = vmatprep.subr.bf16.mxu0 0
          %7216 = vmatpush1.bf16.msra.mxu0 %v7199
          %7217 = vmatprep.subr.bf16.mxu0 0
          %7218 = vmatpush1.bf16.msra.mxu0 %v7200
          %7219 = vmatprep.subr.bf16.mxu0 0
          %7220 = vmatpush1.bf16.msra.mxu0 %v7201
          %7221 = vmatprep.subr.bf16.mxu0 0
          %7222 = vmatpush1.bf16.msra.mxu0 %v7202
          %7223 = vmatprep.subr.bf16.mxu0 0
          %7224 = vmatpush1.bf16.msra.mxu0 %v7203
          %7225 = vmatprep.subr.bf16.mxu0 0
          %7226 = vmatpush1.bf16.msra.mxu0 %v7204
          %7227 = vmatprep.subr.bf16.mxu0 0
          %7228 = vmatpush1.bf16.msra.mxu0 %v7205
          %7229 = vmatprep.subr.bf16.mxu0 0
          %7230 = vmatpush1.bf16.msra.mxu0 %v7206
          %7231 = vmatprep.subr.bf16.mxu0 0
          %7232 = vmatpush1.bf16.msra.mxu0 0
          %7233 = vmatprep.subr.bf16.mxu0 0
          %7234 = vmatpush1.bf16.msra.mxu0 0
          %7235 = vmatprep.subr.bf16.mxu0 0
          %7236 = vmatpush1.bf16.msra.mxu0 0
          %7237 = vmatprep.subr.bf16.mxu0 0
          %7238 = vmatpush1.bf16.msra.mxu0 0
          %7239 = vmatprep.subr.bf16.mxu0 0
          %7240 = vmatpush1.bf16.msra.mxu0 0
          %7241 = vmatprep.subr.bf16.mxu0 0
          %7242 = vmatpush1.bf16.msra.mxu0 0
          %7243 = vmatprep.subr.bf16.mxu0 0
          %7244 = vmatpush1.bf16.msra.mxu0 0
          %7245 = vmatprep.subr.bf16.mxu0 0
          %7246 = vmatpush1.bf16.msra.mxu0 0
          %7247 = vmatprep.mubr.bf16.mxu0 0
          %7248 = vmatmul.mubr.bf16.gmra.mrb[0].mxu0 %v7143
          %v7249 = vpop.f32.mrb[0].mxu0
          %v7250 = vadd.f32 %v7165, %v7249
          %v7251 = vpop.f32.mrb[0].mxu0
          %v7252 = vpop.f32.mrb[0].mxu0
          %v7253 = vadd.f32 %v7165, %v7252
          %v7254 = vpop.f32.mrb[0].mxu0
          %7255 = vdwg.mxu0
          %v7256 = vld [vmem:[#allocation23] sm:$0x1]
          %v7257 = vld [vmem:[#allocation24] sm:$0x1]
          %7258 = vadd.xlane.f32.xlu0 %v7250
          %v7259 = vpop.xlane.xlu0 %7258
          %7260 = vadd.xlane.f32.xlu0 %v7253
          %v7261 = vpop.xlane.xlu0 %7260
          %v7262 = vmul.f32 %v7259, %v4456
          %v7263 = vmul.f32 %v7261, %v4456
          %v7264 = vsub.f32 %v7250, %v7262
          %v7265 = vsub.f32 %v7253, %v7263
          %v7266 = vmul.f32 %v7264, %v7264
          %v7267 = vmul.f32 %v7265, %v7265
          %7268 = vadd.xlane.f32.xlu0 %v7266
          %v7269 = vpop.xlane.xlu0 %7268
          %7270 = vadd.xlane.f32.xlu0 %v7267
          %v7271 = vpop.xlane.xlu0 %7270
          %v7272 = vmul.f32 %v7269, %v4456
          %v7273 = vmul.f32 %v7271, %v4456
          %v7274 = vadd.f32 %v7272, 1e-05
          %v7275 = vadd.f32 %v7273, 1e-05
          %v7276 = vrsqrt.pop %v7274
          %v7277 = vrsqrt.pop %v7275
          %v7278 = vmul.f32 %v7264, %v7276
          %v7279 = vmul.f32 %v7265, %v7277
          %v7281 = vlaneseq
          %v7282 = vshrl.u32 %v7281, 7
          %v7283 = vsub.s32 0, %v7282
          %v7284 = vrot.slane %v7256, %v7283
          %v7286 = vmul.f32 %v7278, %v7284
          %v7287 = vmul.f32 %v7279, %v7284
          %v7289 = vlaneseq
          %v7290 = vshrl.u32 %v7289, 7
          %v7291 = vsub.s32 0, %v7290
          %v7292 = vrot.slane %v7257, %v7291
          %v7294 = vadd.f32 %v7286, %v7292
          %v7295 = vadd.f32 %v7287, %v7292
          %v7296 = vmax.f32 %v7294, 0.0
          %v7297 = vmax.f32 %v7295, 0.0
          %v7298 = vpack.c.bf16 %v7297, %v7296
          %v7299 = vld [vmem:[%s20] sm:$0xf]
          %v7300 = vld [vmem:[%s20 + $0x4] sm:$0xf]
          %v7301 = vld [vmem:[%s20 + $0x8] sm:$0xf]
          %v7302 = vld [vmem:[%s20 + $0xc] sm:$0xf]
          %v7303 = vld [vmem:[%s20 + $0x10] sm:$0xf]
          %v7304 = vld [vmem:[%s20 + $0x14] sm:$0xf]
          %v7305 = vld [vmem:[%s20 + $0x18] sm:$0xf]
          %v7306 = vld [vmem:[%s20 + $0x1c] sm:$0xf]
          %v7307 = vld [vmem:[%s20 + $0x20] sm:$0xf]
          %v7308 = vld [vmem:[%s20 + $0x24] sm:$0xf]
          %v7309 = vld [vmem:[%s20 + $0x28] sm:$0xf]
          %v7310 = vld [vmem:[%s20 + $0x2c] sm:$0xf]
          %v7311 = vld [vmem:[%s20 + $0x30] sm:$0xf]
          %v7312 = vld [vmem:[%s20 + $0x34] sm:$0xf]
          %v7313 = vld [vmem:[%s20 + $0x38] sm:$0xf]
          %v7314 = vld [vmem:[%s20 + $0x3c] sm:$0xf]
          %v7315 = vld [vmem:[#allocation26] sm:$0x1]
          %v7317 = vlaneseq
          %v7318 = vshrl.u32 %v7317, 7
          %v7319 = vsub.s32 0, %v7318
          %v7320 = vrot.slane %v7315, %v7319
          %v7338 = vunpack.c.l.b16 %v7299
          %v7339 = vunpack.c.l.b16 %v7300
          %v7340 = vunpack.c.l.b16 %v7301
          %v7341 = vunpack.c.l.b16 %v7302
          %v7342 = vunpack.c.l.b16 %v7303
          %v7343 = vunpack.c.l.b16 %v7304
          %v7344 = vunpack.c.l.b16 %v7305
          %v7345 = vunpack.c.l.b16 %v7306
          %v7346 = vunpack.c.l.b16 %v7307
          %v7347 = vunpack.c.l.b16 %v7308
          %v7348 = vunpack.c.l.b16 %v7309
          %v7349 = vunpack.c.l.b16 %v7310
          %v7350 = vunpack.c.l.b16 %v7311
          %v7351 = vunpack.c.l.b16 %v7312
          %v7352 = vunpack.c.l.b16 %v7313
          %v7353 = vunpack.c.l.b16 %v7314
          %v7354 = vpack.c.b16 %v7339, %v7338
          %v7355 = vpack.c.b16 %v7341, %v7340
          %v7356 = vpack.c.b16 %v7343, %v7342
          %v7357 = vpack.c.b16 %v7345, %v7344
          %v7358 = vpack.c.b16 %v7347, %v7346
          %v7359 = vpack.c.b16 %v7349, %v7348
          %v7360 = vpack.c.b16 %v7351, %v7350
          %v7361 = vpack.c.b16 %v7353, %v7352
          %7370 = vmatprep.subr.bf16.mxu0 0
          %7371 = vmatpush1.bf16.msra.mxu0 %v7354
          %7372 = vmatprep.subr.bf16.mxu0 0
          %7373 = vmatpush1.bf16.msra.mxu0 %v7355
          %7374 = vmatprep.subr.bf16.mxu0 0
          %7375 = vmatpush1.bf16.msra.mxu0 %v7356
          %7376 = vmatprep.subr.bf16.mxu0 0
          %7377 = vmatpush1.bf16.msra.mxu0 %v7357
          %7378 = vmatprep.subr.bf16.mxu0 0
          %7379 = vmatpush1.bf16.msra.mxu0 %v7358
          %7380 = vmatprep.subr.bf16.mxu0 0
          %7381 = vmatpush1.bf16.msra.mxu0 %v7359
          %7382 = vmatprep.subr.bf16.mxu0 0
          %7383 = vmatpush1.bf16.msra.mxu0 %v7360
          %7384 = vmatprep.subr.bf16.mxu0 0
          %7385 = vmatpush1.bf16.msra.mxu0 %v7361
          %7386 = vmatprep.subr.bf16.mxu0 0
          %7387 = vmatpush1.bf16.msra.mxu0 0
          %7388 = vmatprep.subr.bf16.mxu0 0
          %7389 = vmatpush1.bf16.msra.mxu0 0
          %7390 = vmatprep.subr.bf16.mxu0 0
          %7391 = vmatpush1.bf16.msra.mxu0 0
          %7392 = vmatprep.subr.bf16.mxu0 0
          %7393 = vmatpush1.bf16.msra.mxu0 0
          %7394 = vmatprep.subr.bf16.mxu0 0
          %7395 = vmatpush1.bf16.msra.mxu0 0
          %7396 = vmatprep.subr.bf16.mxu0 0
          %7397 = vmatpush1.bf16.msra.mxu0 0
          %7398 = vmatprep.subr.bf16.mxu0 0
          %7399 = vmatpush1.bf16.msra.mxu0 0
          %7400 = vmatprep.subr.bf16.mxu0 0
          %7401 = vmatpush1.bf16.msra.mxu0 0
          %7402 = vmatprep.mubr.bf16.mxu0 0
          %7403 = vmatmul.mubr.bf16.gmra.mrb[0].mxu0 %v7298
          %v7404 = vpop.f32.mrb[0].mxu0
          %v7405 = vadd.f32 %v7320, %v7404
          %v7406 = vpop.f32.mrb[0].mxu0
          %v7407 = vpop.f32.mrb[0].mxu0
          %v7408 = vadd.f32 %v7320, %v7407
          %v7409 = vpop.f32.mrb[0].mxu0
          %7410 = vdwg.mxu0
          %v7411 = vld [vmem:[#allocation27] sm:$0x1]
          %v7412 = vld [vmem:[#allocation29] sm:$0x1]
          %v7413 = vsel %vm4323, %v7405, 0.0
          %7414 = vadd.xlane.f32.xlu0 %v7413
          %v7415 = vpop.xlane.xlu0 %7414
          %v7416 = vsel %vm4323, %v7408, 0.0
          %7417 = vadd.xlane.f32.xlu0 %v7416
          %v7418 = vpop.xlane.xlu0 %7417
          %v7419 = vrcp.pop 64.0
          %v7420 = vmul.f32 %v7415, %v7419
          %v7421 = vmul.f32 %v7418, %v7419
          %v7422 = vsub.f32 %v7405, %v7420
          %v7423 = vsub.f32 %v7408, %v7421
          %v7424 = vmul.f32 %v7422, %v7422
          %v7425 = vmul.f32 %v7423, %v7423
          %v7426 = vsel %vm4323, %v7424, 0.0
          %7427 = vadd.xlane.f32.xlu0 %v7426
          %v7428 = vpop.xlane.xlu0 %7427
          %v7429 = vsel %vm4323, %v7425, 0.0
          %7430 = vadd.xlane.f32.xlu0 %v7429
          %v7431 = vpop.xlane.xlu0 %7430
          %v7432 = vmul.f32 %v7428, %v7419
          %v7433 = vmul.f32 %v7431, %v7419
          %v7434 = vadd.f32 %v7432, 1e-05
          %v7435 = vadd.f32 %v7433, 1e-05
          %v7436 = vrsqrt.pop %v7434
          %v7437 = vrsqrt.pop %v7435
          %v7438 = vmul.f32 %v7422, %v7436
          %v7439 = vmul.f32 %v7423, %v7437
          %v7441 = vlaneseq
          %v7442 = vshrl.u32 %v7441, 7
          %v7443 = vsub.s32 0, %v7442
          %v7444 = vrot.slane %v7411, %v7443
          %v7446 = vmul.f32 %v7438, %v7444
          %v7447 = vmul.f32 %v7439, %v7444
          %v7449 = vlaneseq
          %v7450 = vshrl.u32 %v7449, 7
          %v7451 = vsub.s32 0, %v7450
          %v7452 = vrot.slane %v7412, %v7451
          %v7454 = vadd.f32 %v7446, %v7452
          %v7455 = vadd.f32 %v7447, %v7452
          %v7456 = vmax.f32 %v7454, 0.0
          %v7457 = vmax.f32 %v7455, 0.0
          %v7458 = vld [vmem:[#allocation30] sm:$0x1]
          %v7460 = vlaneseq
          %v7461 = vshrl.u32 %v7460, 7
          %v7462 = vsub.s32 0, %v7461
          %v7463 = vrot.slane %v7458, %v7462
          %v7465 = vmul.f32 %v7456, %v7463
          %v7466 = vmul.f32 %v7457, %v7463
          %v7467 = vsel %vm4323, %v7465, 0.0
          %7468 = vadd.xlane.f32.xlu0 %v7467
          %v7469 = vpop.xlane.xlu0 %7468
          %v7470 = vsel %vm4323, %v7466, 0.0
          %7471 = vadd.xlane.f32.xlu0 %v7470
          %v7472 = vpop.xlane.xlu0 %7471
          %v7473 = vld [vmem:[#allocation3] sm:$0x1]
          %v7475 = vlaneseq
          %v7476 = vshrl.u32 %v7475, 7
          %v7477 = vsub.s32 0, %v7476
          %v7478 = vrot.slane %v7473, %v7477
          %v7480 = vadd.f32 %v7469, %v7478
          %v7481 = vadd.f32 %v7472, %v7478
          %vm7482 = vcmask 7168
          %v7483 = vsel %vm7482, %v7480, -inf
          %v7484 = vrot.slane %v7483, 4
          %v7485 = vmax.f32 %v7483, %v7484
          %v7486 = vrot.slane %v7485, 2
          %v7487 = vmax.f32 %v7485, %v7486
          %v7488 = vrot.slane %v7487, 1
          %v7489 = vmax.f32 %v7487, %v7488
          %v7490 = vsel %vm7482, %v7481, -inf
          %v7491 = vrot.slane %v7490, 4
          %v7492 = vmax.f32 %v7490, %v7491
          %v7493 = vrot.slane %v7492, 2
          %v7494 = vmax.f32 %v7492, %v7493
          %v7495 = vrot.slane %v7494, 1
          %v7496 = vmax.f32 %v7494, %v7495
          %v7497 = vsub.f32 %v7480, %v7489
          %v7498 = vsub.f32 %v7481, %v7496
          %v7499 = vmul.f32 %v7497, 1.442695
          %v7500 = vpow.pop %v7499
          %v7501 = vmul.f32 %v7498, 1.442695
          %v7502 = vpow.pop %v7501
          %v7503 = vsel %vm7482, %v7500, 0.0
          %v7504 = vrot.slane %v7503, 4
          %v7505 = vadd.f32 %v7503, %v7504
          %v7506 = vrot.slane %v7505, 2
          %v7507 = vadd.f32 %v7505, %v7506
          %v7508 = vrot.slane %v7507, 1
          %v7509 = vadd.f32 %v7507, %v7508
          %v7510 = vsel %vm7482, %v7502, 0.0
          %v7511 = vrot.slane %v7510, 4
          %v7512 = vadd.f32 %v7510, %v7511
          %v7513 = vrot.slane %v7512, 2
          %v7514 = vadd.f32 %v7512, %v7513
          %v7515 = vrot.slane %v7514, 1
          %v7516 = vadd.f32 %v7514, %v7515
          %v7517 = vrcp.pop %v7509
          %v7518 = vmul.f32 %v7500, %v7517
          %v7519 = vrcp.pop %v7516
          %v7520 = vmul.f32 %v7502, %v7519
          %7521 = vst.msk [vmem:[%s26] sm:$0xff] %vm7482, %v7518
          %7522 = vst.msk [vmem:[%s26 + $0x8] sm:$0xff] %vm7482, %v7520
        $region220: #{mtsp_forward.1} parent=123 // pred_fallthru
          _
        // Predicated region
        $region221: #{mtsp_forward.1} parent=123 // pred_check
          %p7523 = pneg %p664
        $region222: #{mtsp_forward.1} parent=123 // pred_check_branch
          %7525 = sbr.rel (%p7523) target = $region224
        $region223: #{mtsp_forward.1} parent=123 // pred_region
          _
        $region224: #{mtsp_forward.1} parent=123 // pred_fallthru
          _
        // Predicated region
        $region225: #{mtsp_forward.1} parent=123 // pred_check
          %p7526 = pneg %p664
        $region226: #{mtsp_forward.1} parent=123 // pred_check_branch
          %7528 = sbr.rel (%p7526) target = $region228
        $region227: #{mtsp_forward.1} parent=123 // pred_region
          _
        $region228: #{mtsp_forward.1} parent=123 // pred_fallthru
          _
      $region124: #{mtsp_forward.1} parent=5 // pred_fallthru
        _
      %p7529 = scmp.le.s32.totalorder 2, %s40
      // Predicated region
      $region229: #{mtsp_forward.1} parent=5 // pred_check
        %p7530 = pneg %p7529
      $region230: #{mtsp_forward.1} parent=5 // pred_check_branch
        %7532 = sbr.rel (%p7530) target = $region232
      $region231: #{mtsp_forward.1} parent=5 // pred_region
        %s7533 = ssub.s32 %s40, 2
      $region232: #{mtsp_forward.1} parent=5 // pred_fallthru
        _
    $region6: #{mtsp_forward.1} parent=1 // loop_footer
      %s44 = sadd.s32 1, %s40
    $region7: #{mtsp_forward.1} parent=1 // loop_footer_branch
      %39 = sbr.rel target = $region3
    $region8: #{mtsp_forward.1} parent=1 // loop_exit
      _
    %7534 = vsyncpa [#allocation5], 1
    %s7535 = scalar_lea.sflag [#allocation5], 1
    %7536 = vsyncpa %s7535, 1
    %7537 = vsyncpa [#allocation7], 1
    %7538 = vsyncpa [#allocation22], 1
    %7539 = vsyncpa [#allocation25], 1
    %7540 = vsyncpa [#allocation28], 1
    %7541 = vsyncpa [#allocation31], 1

</llo_original>
